<compile_context>
chip_gen: v5e
topology: v5e:2x2
jax: 0.10.0
libtpu: 0.0.40
codegen_flags: <defaults>
</compile_context>

<pallas_src>
import functools

import jax
import jax.numpy as jnp
from jax import lax
from jax.experimental import pallas as pl
from jax.experimental.pallas import tpu as pltpu

EPS = 1e-5


def _fused_concat_block_kernel(x_ref, e_ref, w1_ref, w2_ref, o_ref,
                               pad1_ref, pad2_ref, *, taps_per_group):
    """One batch element: concat -> (3x3 conv + InstanceNorm + ReLU) x 2.

    x_ref:    (1, H, W, Cx)       VMEM   decoder features (f32 or bf16)
    e_ref:    (1, H, W, Ce)       VMEM   encoder (skip) features
    w1_ref:   (9*(Cx+Ce), Cout)   VMEM   stage-1 weights, im2col layout, bf16
    w2_ref:   (9*Cout, Cout)      VMEM   stage-2 weights, im2col layout, bf16
    o_ref:    (1, H*W, Cout)      VMEM   output slab (reshaped to NHWC outside)
    pad1_ref: (H+2, W+2, Cx+Ce)   VMEM scratch (bf16), zero-padded concat input
    pad2_ref: (H+2, W+2, Cout)    VMEM scratch (bf16), zero-padded stage-1 out
    """
    _, H, W, cx = x_ref.shape
    ce = e_ref.shape[3]
    cin = cx + ce
    cout = w2_ref.shape[1]

    # 'same' padding: keep a 1-pixel zero border in the persistent scratch
    # tiles.  Only the O(perimeter) border is cleared each step (the O(area)
    # interior is fully overwritten below); this does not rely on grid
    # iteration order, so it is safe if the parallel axis is core-split.
    def zero_border(ref):
        hp, wp, c = ref.shape
        row = jnp.zeros((1, wp, c), ref.dtype)
        col = jnp.zeros((hp, 1, c), ref.dtype)
        ref[0:1, :, :] = row
        ref[hp - 1:hp, :, :] = row
        ref[:, 0:1, :] = col
        ref[:, wp - 1:wp, :] = col

    zero_border(pad1_ref)
    zero_border(pad2_ref)

    # Channel concat folded into the kernel (never materialized in HBM).
    # Lane-aligned channel counts -> two direct slice stores (no temporary);
    # small/unaligned channel counts -> one in-register lane concat (cheaper
    # than masked / shifted stores).
    if cx % 128 == 0 and ce % 128 == 0:
        pad1_ref[1:H + 1, 1:W + 1, 0:cx] = x_ref[0].astype(pad1_ref.dtype)
        pad1_ref[1:H + 1, 1:W + 1, cx:cin] = e_ref[0].astype(pad1_ref.dtype)
    else:
        cat = jnp.concatenate([x_ref[0], e_ref[0]], axis=-1)      # (H, W, Cin)
        pad1_ref[1:H + 1, 1:W + 1, :] = cat.astype(pad1_ref.dtype)

    inv_n = 1.0 / float(H * W)

    def conv_in_relu(pad_ref, w_ref, c):
        # 3x3 conv as an accumulation over tap groups (no (H*W, 9*C) slab):
        #   taps_per_group=3 -> 3 MXU dots with K=3*C (v6e/v7x, 256-deep MXU)
        #   taps_per_group=1 -> 9 MXU dots with K=C   (v5e, 128-deep MXU)
        # Operands are bf16 (taps read straight from the bf16 pad scratch),
        # accumulation in f32 via preferred_element_type on every partial dot.
        acc = None
        for t0 in range(0, 9, taps_per_group):
            taps = [
                pad_ref[(t // 3):(t // 3) + H, (t % 3):(t % 3) + W, :]
                .reshape(H * W, c)
                for t in range(t0, t0 + taps_per_group)
            ]
            grp = taps[0] if len(taps) == 1 else jnp.concatenate(taps, axis=-1)
            w_grp = w_ref[t0 * c:(t0 + taps_per_group) * c, :]
            part = jnp.dot(grp, w_grp, preferred_element_type=jnp.float32)
            acc = part if acc is None else acc + part             # (H*W, Cout)

        # InstanceNorm2d (biased variance over H*W, eps=1e-5, no affine) +
        # ReLU.  Single-pass statistics: sum and sum-of-squares together,
        # variance clamped at zero to guard against f32 cancellation.
        s = jnp.sum(acc, axis=0, keepdims=True)
        ss = jnp.sum(acc * acc, axis=0, keepdims=True)
        mean = s * inv_n
        var = jnp.maximum(ss * inv_n - mean * mean, 0.0)
        return jnp.maximum((acc - mean) * lax.rsqrt(var + EPS), 0.0)

    h1 = conv_in_relu(pad1_ref, w1_ref, cin)                  # (H*W, Cout) f32
    # Stage-1 activation stays in VMEM (bf16 cast on the interior store).
    pad2_ref[1:H + 1, 1:W + 1, :] = h1.reshape(H, W, cout).astype(pad2_ref.dtype)
    h2 = conv_in_relu(pad2_ref, w2_ref, cout)                 # (H*W, Cout) f32

    o_ref[0] = h2.astype(o_ref.dtype)


def _vmem_limit_bytes():
    """Generation-aware VMEM limit: physical capacity minus headroom."""
    caps = []
    try:
        info_cap = getattr(pltpu.get_tpu_info(), "vmem_capacity_bytes", None)
        if info_cap:
            caps.append(int(info_cap))
    except Exception:
        pass
    try:
        kind = jax.devices()[0].device_kind.lower()
        caps.append((64 << 20) if "v7" in kind else (128 << 20))
    except Exception:
        pass
    cap = min(caps) if caps else (64 << 20)          # safe on every generation
    return int(min(max(cap - (12 << 20), 32 << 20), 100 << 20))


def _default_taps_per_group():
    """MXU-depth-aware conv tap grouping: v5e -> K=C dots, v6e/v7x -> K=3*C."""
    try:
        kind = jax.devices()[0].device_kind.lower()
        if "v5 lite" in kind or "v5e" in kind or "v5lite" in kind:
            return 1
    except Exception:
        pass
    return 3


def concat_forward_nhwc(x_nhwc, enc_nhwc, w1_hwio, w2_hwio, *,
                        out_dtype=None, taps_per_group=None):
    """NHWC entry point (preferred: avoids NCHW<->NHWC transposes entirely)."""
    N, H, W, cx = x_nhwc.shape
    ce = enc_nhwc.shape[3]
    cin = cx + ce
    cout = w1_hwio.shape[3]
    assert w1_hwio.shape == (3, 3, cin, cout)
    assert w2_hwio.shape == (3, 3, cout, cout)
    if out_dtype is None:
        out_dtype = x_nhwc.dtype                     # bf16 in -> bf16 out slab
    if taps_per_group is None:
        taps_per_group = _default_taps_per_group()
    assert 9 % taps_per_group == 0

    # Pre-reshape the weights once into the im2col layout (row index =
    # (dy*3+dx)*C + c, matching the kernel's tap/channel packing) and cast to
    # bf16 for the MXU; the kernel accumulates in f32.
    w1r = w1_hwio.reshape(9 * cin, cout).astype(jnp.bfloat16)
    w2r = w2_hwio.reshape(9 * cout, cout).astype(jnp.bfloat16)

    kernel = functools.partial(_fused_concat_block_kernel,
                               taps_per_group=taps_per_group)

    # Whole-sample-per-grid-step tiling; with bf16 pad scratch and no im2col
    # slab the per-sample working set fits VMEM at typical ResUNet sizes.
    # For extreme H,W on v7x, H-band tiling with a 1-row halo and a two-pass
    # (cross-band) InstanceNorm would be needed.
    out = pl.pallas_call(
        kernel,
        out_shape=jax.ShapeDtypeStruct((N, H * W, cout), out_dtype),
        grid_spec=pltpu.PrefetchScalarGridSpec(
            num_scalar_prefetch=0,
            grid=(N,),
            in_specs=[
                pl.BlockSpec((1, H, W, cx), lambda n: (n, 0, 0, 0)),
                pl.BlockSpec((1, H, W, ce), lambda n: (n, 0, 0, 0)),
                pl.BlockSpec((9 * cin, cout), lambda n: (0, 0)),
                pl.BlockSpec((9 * cout, cout), lambda n: (0, 0)),
            ],
            out_specs=pl.BlockSpec((1, H * W, cout), lambda n: (n, 0, 0)),
            scratch_shapes=[
                # bf16 pad scratch: half the persistent VMEM / tap-read bytes.
                pltpu.VMEM((H + 2, W + 2, cin), jnp.bfloat16),
                pltpu.VMEM((H + 2, W + 2, cout), jnp.bfloat16),
            ],
        ),
        compiler_params=pltpu.CompilerParams(
            # One batch element per grid step; on v7x (2 TCs) keep N even so
            # the 'parallel' axis splits evenly across both cores.
            dimension_semantics=("parallel",),
            vmem_limit_bytes=_vmem_limit_bytes(),
        ),
    )(x_nhwc, enc_nhwc, w1r, w2r)
    return out.reshape(N, H, W, cout)


def concat_forward(x_nchw, encoder_x_nchw, w1_hwio, w2_hwio, **kwargs):
    """Pallas implementation of Concat.forward with the PyTorch NCHW API."""
    x_nhwc = jnp.transpose(x_nchw, (0, 2, 3, 1))
    e_nhwc = jnp.transpose(encoder_x_nchw, (0, 2, 3, 1))
    out_nhwc = concat_forward_nhwc(x_nhwc, e_nhwc, w1_hwio, w2_hwio, **kwargs)
    return jnp.transpose(out_nhwc, (0, 3, 1, 2))


# ----------------------- pure-JAX reference (for checking) ------------------
def _ref_stage(x_nhwc, w_hwio):
    y = lax.conv_general_dilated(
        x_nhwc, w_hwio, window_strides=(1, 1), padding="SAME",
        dimension_numbers=("NHWC", "HWIO", "NHWC"),
    )
    mean = y.mean(axis=(1, 2), keepdims=True)
    var = ((y - mean) ** 2).mean(axis=(1, 2), keepdims=True)
    return jnp.maximum((y - mean) * lax.rsqrt(var + EPS), 0.0)


def concat_forward_ref(x_nchw, encoder_x_nchw, w1_hwio, w2_hwio):
    cat = jnp.concatenate([x_nchw, encoder_x_nchw], axis=1)
    h = jnp.transpose(cat, (0, 2, 3, 1))
    h = _ref_stage(h, w1_hwio)
    h = _ref_stage(h, w2_hwio)
    return jnp.transpose(h, (0, 3, 1, 2))


if __name__ == "__main__":
    # Small deterministic config: batch=2, x/encoder_x each 4 channels ->
    # in_channels=8, out_channels=8, spatial 16x16.
    N, C_half, H, W = 2, 4, 16, 16
    in_channels = 2 * C_half
    out_channels = 8

    key = jax.random.PRNGKey(0)
    k_x, k_e, k_w1, k_w2 = jax.random.split(key, 4)

    x = jax.random.normal(k_x, (N, C_half, H, W), jnp.float32)
    encoder_x = jax.random.normal(k_e, (N, C_half, H, W), jnp.float32)

    # Deterministic synthetic weights in HWIO layout (3,3,Cin,Cout), no bias.
    w1 = 0.1 * jax.random.normal(k_w1, (3, 3, in_channels, out_channels),
                                 jnp.float32)
    w2 = 0.1 * jax.random.normal(k_w2, (3, 3, out_channels, out_channels),
                                 jnp.float32)

    fwd = jax.jit(concat_forward)
    out = jax.block_until_ready(fwd(x, encoder_x, w1, w2))

    ref = jax.block_until_ready(concat_forward_ref(x, encoder_x, w1, w2))
    assert out.shape == (N, out_channels, H, W)
    # bf16 matmul operands / f32 accumulation + normalization -> loose f32 tol.
    max_err = float(jnp.max(jnp.abs(out - ref)))
    assert max_err < 5e-2, f"mismatch vs reference (max abs err {max_err})"

    # bf16 I/O path smoke test (halves input DMA / output writeback when the
    # surrounding model runs in bf16).
    x16 = x.astype(jnp.bfloat16)
    e16 = encoder_x.astype(jnp.bfloat16)
    out16 = jax.block_until_ready(fwd(x16, e16, w1, w2))
    assert out16.dtype == jnp.bfloat16
    assert out16.shape == (N, out_channels, H, W)
    assert bool(jnp.all(jnp.isfinite(out16.astype(jnp.float32))))

    print("KERNEL_OK")
</pallas_src>

<mosaic_0001>
module attributes {stable_mosaic.version = 11 : i64} {
  func.func @_fused_concat_block_kernel(%arg0: i32, %arg1: memref<1x16x16x4xf32, #tpu.memory_space<vmem>>, %arg2: memref<1x16x16x4xf32, #tpu.memory_space<vmem>>, %arg3: memref<72x8xbf16, #tpu.memory_space<vmem>>, %arg4: memref<72x8xbf16, #tpu.memory_space<vmem>>, %arg5: memref<1x256x8xf32, #tpu.memory_space<vmem>>, %arg6: memref<18x18x8xbf16, #tpu.memory_space<vmem>>, %arg7: memref<18x18x8xbf16, #tpu.memory_space<vmem>>) attributes {dimension_semantics = [#tpu.dimension_semantics<parallel>], iteration_bounds = array<i64: 2>, scalar_prefetch = 0 : i64, scratch_operands = 2 : i64, tpu.core_type = #tpu.core_type<tc>, window_params = [{transform_indices = @transform_0, window_bounds = array<i64: 1, 16, 16, 4>}, {transform_indices = @transform_1, window_bounds = array<i64: 1, 16, 16, 4>}, {pipeline_mode = #tpu.pipeline_mode<synchronous>, transform_indices = @transform_2, window_bounds = array<i64: 72, 8>}, {pipeline_mode = #tpu.pipeline_mode<synchronous>, transform_indices = @transform_3, window_bounds = array<i64: 72, 8>}, {transform_indices = @transform_4, window_bounds = array<i64: 1, 256, 8>}]} {
    %cst = arith.constant 0.000000e+00 : bf16
    %0 = vector.broadcast %cst : bf16 to vector<1x18x8xbf16>
    %cst_0 = arith.constant 0.000000e+00 : bf16
    %1 = vector.broadcast %cst_0 : bf16 to vector<18x1x8xbf16>
    %c0 = arith.constant 0 : index
    %c0_1 = arith.constant 0 : index
    %c0_2 = arith.constant 0 : index
    %2 = vector.load %arg6[%c0, %c0_1, %c0_2] : memref<18x18x8xbf16, #tpu.memory_space<vmem>>, vector<1x18x8xbf16>
    tpu.vector_store %arg6[%c0, %c0_1, %c0_2], %0 {strides = array<i32>} : memref<18x18x8xbf16, #tpu.memory_space<vmem>>, vector<1x18x8xbf16>,
    %c17 = arith.constant 17 : index
    %c0_3 = arith.constant 0 : index
    %c0_4 = arith.constant 0 : index
    %3 = vector.load %arg6[%c17, %c0_3, %c0_4] : memref<18x18x8xbf16, #tpu.memory_space<vmem>>, vector<1x18x8xbf16>
    tpu.vector_store %arg6[%c17, %c0_3, %c0_4], %0 {strides = array<i32>} : memref<18x18x8xbf16, #tpu.memory_space<vmem>>, vector<1x18x8xbf16>,
    %c0_5 = arith.constant 0 : index
    %c0_6 = arith.constant 0 : index
    %c0_7 = arith.constant 0 : index
    %4 = vector.load %arg6[%c0_5, %c0_6, %c0_7] : memref<18x18x8xbf16, #tpu.memory_space<vmem>>, vector<18x1x8xbf16>
    tpu.vector_store %arg6[%c0_5, %c0_6, %c0_7], %1 {strides = array<i32>} : memref<18x18x8xbf16, #tpu.memory_space<vmem>>, vector<18x1x8xbf16>,
    %c0_8 = arith.constant 0 : index
    %c17_9 = arith.constant 17 : index
    %c0_10 = arith.constant 0 : index
    %5 = vector.load %arg6[%c0_8, %c17_9, %c0_10] : memref<18x18x8xbf16, #tpu.memory_space<vmem>>, vector<18x1x8xbf16>
    tpu.vector_store %arg6[%c0_8, %c17_9, %c0_10], %1 {strides = array<i32>} : memref<18x18x8xbf16, #tpu.memory_space<vmem>>, vector<18x1x8xbf16>,
    %cst_11 = arith.constant 0.000000e+00 : bf16
    %6 = vector.broadcast %cst_11 : bf16 to vector<1x18x8xbf16>
    %cst_12 = arith.constant 0.000000e+00 : bf16
    %7 = vector.broadcast %cst_12 : bf16 to vector<18x1x8xbf16>
    %c0_13 = arith.constant 0 : index
    %c0_14 = arith.constant 0 : index
    %c0_15 = arith.constant 0 : index
    %8 = vector.load %arg7[%c0_13, %c0_14, %c0_15] : memref<18x18x8xbf16, #tpu.memory_space<vmem>>, vector<1x18x8xbf16>
    tpu.vector_store %arg7[%c0_13, %c0_14, %c0_15], %6 {strides = array<i32>} : memref<18x18x8xbf16, #tpu.memory_space<vmem>>, vector<1x18x8xbf16>,
    %c17_16 = arith.constant 17 : index
    %c0_17 = arith.constant 0 : index
    %c0_18 = arith.constant 0 : index
    %9 = vector.load %arg7[%c17_16, %c0_17, %c0_18] : memref<18x18x8xbf16, #tpu.memory_space<vmem>>, vector<1x18x8xbf16>
    tpu.vector_store %arg7[%c17_16, %c0_17, %c0_18], %6 {strides = array<i32>} : memref<18x18x8xbf16, #tpu.memory_space<vmem>>, vector<1x18x8xbf16>,
    %c0_19 = arith.constant 0 : index
    %c0_20 = arith.constant 0 : index
    %c0_21 = arith.constant 0 : index
    %10 = vector.load %arg7[%c0_19, %c0_20, %c0_21] : memref<18x18x8xbf16, #tpu.memory_space<vmem>>, vector<18x1x8xbf16>
    tpu.vector_store %arg7[%c0_19, %c0_20, %c0_21], %7 {strides = array<i32>} : memref<18x18x8xbf16, #tpu.memory_space<vmem>>, vector<18x1x8xbf16>,
    %c0_22 = arith.constant 0 : index
    %c17_23 = arith.constant 17 : index
    %c0_24 = arith.constant 0 : index
    %11 = vector.load %arg7[%c0_22, %c17_23, %c0_24] : memref<18x18x8xbf16, #tpu.memory_space<vmem>>, vector<18x1x8xbf16>
    tpu.vector_store %arg7[%c0_22, %c17_23, %c0_24], %7 {strides = array<i32>} : memref<18x18x8xbf16, #tpu.memory_space<vmem>>, vector<18x1x8xbf16>,
    %c0_25 = arith.constant 0 : index
    %c0_26 = arith.constant 0 : index
    %c0_27 = arith.constant 0 : index
    %c0_28 = arith.constant 0 : index
    %12 = vector.load %arg1[%c0_25, %c0_26, %c0_27, %c0_28] : memref<1x16x16x4xf32, #tpu.memory_space<vmem>>, vector<1x16x16x4xf32>
    %13 = vector.shape_cast %12 : vector<1x16x16x4xf32> to vector<16x16x4xf32>
    %c0_29 = arith.constant 0 : index
    %c0_30 = arith.constant 0 : index
    %c0_31 = arith.constant 0 : index
    %c0_32 = arith.constant 0 : index
    %14 = vector.load %arg2[%c0_29, %c0_30, %c0_31, %c0_32] : memref<1x16x16x4xf32, #tpu.memory_space<vmem>>, vector<1x16x16x4xf32>
    %15 = vector.shape_cast %14 : vector<1x16x16x4xf32> to vector<16x16x4xf32>
    %16 = tpu.concatenate %13, %15 in 2 : vector<16x16x4xf32>, vector<16x16x4xf32> -> vector<16x16x8xf32>
    %17 = arith.truncf %16 : vector<16x16x8xf32> to vector<16x16x8xbf16>
    %c1 = arith.constant 1 : index
    %c1_33 = arith.constant 1 : index
    %c0_34 = arith.constant 0 : index
    %18 = vector.load %arg6[%c1, %c1_33, %c0_34] : memref<18x18x8xbf16, #tpu.memory_space<vmem>>, vector<16x16x8xbf16>
    tpu.vector_store %arg6[%c1, %c1_33, %c0_34], %17 {strides = array<i32>} : memref<18x18x8xbf16, #tpu.memory_space<vmem>>, vector<16x16x8xbf16>,
    %c0_35 = arith.constant 0 : index
    %c0_36 = arith.constant 0 : index
    %c0_37 = arith.constant 0 : index
    %19 = vector.load %arg6[%c0_35, %c0_36, %c0_37] : memref<18x18x8xbf16, #tpu.memory_space<vmem>>, vector<16x16x8xbf16>
    %20 = vector.shape_cast %19 : vector<16x16x8xbf16> to vector<256x8xbf16>
    %c0_38 = arith.constant 0 : index
    %c1_39 = arith.constant 1 : index
    %c0_40 = arith.constant 0 : index
    %21 = vector.load %arg6[%c0_38, %c1_39, %c0_40] : memref<18x18x8xbf16, #tpu.memory_space<vmem>>, vector<16x16x8xbf16>
    %22 = vector.shape_cast %21 : vector<16x16x8xbf16> to vector<256x8xbf16>
    %c0_41 = arith.constant 0 : index
    %c2 = arith.constant 2 : index
    %c0_42 = arith.constant 0 : index
    %23 = vector.load %arg6[%c0_41, %c2, %c0_42] : memref<18x18x8xbf16, #tpu.memory_space<vmem>>, vector<16x16x8xbf16>
    %24 = vector.shape_cast %23 : vector<16x16x8xbf16> to vector<256x8xbf16>
    %25 = tpu.concatenate %20, %22, %24 in 1 : vector<256x8xbf16>, vector<256x8xbf16>, vector<256x8xbf16> -> vector<256x24xbf16>
    %c0_43 = arith.constant 0 : index
    %c0_44 = arith.constant 0 : index
    %26 = vector.load %arg3[%c0_43, %c0_44] : memref<72x8xbf16, #tpu.memory_space<vmem>>, vector<24x8xbf16>
    %cst_45 = arith.constant dense<0.000000e+00> : vector<256x8xf32>
    %27 = tpu.matmul %25, %26, %cst_45 {dimension_numbers = #tpu.dot_dimension_numbers<[1], [0], [0], [1], [0, 0, 1, 1], [], []>} : vector<256x24xbf16>, vector<24x8xbf16>, vector<256x8xf32> -> vector<256x8xf32>
    %c1_46 = arith.constant 1 : index
    %c0_47 = arith.constant 0 : index
    %c0_48 = arith.constant 0 : index
    %28 = vector.load %arg6[%c1_46, %c0_47, %c0_48] : memref<18x18x8xbf16, #tpu.memory_space<vmem>>, vector<16x16x8xbf16>
    %29 = vector.shape_cast %28 : vector<16x16x8xbf16> to vector<256x8xbf16>
    %c1_49 = arith.constant 1 : index
    %c1_50 = arith.constant 1 : index
    %c0_51 = arith.constant 0 : index
    %30 = vector.load %arg6[%c1_49, %c1_50, %c0_51] : memref<18x18x8xbf16, #tpu.memory_space<vmem>>, vector<16x16x8xbf16>
    %31 = vector.shape_cast %30 : vector<16x16x8xbf16> to vector<256x8xbf16>
    %c1_52 = arith.constant 1 : index
    %c2_53 = arith.constant 2 : index
    %c0_54 = arith.constant 0 : index
    %32 = vector.load %arg6[%c1_52, %c2_53, %c0_54] : memref<18x18x8xbf16, #tpu.memory_space<vmem>>, vector<16x16x8xbf16>
    %33 = vector.shape_cast %32 : vector<16x16x8xbf16> to vector<256x8xbf16>
    %34 = tpu.concatenate %29, %31, %33 in 1 : vector<256x8xbf16>, vector<256x8xbf16>, vector<256x8xbf16> -> vector<256x24xbf16>
    %c24 = arith.constant 24 : index
    %c0_55 = arith.constant 0 : index
    %35 = vector.load %arg3[%c24, %c0_55] : memref<72x8xbf16, #tpu.memory_space<vmem>>, vector<24x8xbf16>
    %cst_56 = arith.constant dense<0.000000e+00> : vector<256x8xf32>
    %36 = tpu.matmul %34, %35, %cst_56 {dimension_numbers = #tpu.dot_dimension_numbers<[1], [0], [0], [1], [0, 0, 1, 1], [], []>} : vector<256x24xbf16>, vector<24x8xbf16>, vector<256x8xf32> -> vector<256x8xf32>
    %37 = arith.addf %27, %36 : vector<256x8xf32>
    %c2_57 = arith.constant 2 : index
    %c0_58 = arith.constant 0 : index
    %c0_59 = arith.constant 0 : index
    %38 = vector.load %arg6[%c2_57, %c0_58, %c0_59] : memref<18x18x8xbf16, #tpu.memory_space<vmem>>, vector<16x16x8xbf16>
    %39 = vector.shape_cast %38 : vector<16x16x8xbf16> to vector<256x8xbf16>
    %c2_60 = arith.constant 2 : index
    %c1_61 = arith.constant 1 : index
    %c0_62 = arith.constant 0 : index
    %40 = vector.load %arg6[%c2_60, %c1_61, %c0_62] : memref<18x18x8xbf16, #tpu.memory_space<vmem>>, vector<16x16x8xbf16>
    %41 = vector.shape_cast %40 : vector<16x16x8xbf16> to vector<256x8xbf16>
    %c2_63 = arith.constant 2 : index
    %c2_64 = arith.constant 2 : index
    %c0_65 = arith.constant 0 : index
    %42 = vector.load %arg6[%c2_63, %c2_64, %c0_65] : memref<18x18x8xbf16, #tpu.memory_space<vmem>>, vector<16x16x8xbf16>
    %43 = vector.shape_cast %42 : vector<16x16x8xbf16> to vector<256x8xbf16>
    %44 = tpu.concatenate %39, %41, %43 in 1 : vector<256x8xbf16>, vector<256x8xbf16>, vector<256x8xbf16> -> vector<256x24xbf16>
    %c48 = arith.constant 48 : index
    %c0_66 = arith.constant 0 : index
    %45 = vector.load %arg3[%c48, %c0_66] : memref<72x8xbf16, #tpu.memory_space<vmem>>, vector<24x8xbf16>
    %cst_67 = arith.constant dense<0.000000e+00> : vector<256x8xf32>
    %46 = tpu.matmul %44, %45, %cst_67 {dimension_numbers = #tpu.dot_dimension_numbers<[1], [0], [0], [1], [0, 0, 1, 1], [], []>} : vector<256x24xbf16>, vector<24x8xbf16>, vector<256x8xf32> -> vector<256x8xf32>
    %47 = arith.addf %37, %46 : vector<256x8xf32>
    %cst_68 = arith.constant dense<0.000000e+00> : vector<8xf32>
    %48 = vector.multi_reduction <add>, %47, %cst_68 [0] : vector<256x8xf32> to vector<8xf32>
    %49 = vector.shape_cast %48 : vector<8xf32> to vector<1x8xf32>
    %50 = arith.mulf %47, %47 : vector<256x8xf32>
    %cst_69 = arith.constant dense<0.000000e+00> : vector<8xf32>
    %51 = vector.multi_reduction <add>, %50, %cst_69 [0] : vector<256x8xf32> to vector<8xf32>
    %52 = vector.shape_cast %51 : vector<8xf32> to vector<1x8xf32>
    %cst_70 = arith.constant 3.906250e-03 : f32
    %53 = vector.broadcast %cst_70 : f32 to vector<1x8xf32>
    %54 = arith.mulf %49, %53 : vector<1x8xf32>
    %cst_71 = arith.constant 3.906250e-03 : f32
    %55 = vector.broadcast %cst_71 : f32 to vector<1x8xf32>
    %56 = arith.mulf %52, %55 : vector<1x8xf32>
    %57 = arith.mulf %54, %54 : vector<1x8xf32>
    %58 = arith.subf %56, %57 : vector<1x8xf32>
    %cst_72 = arith.constant 0.000000e+00 : f32
    %59 = vector.broadcast %cst_72 : f32 to vector<1x8xf32>
    %60 = arith.maximumf %58, %59 : vector<1x8xf32>
    %61 = vector.broadcast %54 : vector<1x8xf32> to vector<256x8xf32>
    %62 = arith.subf %47, %61 : vector<256x8xf32>
    %cst_73 = arith.constant 9.99999974E-6 : f32
    %63 = vector.broadcast %cst_73 : f32 to vector<1x8xf32>
    %64 = arith.addf %60, %63 : vector<1x8xf32>
    %65 = math.rsqrt %64 : vector<1x8xf32>
    %66 = vector.broadcast %65 : vector<1x8xf32> to vector<256x8xf32>
    %67 = arith.mulf %62, %66 : vector<256x8xf32>
    %cst_74 = arith.constant 0.000000e+00 : f32
    %68 = vector.broadcast %cst_74 : f32 to vector<256x8xf32>
    %69 = arith.maximumf %67, %68 : vector<256x8xf32>
    %70 = vector.shape_cast %69 : vector<256x8xf32> to vector<16x16x8xf32>
    %71 = arith.truncf %70 : vector<16x16x8xf32> to vector<16x16x8xbf16>
    %c1_75 = arith.constant 1 : index
    %c1_76 = arith.constant 1 : index
    %c0_77 = arith.constant 0 : index
    %72 = vector.load %arg7[%c1_75, %c1_76, %c0_77] : memref<18x18x8xbf16, #tpu.memory_space<vmem>>, vector<16x16x8xbf16>
    tpu.vector_store %arg7[%c1_75, %c1_76, %c0_77], %71 {strides = array<i32>} : memref<18x18x8xbf16, #tpu.memory_space<vmem>>, vector<16x16x8xbf16>,
    %c0_78 = arith.constant 0 : index
    %c0_79 = arith.constant 0 : index
    %c0_80 = arith.constant 0 : index
    %73 = vector.load %arg7[%c0_78, %c0_79, %c0_80] : memref<18x18x8xbf16, #tpu.memory_space<vmem>>, vector<16x16x8xbf16>
    %74 = vector.shape_cast %73 : vector<16x16x8xbf16> to vector<256x8xbf16>
    %c0_81 = arith.constant 0 : index
    %c1_82 = arith.constant 1 : index
    %c0_83 = arith.constant 0 : index
    %75 = vector.load %arg7[%c0_81, %c1_82, %c0_83] : memref<18x18x8xbf16, #tpu.memory_space<vmem>>, vector<16x16x8xbf16>
    %76 = vector.shape_cast %75 : vector<16x16x8xbf16> to vector<256x8xbf16>
    %c0_84 = arith.constant 0 : index
    %c2_85 = arith.constant 2 : index
    %c0_86 = arith.constant 0 : index
    %77 = vector.load %arg7[%c0_84, %c2_85, %c0_86] : memref<18x18x8xbf16, #tpu.memory_space<vmem>>, vector<16x16x8xbf16>
    %78 = vector.shape_cast %77 : vector<16x16x8xbf16> to vector<256x8xbf16>
    %79 = tpu.concatenate %74, %76, %78 in 1 : vector<256x8xbf16>, vector<256x8xbf16>, vector<256x8xbf16> -> vector<256x24xbf16>
    %c0_87 = arith.constant 0 : index
    %c0_88 = arith.constant 0 : index
    %80 = vector.load %arg4[%c0_87, %c0_88] : memref<72x8xbf16, #tpu.memory_space<vmem>>, vector<24x8xbf16>
    %cst_89 = arith.constant dense<0.000000e+00> : vector<256x8xf32>
    %81 = tpu.matmul %79, %80, %cst_89 {dimension_numbers = #tpu.dot_dimension_numbers<[1], [0], [0], [1], [0, 0, 1, 1], [], []>} : vector<256x24xbf16>, vector<24x8xbf16>, vector<256x8xf32> -> vector<256x8xf32>
    %c1_90 = arith.constant 1 : index
    %c0_91 = arith.constant 0 : index
    %c0_92 = arith.constant 0 : index
    %82 = vector.load %arg7[%c1_90, %c0_91, %c0_92] : memref<18x18x8xbf16, #tpu.memory_space<vmem>>, vector<16x16x8xbf16>
    %83 = vector.shape_cast %82 : vector<16x16x8xbf16> to vector<256x8xbf16>
    %c1_93 = arith.constant 1 : index
    %c1_94 = arith.constant 1 : index
    %c0_95 = arith.constant 0 : index
    %84 = vector.load %arg7[%c1_93, %c1_94, %c0_95] : memref<18x18x8xbf16, #tpu.memory_space<vmem>>, vector<16x16x8xbf16>
    %85 = vector.shape_cast %84 : vector<16x16x8xbf16> to vector<256x8xbf16>
    %c1_96 = arith.constant 1 : index
    %c2_97 = arith.constant 2 : index
    %c0_98 = arith.constant 0 : index
    %86 = vector.load %arg7[%c1_96, %c2_97, %c0_98] : memref<18x18x8xbf16, #tpu.memory_space<vmem>>, vector<16x16x8xbf16>
    %87 = vector.shape_cast %86 : vector<16x16x8xbf16> to vector<256x8xbf16>
    %88 = tpu.concatenate %83, %85, %87 in 1 : vector<256x8xbf16>, vector<256x8xbf16>, vector<256x8xbf16> -> vector<256x24xbf16>
    %c24_99 = arith.constant 24 : index
    %c0_100 = arith.constant 0 : index
    %89 = vector.load %arg4[%c24_99, %c0_100] : memref<72x8xbf16, #tpu.memory_space<vmem>>, vector<24x8xbf16>
    %cst_101 = arith.constant dense<0.000000e+00> : vector<256x8xf32>
    %90 = tpu.matmul %88, %89, %cst_101 {dimension_numbers = #tpu.dot_dimension_numbers<[1], [0], [0], [1], [0, 0, 1, 1], [], []>} : vector<256x24xbf16>, vector<24x8xbf16>, vector<256x8xf32> -> vector<256x8xf32>
    %91 = arith.addf %81, %90 : vector<256x8xf32>
    %c2_102 = arith.constant 2 : index
    %c0_103 = arith.constant 0 : index
    %c0_104 = arith.constant 0 : index
    %92 = vector.load %arg7[%c2_102, %c0_103, %c0_104] : memref<18x18x8xbf16, #tpu.memory_space<vmem>>, vector<16x16x8xbf16>
    %93 = vector.shape_cast %92 : vector<16x16x8xbf16> to vector<256x8xbf16>
    %c2_105 = arith.constant 2 : index
    %c1_106 = arith.constant 1 : index
    %c0_107 = arith.constant 0 : index
    %94 = vector.load %arg7[%c2_105, %c1_106, %c0_107] : memref<18x18x8xbf16, #tpu.memory_space<vmem>>, vector<16x16x8xbf16>
    %95 = vector.shape_cast %94 : vector<16x16x8xbf16> to vector<256x8xbf16>
    %c2_108 = arith.constant 2 : index
    %c2_109 = arith.constant 2 : index
    %c0_110 = arith.constant 0 : index
    %96 = vector.load %arg7[%c2_108, %c2_109, %c0_110] : memref<18x18x8xbf16, #tpu.memory_space<vmem>>, vector<16x16x8xbf16>
    %97 = vector.shape_cast %96 : vector<16x16x8xbf16> to vector<256x8xbf16>
    %98 = tpu.concatenate %93, %95, %97 in 1 : vector<256x8xbf16>, vector<256x8xbf16>, vector<256x8xbf16> -> vector<256x24xbf16>
    %c48_111 = arith.constant 48 : index
    %c0_112 = arith.constant 0 : index
    %99 = vector.load %arg4[%c48_111, %c0_112] : memref<72x8xbf16, #tpu.memory_space<vmem>>, vector<24x8xbf16>
    %cst_113 = arith.constant dense<0.000000e+00> : vector<256x8xf32>
    %100 = tpu.matmul %98, %99, %cst_113 {dimension_numbers = #tpu.dot_dimension_numbers<[1], [0], [0], [1], [0, 0, 1, 1], [], []>} : vector<256x24xbf16>, vector<24x8xbf16>, vector<256x8xf32> -> vector<256x8xf32>
    %101 = arith.addf %91, %100 : vector<256x8xf32>
    %cst_114 = arith.constant dense<0.000000e+00> : vector<8xf32>
    %102 = vector.multi_reduction <add>, %101, %cst_114 [0] : vector<256x8xf32> to vector<8xf32>
    %103 = vector.shape_cast %102 : vector<8xf32> to vector<1x8xf32>
    %104 = arith.mulf %101, %101 : vector<256x8xf32>
    %cst_115 = arith.constant dense<0.000000e+00> : vector<8xf32>
    %105 = vector.multi_reduction <add>, %104, %cst_115 [0] : vector<256x8xf32> to vector<8xf32>
    %106 = vector.shape_cast %105 : vector<8xf32> to vector<1x8xf32>
    %cst_116 = arith.constant 3.906250e-03 : f32
    %107 = vector.broadcast %cst_116 : f32 to vector<1x8xf32>
    %108 = arith.mulf %103, %107 : vector<1x8xf32>
    %cst_117 = arith.constant 3.906250e-03 : f32
    %109 = vector.broadcast %cst_117 : f32 to vector<1x8xf32>
    %110 = arith.mulf %106, %109 : vector<1x8xf32>
    %111 = arith.mulf %108, %108 : vector<1x8xf32>
    %112 = arith.subf %110, %111 : vector<1x8xf32>
    %cst_118 = arith.constant 0.000000e+00 : f32
    %113 = vector.broadcast %cst_118 : f32 to vector<1x8xf32>
    %114 = arith.maximumf %112, %113 : vector<1x8xf32>
    %115 = vector.broadcast %108 : vector<1x8xf32> to vector<256x8xf32>
    %116 = arith.subf %101, %115 : vector<256x8xf32>
    %cst_119 = arith.constant 9.99999974E-6 : f32
    %117 = vector.broadcast %cst_119 : f32 to vector<1x8xf32>
    %118 = arith.addf %114, %117 : vector<1x8xf32>
    %119 = math.rsqrt %118 : vector<1x8xf32>
    %120 = vector.broadcast %119 : vector<1x8xf32> to vector<256x8xf32>
    %121 = arith.mulf %116, %120 : vector<256x8xf32>
    %cst_120 = arith.constant 0.000000e+00 : f32
    %122 = vector.broadcast %cst_120 : f32 to vector<256x8xf32>
    %123 = arith.maximumf %121, %122 : vector<256x8xf32>
    %c0_121 = arith.constant 0 : index
    %c0_122 = arith.constant 0 : index
    %c0_123 = arith.constant 0 : index
    %124 = vector.load %arg5[%c0_121, %c0_122, %c0_123] : memref<1x256x8xf32, #tpu.memory_space<vmem>>, vector<1x256x8xf32>
    %125 = vector.shape_cast %124 : vector<1x256x8xf32> to vector<256x8xf32>
    %126 = vector.shape_cast %123 : vector<256x8xf32> to vector<1x256x8xf32>
    tpu.vector_store %arg5[%c0_121, %c0_122, %c0_123], %126 {strides = array<i32>} : memref<1x256x8xf32, #tpu.memory_space<vmem>>, vector<1x256x8xf32>,
    return
  }
  func.func @transform_0(%arg0: i32) -> (i32, i32, i32, i32) {
    %c0_i32 = arith.constant 0 : i32
    %c0_i32_0 = arith.constant 0 : i32
    %c0_i32_1 = arith.constant 0 : i32
    %c0_i32_2 = arith.constant 0 : i32
    return %arg0, %c0_i32, %c0_i32_0, %c0_i32_1 : i32, i32, i32, i32
  }
  func.func @transform_1(%arg0: i32) -> (i32, i32, i32, i32) {
    %c0_i32 = arith.constant 0 : i32
    %c0_i32_0 = arith.constant 0 : i32
    %c0_i32_1 = arith.constant 0 : i32
    %c0_i32_2 = arith.constant 0 : i32
    return %arg0, %c0_i32, %c0_i32_0, %c0_i32_1 : i32, i32, i32, i32
  }
  func.func @transform_2(%arg0: i32) -> (i32, i32) {
    %c0_i32 = arith.constant 0 : i32
    %c0_i32_0 = arith.constant 0 : i32
    %c0_i32_1 = arith.constant 0 : i32
    return %c0_i32, %c0_i32_0 : i32, i32
  }
  func.func @transform_3(%arg0: i32) -> (i32, i32) {
    %c0_i32 = arith.constant 0 : i32
    %c0_i32_0 = arith.constant 0 : i32
    %c0_i32_1 = arith.constant 0 : i32
    return %c0_i32, %c0_i32_0 : i32, i32
  }
  func.func @transform_4(%arg0: i32) -> (i32, i32, i32) {
    %c0_i32 = arith.constant 0 : i32
    %c0_i32_0 = arith.constant 0 : i32
    %c0_i32_1 = arith.constant 0 : i32
    return %arg0, %c0_i32, %c0_i32_0 : i32, i32, i32
  }
}

</mosaic_0001>

<llo_original>
// kernel: concat_forward.1
$region0: #{concat_forward.1}
  #allocation0 [shape = 'u32[]', space=smem, size = 0x4, offset = 0x4, fixed_abs, tag = 'smem constant byte address 0x4 - core index']
  #allocation1 [shape = 'u32[72,128]{1,0:T(1,128)}', space=vmem, size = 0x9000, scoped, tag = 'internal scratch']
  #allocation2 [shape = 'bf16[18,18,8]{2,1,0:T(8,128)(2,1)}', space=vmem, size = 0x1b000, scoped, tag = 'scratch operand']
  #allocation3 [shape = 'bf16[18,18,8]{2,1,0:T(8,128)(2,1)}', space=vmem, size = 0x1b000, scoped, tag = 'scratch operand']
  %s0 = inlined_call_operand.vmem [shape: f32[2,16,16,4], index: 0, kind: input, shape index: {}]
  %s1 = inlined_call_operand.vmem [shape: f32[2,16,16,4], index: 1, kind: input, shape index: {}]
  %s2 = inlined_call_operand.vmem [shape: bf16[72,8], index: 2, kind: input, shape index: {}]
  %s3 = inlined_call_operand.vmem [shape: bf16[72,8], index: 3, kind: input, shape index: {}]
  %s4 = inlined_call_operand.vmem [shape: f32[2,256,8], index: 4, kind: output, shape index: {}]
  %s5 = sld [smem:[#allocation0]]
  $region49: #{concat_forward.1} parent=0
    _
  %s7 = ssub.s32 1, %s5
  %s8 = scalar_select 0, %s7, %s5
  loop: start=0, step=1, limit=4
  $region2: #{concat_forward.1} parent=0 // loop_pre_header
    _
  $region3: #{concat_forward.1} parent=0 // loop_header
    %s10 = sphi 0, %s14
    %p11 = scmp.ge.s32.totalorder %s10, 4
    %s20 = sphi 0, %s22
    %s23 = sphi 0, %s20
    %s24 = sphi 0, %s23
    %s40 = sphi 0, %s24
    %s46 = sphi 0, %s48
    %s49 = sphi 0, %s46
    %s50 = sphi 0, %s49
    %s66 = sphi 0, %s50
    %s70 = sphi 0, %s70
    %s72 = sphi 0, %s70
    %s73 = sphi 0, %s72
    %s87 = sphi 0, %s73
    %s91 = sphi 0, %s91
    %s93 = sphi 0, %s91
    %s94 = sphi 0, %s93
    %s108 = sphi 0, %s94
    %s114 = sphi 0, %s116
    %s117 = sphi 0, %s114
    %s118 = sphi 0, %s117
    %s134 = sphi 0, %s118
  $region4: #{concat_forward.1} parent=0 // loop_header_branch
    %13 = sbr.rel (%p11) target = $region8
  $region5: #{concat_forward.1} parent=0 // loop_body
    %s15 = ssub.s32 %s10, 1
    %s16 = ssub.s32 %s10, 2
    %s17 = sadd.s32 %s10, 1
    %s18 = ssub.s32 %s10, %s17
    %p19 = scmp.eq.s32.totalorder %s18, 0
    %s21 = sadd.s32 %s20, 1
    %s22 = scalar_select %p19, %s20, %s21
    %p25 = pneg %p19
    %p26 = scmp.eq.s32.totalorder %s10, 1
    %p27 = por %p25, %p26
    %p28 = scmp.ne.s32.totalorder %s20, %s23
    %p29 = scmp.eq.s32.totalorder %s10, 0
    %p30 = por %p28, %p29
    %p31 = scmp.ne.s32.totalorder %s20, %s23
    %p32 = scmp.eq.s32.totalorder %s15, 1
    %p33 = por %p31, %p32
    %p34 = scmp.ne.s32.totalorder %s23, %s24
    %p35 = scmp.eq.s32.totalorder %s15, 0
    %p36 = por %p34, %p35
    %p37 = scmp.ne.s32.totalorder %s23, %s24
    %p38 = scmp.eq.s32.totalorder %s16, 1
    %p39 = por %p37, %p38
    %p41 = scmp.ne.s32.totalorder %s24, %s40
    %p42 = scmp.eq.s32.totalorder %s16, 0
    %p43 = por %p41, %p42
    %s44 = ssub.s32 %s10, %s17
    %p45 = scmp.eq.s32.totalorder %s44, 0
    %s47 = sadd.s32 %s46, 1
    %s48 = scalar_select %p45, %s46, %s47
    %p51 = pneg %p45
    %p52 = scmp.eq.s32.totalorder %s10, 1
    %p53 = por %p51, %p52
    %p54 = scmp.ne.s32.totalorder %s46, %s49
    %p55 = scmp.eq.s32.totalorder %s10, 0
    %p56 = por %p54, %p55
    %p57 = scmp.ne.s32.totalorder %s46, %s49
    %p58 = scmp.eq.s32.totalorder %s15, 1
    %p59 = por %p57, %p58
    %p60 = scmp.ne.s32.totalorder %s49, %s50
    %p61 = scmp.eq.s32.totalorder %s15, 0
    %p62 = por %p60, %p61
    %p63 = scmp.ne.s32.totalorder %s49, %s50
    %p64 = scmp.eq.s32.totalorder %s16, 1
    %p65 = por %p63, %p64
    %p67 = scmp.ne.s32.totalorder %s50, %s66
    %p68 = scmp.eq.s32.totalorder %s16, 0
    %p69 = por %p67, %p68
    %s71 = sadd.s32 %s70, 1
    %p74 = scmp.eq.s32.totalorder %s10, 1
    %p75 = scmp.ne.s32.totalorder %s70, %s72
    %p76 = scmp.eq.s32.totalorder %s10, 0
    %p77 = por %p75, %p76
    %p78 = scmp.ne.s32.totalorder %s70, %s72
    %p79 = scmp.eq.s32.totalorder %s15, 1
    %p80 = por %p78, %p79
    %p81 = scmp.ne.s32.totalorder %s72, %s73
    %p82 = scmp.eq.s32.totalorder %s15, 0
    %p83 = por %p81, %p82
    %p84 = scmp.ne.s32.totalorder %s72, %s73
    %p85 = scmp.eq.s32.totalorder %s16, 1
    %p86 = por %p84, %p85
    %p88 = scmp.ne.s32.totalorder %s73, %s87
    %p89 = scmp.eq.s32.totalorder %s16, 0
    %p90 = por %p88, %p89
    %s92 = sadd.s32 %s91, 1
    %p95 = scmp.eq.s32.totalorder %s10, 1
    %p96 = scmp.ne.s32.totalorder %s91, %s93
    %p97 = scmp.eq.s32.totalorder %s10, 0
    %p98 = por %p96, %p97
    %p99 = scmp.ne.s32.totalorder %s91, %s93
    %p100 = scmp.eq.s32.totalorder %s15, 1
    %p101 = por %p99, %p100
    %p102 = scmp.ne.s32.totalorder %s93, %s94
    %p103 = scmp.eq.s32.totalorder %s15, 0
    %p104 = por %p102, %p103
    %p105 = scmp.ne.s32.totalorder %s93, %s94
    %p106 = scmp.eq.s32.totalorder %s16, 1
    %p107 = por %p105, %p106
    %p109 = scmp.ne.s32.totalorder %s94, %s108
    %p110 = scmp.eq.s32.totalorder %s16, 0
    %p111 = por %p109, %p110
    %s112 = ssub.s32 %s10, %s17
    %p113 = scmp.eq.s32.totalorder %s112, 0
    %s115 = sadd.s32 %s114, 1
    %s116 = scalar_select %p113, %s114, %s115
    %p119 = pneg %p113
    %p120 = scmp.eq.s32.totalorder %s10, 1
    %p121 = por %p119, %p120
    %p122 = scmp.ne.s32.totalorder %s114, %s117
    %p123 = scmp.eq.s32.totalorder %s10, 0
    %p124 = por %p122, %p123
    %p125 = scmp.ne.s32.totalorder %s114, %s117
    %p126 = scmp.eq.s32.totalorder %s15, 1
    %p127 = por %p125, %p126
    %p128 = scmp.ne.s32.totalorder %s117, %s118
    %p129 = scmp.eq.s32.totalorder %s15, 0
    %p130 = por %p128, %p129
    %p131 = scmp.ne.s32.totalorder %s117, %s118
    %p132 = scmp.eq.s32.totalorder %s16, 1
    %p133 = por %p131, %p132
    %p135 = scmp.ne.s32.totalorder %s118, %s134
    %p136 = scmp.eq.s32.totalorder %s16, 0
    %p137 = por %p135, %p136
    %p138 = scmp.le.s32.totalorder 1, %s10
    %p139 = scmp.lt.s32.totalorder %s10, 3
    %p140 = pnand %p138, %p139
    %p141 = pneg %p140
    // Predicated region
    $region9: #{concat_forward.1} parent=5 // pred_check
      _
    $region10: #{concat_forward.1} parent=5 // pred_check_branch
      %143 = sbr.rel (%p140) target = $region12
    $region11: #{concat_forward.1} parent=5 // pred_region
      %s144 = ssub.s32 %s10, 1
      // Predicated region
      $region13: #{concat_forward.1} parent=11 // pred_check
        %p145 = pneg %p83
      $region14: #{concat_forward.1} parent=11 // pred_check_branch
        %147 = sbr.rel (%p145) target = $region16
      $region15: #{concat_forward.1} parent=11 // pred_region
        _
      $region16: #{concat_forward.1} parent=11 // pred_fallthru
        _
      // Predicated region
      $region17: #{concat_forward.1} parent=11 // pred_check
        %p148 = pneg %p104
      $region18: #{concat_forward.1} parent=11 // pred_check_branch
        %150 = sbr.rel (%p148) target = $region20
      $region19: #{concat_forward.1} parent=11 // pred_region
        _
      $region20: #{concat_forward.1} parent=11 // pred_fallthru
        _
    $region12: #{concat_forward.1} parent=5 // pred_fallthru
      _
    %p151 = scmp.lt.s32.totalorder %s10, 2
    // Predicated region
    $region21: #{concat_forward.1} parent=5 // pred_check
      %p152 = pneg %p151
    $region22: #{concat_forward.1} parent=5 // pred_check_branch
      %154 = sbr.rel (%p152) target = $region24
    $region23: #{concat_forward.1} parent=5 // pred_region
      // Predicated region
      $region25: #{concat_forward.1} parent=23 // pred_check
        %p155 = pneg %p30
      $region26: #{concat_forward.1} parent=23 // pred_check_branch
        %157 = sbr.rel (%p155) target = $region28
      $region27: #{concat_forward.1} parent=23 // pred_region
        %p158 = scmp.lt.s32.totalorder %s10, 1
        %s159 = scalar_select %p158, %s10, 1
        %s160 = smul.addr %s159, 32
        %s161 = smul.addr %s160, 8
        %s162 = scalar_lea.vmem %s0, %s161
      $region28: #{concat_forward.1} parent=23 // pred_fallthru
        _
      // Predicated region
      $region29: #{concat_forward.1} parent=23 // pred_check
        %p163 = pneg %p56
      $region30: #{concat_forward.1} parent=23 // pred_check_branch
        %165 = sbr.rel (%p163) target = $region32
      $region31: #{concat_forward.1} parent=23 // pred_region
        %p166 = scmp.lt.s32.totalorder %s10, 1
        %s167 = scalar_select %p166, %s10, 1
        %s168 = smul.addr %s167, 32
        %s169 = smul.addr %s168, 8
        %s170 = scalar_lea.vmem %s1, %s169
      $region32: #{concat_forward.1} parent=23 // pred_fallthru
        _
    $region24: #{concat_forward.1} parent=5 // pred_fallthru
      _
    %p171 = scmp.le.s32.totalorder 1, %s10
    %p172 = scmp.lt.s32.totalorder %s10, 3
    %p173 = pnand %p171, %p172
    %p174 = pneg %p173
    // Predicated region
    $region33: #{concat_forward.1} parent=5 // pred_check
      _
    $region34: #{concat_forward.1} parent=5 // pred_check_branch
      %176 = sbr.rel (%p173) target = $region36
    $region35: #{concat_forward.1} parent=5 // pred_region
      %s177 = ssub.s32 %s10, 1
      %p178 = scmp.lt.s32.totalorder %s15, 1
      %s179 = scalar_select %p178, %s15, 1
      %s180 = smul.addr %s179, 32
      %s181 = smul.addr %s180, 8
      %s182 = scalar_lea.vmem %s0, %s181
      %p183 = pneg %p36
      %p184 = pneg %p33
      %p185 = scmp.lt.s32.totalorder %s15, 1
      %s186 = scalar_select %p185, %s15, 1
      %s187 = smul.addr %s186, 32
      %s188 = smul.addr %s187, 8
      %s189 = scalar_lea.vmem %s1, %s188
      %p190 = pneg %p62
      %p191 = pneg %p59
      %p192 = pneg %p83
      %p193 = pneg %p80
      %p194 = pneg %p104
      %p195 = pneg %p101
      %p196 = pneg %p130
      %p197 = pneg %p127
      %p198 = scmp.lt.s32.totalorder %s15, 1
      %s199 = scalar_select %p198, %s15, 1
      %s200 = smul.addr %s199, 32
      %s201 = smul.addr %s200, 8
      %s202 = scalar_lea.vmem %s4, %s201
      %p203 = scmp.lt.s32.totalorder %s15, 1
      %s204 = scalar_select %p203, %s15, 1
      %s205 = smul.addr %s204, 32
      %s206 = smul.addr %s205, 8
      %s207 = scalar_lea.vmem %s0, %s206
      %p208 = scmp.lt.s32.totalorder %s15, 1
      %s209 = scalar_select %p208, %s15, 1
      %s210 = smul.addr %s209, 32
      %s211 = smul.addr %s210, 8
      %s212 = scalar_lea.vmem %s1, %s211
      %p213 = scmp.lt.s32.totalorder %s15, 1
      %s214 = scalar_select %p213, %s15, 1
      %s215 = smul.addr %s214, 32
      %s216 = smul.addr %s215, 8
      %s217 = scalar_lea.vmem %s4, %s216
      %vm219 = vcmask 60416
      %220 = vst.msk [vmem:[#allocation2] sm:$0xf] %vm219, 0
      %221 = vst.msk [vmem:[#allocation2 + $0x4] sm:$0xf] %vm219, 0
      %vm222 = vcmask 57344
      %223 = vst.msk [vmem:[#allocation2 + $0x8] sm:$0x1] %vm222, 0
      %s224 = scalar_lea.vmem [#allocation2], 204
      %225 = vst.msk [vmem:[%s224] sm:$0xf] %vm219, 0
      %226 = vst.msk [vmem:[%s224 + $0x4] sm:$0xf] %vm219, 0
      %227 = vst.msk [vmem:[%s224 + $0x8] sm:$0x1] %vm222, 0
      %vm228 = vcmask 57344
      %vm229 = vsmask.f32 256
      %vm230 = vmand %vm228, %vm229
      %v231 = vld [vmem:[#allocation2] sm:$0x1]
      %v232 = vsel %vm230, 0, %v231
      %233 = vst [vmem:[#allocation2] sm:$0x1] %v232
      %v234 = vld [vmem:[#allocation2 + $0xc] sm:$0x1]
      %v235 = vsel %vm230, 0, %v234
      %236 = vst [vmem:[#allocation2 + $0xc] sm:$0x1] %v235
      %v237 = vld [vmem:[#allocation2 + $0x18] sm:$0x1]
      %v238 = vsel %vm230, 0, %v237
      %239 = vst [vmem:[#allocation2 + $0x18] sm:$0x1] %v238
      %v240 = vld [vmem:[#allocation2 + $0x24] sm:$0x1]
      %v241 = vsel %vm230, 0, %v240
      %242 = vst [vmem:[#allocation2 + $0x24] sm:$0x1] %v241
      %v243 = vld [vmem:[#allocation2 + $0x30] sm:$0x1]
      %v244 = vsel %vm230, 0, %v243
      %245 = vst [vmem:[#allocation2 + $0x30] sm:$0x1] %v244
      %v246 = vld [vmem:[#allocation2 + $0x3c] sm:$0x1]
      %v247 = vsel %vm230, 0, %v246
      %248 = vst [vmem:[#allocation2 + $0x3c] sm:$0x1] %v247
      %v249 = vld [vmem:[#allocation2 + $0x48] sm:$0x1]
      %v250 = vsel %vm230, 0, %v249
      %251 = vst [vmem:[#allocation2 + $0x48] sm:$0x1] %v250
      %v252 = vld [vmem:[#allocation2 + $0x54] sm:$0x1]
      %v253 = vsel %vm230, 0, %v252
      %254 = vst [vmem:[#allocation2 + $0x54] sm:$0x1] %v253
      %v255 = vld [vmem:[#allocation2 + $0x60] sm:$0x1]
      %v256 = vsel %vm230, 0, %v255
      %257 = vst [vmem:[#allocation2 + $0x60] sm:$0x1] %v256
      %v258 = vld [vmem:[#allocation2 + $0x6c] sm:$0x1]
      %v259 = vsel %vm230, 0, %v258
      %260 = vst [vmem:[#allocation2 + $0x6c] sm:$0x1] %v259
      %v261 = vld [vmem:[#allocation2 + $0x78] sm:$0x1]
      %v262 = vsel %vm230, 0, %v261
      %263 = vst [vmem:[#allocation2 + $0x78] sm:$0x1] %v262
      %v264 = vld [vmem:[#allocation2 + $0x84] sm:$0x1]
      %v265 = vsel %vm230, 0, %v264
      %266 = vst [vmem:[#allocation2 + $0x84] sm:$0x1] %v265
      %v267 = vld [vmem:[#allocation2 + $0x90] sm:$0x1]
      %v268 = vsel %vm230, 0, %v267
      %269 = vst [vmem:[#allocation2 + $0x90] sm:$0x1] %v268
      %v270 = vld [vmem:[#allocation2 + $0x9c] sm:$0x1]
      %v271 = vsel %vm230, 0, %v270
      %272 = vst [vmem:[#allocation2 + $0x9c] sm:$0x1] %v271
      %v273 = vld [vmem:[#allocation2 + $0xa8] sm:$0x1]
      %v274 = vsel %vm230, 0, %v273
      %275 = vst [vmem:[#allocation2 + $0xa8] sm:$0x1] %v274
      %v276 = vld [vmem:[#allocation2 + $0xb4] sm:$0x1]
      %v277 = vsel %vm230, 0, %v276
      %278 = vst [vmem:[#allocation2 + $0xb4] sm:$0x1] %v277
      %v279 = vld [vmem:[#allocation2 + $0xc0] sm:$0x1]
      %v280 = vsel %vm230, 0, %v279
      %281 = vst [vmem:[#allocation2 + $0xc0] sm:$0x1] %v280
      %v282 = vld [vmem:[#allocation2 + $0xcc] sm:$0x1]
      %v283 = vsel %vm230, 0, %v282
      %284 = vst [vmem:[#allocation2 + $0xcc] sm:$0x1] %v283
      %vm285 = vsmask.f32 7938
      %vm286 = vmand %vm228, %vm285
      %v287 = vld [vmem:[#allocation2 + $0x8] sm:$0x1]
      %v288 = vsel %vm286, 0, %v287
      %289 = vst [vmem:[#allocation2 + $0x8] sm:$0x1] %v288
      %v290 = vld [vmem:[#allocation2 + $0x14] sm:$0x1]
      %v291 = vsel %vm286, 0, %v290
      %292 = vst [vmem:[#allocation2 + $0x14] sm:$0x1] %v291
      %v293 = vld [vmem:[#allocation2 + $0x20] sm:$0x1]
      %v294 = vsel %vm286, 0, %v293
      %295 = vst [vmem:[#allocation2 + $0x20] sm:$0x1] %v294
      %v296 = vld [vmem:[#allocation2 + $0x2c] sm:$0x1]
      %v297 = vsel %vm286, 0, %v296
      %298 = vst [vmem:[#allocation2 + $0x2c] sm:$0x1] %v297
      %v299 = vld [vmem:[#allocation2 + $0x38] sm:$0x1]
      %v300 = vsel %vm286, 0, %v299
      %301 = vst [vmem:[#allocation2 + $0x38] sm:$0x1] %v300
      %v302 = vld [vmem:[#allocation2 + $0x44] sm:$0x1]
      %v303 = vsel %vm286, 0, %v302
      %304 = vst [vmem:[#allocation2 + $0x44] sm:$0x1] %v303
      %v305 = vld [vmem:[#allocation2 + $0x50] sm:$0x1]
      %v306 = vsel %vm286, 0, %v305
      %307 = vst [vmem:[#allocation2 + $0x50] sm:$0x1] %v306
      %v308 = vld [vmem:[#allocation2 + $0x5c] sm:$0x1]
      %v309 = vsel %vm286, 0, %v308
      %310 = vst [vmem:[#allocation2 + $0x5c] sm:$0x1] %v309
      %v311 = vld [vmem:[#allocation2 + $0x68] sm:$0x1]
      %v312 = vsel %vm286, 0, %v311
      %313 = vst [vmem:[#allocation2 + $0x68] sm:$0x1] %v312
      %v314 = vld [vmem:[#allocation2 + $0x74] sm:$0x1]
      %v315 = vsel %vm286, 0, %v314
      %316 = vst [vmem:[#allocation2 + $0x74] sm:$0x1] %v315
      %v317 = vld [vmem:[#allocation2 + $0x80] sm:$0x1]
      %v318 = vsel %vm286, 0, %v317
      %319 = vst [vmem:[#allocation2 + $0x80] sm:$0x1] %v318
      %v320 = vld [vmem:[#allocation2 + $0x8c] sm:$0x1]
      %v321 = vsel %vm286, 0, %v320
      %322 = vst [vmem:[#allocation2 + $0x8c] sm:$0x1] %v321
      %v323 = vld [vmem:[#allocation2 + $0x98] sm:$0x1]
      %v324 = vsel %vm286, 0, %v323
      %325 = vst [vmem:[#allocation2 + $0x98] sm:$0x1] %v324
      %v326 = vld [vmem:[#allocation2 + $0xa4] sm:$0x1]
      %v327 = vsel %vm286, 0, %v326
      %328 = vst [vmem:[#allocation2 + $0xa4] sm:$0x1] %v327
      %v329 = vld [vmem:[#allocation2 + $0xb0] sm:$0x1]
      %v330 = vsel %vm286, 0, %v329
      %331 = vst [vmem:[#allocation2 + $0xb0] sm:$0x1] %v330
      %v332 = vld [vmem:[#allocation2 + $0xbc] sm:$0x1]
      %v333 = vsel %vm286, 0, %v332
      %334 = vst [vmem:[#allocation2 + $0xbc] sm:$0x1] %v333
      %v335 = vld [vmem:[#allocation2 + $0xc8] sm:$0x1]
      %v336 = vsel %vm286, 0, %v335
      %337 = vst [vmem:[#allocation2 + $0xc8] sm:$0x1] %v336
      %v338 = vld [vmem:[#allocation2 + $0xd4] sm:$0x1]
      %v339 = vsel %vm286, 0, %v338
      %340 = vst [vmem:[#allocation2 + $0xd4] sm:$0x1] %v339
      %341 = vst.msk [vmem:[#allocation3] sm:$0xf] %vm219, 0
      %342 = vst.msk [vmem:[#allocation3 + $0x4] sm:$0xf] %vm219, 0
      %343 = vst.msk [vmem:[#allocation3 + $0x8] sm:$0x1] %vm222, 0
      %s344 = scalar_lea.vmem [#allocation3], 204
      %345 = vst.msk [vmem:[%s344] sm:$0xf] %vm219, 0
      %346 = vst.msk [vmem:[%s344 + $0x4] sm:$0xf] %vm219, 0
      %347 = vst.msk [vmem:[%s344 + $0x8] sm:$0x1] %vm222, 0
      %v348 = vld [vmem:[#allocation3] sm:$0x1]
      %v349 = vsel %vm230, 0, %v348
      %350 = vst [vmem:[#allocation3] sm:$0x1] %v349
      %v351 = vld [vmem:[#allocation3 + $0xc] sm:$0x1]
      %v352 = vsel %vm230, 0, %v351
      %353 = vst [vmem:[#allocation3 + $0xc] sm:$0x1] %v352
      %v354 = vld [vmem:[#allocation3 + $0x18] sm:$0x1]
      %v355 = vsel %vm230, 0, %v354
      %356 = vst [vmem:[#allocation3 + $0x18] sm:$0x1] %v355
      %v357 = vld [vmem:[#allocation3 + $0x24] sm:$0x1]
      %v358 = vsel %vm230, 0, %v357
      %359 = vst [vmem:[#allocation3 + $0x24] sm:$0x1] %v358
      %v360 = vld [vmem:[#allocation3 + $0x30] sm:$0x1]
      %v361 = vsel %vm230, 0, %v360
      %362 = vst [vmem:[#allocation3 + $0x30] sm:$0x1] %v361
      %v363 = vld [vmem:[#allocation3 + $0x3c] sm:$0x1]
      %v364 = vsel %vm230, 0, %v363
      %365 = vst [vmem:[#allocation3 + $0x3c] sm:$0x1] %v364
      %v366 = vld [vmem:[#allocation3 + $0x48] sm:$0x1]
      %v367 = vsel %vm230, 0, %v366
      %368 = vst [vmem:[#allocation3 + $0x48] sm:$0x1] %v367
      %v369 = vld [vmem:[#allocation3 + $0x54] sm:$0x1]
      %v370 = vsel %vm230, 0, %v369
      %371 = vst [vmem:[#allocation3 + $0x54] sm:$0x1] %v370
      %v372 = vld [vmem:[#allocation3 + $0x60] sm:$0x1]
      %v373 = vsel %vm230, 0, %v372
      %374 = vst [vmem:[#allocation3 + $0x60] sm:$0x1] %v373
      %v375 = vld [vmem:[#allocation3 + $0x6c] sm:$0x1]
      %v376 = vsel %vm230, 0, %v375
      %377 = vst [vmem:[#allocation3 + $0x6c] sm:$0x1] %v376
      %v378 = vld [vmem:[#allocation3 + $0x78] sm:$0x1]
      %v379 = vsel %vm230, 0, %v378
      %380 = vst [vmem:[#allocation3 + $0x78] sm:$0x1] %v379
      %v381 = vld [vmem:[#allocation3 + $0x84] sm:$0x1]
      %v382 = vsel %vm230, 0, %v381
      %383 = vst [vmem:[#allocation3 + $0x84] sm:$0x1] %v382
      %v384 = vld [vmem:[#allocation3 + $0x90] sm:$0x1]
      %v385 = vsel %vm230, 0, %v384
      %386 = vst [vmem:[#allocation3 + $0x90] sm:$0x1] %v385
      %v387 = vld [vmem:[#allocation3 + $0x9c] sm:$0x1]
      %v388 = vsel %vm230, 0, %v387
      %389 = vst [vmem:[#allocation3 + $0x9c] sm:$0x1] %v388
      %v390 = vld [vmem:[#allocation3 + $0xa8] sm:$0x1]
      %v391 = vsel %vm230, 0, %v390
      %392 = vst [vmem:[#allocation3 + $0xa8] sm:$0x1] %v391
      %v393 = vld [vmem:[#allocation3 + $0xb4] sm:$0x1]
      %v394 = vsel %vm230, 0, %v393
      %395 = vst [vmem:[#allocation3 + $0xb4] sm:$0x1] %v394
      %v396 = vld [vmem:[#allocation3 + $0xc0] sm:$0x1]
      %v397 = vsel %vm230, 0, %v396
      %398 = vst [vmem:[#allocation3 + $0xc0] sm:$0x1] %v397
      %v399 = vld [vmem:[#allocation3 + $0xcc] sm:$0x1]
      %v400 = vsel %vm230, 0, %v399
      %401 = vst [vmem:[#allocation3 + $0xcc] sm:$0x1] %v400
      %v402 = vld [vmem:[#allocation3 + $0x8] sm:$0x1]
      %v403 = vsel %vm286, 0, %v402
      %404 = vst [vmem:[#allocation3 + $0x8] sm:$0x1] %v403
      %v405 = vld [vmem:[#allocation3 + $0x14] sm:$0x1]
      %v406 = vsel %vm286, 0, %v405
      %407 = vst [vmem:[#allocation3 + $0x14] sm:$0x1] %v406
      %v408 = vld [vmem:[#allocation3 + $0x20] sm:$0x1]
      %v409 = vsel %vm286, 0, %v408
      %410 = vst [vmem:[#allocation3 + $0x20] sm:$0x1] %v409
      %v411 = vld [vmem:[#allocation3 + $0x2c] sm:$0x1]
      %v412 = vsel %vm286, 0, %v411
      %413 = vst [vmem:[#allocation3 + $0x2c] sm:$0x1] %v412
      %v414 = vld [vmem:[#allocation3 + $0x38] sm:$0x1]
      %v415 = vsel %vm286, 0, %v414
      %416 = vst [vmem:[#allocation3 + $0x38] sm:$0x1] %v415
      %v417 = vld [vmem:[#allocation3 + $0x44] sm:$0x1]
      %v418 = vsel %vm286, 0, %v417
      %419 = vst [vmem:[#allocation3 + $0x44] sm:$0x1] %v418
      %v420 = vld [vmem:[#allocation3 + $0x50] sm:$0x1]
      %v421 = vsel %vm286, 0, %v420
      %422 = vst [vmem:[#allocation3 + $0x50] sm:$0x1] %v421
      %v423 = vld [vmem:[#allocation3 + $0x5c] sm:$0x1]
      %v424 = vsel %vm286, 0, %v423
      %425 = vst [vmem:[#allocation3 + $0x5c] sm:$0x1] %v424
      %v426 = vld [vmem:[#allocation3 + $0x68] sm:$0x1]
      %v427 = vsel %vm286, 0, %v426
      %428 = vst [vmem:[#allocation3 + $0x68] sm:$0x1] %v427
      %v429 = vld [vmem:[#allocation3 + $0x74] sm:$0x1]
      %v430 = vsel %vm286, 0, %v429
      %431 = vst [vmem:[#allocation3 + $0x74] sm:$0x1] %v430
      %v432 = vld [vmem:[#allocation3 + $0x80] sm:$0x1]
      %v433 = vsel %vm286, 0, %v432
      %434 = vst [vmem:[#allocation3 + $0x80] sm:$0x1] %v433
      %v435 = vld [vmem:[#allocation3 + $0x8c] sm:$0x1]
      %v436 = vsel %vm286, 0, %v435
      %437 = vst [vmem:[#allocation3 + $0x8c] sm:$0x1] %v436
      %v438 = vld [vmem:[#allocation3 + $0x98] sm:$0x1]
      %v439 = vsel %vm286, 0, %v438
      %440 = vst [vmem:[#allocation3 + $0x98] sm:$0x1] %v439
      %v441 = vld [vmem:[#allocation3 + $0xa4] sm:$0x1]
      %v442 = vsel %vm286, 0, %v441
      %443 = vst [vmem:[#allocation3 + $0xa4] sm:$0x1] %v442
      %v444 = vld [vmem:[#allocation3 + $0xb0] sm:$0x1]
      %v445 = vsel %vm286, 0, %v444
      %446 = vst [vmem:[#allocation3 + $0xb0] sm:$0x1] %v445
      %v447 = vld [vmem:[#allocation3 + $0xbc] sm:$0x1]
      %v448 = vsel %vm286, 0, %v447
      %449 = vst [vmem:[#allocation3 + $0xbc] sm:$0x1] %v448
      %v450 = vld [vmem:[#allocation3 + $0xc8] sm:$0x1]
      %v451 = vsel %vm286, 0, %v450
      %452 = vst [vmem:[#allocation3 + $0xc8] sm:$0x1] %v451
      %v453 = vld [vmem:[#allocation3 + $0xd4] sm:$0x1]
      %v454 = vsel %vm286, 0, %v453
      %455 = vst [vmem:[#allocation3 + $0xd4] sm:$0x1] %v454
      %v456 = vld [vmem:[%s207] sm:$0xff]
      %v457 = vld [vmem:[%s207 + $0x8] sm:$0xff]
      %v458 = vld [vmem:[%s207 + $0x10] sm:$0xff]
      %v459 = vld [vmem:[%s207 + $0x18] sm:$0xff]
      %v460 = vld [vmem:[%s207 + $0x20] sm:$0xff]
      %v461 = vld [vmem:[%s207 + $0x28] sm:$0xff]
      %v462 = vld [vmem:[%s207 + $0x30] sm:$0xff]
      %v463 = vld [vmem:[%s207 + $0x38] sm:$0xff]
      %v464 = vld [vmem:[%s207 + $0x40] sm:$0xff]
      %v465 = vld [vmem:[%s207 + $0x48] sm:$0xff]
      %v466 = vld [vmem:[%s207 + $0x50] sm:$0xff]
      %v467 = vld [vmem:[%s207 + $0x58] sm:$0xff]
      %v468 = vld [vmem:[%s207 + $0x60] sm:$0xff]
      %v469 = vld [vmem:[%s207 + $0x68] sm:$0xff]
      %v470 = vld [vmem:[%s207 + $0x70] sm:$0xff]
      %v471 = vld [vmem:[%s207 + $0x78] sm:$0xff]
      %v472 = vld [vmem:[%s207 + $0x80] sm:$0xff]
      %v473 = vld [vmem:[%s207 + $0x88] sm:$0xff]
      %v474 = vld [vmem:[%s207 + $0x90] sm:$0xff]
      %v475 = vld [vmem:[%s207 + $0x98] sm:$0xff]
      %v476 = vld [vmem:[%s207 + $0xa0] sm:$0xff]
      %v477 = vld [vmem:[%s207 + $0xa8] sm:$0xff]
      %v478 = vld [vmem:[%s207 + $0xb0] sm:$0xff]
      %v479 = vld [vmem:[%s207 + $0xb8] sm:$0xff]
      %v480 = vld [vmem:[%s207 + $0xc0] sm:$0xff]
      %v481 = vld [vmem:[%s207 + $0xc8] sm:$0xff]
      %v482 = vld [vmem:[%s207 + $0xd0] sm:$0xff]
      %v483 = vld [vmem:[%s207 + $0xd8] sm:$0xff]
      %v484 = vld [vmem:[%s207 + $0xe0] sm:$0xff]
      %v485 = vld [vmem:[%s207 + $0xe8] sm:$0xff]
      %v486 = vld [vmem:[%s207 + $0xf0] sm:$0xff]
      %v487 = vld [vmem:[%s207 + $0xf8] sm:$0xff]
      %v488 = vld [vmem:[%s212] sm:$0xff]
      %v489 = vld [vmem:[%s212 + $0x8] sm:$0xff]
      %v490 = vld [vmem:[%s212 + $0x10] sm:$0xff]
      %v491 = vld [vmem:[%s212 + $0x18] sm:$0xff]
      %v492 = vld [vmem:[%s212 + $0x20] sm:$0xff]
      %v493 = vld [vmem:[%s212 + $0x28] sm:$0xff]
      %v494 = vld [vmem:[%s212 + $0x30] sm:$0xff]
      %v495 = vld [vmem:[%s212 + $0x38] sm:$0xff]
      %v496 = vld [vmem:[%s212 + $0x40] sm:$0xff]
      %v497 = vld [vmem:[%s212 + $0x48] sm:$0xff]
      %v498 = vld [vmem:[%s212 + $0x50] sm:$0xff]
      %v499 = vld [vmem:[%s212 + $0x58] sm:$0xff]
      %v500 = vld [vmem:[%s212 + $0x60] sm:$0xff]
      %v501 = vld [vmem:[%s212 + $0x68] sm:$0xff]
      %v502 = vld [vmem:[%s212 + $0x70] sm:$0xff]
      %v503 = vld [vmem:[%s212 + $0x78] sm:$0xff]
      %v504 = vld [vmem:[%s212 + $0x80] sm:$0xff]
      %v505 = vld [vmem:[%s212 + $0x88] sm:$0xff]
      %v506 = vld [vmem:[%s212 + $0x90] sm:$0xff]
      %v507 = vld [vmem:[%s212 + $0x98] sm:$0xff]
      %v508 = vld [vmem:[%s212 + $0xa0] sm:$0xff]
      %v509 = vld [vmem:[%s212 + $0xa8] sm:$0xff]
      %v510 = vld [vmem:[%s212 + $0xb0] sm:$0xff]
      %v511 = vld [vmem:[%s212 + $0xb8] sm:$0xff]
      %v512 = vld [vmem:[%s212 + $0xc0] sm:$0xff]
      %v513 = vld [vmem:[%s212 + $0xc8] sm:$0xff]
      %v514 = vld [vmem:[%s212 + $0xd0] sm:$0xff]
      %v515 = vld [vmem:[%s212 + $0xd8] sm:$0xff]
      %v516 = vld [vmem:[%s212 + $0xe0] sm:$0xff]
      %v517 = vld [vmem:[%s212 + $0xe8] sm:$0xff]
      %v518 = vld [vmem:[%s212 + $0xf0] sm:$0xff]
      %v519 = vld [vmem:[%s212 + $0xf8] sm:$0xff]
      %552 = vrot.lane.b32.xlu0 %v488, 4
      %v553 = vpop.permute.xlu0 %552
      %554 = vrot.lane.b32.xlu0 %v489, 4
      %v555 = vpop.permute.xlu0 %554
      %556 = vrot.lane.b32.xlu0 %v490, 4
      %v557 = vpop.permute.xlu0 %556
      %558 = vrot.lane.b32.xlu0 %v491, 4
      %v559 = vpop.permute.xlu0 %558
      %560 = vrot.lane.b32.xlu0 %v492, 4
      %v561 = vpop.permute.xlu0 %560
      %562 = vrot.lane.b32.xlu0 %v493, 4
      %v563 = vpop.permute.xlu0 %562
      %564 = vrot.lane.b32.xlu0 %v494, 4
      %v565 = vpop.permute.xlu0 %564
      %566 = vrot.lane.b32.xlu0 %v495, 4
      %v567 = vpop.permute.xlu0 %566
      %568 = vrot.lane.b32.xlu0 %v496, 4
      %v569 = vpop.permute.xlu0 %568
      %570 = vrot.lane.b32.xlu0 %v497, 4
      %v571 = vpop.permute.xlu0 %570
      %572 = vrot.lane.b32.xlu0 %v498, 4
      %v573 = vpop.permute.xlu0 %572
      %574 = vrot.lane.b32.xlu0 %v499, 4
      %v575 = vpop.permute.xlu0 %574
      %576 = vrot.lane.b32.xlu0 %v500, 4
      %v577 = vpop.permute.xlu0 %576
      %578 = vrot.lane.b32.xlu0 %v501, 4
      %v579 = vpop.permute.xlu0 %578
      %580 = vrot.lane.b32.xlu0 %v502, 4
      %v581 = vpop.permute.xlu0 %580
      %582 = vrot.lane.b32.xlu0 %v503, 4
      %v583 = vpop.permute.xlu0 %582
      %584 = vrot.lane.b32.xlu0 %v504, 4
      %v585 = vpop.permute.xlu0 %584
      %586 = vrot.lane.b32.xlu0 %v505, 4
      %v587 = vpop.permute.xlu0 %586
      %588 = vrot.lane.b32.xlu0 %v506, 4
      %v589 = vpop.permute.xlu0 %588
      %590 = vrot.lane.b32.xlu0 %v507, 4
      %v591 = vpop.permute.xlu0 %590
      %592 = vrot.lane.b32.xlu0 %v508, 4
      %v593 = vpop.permute.xlu0 %592
      %594 = vrot.lane.b32.xlu0 %v509, 4
      %v595 = vpop.permute.xlu0 %594
      %596 = vrot.lane.b32.xlu0 %v510, 4
      %v597 = vpop.permute.xlu0 %596
      %598 = vrot.lane.b32.xlu0 %v511, 4
      %v599 = vpop.permute.xlu0 %598
      %600 = vrot.lane.b32.xlu0 %v512, 4
      %v601 = vpop.permute.xlu0 %600
      %602 = vrot.lane.b32.xlu0 %v513, 4
      %v603 = vpop.permute.xlu0 %602
      %604 = vrot.lane.b32.xlu0 %v514, 4
      %v605 = vpop.permute.xlu0 %604
      %606 = vrot.lane.b32.xlu0 %v515, 4
      %v607 = vpop.permute.xlu0 %606
      %608 = vrot.lane.b32.xlu0 %v516, 4
      %v609 = vpop.permute.xlu0 %608
      %610 = vrot.lane.b32.xlu0 %v517, 4
      %v611 = vpop.permute.xlu0 %610
      %612 = vrot.lane.b32.xlu0 %v518, 4
      %v613 = vpop.permute.xlu0 %612
      %614 = vrot.lane.b32.xlu0 %v519, 4
      %v615 = vpop.permute.xlu0 %614
      %vm648 = vcmask 31744
      %v649 = vsel %vm648, %v456, %v553
      %v650 = vsel %vm648, %v457, %v555
      %v651 = vsel %vm648, %v458, %v557
      %v652 = vsel %vm648, %v459, %v559
      %v653 = vsel %vm648, %v460, %v561
      %v654 = vsel %vm648, %v461, %v563
      %v655 = vsel %vm648, %v462, %v565
      %v656 = vsel %vm648, %v463, %v567
      %v657 = vsel %vm648, %v464, %v569
      %v658 = vsel %vm648, %v465, %v571
      %v659 = vsel %vm648, %v466, %v573
      %v660 = vsel %vm648, %v467, %v575
      %v661 = vsel %vm648, %v468, %v577
      %v662 = vsel %vm648, %v469, %v579
      %v663 = vsel %vm648, %v470, %v581
      %v664 = vsel %vm648, %v471, %v583
      %v665 = vsel %vm648, %v472, %v585
      %v666 = vsel %vm648, %v473, %v587
      %v667 = vsel %vm648, %v474, %v589
      %v668 = vsel %vm648, %v475, %v591
      %v669 = vsel %vm648, %v476, %v593
      %v670 = vsel %vm648, %v477, %v595
      %v671 = vsel %vm648, %v478, %v597
      %v672 = vsel %vm648, %v479, %v599
      %v673 = vsel %vm648, %v480, %v601
      %v674 = vsel %vm648, %v481, %v603
      %v675 = vsel %vm648, %v482, %v605
      %v676 = vsel %vm648, %v483, %v607
      %v677 = vsel %vm648, %v484, %v609
      %v678 = vsel %vm648, %v485, %v611
      %v679 = vsel %vm648, %v486, %v613
      %v680 = vsel %vm648, %v487, %v615
      %v681 = vpack.c.bf16 %v649, %v649
      %v682 = vpack.c.bf16 %v650, %v650
      %v683 = vpack.c.bf16 %v651, %v651
      %v684 = vpack.c.bf16 %v652, %v652
      %v685 = vpack.c.bf16 %v653, %v653
      %v686 = vpack.c.bf16 %v654, %v654
      %v687 = vpack.c.bf16 %v655, %v655
      %v688 = vpack.c.bf16 %v656, %v656
      %v689 = vpack.c.bf16 %v657, %v657
      %v690 = vpack.c.bf16 %v658, %v658
      %v691 = vpack.c.bf16 %v659, %v659
      %v692 = vpack.c.bf16 %v660, %v660
      %v693 = vpack.c.bf16 %v661, %v661
      %v694 = vpack.c.bf16 %v662, %v662
      %v695 = vpack.c.bf16 %v663, %v663
      %v696 = vpack.c.bf16 %v664, %v664
      %v697 = vpack.c.bf16 %v665, %v665
      %v698 = vpack.c.bf16 %v666, %v666
      %v699 = vpack.c.bf16 %v667, %v667
      %v700 = vpack.c.bf16 %v668, %v668
      %v701 = vpack.c.bf16 %v669, %v669
      %v702 = vpack.c.bf16 %v670, %v670
      %v703 = vpack.c.bf16 %v671, %v671
      %v704 = vpack.c.bf16 %v672, %v672
      %v705 = vpack.c.bf16 %v673, %v673
      %v706 = vpack.c.bf16 %v674, %v674
      %v707 = vpack.c.bf16 %v675, %v675
      %v708 = vpack.c.bf16 %v676, %v676
      %v709 = vpack.c.bf16 %v677, %v677
      %v710 = vpack.c.bf16 %v678, %v678
      %v711 = vpack.c.bf16 %v679, %v679
      %v712 = vpack.c.bf16 %v680, %v680
      %vm713 = vsmask.f32 4368
      %vm714 = vmor %vm229, %vm713
      %v716 = vshrl.u32 %v681, 16
      %v718 = vrot.slane %v716, 7
      %v719 = vshll.u32 %v681, 16
      %v721 = vor.u32 %v718, %v719
      %v722 = vrot.slane %v718, 4
      %v724 = vshrl.u32 %v682, 16
      %v726 = vrot.slane %v724, 7
      %v727 = vshll.u32 %v682, 16
      %v729 = vor.u32 %v726, %v727
      %v730 = vsel %vm714, %v722, %v729
      %v731 = vrot.slane %v726, 4
      %v733 = vshrl.u32 %v683, 16
      %v735 = vrot.slane %v733, 7
      %v736 = vshll.u32 %v683, 16
      %v738 = vor.u32 %v735, %v736
      %v739 = vrot.slane %v735, 4
      %v741 = vshrl.u32 %v684, 16
      %v743 = vrot.slane %v741, 7
      %v744 = vshll.u32 %v684, 16
      %v746 = vor.u32 %v743, %v744
      %v747 = vsel %vm714, %v739, %v746
      %v748 = vrot.slane %v743, 4
      %v750 = vshrl.u32 %v685, 16
      %v752 = vrot.slane %v750, 7
      %v753 = vshll.u32 %v685, 16
      %v755 = vor.u32 %v752, %v753
      %v756 = vrot.slane %v752, 4
      %v758 = vshrl.u32 %v686, 16
      %v760 = vrot.slane %v758, 7
      %v761 = vshll.u32 %v686, 16
      %v763 = vor.u32 %v760, %v761
      %v764 = vsel %vm714, %v756, %v763
      %v765 = vrot.slane %v760, 4
      %v767 = vshrl.u32 %v687, 16
      %v769 = vrot.slane %v767, 7
      %v770 = vshll.u32 %v687, 16
      %v772 = vor.u32 %v769, %v770
      %v773 = vrot.slane %v769, 4
      %v775 = vshrl.u32 %v688, 16
      %v777 = vrot.slane %v775, 7
      %v778 = vshll.u32 %v688, 16
      %v780 = vor.u32 %v777, %v778
      %v781 = vsel %vm714, %v773, %v780
      %v782 = vrot.slane %v777, 4
      %v784 = vshrl.u32 %v689, 16
      %v786 = vrot.slane %v784, 7
      %v787 = vshll.u32 %v689, 16
      %v789 = vor.u32 %v786, %v787
      %v790 = vrot.slane %v786, 4
      %v792 = vshrl.u32 %v690, 16
      %v794 = vrot.slane %v792, 7
      %v795 = vshll.u32 %v690, 16
      %v797 = vor.u32 %v794, %v795
      %v798 = vsel %vm714, %v790, %v797
      %v799 = vrot.slane %v794, 4
      %v801 = vshrl.u32 %v691, 16
      %v803 = vrot.slane %v801, 7
      %v804 = vshll.u32 %v691, 16
      %v806 = vor.u32 %v803, %v804
      %v807 = vrot.slane %v803, 4
      %v809 = vshrl.u32 %v692, 16
      %v811 = vrot.slane %v809, 7
      %v812 = vshll.u32 %v692, 16
      %v814 = vor.u32 %v811, %v812
      %v815 = vsel %vm714, %v807, %v814
      %v816 = vrot.slane %v811, 4
      %v818 = vshrl.u32 %v693, 16
      %v820 = vrot.slane %v818, 7
      %v821 = vshll.u32 %v693, 16
      %v823 = vor.u32 %v820, %v821
      %v824 = vrot.slane %v820, 4
      %v826 = vshrl.u32 %v694, 16
      %v828 = vrot.slane %v826, 7
      %v829 = vshll.u32 %v694, 16
      %v831 = vor.u32 %v828, %v829
      %v832 = vsel %vm714, %v824, %v831
      %v833 = vrot.slane %v828, 4
      %v835 = vshrl.u32 %v695, 16
      %v837 = vrot.slane %v835, 7
      %v838 = vshll.u32 %v695, 16
      %v840 = vor.u32 %v837, %v838
      %v841 = vrot.slane %v837, 4
      %v843 = vshrl.u32 %v696, 16
      %v845 = vrot.slane %v843, 7
      %v846 = vshll.u32 %v696, 16
      %v848 = vor.u32 %v845, %v846
      %v849 = vsel %vm714, %v841, %v848
      %v850 = vrot.slane %v845, 4
      %v852 = vshrl.u32 %v697, 16
      %v854 = vrot.slane %v852, 7
      %v855 = vshll.u32 %v697, 16
      %v857 = vor.u32 %v854, %v855
      %v858 = vrot.slane %v854, 4
      %v860 = vshrl.u32 %v698, 16
      %v862 = vrot.slane %v860, 7
      %v863 = vshll.u32 %v698, 16
      %v865 = vor.u32 %v862, %v863
      %v866 = vsel %vm714, %v858, %v865
      %v867 = vrot.slane %v862, 4
      %v869 = vshrl.u32 %v699, 16
      %v871 = vrot.slane %v869, 7
      %v872 = vshll.u32 %v699, 16
      %v874 = vor.u32 %v871, %v872
      %v875 = vrot.slane %v871, 4
      %v877 = vshrl.u32 %v700, 16
      %v879 = vrot.slane %v877, 7
      %v880 = vshll.u32 %v700, 16
      %v882 = vor.u32 %v879, %v880
      %v883 = vsel %vm714, %v875, %v882
      %v884 = vrot.slane %v879, 4
      %v886 = vshrl.u32 %v701, 16
      %v888 = vrot.slane %v886, 7
      %v889 = vshll.u32 %v701, 16
      %v891 = vor.u32 %v888, %v889
      %v892 = vrot.slane %v888, 4
      %v894 = vshrl.u32 %v702, 16
      %v896 = vrot.slane %v894, 7
      %v897 = vshll.u32 %v702, 16
      %v899 = vor.u32 %v896, %v897
      %v900 = vsel %vm714, %v892, %v899
      %v901 = vrot.slane %v896, 4
      %v903 = vshrl.u32 %v703, 16
      %v905 = vrot.slane %v903, 7
      %v906 = vshll.u32 %v703, 16
      %v908 = vor.u32 %v905, %v906
      %v909 = vrot.slane %v905, 4
      %v911 = vshrl.u32 %v704, 16
      %v913 = vrot.slane %v911, 7
      %v914 = vshll.u32 %v704, 16
      %v916 = vor.u32 %v913, %v914
      %v917 = vsel %vm714, %v909, %v916
      %v918 = vrot.slane %v913, 4
      %v920 = vshrl.u32 %v705, 16
      %v922 = vrot.slane %v920, 7
      %v923 = vshll.u32 %v705, 16
      %v925 = vor.u32 %v922, %v923
      %v926 = vrot.slane %v922, 4
      %v928 = vshrl.u32 %v706, 16
      %v930 = vrot.slane %v928, 7
      %v931 = vshll.u32 %v706, 16
      %v933 = vor.u32 %v930, %v931
      %v934 = vsel %vm714, %v926, %v933
      %v935 = vrot.slane %v930, 4
      %v937 = vshrl.u32 %v707, 16
      %v939 = vrot.slane %v937, 7
      %v940 = vshll.u32 %v707, 16
      %v942 = vor.u32 %v939, %v940
      %v943 = vrot.slane %v939, 4
      %v945 = vshrl.u32 %v708, 16
      %v947 = vrot.slane %v945, 7
      %v948 = vshll.u32 %v708, 16
      %v950 = vor.u32 %v947, %v948
      %v951 = vsel %vm714, %v943, %v950
      %v952 = vrot.slane %v947, 4
      %v954 = vshrl.u32 %v709, 16
      %v956 = vrot.slane %v954, 7
      %v957 = vshll.u32 %v709, 16
      %v959 = vor.u32 %v956, %v957
      %v960 = vrot.slane %v956, 4
      %v962 = vshrl.u32 %v710, 16
      %v964 = vrot.slane %v962, 7
      %v965 = vshll.u32 %v710, 16
      %v967 = vor.u32 %v964, %v965
      %v968 = vsel %vm714, %v960, %v967
      %v969 = vrot.slane %v964, 4
      %v971 = vshrl.u32 %v711, 16
      %v973 = vrot.slane %v971, 7
      %v974 = vshll.u32 %v711, 16
      %v976 = vor.u32 %v973, %v974
      %v977 = vrot.slane %v973, 4
      %v979 = vshrl.u32 %v712, 16
      %v981 = vrot.slane %v979, 7
      %v982 = vshll.u32 %v712, 16
      %v984 = vor.u32 %v981, %v982
      %v985 = vsel %vm714, %v977, %v984
      %v986 = vrot.slane %v981, 4
      %s1035 = scalar_lea.vmem [#allocation2], 12
      %vm1036 = vcmask 60416
      %vm1037 = vmand %vm1036, %vm285
      %v1038 = vld [vmem:[%s1035] sm:$0xf]
      %v1039 = vsel %vm1037, %v721, %v1038
      %1040 = vst [vmem:[%s1035] sm:$0xf] %v1039
      %1041 = vst.msk [vmem:[%s1035 + $0x4] sm:$0xf] %vm219, %v730
      %v1042 = vld [vmem:[%s1035 + $0x8] sm:$0x1]
      %v1043 = vsel %vm230, %v731, %v1042
      %1044 = vst [vmem:[%s1035 + $0x8] sm:$0x1] %v1043
      %v1045 = vld [vmem:[%s1035 + $0xc] sm:$0xf]
      %v1046 = vsel %vm1037, %v738, %v1045
      %1047 = vst [vmem:[%s1035 + $0xc] sm:$0xf] %v1046
      %1048 = vst.msk [vmem:[%s1035 + $0x10] sm:$0xf] %vm219, %v747
      %v1049 = vld [vmem:[%s1035 + $0x14] sm:$0x1]
      %v1050 = vsel %vm230, %v748, %v1049
      %1051 = vst [vmem:[%s1035 + $0x14] sm:$0x1] %v1050
      %v1052 = vld [vmem:[%s1035 + $0x18] sm:$0xf]
      %v1053 = vsel %vm1037, %v755, %v1052
      %1054 = vst [vmem:[%s1035 + $0x18] sm:$0xf] %v1053
      %1055 = vst.msk [vmem:[%s1035 + $0x1c] sm:$0xf] %vm219, %v764
      %v1056 = vld [vmem:[%s1035 + $0x20] sm:$0x1]
      %v1057 = vsel %vm230, %v765, %v1056
      %1058 = vst [vmem:[%s1035 + $0x20] sm:$0x1] %v1057
      %v1059 = vld [vmem:[%s1035 + $0x24] sm:$0xf]
      %v1060 = vsel %vm1037, %v772, %v1059
      %1061 = vst [vmem:[%s1035 + $0x24] sm:$0xf] %v1060
      %1062 = vst.msk [vmem:[%s1035 + $0x28] sm:$0xf] %vm219, %v781
      %v1063 = vld [vmem:[%s1035 + $0x2c] sm:$0x1]
      %v1064 = vsel %vm230, %v782, %v1063
      %1065 = vst [vmem:[%s1035 + $0x2c] sm:$0x1] %v1064
      %v1066 = vld [vmem:[%s1035 + $0x30] sm:$0xf]
      %v1067 = vsel %vm1037, %v789, %v1066
      %1068 = vst [vmem:[%s1035 + $0x30] sm:$0xf] %v1067
      %1069 = vst.msk [vmem:[%s1035 + $0x34] sm:$0xf] %vm219, %v798
      %v1070 = vld [vmem:[%s1035 + $0x38] sm:$0x1]
      %v1071 = vsel %vm230, %v799, %v1070
      %1072 = vst [vmem:[%s1035 + $0x38] sm:$0x1] %v1071
      %v1073 = vld [vmem:[%s1035 + $0x3c] sm:$0xf]
      %v1074 = vsel %vm1037, %v806, %v1073
      %1075 = vst [vmem:[%s1035 + $0x3c] sm:$0xf] %v1074
      %1076 = vst.msk [vmem:[%s1035 + $0x40] sm:$0xf] %vm219, %v815
      %v1077 = vld [vmem:[%s1035 + $0x44] sm:$0x1]
      %v1078 = vsel %vm230, %v816, %v1077
      %1079 = vst [vmem:[%s1035 + $0x44] sm:$0x1] %v1078
      %v1080 = vld [vmem:[%s1035 + $0x48] sm:$0xf]
      %v1081 = vsel %vm1037, %v823, %v1080
      %1082 = vst [vmem:[%s1035 + $0x48] sm:$0xf] %v1081
      %1083 = vst.msk [vmem:[%s1035 + $0x4c] sm:$0xf] %vm219, %v832
      %v1084 = vld [vmem:[%s1035 + $0x50] sm:$0x1]
      %v1085 = vsel %vm230, %v833, %v1084
      %1086 = vst [vmem:[%s1035 + $0x50] sm:$0x1] %v1085
      %v1087 = vld [vmem:[%s1035 + $0x54] sm:$0xf]
      %v1088 = vsel %vm1037, %v840, %v1087
      %1089 = vst [vmem:[%s1035 + $0x54] sm:$0xf] %v1088
      %1090 = vst.msk [vmem:[%s1035 + $0x58] sm:$0xf] %vm219, %v849
      %v1091 = vld [vmem:[%s1035 + $0x5c] sm:$0x1]
      %v1092 = vsel %vm230, %v850, %v1091
      %1093 = vst [vmem:[%s1035 + $0x5c] sm:$0x1] %v1092
      %v1094 = vld [vmem:[%s1035 + $0x60] sm:$0xf]
      %v1095 = vsel %vm1037, %v857, %v1094
      %1096 = vst [vmem:[%s1035 + $0x60] sm:$0xf] %v1095
      %1097 = vst.msk [vmem:[%s1035 + $0x64] sm:$0xf] %vm219, %v866
      %v1098 = vld [vmem:[%s1035 + $0x68] sm:$0x1]
      %v1099 = vsel %vm230, %v867, %v1098
      %1100 = vst [vmem:[%s1035 + $0x68] sm:$0x1] %v1099
      %v1101 = vld [vmem:[%s1035 + $0x6c] sm:$0xf]
      %v1102 = vsel %vm1037, %v874, %v1101
      %1103 = vst [vmem:[%s1035 + $0x6c] sm:$0xf] %v1102
      %1104 = vst.msk [vmem:[%s1035 + $0x70] sm:$0xf] %vm219, %v883
      %v1105 = vld [vmem:[%s1035 + $0x74] sm:$0x1]
      %v1106 = vsel %vm230, %v884, %v1105
      %1107 = vst [vmem:[%s1035 + $0x74] sm:$0x1] %v1106
      %v1108 = vld [vmem:[%s1035 + $0x78] sm:$0xf]
      %v1109 = vsel %vm1037, %v891, %v1108
      %1110 = vst [vmem:[%s1035 + $0x78] sm:$0xf] %v1109
      %1111 = vst.msk [vmem:[%s1035 + $0x7c] sm:$0xf] %vm219, %v900
      %v1112 = vld [vmem:[%s1035 + $0x80] sm:$0x1]
      %v1113 = vsel %vm230, %v901, %v1112
      %1114 = vst [vmem:[%s1035 + $0x80] sm:$0x1] %v1113
      %v1115 = vld [vmem:[%s1035 + $0x84] sm:$0xf]
      %v1116 = vsel %vm1037, %v908, %v1115
      %1117 = vst [vmem:[%s1035 + $0x84] sm:$0xf] %v1116
      %1118 = vst.msk [vmem:[%s1035 + $0x88] sm:$0xf] %vm219, %v917
      %v1119 = vld [vmem:[%s1035 + $0x8c] sm:$0x1]
      %v1120 = vsel %vm230, %v918, %v1119
      %1121 = vst [vmem:[%s1035 + $0x8c] sm:$0x1] %v1120
      %v1122 = vld [vmem:[%s1035 + $0x90] sm:$0xf]
      %v1123 = vsel %vm1037, %v925, %v1122
      %1124 = vst [vmem:[%s1035 + $0x90] sm:$0xf] %v1123
      %1125 = vst.msk [vmem:[%s1035 + $0x94] sm:$0xf] %vm219, %v934
      %v1126 = vld [vmem:[%s1035 + $0x98] sm:$0x1]
      %v1127 = vsel %vm230, %v935, %v1126
      %1128 = vst [vmem:[%s1035 + $0x98] sm:$0x1] %v1127
      %v1129 = vld [vmem:[%s1035 + $0x9c] sm:$0xf]
      %v1130 = vsel %vm1037, %v942, %v1129
      %1131 = vst [vmem:[%s1035 + $0x9c] sm:$0xf] %v1130
      %1132 = vst.msk [vmem:[%s1035 + $0xa0] sm:$0xf] %vm219, %v951
      %v1133 = vld [vmem:[%s1035 + $0xa4] sm:$0x1]
      %v1134 = vsel %vm230, %v952, %v1133
      %1135 = vst [vmem:[%s1035 + $0xa4] sm:$0x1] %v1134
      %v1136 = vld [vmem:[%s1035 + $0xa8] sm:$0xf]
      %v1137 = vsel %vm1037, %v959, %v1136
      %1138 = vst [vmem:[%s1035 + $0xa8] sm:$0xf] %v1137
      %1139 = vst.msk [vmem:[%s1035 + $0xac] sm:$0xf] %vm219, %v968
      %v1140 = vld [vmem:[%s1035 + $0xb0] sm:$0x1]
      %v1141 = vsel %vm230, %v969, %v1140
      %1142 = vst [vmem:[%s1035 + $0xb0] sm:$0x1] %v1141
      %v1143 = vld [vmem:[%s1035 + $0xb4] sm:$0xf]
      %v1144 = vsel %vm1037, %v976, %v1143
      %1145 = vst [vmem:[%s1035 + $0xb4] sm:$0xf] %v1144
      %1146 = vst.msk [vmem:[%s1035 + $0xb8] sm:$0xf] %vm219, %v985
      %v1147 = vld [vmem:[%s1035 + $0xbc] sm:$0x1]
      %v1148 = vsel %vm230, %v986, %v1147
      %1149 = vst [vmem:[%s1035 + $0xbc] sm:$0x1] %v1148
      %v1150 = vld [vmem:[#allocation2] sm:$0xf]
      %v1151 = vld [vmem:[#allocation2 + $0x4] sm:$0xf]
      %v1152 = vld [vmem:[#allocation2 + $0xc] sm:$0xf]
      %v1153 = vld [vmem:[#allocation2 + $0x10] sm:$0xf]
      %v1154 = vld [vmem:[#allocation2 + $0x18] sm:$0xf]
      %v1155 = vld [vmem:[#allocation2 + $0x1c] sm:$0xf]
      %v1156 = vld [vmem:[#allocation2 + $0x24] sm:$0xf]
      %v1157 = vld [vmem:[#allocation2 + $0x28] sm:$0xf]
      %v1158 = vld [vmem:[#allocation2 + $0x30] sm:$0xf]
      %v1159 = vld [vmem:[#allocation2 + $0x34] sm:$0xf]
      %v1160 = vld [vmem:[#allocation2 + $0x3c] sm:$0xf]
      %v1161 = vld [vmem:[#allocation2 + $0x40] sm:$0xf]
      %v1162 = vld [vmem:[#allocation2 + $0x48] sm:$0xf]
      %v1163 = vld [vmem:[#allocation2 + $0x4c] sm:$0xf]
      %v1164 = vld [vmem:[#allocation2 + $0x54] sm:$0xf]
      %v1165 = vld [vmem:[#allocation2 + $0x58] sm:$0xf]
      %v1166 = vld [vmem:[#allocation2 + $0x60] sm:$0xf]
      %v1167 = vld [vmem:[#allocation2 + $0x64] sm:$0xf]
      %v1168 = vld [vmem:[#allocation2 + $0x6c] sm:$0xf]
      %v1169 = vld [vmem:[#allocation2 + $0x70] sm:$0xf]
      %v1170 = vld [vmem:[#allocation2 + $0x78] sm:$0xf]
      %v1171 = vld [vmem:[#allocation2 + $0x7c] sm:$0xf]
      %v1172 = vld [vmem:[#allocation2 + $0x84] sm:$0xf]
      %v1173 = vld [vmem:[#allocation2 + $0x88] sm:$0xf]
      %v1174 = vld [vmem:[#allocation2 + $0x90] sm:$0xf]
      %v1175 = vld [vmem:[#allocation2 + $0x94] sm:$0xf]
      %v1176 = vld [vmem:[#allocation2 + $0x9c] sm:$0xf]
      %v1177 = vld [vmem:[#allocation2 + $0xa0] sm:$0xf]
      %v1178 = vld [vmem:[#allocation2 + $0xa8] sm:$0xf]
      %v1179 = vld [vmem:[#allocation2 + $0xac] sm:$0xf]
      %v1180 = vld [vmem:[#allocation2 + $0xb4] sm:$0xf]
      %v1181 = vld [vmem:[#allocation2 + $0xb8] sm:$0xf]
      %v1182 = vld [vmem:[#allocation2 + $0x8] sm:$0x1]
      %v1183 = vld [vmem:[#allocation2 + $0x14] sm:$0x1]
      %v1184 = vld [vmem:[#allocation2 + $0x20] sm:$0x1]
      %v1185 = vld [vmem:[#allocation2 + $0x2c] sm:$0x1]
      %v1186 = vld [vmem:[#allocation2 + $0x38] sm:$0x1]
      %v1187 = vld [vmem:[#allocation2 + $0x44] sm:$0x1]
      %v1188 = vld [vmem:[#allocation2 + $0x50] sm:$0x1]
      %v1189 = vld [vmem:[#allocation2 + $0x5c] sm:$0x1]
      %v1190 = vld [vmem:[#allocation2 + $0x68] sm:$0x1]
      %v1191 = vld [vmem:[#allocation2 + $0x74] sm:$0x1]
      %v1192 = vld [vmem:[#allocation2 + $0x80] sm:$0x1]
      %v1193 = vld [vmem:[#allocation2 + $0x8c] sm:$0x1]
      %v1194 = vld [vmem:[#allocation2 + $0x98] sm:$0x1]
      %v1195 = vld [vmem:[#allocation2 + $0xa4] sm:$0x1]
      %v1196 = vld [vmem:[#allocation2 + $0xb0] sm:$0x1]
      %v1197 = vld [vmem:[#allocation2 + $0xbc] sm:$0x1]
      %vm1198 = vsmask.f32 3328
      %vm1199 = vsmask.f32 7440
      %vm1200 = vmor %vm1198, %vm1199
      %v1202 = vshrl.u32 %v1150, 16
      %v1204 = vrot.slane %v1202, 4
      %v1205 = vshll.u32 %v1150, 16
      %v1207 = vrot.slane %v1205, 5
      %v1208 = vor.u32 %v1204, %v1207
      %v1209 = vrot.slane %v1208, 4
      %v1211 = vshll.u32 %v1151, 16
      %v1213 = vrot.slane %v1211, 5
      %v1214 = vsel %vm1200, %v1209, %v1213
      %v1215 = vshrl.u32 %v1151, 16
      %v1217 = vrot.slane %v1215, 4
      %v1218 = vor.u32 %v1217, %v1213
      %v1219 = vrot.slane %v1218, 4
      %v1221 = vshll.u32 %v1182, 16
      %v1223 = vrot.slane %v1221, 5
      %v1224 = vsel %vm1200, %v1219, %v1223
      %v1226 = vshrl.u32 %v1152, 16
      %v1228 = vrot.slane %v1226, 4
      %v1229 = vshll.u32 %v1152, 16
      %v1231 = vrot.slane %v1229, 5
      %v1232 = vor.u32 %v1228, %v1231
      %v1233 = vrot.slane %v1232, 4
      %v1235 = vshll.u32 %v1153, 16
      %v1237 = vrot.slane %v1235, 5
      %v1238 = vsel %vm1200, %v1233, %v1237
      %v1239 = vshrl.u32 %v1153, 16
      %v1241 = vrot.slane %v1239, 4
      %v1242 = vor.u32 %v1241, %v1237
      %v1243 = vrot.slane %v1242, 4
      %v1245 = vshll.u32 %v1183, 16
      %v1247 = vrot.slane %v1245, 5
      %v1248 = vsel %vm1200, %v1243, %v1247
      %v1250 = vshrl.u32 %v1154, 16
      %v1252 = vrot.slane %v1250, 4
      %v1253 = vshll.u32 %v1154, 16
      %v1255 = vrot.slane %v1253, 5
      %v1256 = vor.u32 %v1252, %v1255
      %v1257 = vrot.slane %v1256, 4
      %v1259 = vshll.u32 %v1155, 16
      %v1261 = vrot.slane %v1259, 5
      %v1262 = vsel %vm1200, %v1257, %v1261
      %v1263 = vshrl.u32 %v1155, 16
      %v1265 = vrot.slane %v1263, 4
      %v1266 = vor.u32 %v1265, %v1261
      %v1267 = vrot.slane %v1266, 4
      %v1269 = vshll.u32 %v1184, 16
      %v1271 = vrot.slane %v1269, 5
      %v1272 = vsel %vm1200, %v1267, %v1271
      %v1274 = vshrl.u32 %v1156, 16
      %v1276 = vrot.slane %v1274, 4
      %v1277 = vshll.u32 %v1156, 16
      %v1279 = vrot.slane %v1277, 5
      %v1280 = vor.u32 %v1276, %v1279
      %v1281 = vrot.slane %v1280, 4
      %v1283 = vshll.u32 %v1157, 16
      %v1285 = vrot.slane %v1283, 5
      %v1286 = vsel %vm1200, %v1281, %v1285
      %v1287 = vshrl.u32 %v1157, 16
      %v1289 = vrot.slane %v1287, 4
      %v1290 = vor.u32 %v1289, %v1285
      %v1291 = vrot.slane %v1290, 4
      %v1293 = vshll.u32 %v1185, 16
      %v1295 = vrot.slane %v1293, 5
      %v1296 = vsel %vm1200, %v1291, %v1295
      %v1298 = vshrl.u32 %v1158, 16
      %v1300 = vrot.slane %v1298, 4
      %v1301 = vshll.u32 %v1158, 16
      %v1303 = vrot.slane %v1301, 5
      %v1304 = vor.u32 %v1300, %v1303
      %v1305 = vrot.slane %v1304, 4
      %v1307 = vshll.u32 %v1159, 16
      %v1309 = vrot.slane %v1307, 5
      %v1310 = vsel %vm1200, %v1305, %v1309
      %v1311 = vshrl.u32 %v1159, 16
      %v1313 = vrot.slane %v1311, 4
      %v1314 = vor.u32 %v1313, %v1309
      %v1315 = vrot.slane %v1314, 4
      %v1317 = vshll.u32 %v1186, 16
      %v1319 = vrot.slane %v1317, 5
      %v1320 = vsel %vm1200, %v1315, %v1319
      %v1322 = vshrl.u32 %v1160, 16
      %v1324 = vrot.slane %v1322, 4
      %v1325 = vshll.u32 %v1160, 16
      %v1327 = vrot.slane %v1325, 5
      %v1328 = vor.u32 %v1324, %v1327
      %v1329 = vrot.slane %v1328, 4
      %v1331 = vshll.u32 %v1161, 16
      %v1333 = vrot.slane %v1331, 5
      %v1334 = vsel %vm1200, %v1329, %v1333
      %v1335 = vshrl.u32 %v1161, 16
      %v1337 = vrot.slane %v1335, 4
      %v1338 = vor.u32 %v1337, %v1333
      %v1339 = vrot.slane %v1338, 4
      %v1341 = vshll.u32 %v1187, 16
      %v1343 = vrot.slane %v1341, 5
      %v1344 = vsel %vm1200, %v1339, %v1343
      %v1346 = vshrl.u32 %v1162, 16
      %v1348 = vrot.slane %v1346, 4
      %v1349 = vshll.u32 %v1162, 16
      %v1351 = vrot.slane %v1349, 5
      %v1352 = vor.u32 %v1348, %v1351
      %v1353 = vrot.slane %v1352, 4
      %v1355 = vshll.u32 %v1163, 16
      %v1357 = vrot.slane %v1355, 5
      %v1358 = vsel %vm1200, %v1353, %v1357
      %v1359 = vshrl.u32 %v1163, 16
      %v1361 = vrot.slane %v1359, 4
      %v1362 = vor.u32 %v1361, %v1357
      %v1363 = vrot.slane %v1362, 4
      %v1365 = vshll.u32 %v1188, 16
      %v1367 = vrot.slane %v1365, 5
      %v1368 = vsel %vm1200, %v1363, %v1367
      %v1370 = vshrl.u32 %v1164, 16
      %v1372 = vrot.slane %v1370, 4
      %v1373 = vshll.u32 %v1164, 16
      %v1375 = vrot.slane %v1373, 5
      %v1376 = vor.u32 %v1372, %v1375
      %v1377 = vrot.slane %v1376, 4
      %v1379 = vshll.u32 %v1165, 16
      %v1381 = vrot.slane %v1379, 5
      %v1382 = vsel %vm1200, %v1377, %v1381
      %v1383 = vshrl.u32 %v1165, 16
      %v1385 = vrot.slane %v1383, 4
      %v1386 = vor.u32 %v1385, %v1381
      %v1387 = vrot.slane %v1386, 4
      %v1389 = vshll.u32 %v1189, 16
      %v1391 = vrot.slane %v1389, 5
      %v1392 = vsel %vm1200, %v1387, %v1391
      %v1394 = vshrl.u32 %v1166, 16
      %v1396 = vrot.slane %v1394, 4
      %v1397 = vshll.u32 %v1166, 16
      %v1399 = vrot.slane %v1397, 5
      %v1400 = vor.u32 %v1396, %v1399
      %v1401 = vrot.slane %v1400, 4
      %v1403 = vshll.u32 %v1167, 16
      %v1405 = vrot.slane %v1403, 5
      %v1406 = vsel %vm1200, %v1401, %v1405
      %v1407 = vshrl.u32 %v1167, 16
      %v1409 = vrot.slane %v1407, 4
      %v1410 = vor.u32 %v1409, %v1405
      %v1411 = vrot.slane %v1410, 4
      %v1413 = vshll.u32 %v1190, 16
      %v1415 = vrot.slane %v1413, 5
      %v1416 = vsel %vm1200, %v1411, %v1415
      %v1418 = vshrl.u32 %v1168, 16
      %v1420 = vrot.slane %v1418, 4
      %v1421 = vshll.u32 %v1168, 16
      %v1423 = vrot.slane %v1421, 5
      %v1424 = vor.u32 %v1420, %v1423
      %v1425 = vrot.slane %v1424, 4
      %v1427 = vshll.u32 %v1169, 16
      %v1429 = vrot.slane %v1427, 5
      %v1430 = vsel %vm1200, %v1425, %v1429
      %v1431 = vshrl.u32 %v1169, 16
      %v1433 = vrot.slane %v1431, 4
      %v1434 = vor.u32 %v1433, %v1429
      %v1435 = vrot.slane %v1434, 4
      %v1437 = vshll.u32 %v1191, 16
      %v1439 = vrot.slane %v1437, 5
      %v1440 = vsel %vm1200, %v1435, %v1439
      %v1442 = vshrl.u32 %v1170, 16
      %v1444 = vrot.slane %v1442, 4
      %v1445 = vshll.u32 %v1170, 16
      %v1447 = vrot.slane %v1445, 5
      %v1448 = vor.u32 %v1444, %v1447
      %v1449 = vrot.slane %v1448, 4
      %v1451 = vshll.u32 %v1171, 16
      %v1453 = vrot.slane %v1451, 5
      %v1454 = vsel %vm1200, %v1449, %v1453
      %v1455 = vshrl.u32 %v1171, 16
      %v1457 = vrot.slane %v1455, 4
      %v1458 = vor.u32 %v1457, %v1453
      %v1459 = vrot.slane %v1458, 4
      %v1461 = vshll.u32 %v1192, 16
      %v1463 = vrot.slane %v1461, 5
      %v1464 = vsel %vm1200, %v1459, %v1463
      %v1466 = vshrl.u32 %v1172, 16
      %v1468 = vrot.slane %v1466, 4
      %v1469 = vshll.u32 %v1172, 16
      %v1471 = vrot.slane %v1469, 5
      %v1472 = vor.u32 %v1468, %v1471
      %v1473 = vrot.slane %v1472, 4
      %v1475 = vshll.u32 %v1173, 16
      %v1477 = vrot.slane %v1475, 5
      %v1478 = vsel %vm1200, %v1473, %v1477
      %v1479 = vshrl.u32 %v1173, 16
      %v1481 = vrot.slane %v1479, 4
      %v1482 = vor.u32 %v1481, %v1477
      %v1483 = vrot.slane %v1482, 4
      %v1485 = vshll.u32 %v1193, 16
      %v1487 = vrot.slane %v1485, 5
      %v1488 = vsel %vm1200, %v1483, %v1487
      %v1490 = vshrl.u32 %v1174, 16
      %v1492 = vrot.slane %v1490, 4
      %v1493 = vshll.u32 %v1174, 16
      %v1495 = vrot.slane %v1493, 5
      %v1496 = vor.u32 %v1492, %v1495
      %v1497 = vrot.slane %v1496, 4
      %v1499 = vshll.u32 %v1175, 16
      %v1501 = vrot.slane %v1499, 5
      %v1502 = vsel %vm1200, %v1497, %v1501
      %v1503 = vshrl.u32 %v1175, 16
      %v1505 = vrot.slane %v1503, 4
      %v1506 = vor.u32 %v1505, %v1501
      %v1507 = vrot.slane %v1506, 4
      %v1509 = vshll.u32 %v1194, 16
      %v1511 = vrot.slane %v1509, 5
      %v1512 = vsel %vm1200, %v1507, %v1511
      %v1514 = vshrl.u32 %v1176, 16
      %v1516 = vrot.slane %v1514, 4
      %v1517 = vshll.u32 %v1176, 16
      %v1519 = vrot.slane %v1517, 5
      %v1520 = vor.u32 %v1516, %v1519
      %v1521 = vrot.slane %v1520, 4
      %v1523 = vshll.u32 %v1177, 16
      %v1525 = vrot.slane %v1523, 5
      %v1526 = vsel %vm1200, %v1521, %v1525
      %v1527 = vshrl.u32 %v1177, 16
      %v1529 = vrot.slane %v1527, 4
      %v1530 = vor.u32 %v1529, %v1525
      %v1531 = vrot.slane %v1530, 4
      %v1533 = vshll.u32 %v1195, 16
      %v1535 = vrot.slane %v1533, 5
      %v1536 = vsel %vm1200, %v1531, %v1535
      %v1538 = vshrl.u32 %v1178, 16
      %v1540 = vrot.slane %v1538, 4
      %v1541 = vshll.u32 %v1178, 16
      %v1543 = vrot.slane %v1541, 5
      %v1544 = vor.u32 %v1540, %v1543
      %v1545 = vrot.slane %v1544, 4
      %v1547 = vshll.u32 %v1179, 16
      %v1549 = vrot.slane %v1547, 5
      %v1550 = vsel %vm1200, %v1545, %v1549
      %v1551 = vshrl.u32 %v1179, 16
      %v1553 = vrot.slane %v1551, 4
      %v1554 = vor.u32 %v1553, %v1549
      %v1555 = vrot.slane %v1554, 4
      %v1557 = vshll.u32 %v1196, 16
      %v1559 = vrot.slane %v1557, 5
      %v1560 = vsel %vm1200, %v1555, %v1559
      %v1562 = vshrl.u32 %v1180, 16
      %v1564 = vrot.slane %v1562, 4
      %v1565 = vshll.u32 %v1180, 16
      %v1567 = vrot.slane %v1565, 5
      %v1568 = vor.u32 %v1564, %v1567
      %v1569 = vrot.slane %v1568, 4
      %v1571 = vshll.u32 %v1181, 16
      %v1573 = vrot.slane %v1571, 5
      %v1574 = vsel %vm1200, %v1569, %v1573
      %v1575 = vshrl.u32 %v1181, 16
      %v1577 = vrot.slane %v1575, 4
      %v1578 = vor.u32 %v1577, %v1573
      %v1579 = vrot.slane %v1578, 4
      %v1581 = vshll.u32 %v1197, 16
      %v1583 = vrot.slane %v1581, 5
      %v1584 = vsel %vm1200, %v1579, %v1583
      %v1585 = vld [vmem:[#allocation2] sm:$0xe]
      %v1586 = vld [vmem:[#allocation2 + $0xc] sm:$0xe]
      %v1587 = vld [vmem:[#allocation2 + $0x18] sm:$0xe]
      %v1588 = vld [vmem:[#allocation2 + $0x24] sm:$0xe]
      %v1589 = vld [vmem:[#allocation2 + $0x30] sm:$0xe]
      %v1590 = vld [vmem:[#allocation2 + $0x3c] sm:$0xe]
      %v1591 = vld [vmem:[#allocation2 + $0x48] sm:$0xe]
      %v1592 = vld [vmem:[#allocation2 + $0x54] sm:$0xe]
      %v1593 = vld [vmem:[#allocation2 + $0x60] sm:$0xe]
      %v1594 = vld [vmem:[#allocation2 + $0x6c] sm:$0xe]
      %v1595 = vld [vmem:[#allocation2 + $0x78] sm:$0xe]
      %v1596 = vld [vmem:[#allocation2 + $0x84] sm:$0xe]
      %v1597 = vld [vmem:[#allocation2 + $0x90] sm:$0xe]
      %v1598 = vld [vmem:[#allocation2 + $0x9c] sm:$0xe]
      %v1599 = vld [vmem:[#allocation2 + $0xa8] sm:$0xe]
      %v1600 = vld [vmem:[#allocation2 + $0xb4] sm:$0xe]
      %vm1649 = vcmask 1042432
      %vm1650 = vcmask 1046532
      %vm1651 = vmor %vm1649, %vm1650
      %v1652 = vrot.slane %v1585, 5
      %v1653 = vrot.slane %v1652, 4
      %v1654 = vrot.slane %v1151, 5
      %v1655 = vsel %vm1651, %v1653, %v1654
      %v1656 = vrot.slane %v1654, 4
      %v1657 = vrot.slane %v1182, 5
      %v1658 = vsel %vm1651, %v1656, %v1657
      %v1659 = vrot.slane %v1586, 5
      %v1660 = vrot.slane %v1659, 4
      %v1661 = vrot.slane %v1153, 5
      %v1662 = vsel %vm1651, %v1660, %v1661
      %v1663 = vrot.slane %v1661, 4
      %v1664 = vrot.slane %v1183, 5
      %v1665 = vsel %vm1651, %v1663, %v1664
      %v1666 = vrot.slane %v1587, 5
      %v1667 = vrot.slane %v1666, 4
      %v1668 = vrot.slane %v1155, 5
      %v1669 = vsel %vm1651, %v1667, %v1668
      %v1670 = vrot.slane %v1668, 4
      %v1671 = vrot.slane %v1184, 5
      %v1672 = vsel %vm1651, %v1670, %v1671
      %v1673 = vrot.slane %v1588, 5
      %v1674 = vrot.slane %v1673, 4
      %v1675 = vrot.slane %v1157, 5
      %v1676 = vsel %vm1651, %v1674, %v1675
      %v1677 = vrot.slane %v1675, 4
      %v1678 = vrot.slane %v1185, 5
      %v1679 = vsel %vm1651, %v1677, %v1678
      %v1680 = vrot.slane %v1589, 5
      %v1681 = vrot.slane %v1680, 4
      %v1682 = vrot.slane %v1159, 5
      %v1683 = vsel %vm1651, %v1681, %v1682
      %v1684 = vrot.slane %v1682, 4
      %v1685 = vrot.slane %v1186, 5
      %v1686 = vsel %vm1651, %v1684, %v1685
      %v1687 = vrot.slane %v1590, 5
      %v1688 = vrot.slane %v1687, 4
      %v1689 = vrot.slane %v1161, 5
      %v1690 = vsel %vm1651, %v1688, %v1689
      %v1691 = vrot.slane %v1689, 4
      %v1692 = vrot.slane %v1187, 5
      %v1693 = vsel %vm1651, %v1691, %v1692
      %v1694 = vrot.slane %v1591, 5
      %v1695 = vrot.slane %v1694, 4
      %v1696 = vrot.slane %v1163, 5
      %v1697 = vsel %vm1651, %v1695, %v1696
      %v1698 = vrot.slane %v1696, 4
      %v1699 = vrot.slane %v1188, 5
      %v1700 = vsel %vm1651, %v1698, %v1699
      %v1701 = vrot.slane %v1592, 5
      %v1702 = vrot.slane %v1701, 4
      %v1703 = vrot.slane %v1165, 5
      %v1704 = vsel %vm1651, %v1702, %v1703
      %v1705 = vrot.slane %v1703, 4
      %v1706 = vrot.slane %v1189, 5
      %v1707 = vsel %vm1651, %v1705, %v1706
      %v1708 = vrot.slane %v1593, 5
      %v1709 = vrot.slane %v1708, 4
      %v1710 = vrot.slane %v1167, 5
      %v1711 = vsel %vm1651, %v1709, %v1710
      %v1712 = vrot.slane %v1710, 4
      %v1713 = vrot.slane %v1190, 5
      %v1714 = vsel %vm1651, %v1712, %v1713
      %v1715 = vrot.slane %v1594, 5
      %v1716 = vrot.slane %v1715, 4
      %v1717 = vrot.slane %v1169, 5
      %v1718 = vsel %vm1651, %v1716, %v1717
      %v1719 = vrot.slane %v1717, 4
      %v1720 = vrot.slane %v1191, 5
      %v1721 = vsel %vm1651, %v1719, %v1720
      %v1722 = vrot.slane %v1595, 5
      %v1723 = vrot.slane %v1722, 4
      %v1724 = vrot.slane %v1171, 5
      %v1725 = vsel %vm1651, %v1723, %v1724
      %v1726 = vrot.slane %v1724, 4
      %v1727 = vrot.slane %v1192, 5
      %v1728 = vsel %vm1651, %v1726, %v1727
      %v1729 = vrot.slane %v1596, 5
      %v1730 = vrot.slane %v1729, 4
      %v1731 = vrot.slane %v1173, 5
      %v1732 = vsel %vm1651, %v1730, %v1731
      %v1733 = vrot.slane %v1731, 4
      %v1734 = vrot.slane %v1193, 5
      %v1735 = vsel %vm1651, %v1733, %v1734
      %v1736 = vrot.slane %v1597, 5
      %v1737 = vrot.slane %v1736, 4
      %v1738 = vrot.slane %v1175, 5
      %v1739 = vsel %vm1651, %v1737, %v1738
      %v1740 = vrot.slane %v1738, 4
      %v1741 = vrot.slane %v1194, 5
      %v1742 = vsel %vm1651, %v1740, %v1741
      %v1743 = vrot.slane %v1598, 5
      %v1744 = vrot.slane %v1743, 4
      %v1745 = vrot.slane %v1177, 5
      %v1746 = vsel %vm1651, %v1744, %v1745
      %v1747 = vrot.slane %v1745, 4
      %v1748 = vrot.slane %v1195, 5
      %v1749 = vsel %vm1651, %v1747, %v1748
      %v1750 = vrot.slane %v1599, 5
      %v1751 = vrot.slane %v1750, 4
      %v1752 = vrot.slane %v1179, 5
      %v1753 = vsel %vm1651, %v1751, %v1752
      %v1754 = vrot.slane %v1752, 4
      %v1755 = vrot.slane %v1196, 5
      %v1756 = vsel %vm1651, %v1754, %v1755
      %v1757 = vrot.slane %v1600, 5
      %v1758 = vrot.slane %v1757, 4
      %v1759 = vrot.slane %v1181, 5
      %v1760 = vsel %vm1651, %v1758, %v1759
      %v1761 = vrot.slane %v1759, 4
      %v1762 = vrot.slane %v1197, 5
      %v1763 = vsel %vm1651, %v1761, %v1762
      %v1780 = vunpack.c.l.b16 %v1150
      %v1781 = vunpack.c.l.b16 %v1151
      %v1782 = vunpack.c.l.b16 %v1152
      %v1783 = vunpack.c.l.b16 %v1153
      %v1784 = vunpack.c.l.b16 %v1154
      %v1785 = vunpack.c.l.b16 %v1155
      %v1786 = vunpack.c.l.b16 %v1156
      %v1787 = vunpack.c.l.b16 %v1157
      %v1788 = vunpack.c.l.b16 %v1158
      %v1789 = vunpack.c.l.b16 %v1159
      %v1790 = vunpack.c.l.b16 %v1160
      %v1791 = vunpack.c.l.b16 %v1161
      %v1792 = vunpack.c.l.b16 %v1162
      %v1793 = vunpack.c.l.b16 %v1163
      %v1794 = vunpack.c.l.b16 %v1164
      %v1795 = vunpack.c.l.b16 %v1165
      %v1796 = vunpack.c.l.b16 %v1166
      %v1797 = vunpack.c.l.b16 %v1167
      %v1798 = vunpack.c.l.b16 %v1168
      %v1799 = vunpack.c.l.b16 %v1169
      %v1800 = vunpack.c.l.b16 %v1170
      %v1801 = vunpack.c.l.b16 %v1171
      %v1802 = vunpack.c.l.b16 %v1172
      %v1803 = vunpack.c.l.b16 %v1173
      %v1804 = vunpack.c.l.b16 %v1174
      %v1805 = vunpack.c.l.b16 %v1175
      %v1806 = vunpack.c.l.b16 %v1176
      %v1807 = vunpack.c.l.b16 %v1177
      %v1808 = vunpack.c.l.b16 %v1178
      %v1809 = vunpack.c.l.b16 %v1179
      %v1810 = vunpack.c.l.b16 %v1180
      %v1811 = vunpack.c.l.b16 %v1181
      %v1812 = vpack.c.b16 %v1781, %v1780
      %v1813 = vpack.c.b16 %v1783, %v1782
      %v1814 = vpack.c.b16 %v1785, %v1784
      %v1815 = vpack.c.b16 %v1787, %v1786
      %v1816 = vpack.c.b16 %v1789, %v1788
      %v1817 = vpack.c.b16 %v1791, %v1790
      %v1818 = vpack.c.b16 %v1793, %v1792
      %v1819 = vpack.c.b16 %v1795, %v1794
      %v1820 = vpack.c.b16 %v1797, %v1796
      %v1821 = vpack.c.b16 %v1799, %v1798
      %v1822 = vpack.c.b16 %v1801, %v1800
      %v1823 = vpack.c.b16 %v1803, %v1802
      %v1824 = vpack.c.b16 %v1805, %v1804
      %v1825 = vpack.c.b16 %v1807, %v1806
      %v1826 = vpack.c.b16 %v1809, %v1808
      %v1827 = vpack.c.b16 %v1811, %v1810
      %v1828 = vunpack.c.l.b16 %v1214
      %v1829 = vunpack.c.l.b16 %v1224
      %v1830 = vunpack.c.l.b16 %v1238
      %v1831 = vunpack.c.l.b16 %v1248
      %v1832 = vunpack.c.l.b16 %v1262
      %v1833 = vunpack.c.l.b16 %v1272
      %v1834 = vunpack.c.l.b16 %v1286
      %v1835 = vunpack.c.l.b16 %v1296
      %v1836 = vunpack.c.l.b16 %v1310
      %v1837 = vunpack.c.l.b16 %v1320
      %v1838 = vunpack.c.l.b16 %v1334
      %v1839 = vunpack.c.l.b16 %v1344
      %v1840 = vunpack.c.l.b16 %v1358
      %v1841 = vunpack.c.l.b16 %v1368
      %v1842 = vunpack.c.l.b16 %v1382
      %v1843 = vunpack.c.l.b16 %v1392
      %v1844 = vunpack.c.l.b16 %v1406
      %v1845 = vunpack.c.l.b16 %v1416
      %v1846 = vunpack.c.l.b16 %v1430
      %v1847 = vunpack.c.l.b16 %v1440
      %v1848 = vunpack.c.l.b16 %v1454
      %v1849 = vunpack.c.l.b16 %v1464
      %v1850 = vunpack.c.l.b16 %v1478
      %v1851 = vunpack.c.l.b16 %v1488
      %v1852 = vunpack.c.l.b16 %v1502
      %v1853 = vunpack.c.l.b16 %v1512
      %v1854 = vunpack.c.l.b16 %v1526
      %v1855 = vunpack.c.l.b16 %v1536
      %v1856 = vunpack.c.l.b16 %v1550
      %v1857 = vunpack.c.l.b16 %v1560
      %v1858 = vunpack.c.l.b16 %v1574
      %v1859 = vunpack.c.l.b16 %v1584
      %v1860 = vpack.c.b16 %v1829, %v1828
      %v1861 = vpack.c.b16 %v1831, %v1830
      %v1862 = vpack.c.b16 %v1833, %v1832
      %v1863 = vpack.c.b16 %v1835, %v1834
      %v1864 = vpack.c.b16 %v1837, %v1836
      %v1865 = vpack.c.b16 %v1839, %v1838
      %v1866 = vpack.c.b16 %v1841, %v1840
      %v1867 = vpack.c.b16 %v1843, %v1842
      %v1868 = vpack.c.b16 %v1845, %v1844
      %v1869 = vpack.c.b16 %v1847, %v1846
      %v1870 = vpack.c.b16 %v1849, %v1848
      %v1871 = vpack.c.b16 %v1851, %v1850
      %v1872 = vpack.c.b16 %v1853, %v1852
      %v1873 = vpack.c.b16 %v1855, %v1854
      %v1874 = vpack.c.b16 %v1857, %v1856
      %v1875 = vpack.c.b16 %v1859, %v1858
      %1876 = vrot.lane.b32.xlu0 %v1860, 8
      %v1877 = vpop.permute.xlu0 %1876
      %1878 = vrot.lane.b32.xlu0 %v1861, 8
      %v1879 = vpop.permute.xlu0 %1878
      %1880 = vrot.lane.b32.xlu0 %v1862, 8
      %v1881 = vpop.permute.xlu0 %1880
      %1882 = vrot.lane.b32.xlu0 %v1863, 8
      %v1883 = vpop.permute.xlu0 %1882
      %1884 = vrot.lane.b32.xlu0 %v1864, 8
      %v1885 = vpop.permute.xlu0 %1884
      %1886 = vrot.lane.b32.xlu0 %v1865, 8
      %v1887 = vpop.permute.xlu0 %1886
      %1888 = vrot.lane.b32.xlu0 %v1866, 8
      %v1889 = vpop.permute.xlu0 %1888
      %1890 = vrot.lane.b32.xlu0 %v1867, 8
      %v1891 = vpop.permute.xlu0 %1890
      %1892 = vrot.lane.b32.xlu0 %v1868, 8
      %v1893 = vpop.permute.xlu0 %1892
      %1894 = vrot.lane.b32.xlu0 %v1869, 8
      %v1895 = vpop.permute.xlu0 %1894
      %1896 = vrot.lane.b32.xlu0 %v1870, 8
      %v1897 = vpop.permute.xlu0 %1896
      %1898 = vrot.lane.b32.xlu0 %v1871, 8
      %v1899 = vpop.permute.xlu0 %1898
      %1900 = vrot.lane.b32.xlu0 %v1872, 8
      %v1901 = vpop.permute.xlu0 %1900
      %1902 = vrot.lane.b32.xlu0 %v1873, 8
      %v1903 = vpop.permute.xlu0 %1902
      %1904 = vrot.lane.b32.xlu0 %v1874, 8
      %v1905 = vpop.permute.xlu0 %1904
      %1906 = vrot.lane.b32.xlu0 %v1875, 8
      %v1907 = vpop.permute.xlu0 %1906
      %v1908 = vunpack.c.l.b16 %v1655
      %v1909 = vunpack.c.l.b16 %v1658
      %v1910 = vunpack.c.l.b16 %v1662
      %v1911 = vunpack.c.l.b16 %v1665
      %v1912 = vunpack.c.l.b16 %v1669
      %v1913 = vunpack.c.l.b16 %v1672
      %v1914 = vunpack.c.l.b16 %v1676
      %v1915 = vunpack.c.l.b16 %v1679
      %v1916 = vunpack.c.l.b16 %v1683
      %v1917 = vunpack.c.l.b16 %v1686
      %v1918 = vunpack.c.l.b16 %v1690
      %v1919 = vunpack.c.l.b16 %v1693
      %v1920 = vunpack.c.l.b16 %v1697
      %v1921 = vunpack.c.l.b16 %v1700
      %v1922 = vunpack.c.l.b16 %v1704
      %v1923 = vunpack.c.l.b16 %v1707
      %v1924 = vunpack.c.l.b16 %v1711
      %v1925 = vunpack.c.l.b16 %v1714
      %v1926 = vunpack.c.l.b16 %v1718
      %v1927 = vunpack.c.l.b16 %v1721
      %v1928 = vunpack.c.l.b16 %v1725
      %v1929 = vunpack.c.l.b16 %v1728
      %v1930 = vunpack.c.l.b16 %v1732
      %v1931 = vunpack.c.l.b16 %v1735
      %v1932 = vunpack.c.l.b16 %v1739
      %v1933 = vunpack.c.l.b16 %v1742
      %v1934 = vunpack.c.l.b16 %v1746
      %v1935 = vunpack.c.l.b16 %v1749
      %v1936 = vunpack.c.l.b16 %v1753
      %v1937 = vunpack.c.l.b16 %v1756
      %v1938 = vunpack.c.l.b16 %v1760
      %v1939 = vunpack.c.l.b16 %v1763
      %v1940 = vpack.c.b16 %v1909, %v1908
      %v1941 = vpack.c.b16 %v1911, %v1910
      %v1942 = vpack.c.b16 %v1913, %v1912
      %v1943 = vpack.c.b16 %v1915, %v1914
      %v1944 = vpack.c.b16 %v1917, %v1916
      %v1945 = vpack.c.b16 %v1919, %v1918
      %v1946 = vpack.c.b16 %v1921, %v1920
      %v1947 = vpack.c.b16 %v1923, %v1922
      %v1948 = vpack.c.b16 %v1925, %v1924
      %v1949 = vpack.c.b16 %v1927, %v1926
      %v1950 = vpack.c.b16 %v1929, %v1928
      %v1951 = vpack.c.b16 %v1931, %v1930
      %v1952 = vpack.c.b16 %v1933, %v1932
      %v1953 = vpack.c.b16 %v1935, %v1934
      %v1954 = vpack.c.b16 %v1937, %v1936
      %v1955 = vpack.c.b16 %v1939, %v1938
      %1956 = vrot.lane.b32.xlu0 %v1940, 16
      %v1957 = vpop.permute.xlu0 %1956
      %1958 = vrot.lane.b32.xlu0 %v1941, 16
      %v1959 = vpop.permute.xlu0 %1958
      %1960 = vrot.lane.b32.xlu0 %v1942, 16
      %v1961 = vpop.permute.xlu0 %1960
      %1962 = vrot.lane.b32.xlu0 %v1943, 16
      %v1963 = vpop.permute.xlu0 %1962
      %1964 = vrot.lane.b32.xlu0 %v1944, 16
      %v1965 = vpop.permute.xlu0 %1964
      %1966 = vrot.lane.b32.xlu0 %v1945, 16
      %v1967 = vpop.permute.xlu0 %1966
      %1968 = vrot.lane.b32.xlu0 %v1946, 16
      %v1969 = vpop.permute.xlu0 %1968
      %1970 = vrot.lane.b32.xlu0 %v1947, 16
      %v1971 = vpop.permute.xlu0 %1970
      %1972 = vrot.lane.b32.xlu0 %v1948, 16
      %v1973 = vpop.permute.xlu0 %1972
      %1974 = vrot.lane.b32.xlu0 %v1949, 16
      %v1975 = vpop.permute.xlu0 %1974
      %1976 = vrot.lane.b32.xlu0 %v1950, 16
      %v1977 = vpop.permute.xlu0 %1976
      %1978 = vrot.lane.b32.xlu0 %v1951, 16
      %v1979 = vpop.permute.xlu0 %1978
      %1980 = vrot.lane.b32.xlu0 %v1952, 16
      %v1981 = vpop.permute.xlu0 %1980
      %1982 = vrot.lane.b32.xlu0 %v1953, 16
      %v1983 = vpop.permute.xlu0 %1982
      %1984 = vrot.lane.b32.xlu0 %v1954, 16
      %v1985 = vpop.permute.xlu0 %1984
      %1986 = vrot.lane.b32.xlu0 %v1955, 16
      %v1987 = vpop.permute.xlu0 %1986
      %vm1988 = vcmask 64512
      %v1991 = vsel %vm1988, %v1812, %v1877
      %v1994 = vsel %vm1988, %v1813, %v1879
      %v1997 = vsel %vm1988, %v1814, %v1881
      %v2000 = vsel %vm1988, %v1815, %v1883
      %v2003 = vsel %vm1988, %v1816, %v1885
      %v2006 = vsel %vm1988, %v1817, %v1887
      %v2009 = vsel %vm1988, %v1818, %v1889
      %v2012 = vsel %vm1988, %v1819, %v1891
      %v2015 = vsel %vm1988, %v1820, %v1893
      %v2018 = vsel %vm1988, %v1821, %v1895
      %v2021 = vsel %vm1988, %v1822, %v1897
      %v2024 = vsel %vm1988, %v1823, %v1899
      %v2027 = vsel %vm1988, %v1824, %v1901
      %v2030 = vsel %vm1988, %v1825, %v1903
      %v2033 = vsel %vm1988, %v1826, %v1905
      %v2036 = vsel %vm1988, %v1827, %v1907
      %vm2037 = vcmask 130048
      %v2039 = vsel %vm2037, %v1991, %v1957
      %v2041 = vsel %vm2037, %v1994, %v1959
      %v2043 = vsel %vm2037, %v1997, %v1961
      %v2045 = vsel %vm2037, %v2000, %v1963
      %v2047 = vsel %vm2037, %v2003, %v1965
      %v2049 = vsel %vm2037, %v2006, %v1967
      %v2051 = vsel %vm2037, %v2009, %v1969
      %v2053 = vsel %vm2037, %v2012, %v1971
      %v2055 = vsel %vm2037, %v2015, %v1973
      %v2057 = vsel %vm2037, %v2018, %v1975
      %v2059 = vsel %vm2037, %v2021, %v1977
      %v2061 = vsel %vm2037, %v2024, %v1979
      %v2063 = vsel %vm2037, %v2027, %v1981
      %v2065 = vsel %vm2037, %v2030, %v1983
      %v2067 = vsel %vm2037, %v2033, %v1985
      %v2069 = vsel %vm2037, %v2036, %v1987
      %v2070 = vld [vmem:[%s2] sm:$0xf]
      %v2071 = vld [vmem:[%s2 + $0x4] sm:$0xf]
      %v2072 = vld [vmem:[%s2 + $0x8] sm:$0xf]
      %v2073 = vld [vmem:[%s1035] sm:$0xf]
      %v2074 = vld [vmem:[%s1035 + $0x4] sm:$0xf]
      %v2075 = vld [vmem:[%s1035 + $0xc] sm:$0xf]
      %v2076 = vld [vmem:[%s1035 + $0x10] sm:$0xf]
      %v2077 = vld [vmem:[%s1035 + $0x18] sm:$0xf]
      %v2078 = vld [vmem:[%s1035 + $0x1c] sm:$0xf]
      %v2079 = vld [vmem:[%s1035 + $0x24] sm:$0xf]
      %v2080 = vld [vmem:[%s1035 + $0x28] sm:$0xf]
      %v2081 = vld [vmem:[%s1035 + $0x30] sm:$0xf]
      %v2082 = vld [vmem:[%s1035 + $0x34] sm:$0xf]
      %v2083 = vld [vmem:[%s1035 + $0x3c] sm:$0xf]
      %v2084 = vld [vmem:[%s1035 + $0x40] sm:$0xf]
      %v2085 = vld [vmem:[%s1035 + $0x48] sm:$0xf]
      %v2086 = vld [vmem:[%s1035 + $0x4c] sm:$0xf]
      %v2087 = vld [vmem:[%s1035 + $0x54] sm:$0xf]
      %v2088 = vld [vmem:[%s1035 + $0x58] sm:$0xf]
      %v2089 = vld [vmem:[%s1035 + $0x60] sm:$0xf]
      %v2090 = vld [vmem:[%s1035 + $0x64] sm:$0xf]
      %v2091 = vld [vmem:[%s1035 + $0x6c] sm:$0xf]
      %v2092 = vld [vmem:[%s1035 + $0x70] sm:$0xf]
      %v2093 = vld [vmem:[%s1035 + $0x78] sm:$0xf]
      %v2094 = vld [vmem:[%s1035 + $0x7c] sm:$0xf]
      %v2095 = vld [vmem:[%s1035 + $0x84] sm:$0xf]
      %v2096 = vld [vmem:[%s1035 + $0x88] sm:$0xf]
      %v2097 = vld [vmem:[%s1035 + $0x90] sm:$0xf]
      %v2098 = vld [vmem:[%s1035 + $0x94] sm:$0xf]
      %v2099 = vld [vmem:[%s1035 + $0x9c] sm:$0xf]
      %v2100 = vld [vmem:[%s1035 + $0xa0] sm:$0xf]
      %v2101 = vld [vmem:[%s1035 + $0xa8] sm:$0xf]
      %v2102 = vld [vmem:[%s1035 + $0xac] sm:$0xf]
      %v2103 = vld [vmem:[%s1035 + $0xb4] sm:$0xf]
      %v2104 = vld [vmem:[%s1035 + $0xb8] sm:$0xf]
      %v2105 = vld [vmem:[%s1035 + $0x8] sm:$0x1]
      %v2106 = vld [vmem:[%s1035 + $0x14] sm:$0x1]
      %v2107 = vld [vmem:[%s1035 + $0x20] sm:$0x1]
      %v2108 = vld [vmem:[%s1035 + $0x2c] sm:$0x1]
      %v2109 = vld [vmem:[%s1035 + $0x38] sm:$0x1]
      %v2110 = vld [vmem:[%s1035 + $0x44] sm:$0x1]
      %v2111 = vld [vmem:[%s1035 + $0x50] sm:$0x1]
      %v2112 = vld [vmem:[%s1035 + $0x5c] sm:$0x1]
      %v2113 = vld [vmem:[%s1035 + $0x68] sm:$0x1]
      %v2114 = vld [vmem:[%s1035 + $0x74] sm:$0x1]
      %v2115 = vld [vmem:[%s1035 + $0x80] sm:$0x1]
      %v2116 = vld [vmem:[%s1035 + $0x8c] sm:$0x1]
      %v2117 = vld [vmem:[%s1035 + $0x98] sm:$0x1]
      %v2118 = vld [vmem:[%s1035 + $0xa4] sm:$0x1]
      %v2119 = vld [vmem:[%s1035 + $0xb0] sm:$0x1]
      %v2120 = vld [vmem:[%s1035 + $0xbc] sm:$0x1]
      %v2122 = vshrl.u32 %v2073, 16
      %v2124 = vrot.slane %v2122, 4
      %v2125 = vshll.u32 %v2073, 16
      %v2127 = vrot.slane %v2125, 5
      %v2128 = vor.u32 %v2124, %v2127
      %v2129 = vrot.slane %v2128, 4
      %v2131 = vshll.u32 %v2074, 16
      %v2133 = vrot.slane %v2131, 5
      %v2134 = vsel %vm1200, %v2129, %v2133
      %v2135 = vshrl.u32 %v2074, 16
      %v2137 = vrot.slane %v2135, 4
      %v2138 = vor.u32 %v2137, %v2133
      %v2139 = vrot.slane %v2138, 4
      %v2141 = vshll.u32 %v2105, 16
      %v2143 = vrot.slane %v2141, 5
      %v2144 = vsel %vm1200, %v2139, %v2143
      %v2146 = vshrl.u32 %v2075, 16
      %v2148 = vrot.slane %v2146, 4
      %v2149 = vshll.u32 %v2075, 16
      %v2151 = vrot.slane %v2149, 5
      %v2152 = vor.u32 %v2148, %v2151
      %v2153 = vrot.slane %v2152, 4
      %v2155 = vshll.u32 %v2076, 16
      %v2157 = vrot.slane %v2155, 5
      %v2158 = vsel %vm1200, %v2153, %v2157
      %v2159 = vshrl.u32 %v2076, 16
      %v2161 = vrot.slane %v2159, 4
      %v2162 = vor.u32 %v2161, %v2157
      %v2163 = vrot.slane %v2162, 4
      %v2165 = vshll.u32 %v2106, 16
      %v2167 = vrot.slane %v2165, 5
      %v2168 = vsel %vm1200, %v2163, %v2167
      %v2170 = vshrl.u32 %v2077, 16
      %v2172 = vrot.slane %v2170, 4
      %v2173 = vshll.u32 %v2077, 16
      %v2175 = vrot.slane %v2173, 5
      %v2176 = vor.u32 %v2172, %v2175
      %v2177 = vrot.slane %v2176, 4
      %v2179 = vshll.u32 %v2078, 16
      %v2181 = vrot.slane %v2179, 5
      %v2182 = vsel %vm1200, %v2177, %v2181
      %v2183 = vshrl.u32 %v2078, 16
      %v2185 = vrot.slane %v2183, 4
      %v2186 = vor.u32 %v2185, %v2181
      %v2187 = vrot.slane %v2186, 4
      %v2189 = vshll.u32 %v2107, 16
      %v2191 = vrot.slane %v2189, 5
      %v2192 = vsel %vm1200, %v2187, %v2191
      %v2194 = vshrl.u32 %v2079, 16
      %v2196 = vrot.slane %v2194, 4
      %v2197 = vshll.u32 %v2079, 16
      %v2199 = vrot.slane %v2197, 5
      %v2200 = vor.u32 %v2196, %v2199
      %v2201 = vrot.slane %v2200, 4
      %v2203 = vshll.u32 %v2080, 16
      %v2205 = vrot.slane %v2203, 5
      %v2206 = vsel %vm1200, %v2201, %v2205
      %v2207 = vshrl.u32 %v2080, 16
      %v2209 = vrot.slane %v2207, 4
      %v2210 = vor.u32 %v2209, %v2205
      %v2211 = vrot.slane %v2210, 4
      %v2213 = vshll.u32 %v2108, 16
      %v2215 = vrot.slane %v2213, 5
      %v2216 = vsel %vm1200, %v2211, %v2215
      %v2218 = vshrl.u32 %v2081, 16
      %v2220 = vrot.slane %v2218, 4
      %v2221 = vshll.u32 %v2081, 16
      %v2223 = vrot.slane %v2221, 5
      %v2224 = vor.u32 %v2220, %v2223
      %v2225 = vrot.slane %v2224, 4
      %v2227 = vshll.u32 %v2082, 16
      %v2229 = vrot.slane %v2227, 5
      %v2230 = vsel %vm1200, %v2225, %v2229
      %v2231 = vshrl.u32 %v2082, 16
      %v2233 = vrot.slane %v2231, 4
      %v2234 = vor.u32 %v2233, %v2229
      %v2235 = vrot.slane %v2234, 4
      %v2237 = vshll.u32 %v2109, 16
      %v2239 = vrot.slane %v2237, 5
      %v2240 = vsel %vm1200, %v2235, %v2239
      %v2242 = vshrl.u32 %v2083, 16
      %v2244 = vrot.slane %v2242, 4
      %v2245 = vshll.u32 %v2083, 16
      %v2247 = vrot.slane %v2245, 5
      %v2248 = vor.u32 %v2244, %v2247
      %v2249 = vrot.slane %v2248, 4
      %v2251 = vshll.u32 %v2084, 16
      %v2253 = vrot.slane %v2251, 5
      %v2254 = vsel %vm1200, %v2249, %v2253
      %v2255 = vshrl.u32 %v2084, 16
      %v2257 = vrot.slane %v2255, 4
      %v2258 = vor.u32 %v2257, %v2253
      %v2259 = vrot.slane %v2258, 4
      %v2261 = vshll.u32 %v2110, 16
      %v2263 = vrot.slane %v2261, 5
      %v2264 = vsel %vm1200, %v2259, %v2263
      %v2266 = vshrl.u32 %v2085, 16
      %v2268 = vrot.slane %v2266, 4
      %v2269 = vshll.u32 %v2085, 16
      %v2271 = vrot.slane %v2269, 5
      %v2272 = vor.u32 %v2268, %v2271
      %v2273 = vrot.slane %v2272, 4
      %v2275 = vshll.u32 %v2086, 16
      %v2277 = vrot.slane %v2275, 5
      %v2278 = vsel %vm1200, %v2273, %v2277
      %v2279 = vshrl.u32 %v2086, 16
      %v2281 = vrot.slane %v2279, 4
      %v2282 = vor.u32 %v2281, %v2277
      %v2283 = vrot.slane %v2282, 4
      %v2285 = vshll.u32 %v2111, 16
      %v2287 = vrot.slane %v2285, 5
      %v2288 = vsel %vm1200, %v2283, %v2287
      %v2290 = vshrl.u32 %v2087, 16
      %v2292 = vrot.slane %v2290, 4
      %v2293 = vshll.u32 %v2087, 16
      %v2295 = vrot.slane %v2293, 5
      %v2296 = vor.u32 %v2292, %v2295
      %v2297 = vrot.slane %v2296, 4
      %v2299 = vshll.u32 %v2088, 16
      %v2301 = vrot.slane %v2299, 5
      %v2302 = vsel %vm1200, %v2297, %v2301
      %v2303 = vshrl.u32 %v2088, 16
      %v2305 = vrot.slane %v2303, 4
      %v2306 = vor.u32 %v2305, %v2301
      %v2307 = vrot.slane %v2306, 4
      %v2309 = vshll.u32 %v2112, 16
      %v2311 = vrot.slane %v2309, 5
      %v2312 = vsel %vm1200, %v2307, %v2311
      %v2314 = vshrl.u32 %v2089, 16
      %v2316 = vrot.slane %v2314, 4
      %v2317 = vshll.u32 %v2089, 16
      %v2319 = vrot.slane %v2317, 5
      %v2320 = vor.u32 %v2316, %v2319
      %v2321 = vrot.slane %v2320, 4
      %v2323 = vshll.u32 %v2090, 16
      %v2325 = vrot.slane %v2323, 5
      %v2326 = vsel %vm1200, %v2321, %v2325
      %v2327 = vshrl.u32 %v2090, 16
      %v2329 = vrot.slane %v2327, 4
      %v2330 = vor.u32 %v2329, %v2325
      %v2331 = vrot.slane %v2330, 4
      %v2333 = vshll.u32 %v2113, 16
      %v2335 = vrot.slane %v2333, 5
      %v2336 = vsel %vm1200, %v2331, %v2335
      %v2338 = vshrl.u32 %v2091, 16
      %v2340 = vrot.slane %v2338, 4
      %v2341 = vshll.u32 %v2091, 16
      %v2343 = vrot.slane %v2341, 5
      %v2344 = vor.u32 %v2340, %v2343
      %v2345 = vrot.slane %v2344, 4
      %v2347 = vshll.u32 %v2092, 16
      %v2349 = vrot.slane %v2347, 5
      %v2350 = vsel %vm1200, %v2345, %v2349
      %v2351 = vshrl.u32 %v2092, 16
      %v2353 = vrot.slane %v2351, 4
      %v2354 = vor.u32 %v2353, %v2349
      %v2355 = vrot.slane %v2354, 4
      %v2357 = vshll.u32 %v2114, 16
      %v2359 = vrot.slane %v2357, 5
      %v2360 = vsel %vm1200, %v2355, %v2359
      %v2362 = vshrl.u32 %v2093, 16
      %v2364 = vrot.slane %v2362, 4
      %v2365 = vshll.u32 %v2093, 16
      %v2367 = vrot.slane %v2365, 5
      %v2368 = vor.u32 %v2364, %v2367
      %v2369 = vrot.slane %v2368, 4
      %v2371 = vshll.u32 %v2094, 16
      %v2373 = vrot.slane %v2371, 5
      %v2374 = vsel %vm1200, %v2369, %v2373
      %v2375 = vshrl.u32 %v2094, 16
      %v2377 = vrot.slane %v2375, 4
      %v2378 = vor.u32 %v2377, %v2373
      %v2379 = vrot.slane %v2378, 4
      %v2381 = vshll.u32 %v2115, 16
      %v2383 = vrot.slane %v2381, 5
      %v2384 = vsel %vm1200, %v2379, %v2383
      %v2386 = vshrl.u32 %v2095, 16
      %v2388 = vrot.slane %v2386, 4
      %v2389 = vshll.u32 %v2095, 16
      %v2391 = vrot.slane %v2389, 5
      %v2392 = vor.u32 %v2388, %v2391
      %v2393 = vrot.slane %v2392, 4
      %v2395 = vshll.u32 %v2096, 16
      %v2397 = vrot.slane %v2395, 5
      %v2398 = vsel %vm1200, %v2393, %v2397
      %v2399 = vshrl.u32 %v2096, 16
      %v2401 = vrot.slane %v2399, 4
      %v2402 = vor.u32 %v2401, %v2397
      %v2403 = vrot.slane %v2402, 4
      %v2405 = vshll.u32 %v2116, 16
      %v2407 = vrot.slane %v2405, 5
      %v2408 = vsel %vm1200, %v2403, %v2407
      %v2410 = vshrl.u32 %v2097, 16
      %v2412 = vrot.slane %v2410, 4
      %v2413 = vshll.u32 %v2097, 16
      %v2415 = vrot.slane %v2413, 5
      %v2416 = vor.u32 %v2412, %v2415
      %v2417 = vrot.slane %v2416, 4
      %v2419 = vshll.u32 %v2098, 16
      %v2421 = vrot.slane %v2419, 5
      %v2422 = vsel %vm1200, %v2417, %v2421
      %v2423 = vshrl.u32 %v2098, 16
      %v2425 = vrot.slane %v2423, 4
      %v2426 = vor.u32 %v2425, %v2421
      %v2427 = vrot.slane %v2426, 4
      %v2429 = vshll.u32 %v2117, 16
      %v2431 = vrot.slane %v2429, 5
      %v2432 = vsel %vm1200, %v2427, %v2431
      %v2434 = vshrl.u32 %v2099, 16
      %v2436 = vrot.slane %v2434, 4
      %v2437 = vshll.u32 %v2099, 16
      %v2439 = vrot.slane %v2437, 5
      %v2440 = vor.u32 %v2436, %v2439
      %v2441 = vrot.slane %v2440, 4
      %v2443 = vshll.u32 %v2100, 16
      %v2445 = vrot.slane %v2443, 5
      %v2446 = vsel %vm1200, %v2441, %v2445
      %v2447 = vshrl.u32 %v2100, 16
      %v2449 = vrot.slane %v2447, 4
      %v2450 = vor.u32 %v2449, %v2445
      %v2451 = vrot.slane %v2450, 4
      %v2453 = vshll.u32 %v2118, 16
      %v2455 = vrot.slane %v2453, 5
      %v2456 = vsel %vm1200, %v2451, %v2455
      %v2458 = vshrl.u32 %v2101, 16
      %v2460 = vrot.slane %v2458, 4
      %v2461 = vshll.u32 %v2101, 16
      %v2463 = vrot.slane %v2461, 5
      %v2464 = vor.u32 %v2460, %v2463
      %v2465 = vrot.slane %v2464, 4
      %v2467 = vshll.u32 %v2102, 16
      %v2469 = vrot.slane %v2467, 5
      %v2470 = vsel %vm1200, %v2465, %v2469
      %v2471 = vshrl.u32 %v2102, 16
      %v2473 = vrot.slane %v2471, 4
      %v2474 = vor.u32 %v2473, %v2469
      %v2475 = vrot.slane %v2474, 4
      %v2477 = vshll.u32 %v2119, 16
      %v2479 = vrot.slane %v2477, 5
      %v2480 = vsel %vm1200, %v2475, %v2479
      %v2482 = vshrl.u32 %v2103, 16
      %v2484 = vrot.slane %v2482, 4
      %v2485 = vshll.u32 %v2103, 16
      %v2487 = vrot.slane %v2485, 5
      %v2488 = vor.u32 %v2484, %v2487
      %v2489 = vrot.slane %v2488, 4
      %v2491 = vshll.u32 %v2104, 16
      %v2493 = vrot.slane %v2491, 5
      %v2494 = vsel %vm1200, %v2489, %v2493
      %v2495 = vshrl.u32 %v2104, 16
      %v2497 = vrot.slane %v2495, 4
      %v2498 = vor.u32 %v2497, %v2493
      %v2499 = vrot.slane %v2498, 4
      %v2501 = vshll.u32 %v2120, 16
      %v2503 = vrot.slane %v2501, 5
      %v2504 = vsel %vm1200, %v2499, %v2503
      %v2505 = vld [vmem:[%s1035] sm:$0xe]
      %v2506 = vld [vmem:[%s1035 + $0xc] sm:$0xe]
      %v2507 = vld [vmem:[%s1035 + $0x18] sm:$0xe]
      %v2508 = vld [vmem:[%s1035 + $0x24] sm:$0xe]
      %v2509 = vld [vmem:[%s1035 + $0x30] sm:$0xe]
      %v2510 = vld [vmem:[%s1035 + $0x3c] sm:$0xe]
      %v2511 = vld [vmem:[%s1035 + $0x48] sm:$0xe]
      %v2512 = vld [vmem:[%s1035 + $0x54] sm:$0xe]
      %v2513 = vld [vmem:[%s1035 + $0x60] sm:$0xe]
      %v2514 = vld [vmem:[%s1035 + $0x6c] sm:$0xe]
      %v2515 = vld [vmem:[%s1035 + $0x78] sm:$0xe]
      %v2516 = vld [vmem:[%s1035 + $0x84] sm:$0xe]
      %v2517 = vld [vmem:[%s1035 + $0x90] sm:$0xe]
      %v2518 = vld [vmem:[%s1035 + $0x9c] sm:$0xe]
      %v2519 = vld [vmem:[%s1035 + $0xa8] sm:$0xe]
      %v2520 = vld [vmem:[%s1035 + $0xb4] sm:$0xe]
      %v2569 = vrot.slane %v2505, 5
      %v2570 = vrot.slane %v2569, 4
      %v2571 = vrot.slane %v2074, 5
      %v2572 = vsel %vm1651, %v2570, %v2571
      %v2573 = vrot.slane %v2571, 4
      %v2574 = vrot.slane %v2105, 5
      %v2575 = vsel %vm1651, %v2573, %v2574
      %v2576 = vrot.slane %v2506, 5
      %v2577 = vrot.slane %v2576, 4
      %v2578 = vrot.slane %v2076, 5
      %v2579 = vsel %vm1651, %v2577, %v2578
      %v2580 = vrot.slane %v2578, 4
      %v2581 = vrot.slane %v2106, 5
      %v2582 = vsel %vm1651, %v2580, %v2581
      %v2583 = vrot.slane %v2507, 5
      %v2584 = vrot.slane %v2583, 4
      %v2585 = vrot.slane %v2078, 5
      %v2586 = vsel %vm1651, %v2584, %v2585
      %v2587 = vrot.slane %v2585, 4
      %v2588 = vrot.slane %v2107, 5
      %v2589 = vsel %vm1651, %v2587, %v2588
      %v2590 = vrot.slane %v2508, 5
      %v2591 = vrot.slane %v2590, 4
      %v2592 = vrot.slane %v2080, 5
      %v2593 = vsel %vm1651, %v2591, %v2592
      %v2594 = vrot.slane %v2592, 4
      %v2595 = vrot.slane %v2108, 5
      %v2596 = vsel %vm1651, %v2594, %v2595
      %v2597 = vrot.slane %v2509, 5
      %v2598 = vrot.slane %v2597, 4
      %v2599 = vrot.slane %v2082, 5
      %v2600 = vsel %vm1651, %v2598, %v2599
      %v2601 = vrot.slane %v2599, 4
      %v2602 = vrot.slane %v2109, 5
      %v2603 = vsel %vm1651, %v2601, %v2602
      %v2604 = vrot.slane %v2510, 5
      %v2605 = vrot.slane %v2604, 4
      %v2606 = vrot.slane %v2084, 5
      %v2607 = vsel %vm1651, %v2605, %v2606
      %v2608 = vrot.slane %v2606, 4
      %v2609 = vrot.slane %v2110, 5
      %v2610 = vsel %vm1651, %v2608, %v2609
      %v2611 = vrot.slane %v2511, 5
      %v2612 = vrot.slane %v2611, 4
      %v2613 = vrot.slane %v2086, 5
      %v2614 = vsel %vm1651, %v2612, %v2613
      %v2615 = vrot.slane %v2613, 4
      %v2616 = vrot.slane %v2111, 5
      %v2617 = vsel %vm1651, %v2615, %v2616
      %v2618 = vrot.slane %v2512, 5
      %v2619 = vrot.slane %v2618, 4
      %v2620 = vrot.slane %v2088, 5
      %v2621 = vsel %vm1651, %v2619, %v2620
      %v2622 = vrot.slane %v2620, 4
      %v2623 = vrot.slane %v2112, 5
      %v2624 = vsel %vm1651, %v2622, %v2623
      %v2625 = vrot.slane %v2513, 5
      %v2626 = vrot.slane %v2625, 4
      %v2627 = vrot.slane %v2090, 5
      %v2628 = vsel %vm1651, %v2626, %v2627
      %v2629 = vrot.slane %v2627, 4
      %v2630 = vrot.slane %v2113, 5
      %v2631 = vsel %vm1651, %v2629, %v2630
      %v2632 = vrot.slane %v2514, 5
      %v2633 = vrot.slane %v2632, 4
      %v2634 = vrot.slane %v2092, 5
      %v2635 = vsel %vm1651, %v2633, %v2634
      %v2636 = vrot.slane %v2634, 4
      %v2637 = vrot.slane %v2114, 5
      %v2638 = vsel %vm1651, %v2636, %v2637
      %v2639 = vrot.slane %v2515, 5
      %v2640 = vrot.slane %v2639, 4
      %v2641 = vrot.slane %v2094, 5
      %v2642 = vsel %vm1651, %v2640, %v2641
      %v2643 = vrot.slane %v2641, 4
      %v2644 = vrot.slane %v2115, 5
      %v2645 = vsel %vm1651, %v2643, %v2644
      %v2646 = vrot.slane %v2516, 5
      %v2647 = vrot.slane %v2646, 4
      %v2648 = vrot.slane %v2096, 5
      %v2649 = vsel %vm1651, %v2647, %v2648
      %v2650 = vrot.slane %v2648, 4
      %v2651 = vrot.slane %v2116, 5
      %v2652 = vsel %vm1651, %v2650, %v2651
      %v2653 = vrot.slane %v2517, 5
      %v2654 = vrot.slane %v2653, 4
      %v2655 = vrot.slane %v2098, 5
      %v2656 = vsel %vm1651, %v2654, %v2655
      %v2657 = vrot.slane %v2655, 4
      %v2658 = vrot.slane %v2117, 5
      %v2659 = vsel %vm1651, %v2657, %v2658
      %v2660 = vrot.slane %v2518, 5
      %v2661 = vrot.slane %v2660, 4
      %v2662 = vrot.slane %v2100, 5
      %v2663 = vsel %vm1651, %v2661, %v2662
      %v2664 = vrot.slane %v2662, 4
      %v2665 = vrot.slane %v2118, 5
      %v2666 = vsel %vm1651, %v2664, %v2665
      %v2667 = vrot.slane %v2519, 5
      %v2668 = vrot.slane %v2667, 4
      %v2669 = vrot.slane %v2102, 5
      %v2670 = vsel %vm1651, %v2668, %v2669
      %v2671 = vrot.slane %v2669, 4
      %v2672 = vrot.slane %v2119, 5
      %v2673 = vsel %vm1651, %v2671, %v2672
      %v2674 = vrot.slane %v2520, 5
      %v2675 = vrot.slane %v2674, 4
      %v2676 = vrot.slane %v2104, 5
      %v2677 = vsel %vm1651, %v2675, %v2676
      %v2678 = vrot.slane %v2676, 4
      %v2679 = vrot.slane %v2120, 5
      %v2680 = vsel %vm1651, %v2678, %v2679
      %v2697 = vunpack.c.l.b16 %v2073
      %v2698 = vunpack.c.l.b16 %v2074
      %v2699 = vunpack.c.l.b16 %v2075
      %v2700 = vunpack.c.l.b16 %v2076
      %v2701 = vunpack.c.l.b16 %v2077
      %v2702 = vunpack.c.l.b16 %v2078
      %v2703 = vunpack.c.l.b16 %v2079
      %v2704 = vunpack.c.l.b16 %v2080
      %v2705 = vunpack.c.l.b16 %v2081
      %v2706 = vunpack.c.l.b16 %v2082
      %v2707 = vunpack.c.l.b16 %v2083
      %v2708 = vunpack.c.l.b16 %v2084
      %v2709 = vunpack.c.l.b16 %v2085
      %v2710 = vunpack.c.l.b16 %v2086
      %v2711 = vunpack.c.l.b16 %v2087
      %v2712 = vunpack.c.l.b16 %v2088
      %v2713 = vunpack.c.l.b16 %v2089
      %v2714 = vunpack.c.l.b16 %v2090
      %v2715 = vunpack.c.l.b16 %v2091
      %v2716 = vunpack.c.l.b16 %v2092
      %v2717 = vunpack.c.l.b16 %v2093
      %v2718 = vunpack.c.l.b16 %v2094
      %v2719 = vunpack.c.l.b16 %v2095
      %v2720 = vunpack.c.l.b16 %v2096
      %v2721 = vunpack.c.l.b16 %v2097
      %v2722 = vunpack.c.l.b16 %v2098
      %v2723 = vunpack.c.l.b16 %v2099
      %v2724 = vunpack.c.l.b16 %v2100
      %v2725 = vunpack.c.l.b16 %v2101
      %v2726 = vunpack.c.l.b16 %v2102
      %v2727 = vunpack.c.l.b16 %v2103
      %v2728 = vunpack.c.l.b16 %v2104
      %v2729 = vpack.c.b16 %v2698, %v2697
      %v2730 = vpack.c.b16 %v2700, %v2699
      %v2731 = vpack.c.b16 %v2702, %v2701
      %v2732 = vpack.c.b16 %v2704, %v2703
      %v2733 = vpack.c.b16 %v2706, %v2705
      %v2734 = vpack.c.b16 %v2708, %v2707
      %v2735 = vpack.c.b16 %v2710, %v2709
      %v2736 = vpack.c.b16 %v2712, %v2711
      %v2737 = vpack.c.b16 %v2714, %v2713
      %v2738 = vpack.c.b16 %v2716, %v2715
      %v2739 = vpack.c.b16 %v2718, %v2717
      %v2740 = vpack.c.b16 %v2720, %v2719
      %v2741 = vpack.c.b16 %v2722, %v2721
      %v2742 = vpack.c.b16 %v2724, %v2723
      %v2743 = vpack.c.b16 %v2726, %v2725
      %v2744 = vpack.c.b16 %v2728, %v2727
      %v2745 = vunpack.c.l.b16 %v2134
      %v2746 = vunpack.c.l.b16 %v2144
      %v2747 = vunpack.c.l.b16 %v2158
      %v2748 = vunpack.c.l.b16 %v2168
      %v2749 = vunpack.c.l.b16 %v2182
      %v2750 = vunpack.c.l.b16 %v2192
      %v2751 = vunpack.c.l.b16 %v2206
      %v2752 = vunpack.c.l.b16 %v2216
      %v2753 = vunpack.c.l.b16 %v2230
      %v2754 = vunpack.c.l.b16 %v2240
      %v2755 = vunpack.c.l.b16 %v2254
      %v2756 = vunpack.c.l.b16 %v2264
      %v2757 = vunpack.c.l.b16 %v2278
      %v2758 = vunpack.c.l.b16 %v2288
      %v2759 = vunpack.c.l.b16 %v2302
      %v2760 = vunpack.c.l.b16 %v2312
      %v2761 = vunpack.c.l.b16 %v2326
      %v2762 = vunpack.c.l.b16 %v2336
      %v2763 = vunpack.c.l.b16 %v2350
      %v2764 = vunpack.c.l.b16 %v2360
      %v2765 = vunpack.c.l.b16 %v2374
      %v2766 = vunpack.c.l.b16 %v2384
      %v2767 = vunpack.c.l.b16 %v2398
      %v2768 = vunpack.c.l.b16 %v2408
      %v2769 = vunpack.c.l.b16 %v2422
      %v2770 = vunpack.c.l.b16 %v2432
      %v2771 = vunpack.c.l.b16 %v2446
      %v2772 = vunpack.c.l.b16 %v2456
      %v2773 = vunpack.c.l.b16 %v2470
      %v2774 = vunpack.c.l.b16 %v2480
      %v2775 = vunpack.c.l.b16 %v2494
      %v2776 = vunpack.c.l.b16 %v2504
      %v2777 = vpack.c.b16 %v2746, %v2745
      %v2778 = vpack.c.b16 %v2748, %v2747
      %v2779 = vpack.c.b16 %v2750, %v2749
      %v2780 = vpack.c.b16 %v2752, %v2751
      %v2781 = vpack.c.b16 %v2754, %v2753
      %v2782 = vpack.c.b16 %v2756, %v2755
      %v2783 = vpack.c.b16 %v2758, %v2757
      %v2784 = vpack.c.b16 %v2760, %v2759
      %v2785 = vpack.c.b16 %v2762, %v2761
      %v2786 = vpack.c.b16 %v2764, %v2763
      %v2787 = vpack.c.b16 %v2766, %v2765
      %v2788 = vpack.c.b16 %v2768, %v2767
      %v2789 = vpack.c.b16 %v2770, %v2769
      %v2790 = vpack.c.b16 %v2772, %v2771
      %v2791 = vpack.c.b16 %v2774, %v2773
      %v2792 = vpack.c.b16 %v2776, %v2775
      %2793 = vrot.lane.b32.xlu0 %v2777, 8
      %v2794 = vpop.permute.xlu0 %2793
      %2795 = vrot.lane.b32.xlu0 %v2778, 8
      %v2796 = vpop.permute.xlu0 %2795
      %2797 = vrot.lane.b32.xlu0 %v2779, 8
      %v2798 = vpop.permute.xlu0 %2797
      %2799 = vrot.lane.b32.xlu0 %v2780, 8
      %v2800 = vpop.permute.xlu0 %2799
      %2801 = vrot.lane.b32.xlu0 %v2781, 8
      %v2802 = vpop.permute.xlu0 %2801
      %2803 = vrot.lane.b32.xlu0 %v2782, 8
      %v2804 = vpop.permute.xlu0 %2803
      %2805 = vrot.lane.b32.xlu0 %v2783, 8
      %v2806 = vpop.permute.xlu0 %2805
      %2807 = vrot.lane.b32.xlu0 %v2784, 8
      %v2808 = vpop.permute.xlu0 %2807
      %2809 = vrot.lane.b32.xlu0 %v2785, 8
      %v2810 = vpop.permute.xlu0 %2809
      %2811 = vrot.lane.b32.xlu0 %v2786, 8
      %v2812 = vpop.permute.xlu0 %2811
      %2813 = vrot.lane.b32.xlu0 %v2787, 8
      %v2814 = vpop.permute.xlu0 %2813
      %2815 = vrot.lane.b32.xlu0 %v2788, 8
      %v2816 = vpop.permute.xlu0 %2815
      %2817 = vrot.lane.b32.xlu0 %v2789, 8
      %v2818 = vpop.permute.xlu0 %2817
      %2819 = vrot.lane.b32.xlu0 %v2790, 8
      %v2820 = vpop.permute.xlu0 %2819
      %2821 = vrot.lane.b32.xlu0 %v2791, 8
      %v2822 = vpop.permute.xlu0 %2821
      %2823 = vrot.lane.b32.xlu0 %v2792, 8
      %v2824 = vpop.permute.xlu0 %2823
      %v2825 = vunpack.c.l.b16 %v2572
      %v2826 = vunpack.c.l.b16 %v2575
      %v2827 = vunpack.c.l.b16 %v2579
      %v2828 = vunpack.c.l.b16 %v2582
      %v2829 = vunpack.c.l.b16 %v2586
      %v2830 = vunpack.c.l.b16 %v2589
      %v2831 = vunpack.c.l.b16 %v2593
      %v2832 = vunpack.c.l.b16 %v2596
      %v2833 = vunpack.c.l.b16 %v2600
      %v2834 = vunpack.c.l.b16 %v2603
      %v2835 = vunpack.c.l.b16 %v2607
      %v2836 = vunpack.c.l.b16 %v2610
      %v2837 = vunpack.c.l.b16 %v2614
      %v2838 = vunpack.c.l.b16 %v2617
      %v2839 = vunpack.c.l.b16 %v2621
      %v2840 = vunpack.c.l.b16 %v2624
      %v2841 = vunpack.c.l.b16 %v2628
      %v2842 = vunpack.c.l.b16 %v2631
      %v2843 = vunpack.c.l.b16 %v2635
      %v2844 = vunpack.c.l.b16 %v2638
      %v2845 = vunpack.c.l.b16 %v2642
      %v2846 = vunpack.c.l.b16 %v2645
      %v2847 = vunpack.c.l.b16 %v2649
      %v2848 = vunpack.c.l.b16 %v2652
      %v2849 = vunpack.c.l.b16 %v2656
      %v2850 = vunpack.c.l.b16 %v2659
      %v2851 = vunpack.c.l.b16 %v2663
      %v2852 = vunpack.c.l.b16 %v2666
      %v2853 = vunpack.c.l.b16 %v2670
      %v2854 = vunpack.c.l.b16 %v2673
      %v2855 = vunpack.c.l.b16 %v2677
      %v2856 = vunpack.c.l.b16 %v2680
      %v2857 = vpack.c.b16 %v2826, %v2825
      %v2858 = vpack.c.b16 %v2828, %v2827
      %v2859 = vpack.c.b16 %v2830, %v2829
      %v2860 = vpack.c.b16 %v2832, %v2831
      %v2861 = vpack.c.b16 %v2834, %v2833
      %v2862 = vpack.c.b16 %v2836, %v2835
      %v2863 = vpack.c.b16 %v2838, %v2837
      %v2864 = vpack.c.b16 %v2840, %v2839
      %v2865 = vpack.c.b16 %v2842, %v2841
      %v2866 = vpack.c.b16 %v2844, %v2843
      %v2867 = vpack.c.b16 %v2846, %v2845
      %v2868 = vpack.c.b16 %v2848, %v2847
      %v2869 = vpack.c.b16 %v2850, %v2849
      %v2870 = vpack.c.b16 %v2852, %v2851
      %v2871 = vpack.c.b16 %v2854, %v2853
      %v2872 = vpack.c.b16 %v2856, %v2855
      %2873 = vrot.lane.b32.xlu0 %v2857, 16
      %v2874 = vpop.permute.xlu0 %2873
      %2875 = vrot.lane.b32.xlu0 %v2858, 16
      %v2876 = vpop.permute.xlu0 %2875
      %2877 = vrot.lane.b32.xlu0 %v2859, 16
      %v2878 = vpop.permute.xlu0 %2877
      %2879 = vrot.lane.b32.xlu0 %v2860, 16
      %v2880 = vpop.permute.xlu0 %2879
      %2881 = vrot.lane.b32.xlu0 %v2861, 16
      %v2882 = vpop.permute.xlu0 %2881
      %2883 = vrot.lane.b32.xlu0 %v2862, 16
      %v2884 = vpop.permute.xlu0 %2883
      %2885 = vrot.lane.b32.xlu0 %v2863, 16
      %v2886 = vpop.permute.xlu0 %2885
      %2887 = vrot.lane.b32.xlu0 %v2864, 16
      %v2888 = vpop.permute.xlu0 %2887
      %2889 = vrot.lane.b32.xlu0 %v2865, 16
      %v2890 = vpop.permute.xlu0 %2889
      %2891 = vrot.lane.b32.xlu0 %v2866, 16
      %v2892 = vpop.permute.xlu0 %2891
      %2893 = vrot.lane.b32.xlu0 %v2867, 16
      %v2894 = vpop.permute.xlu0 %2893
      %2895 = vrot.lane.b32.xlu0 %v2868, 16
      %v2896 = vpop.permute.xlu0 %2895
      %2897 = vrot.lane.b32.xlu0 %v2869, 16
      %v2898 = vpop.permute.xlu0 %2897
      %2899 = vrot.lane.b32.xlu0 %v2870, 16
      %v2900 = vpop.permute.xlu0 %2899
      %2901 = vrot.lane.b32.xlu0 %v2871, 16
      %v2902 = vpop.permute.xlu0 %2901
      %2903 = vrot.lane.b32.xlu0 %v2872, 16
      %v2904 = vpop.permute.xlu0 %2903
      %v2907 = vsel %vm1988, %v2729, %v2794
      %v2910 = vsel %vm1988, %v2730, %v2796
      %v2913 = vsel %vm1988, %v2731, %v2798
      %v2916 = vsel %vm1988, %v2732, %v2800
      %v2919 = vsel %vm1988, %v2733, %v2802
      %v2922 = vsel %vm1988, %v2734, %v2804
      %v2925 = vsel %vm1988, %v2735, %v2806
      %v2928 = vsel %vm1988, %v2736, %v2808
      %v2931 = vsel %vm1988, %v2737, %v2810
      %v2934 = vsel %vm1988, %v2738, %v2812
      %v2937 = vsel %vm1988, %v2739, %v2814
      %v2940 = vsel %vm1988, %v2740, %v2816
      %v2943 = vsel %vm1988, %v2741, %v2818
      %v2946 = vsel %vm1988, %v2742, %v2820
      %v2949 = vsel %vm1988, %v2743, %v2822
      %v2952 = vsel %vm1988, %v2744, %v2824
      %v2954 = vsel %vm2037, %v2907, %v2874
      %v2956 = vsel %vm2037, %v2910, %v2876
      %v2958 = vsel %vm2037, %v2913, %v2878
      %v2960 = vsel %vm2037, %v2916, %v2880
      %v2962 = vsel %vm2037, %v2919, %v2882
      %v2964 = vsel %vm2037, %v2922, %v2884
      %v2966 = vsel %vm2037, %v2925, %v2886
      %v2968 = vsel %vm2037, %v2928, %v2888
      %v2970 = vsel %vm2037, %v2931, %v2890
      %v2972 = vsel %vm2037, %v2934, %v2892
      %v2974 = vsel %vm2037, %v2937, %v2894
      %v2976 = vsel %vm2037, %v2940, %v2896
      %v2978 = vsel %vm2037, %v2943, %v2898
      %v2980 = vsel %vm2037, %v2946, %v2900
      %v2982 = vsel %vm2037, %v2949, %v2902
      %v2984 = vsel %vm2037, %v2952, %v2904
      %v2985 = vld [vmem:[%s2 + $0xc] sm:$0xf]
      %v2986 = vld [vmem:[%s2 + $0x10] sm:$0xf]
      %v2987 = vld [vmem:[%s2 + $0x14] sm:$0xf]
      %v2991 = vunpack.c.l.b16 %v2985
      %v2992 = vunpack.c.l.b16 %v2986
      %v2993 = vunpack.c.l.b16 %v2987
      %v2994 = vpack.c.b16 %v2992, %v2991
      %v2995 = vpack.c.b16 %v2993, %v2993
      %vm2997 = vcmask 195584
      %v2998 = vsel %vm2997, %v2954, 0
      %v3000 = vsel %vm2997, %v2956, 0
      %v3002 = vsel %vm2997, %v2958, 0
      %v3004 = vsel %vm2997, %v2960, 0
      %v3006 = vsel %vm2997, %v2962, 0
      %v3008 = vsel %vm2997, %v2964, 0
      %v3010 = vsel %vm2997, %v2966, 0
      %v3012 = vsel %vm2997, %v2968, 0
      %v3014 = vsel %vm2997, %v2970, 0
      %v3016 = vsel %vm2997, %v2972, 0
      %v3018 = vsel %vm2997, %v2974, 0
      %v3020 = vsel %vm2997, %v2976, 0
      %v3022 = vsel %vm2997, %v2978, 0
      %v3024 = vsel %vm2997, %v2980, 0
      %v3026 = vsel %vm2997, %v2982, 0
      %v3028 = vsel %vm2997, %v2984, 0
      %vm3030 = vcmask 1043456
      %v3032 = vsel %vm3030, %v2995, 0
      %3034 = vmatpush.bf16.msra.mxu0 0
      %3035 = vmatpush.bf16.msra.mxu0 0
      %3036 = vmatpush.bf16.msra.mxu0 0
      %3037 = vmatpush.bf16.msra.mxu0 0
      %3038 = vmatpush.bf16.msra.mxu0 0
      %3039 = vmatpush.bf16.msra.mxu0 0
      %3040 = vmatpush.bf16.msra.mxu0 %v3032
      %3041 = vmatpush.bf16.msra.mxu0 %v2994
      %3042 = vmatmul.bf16.gmra.mxu0 %v2998
      %v3043 = vpop.f32.mrf.mxu0
      %v3044 = vadd.f32 0.0, %v3043
      %v3045 = vpop.f32.mrf.mxu0
      %v3046 = vadd.f32 0.0, %v3045
      %3047 = vmatmul.bf16.gmra.mxu0 %v3000
      %v3048 = vpop.f32.mrf.mxu0
      %v3049 = vadd.f32 0.0, %v3048
      %v3050 = vpop.f32.mrf.mxu0
      %v3051 = vadd.f32 0.0, %v3050
      %3052 = vmatmul.bf16.gmra.mxu0 %v3002
      %v3053 = vpop.f32.mrf.mxu0
      %v3054 = vadd.f32 0.0, %v3053
      %v3055 = vpop.f32.mrf.mxu0
      %v3056 = vadd.f32 0.0, %v3055
      %3057 = vmatmul.bf16.gmra.mxu0 %v3004
      %v3058 = vpop.f32.mrf.mxu0
      %v3059 = vadd.f32 0.0, %v3058
      %v3060 = vpop.f32.mrf.mxu0
      %v3061 = vadd.f32 0.0, %v3060
      %3062 = vmatmul.bf16.gmra.mxu0 %v3006
      %v3063 = vpop.f32.mrf.mxu0
      %v3064 = vadd.f32 0.0, %v3063
      %v3065 = vpop.f32.mrf.mxu0
      %v3066 = vadd.f32 0.0, %v3065
      %3067 = vmatmul.bf16.gmra.mxu0 %v3008
      %v3068 = vpop.f32.mrf.mxu0
      %v3069 = vadd.f32 0.0, %v3068
      %v3070 = vpop.f32.mrf.mxu0
      %v3071 = vadd.f32 0.0, %v3070
      %3072 = vmatmul.bf16.gmra.mxu0 %v3010
      %v3073 = vpop.f32.mrf.mxu0
      %v3074 = vadd.f32 0.0, %v3073
      %v3075 = vpop.f32.mrf.mxu0
      %v3076 = vadd.f32 0.0, %v3075
      %3077 = vmatmul.bf16.gmra.mxu0 %v3012
      %v3078 = vpop.f32.mrf.mxu0
      %v3079 = vadd.f32 0.0, %v3078
      %v3080 = vpop.f32.mrf.mxu0
      %v3081 = vadd.f32 0.0, %v3080
      %3082 = vmatmul.bf16.gmra.mxu0 %v3014
      %v3083 = vpop.f32.mrf.mxu0
      %v3084 = vadd.f32 0.0, %v3083
      %v3085 = vpop.f32.mrf.mxu0
      %v3086 = vadd.f32 0.0, %v3085
      %3087 = vmatmul.bf16.gmra.mxu0 %v3016
      %v3088 = vpop.f32.mrf.mxu0
      %v3089 = vadd.f32 0.0, %v3088
      %v3090 = vpop.f32.mrf.mxu0
      %v3091 = vadd.f32 0.0, %v3090
      %3092 = vmatmul.bf16.gmra.mxu0 %v3018
      %v3093 = vpop.f32.mrf.mxu0
      %v3094 = vadd.f32 0.0, %v3093
      %v3095 = vpop.f32.mrf.mxu0
      %v3096 = vadd.f32 0.0, %v3095
      %3097 = vmatmul.bf16.gmra.mxu0 %v3020
      %v3098 = vpop.f32.mrf.mxu0
      %v3099 = vadd.f32 0.0, %v3098
      %v3100 = vpop.f32.mrf.mxu0
      %v3101 = vadd.f32 0.0, %v3100
      %3102 = vmatmul.bf16.gmra.mxu0 %v3022
      %v3103 = vpop.f32.mrf.mxu0
      %v3104 = vadd.f32 0.0, %v3103
      %v3105 = vpop.f32.mrf.mxu0
      %v3106 = vadd.f32 0.0, %v3105
      %3107 = vmatmul.bf16.gmra.mxu0 %v3024
      %v3108 = vpop.f32.mrf.mxu0
      %v3109 = vadd.f32 0.0, %v3108
      %v3110 = vpop.f32.mrf.mxu0
      %v3111 = vadd.f32 0.0, %v3110
      %3112 = vmatmul.bf16.gmra.mxu0 %v3026
      %v3113 = vpop.f32.mrf.mxu0
      %v3114 = vadd.f32 0.0, %v3113
      %v3115 = vpop.f32.mrf.mxu0
      %v3116 = vadd.f32 0.0, %v3115
      %3117 = vmatmul.bf16.gmra.mxu0 %v3028
      %v3118 = vpop.f32.mrf.mxu0
      %v3119 = vadd.f32 0.0, %v3118
      %v3120 = vpop.f32.mrf.mxu0
      %v3121 = vadd.f32 0.0, %v3120
      %3122 = vdwg.mxu0
      %v3126 = vunpack.c.l.b16 %v2070
      %v3127 = vunpack.c.l.b16 %v2071
      %v3128 = vunpack.c.l.b16 %v2072
      %v3129 = vpack.c.b16 %v3127, %v3126
      %v3130 = vpack.c.b16 %v3128, %v3128
      %v3132 = vsel %vm2997, %v2039, 0
      %v3134 = vsel %vm2997, %v2041, 0
      %v3136 = vsel %vm2997, %v2043, 0
      %v3138 = vsel %vm2997, %v2045, 0
      %v3140 = vsel %vm2997, %v2047, 0
      %v3142 = vsel %vm2997, %v2049, 0
      %v3144 = vsel %vm2997, %v2051, 0
      %v3146 = vsel %vm2997, %v2053, 0
      %v3148 = vsel %vm2997, %v2055, 0
      %v3150 = vsel %vm2997, %v2057, 0
      %v3152 = vsel %vm2997, %v2059, 0
      %v3154 = vsel %vm2997, %v2061, 0
      %v3156 = vsel %vm2997, %v2063, 0
      %v3158 = vsel %vm2997, %v2065, 0
      %v3160 = vsel %vm2997, %v2067, 0
      %v3162 = vsel %vm2997, %v2069, 0
      %v3165 = vsel %vm3030, %v3130, 0
      %3167 = vmatpush.bf16.msra.mxu0 0
      %3168 = vmatpush.bf16.msra.mxu0 0
      %3169 = vmatpush.bf16.msra.mxu0 0
      %3170 = vmatpush.bf16.msra.mxu0 0
      %3171 = vmatpush.bf16.msra.mxu0 0
      %3172 = vmatpush.bf16.msra.mxu0 0
      %3173 = vmatpush.bf16.msra.mxu0 %v3165
      %3174 = vmatpush.bf16.msra.mxu0 %v3129
      %3175 = vmatmul.bf16.gmra.mxu0 %v3132
      %v3176 = vpop.f32.mrf.mxu0
      %v3177 = vadd.f32 %v3044, %v3176
      %v3178 = vpop.f32.mrf.mxu0
      %v3179 = vadd.f32 %v3046, %v3178
      %3180 = vmatmul.bf16.gmra.mxu0 %v3134
      %v3181 = vpop.f32.mrf.mxu0
      %v3182 = vadd.f32 %v3049, %v3181
      %v3183 = vpop.f32.mrf.mxu0
      %v3184 = vadd.f32 %v3051, %v3183
      %3185 = vmatmul.bf16.gmra.mxu0 %v3136
      %v3186 = vpop.f32.mrf.mxu0
      %v3187 = vadd.f32 %v3054, %v3186
      %v3188 = vpop.f32.mrf.mxu0
      %v3189 = vadd.f32 %v3056, %v3188
      %3190 = vmatmul.bf16.gmra.mxu0 %v3138
      %v3191 = vpop.f32.mrf.mxu0
      %v3192 = vadd.f32 %v3059, %v3191
      %v3193 = vpop.f32.mrf.mxu0
      %v3194 = vadd.f32 %v3061, %v3193
      %3195 = vmatmul.bf16.gmra.mxu0 %v3140
      %v3196 = vpop.f32.mrf.mxu0
      %v3197 = vadd.f32 %v3064, %v3196
      %v3198 = vpop.f32.mrf.mxu0
      %v3199 = vadd.f32 %v3066, %v3198
      %3200 = vmatmul.bf16.gmra.mxu0 %v3142
      %v3201 = vpop.f32.mrf.mxu0
      %v3202 = vadd.f32 %v3069, %v3201
      %v3203 = vpop.f32.mrf.mxu0
      %v3204 = vadd.f32 %v3071, %v3203
      %3205 = vmatmul.bf16.gmra.mxu0 %v3144
      %v3206 = vpop.f32.mrf.mxu0
      %v3207 = vadd.f32 %v3074, %v3206
      %v3208 = vpop.f32.mrf.mxu0
      %v3209 = vadd.f32 %v3076, %v3208
      %3210 = vmatmul.bf16.gmra.mxu0 %v3146
      %v3211 = vpop.f32.mrf.mxu0
      %v3212 = vadd.f32 %v3079, %v3211
      %v3213 = vpop.f32.mrf.mxu0
      %v3214 = vadd.f32 %v3081, %v3213
      %3215 = vmatmul.bf16.gmra.mxu0 %v3148
      %v3216 = vpop.f32.mrf.mxu0
      %v3217 = vadd.f32 %v3084, %v3216
      %v3218 = vpop.f32.mrf.mxu0
      %v3219 = vadd.f32 %v3086, %v3218
      %3220 = vmatmul.bf16.gmra.mxu0 %v3150
      %v3221 = vpop.f32.mrf.mxu0
      %v3222 = vadd.f32 %v3089, %v3221
      %v3223 = vpop.f32.mrf.mxu0
      %v3224 = vadd.f32 %v3091, %v3223
      %3225 = vmatmul.bf16.gmra.mxu0 %v3152
      %v3226 = vpop.f32.mrf.mxu0
      %v3227 = vadd.f32 %v3094, %v3226
      %v3228 = vpop.f32.mrf.mxu0
      %v3229 = vadd.f32 %v3096, %v3228
      %3230 = vmatmul.bf16.gmra.mxu0 %v3154
      %v3231 = vpop.f32.mrf.mxu0
      %v3232 = vadd.f32 %v3099, %v3231
      %v3233 = vpop.f32.mrf.mxu0
      %v3234 = vadd.f32 %v3101, %v3233
      %3235 = vmatmul.bf16.gmra.mxu0 %v3156
      %v3236 = vpop.f32.mrf.mxu0
      %v3237 = vadd.f32 %v3104, %v3236
      %v3238 = vpop.f32.mrf.mxu0
      %v3239 = vadd.f32 %v3106, %v3238
      %3240 = vmatmul.bf16.gmra.mxu0 %v3158
      %v3241 = vpop.f32.mrf.mxu0
      %v3242 = vadd.f32 %v3109, %v3241
      %v3243 = vpop.f32.mrf.mxu0
      %v3244 = vadd.f32 %v3111, %v3243
      %3245 = vmatmul.bf16.gmra.mxu0 %v3160
      %v3246 = vpop.f32.mrf.mxu0
      %v3247 = vadd.f32 %v3114, %v3246
      %v3248 = vpop.f32.mrf.mxu0
      %v3249 = vadd.f32 %v3116, %v3248
      %3250 = vmatmul.bf16.gmra.mxu0 %v3162
      %v3251 = vpop.f32.mrf.mxu0
      %v3252 = vadd.f32 %v3119, %v3251
      %v3253 = vpop.f32.mrf.mxu0
      %v3254 = vadd.f32 %v3121, %v3253
      %3255 = vdwg.mxu0
      %s3256 = scalar_lea.vmem [#allocation2], 24
      %v3257 = vld [vmem:[%s3256] sm:$0xf]
      %v3258 = vld [vmem:[%s3256 + $0x4] sm:$0xf]
      %v3259 = vld [vmem:[%s3256 + $0xc] sm:$0xf]
      %v3260 = vld [vmem:[%s3256 + $0x10] sm:$0xf]
      %v3261 = vld [vmem:[%s3256 + $0x18] sm:$0xf]
      %v3262 = vld [vmem:[%s3256 + $0x1c] sm:$0xf]
      %v3263 = vld [vmem:[%s3256 + $0x24] sm:$0xf]
      %v3264 = vld [vmem:[%s3256 + $0x28] sm:$0xf]
      %v3265 = vld [vmem:[%s3256 + $0x30] sm:$0xf]
      %v3266 = vld [vmem:[%s3256 + $0x34] sm:$0xf]
      %v3267 = vld [vmem:[%s3256 + $0x3c] sm:$0xf]
      %v3268 = vld [vmem:[%s3256 + $0x40] sm:$0xf]
      %v3269 = vld [vmem:[%s3256 + $0x48] sm:$0xf]
      %v3270 = vld [vmem:[%s3256 + $0x4c] sm:$0xf]
      %v3271 = vld [vmem:[%s3256 + $0x54] sm:$0xf]
      %v3272 = vld [vmem:[%s3256 + $0x58] sm:$0xf]
      %v3273 = vld [vmem:[%s3256 + $0x60] sm:$0xf]
      %v3274 = vld [vmem:[%s3256 + $0x64] sm:$0xf]
      %v3275 = vld [vmem:[%s3256 + $0x6c] sm:$0xf]
      %v3276 = vld [vmem:[%s3256 + $0x70] sm:$0xf]
      %v3277 = vld [vmem:[%s3256 + $0x78] sm:$0xf]
      %v3278 = vld [vmem:[%s3256 + $0x7c] sm:$0xf]
      %v3279 = vld [vmem:[%s3256 + $0x84] sm:$0xf]
      %v3280 = vld [vmem:[%s3256 + $0x88] sm:$0xf]
      %v3281 = vld [vmem:[%s3256 + $0x90] sm:$0xf]
      %v3282 = vld [vmem:[%s3256 + $0x94] sm:$0xf]
      %v3283 = vld [vmem:[%s3256 + $0x9c] sm:$0xf]
      %v3284 = vld [vmem:[%s3256 + $0xa0] sm:$0xf]
      %v3285 = vld [vmem:[%s3256 + $0xa8] sm:$0xf]
      %v3286 = vld [vmem:[%s3256 + $0xac] sm:$0xf]
      %v3287 = vld [vmem:[%s3256 + $0xb4] sm:$0xf]
      %v3288 = vld [vmem:[%s3256 + $0xb8] sm:$0xf]
      %v3289 = vld [vmem:[%s3256 + $0x8] sm:$0x1]
      %v3290 = vld [vmem:[%s3256 + $0x14] sm:$0x1]
      %v3291 = vld [vmem:[%s3256 + $0x20] sm:$0x1]
      %v3292 = vld [vmem:[%s3256 + $0x2c] sm:$0x1]
      %v3293 = vld [vmem:[%s3256 + $0x38] sm:$0x1]
      %v3294 = vld [vmem:[%s3256 + $0x44] sm:$0x1]
      %v3295 = vld [vmem:[%s3256 + $0x50] sm:$0x1]
      %v3296 = vld [vmem:[%s3256 + $0x5c] sm:$0x1]
      %v3297 = vld [vmem:[%s3256 + $0x68] sm:$0x1]
      %v3298 = vld [vmem:[%s3256 + $0x74] sm:$0x1]
      %v3299 = vld [vmem:[%s3256 + $0x80] sm:$0x1]
      %v3300 = vld [vmem:[%s3256 + $0x8c] sm:$0x1]
      %v3301 = vld [vmem:[%s3256 + $0x98] sm:$0x1]
      %v3302 = vld [vmem:[%s3256 + $0xa4] sm:$0x1]
      %v3303 = vld [vmem:[%s3256 + $0xb0] sm:$0x1]
      %v3304 = vld [vmem:[%s3256 + $0xbc] sm:$0x1]
      %v3306 = vshrl.u32 %v3257, 16
      %v3308 = vrot.slane %v3306, 4
      %v3309 = vshll.u32 %v3257, 16
      %v3311 = vrot.slane %v3309, 5
      %v3312 = vor.u32 %v3308, %v3311
      %v3313 = vrot.slane %v3312, 4
      %v3315 = vshll.u32 %v3258, 16
      %v3317 = vrot.slane %v3315, 5
      %v3318 = vsel %vm1200, %v3313, %v3317
      %v3319 = vshrl.u32 %v3258, 16
      %v3321 = vrot.slane %v3319, 4
      %v3322 = vor.u32 %v3321, %v3317
      %v3323 = vrot.slane %v3322, 4
      %v3325 = vshll.u32 %v3289, 16
      %v3327 = vrot.slane %v3325, 5
      %v3328 = vsel %vm1200, %v3323, %v3327
      %v3330 = vshrl.u32 %v3259, 16
      %v3332 = vrot.slane %v3330, 4
      %v3333 = vshll.u32 %v3259, 16
      %v3335 = vrot.slane %v3333, 5
      %v3336 = vor.u32 %v3332, %v3335
      %v3337 = vrot.slane %v3336, 4
      %v3339 = vshll.u32 %v3260, 16
      %v3341 = vrot.slane %v3339, 5
      %v3342 = vsel %vm1200, %v3337, %v3341
      %v3343 = vshrl.u32 %v3260, 16
      %v3345 = vrot.slane %v3343, 4
      %v3346 = vor.u32 %v3345, %v3341
      %v3347 = vrot.slane %v3346, 4
      %v3349 = vshll.u32 %v3290, 16
      %v3351 = vrot.slane %v3349, 5
      %v3352 = vsel %vm1200, %v3347, %v3351
      %v3354 = vshrl.u32 %v3261, 16
      %v3356 = vrot.slane %v3354, 4
      %v3357 = vshll.u32 %v3261, 16
      %v3359 = vrot.slane %v3357, 5
      %v3360 = vor.u32 %v3356, %v3359
      %v3361 = vrot.slane %v3360, 4
      %v3363 = vshll.u32 %v3262, 16
      %v3365 = vrot.slane %v3363, 5
      %v3366 = vsel %vm1200, %v3361, %v3365
      %v3367 = vshrl.u32 %v3262, 16
      %v3369 = vrot.slane %v3367, 4
      %v3370 = vor.u32 %v3369, %v3365
      %v3371 = vrot.slane %v3370, 4
      %v3373 = vshll.u32 %v3291, 16
      %v3375 = vrot.slane %v3373, 5
      %v3376 = vsel %vm1200, %v3371, %v3375
      %v3378 = vshrl.u32 %v3263, 16
      %v3380 = vrot.slane %v3378, 4
      %v3381 = vshll.u32 %v3263, 16
      %v3383 = vrot.slane %v3381, 5
      %v3384 = vor.u32 %v3380, %v3383
      %v3385 = vrot.slane %v3384, 4
      %v3387 = vshll.u32 %v3264, 16
      %v3389 = vrot.slane %v3387, 5
      %v3390 = vsel %vm1200, %v3385, %v3389
      %v3391 = vshrl.u32 %v3264, 16
      %v3393 = vrot.slane %v3391, 4
      %v3394 = vor.u32 %v3393, %v3389
      %v3395 = vrot.slane %v3394, 4
      %v3397 = vshll.u32 %v3292, 16
      %v3399 = vrot.slane %v3397, 5
      %v3400 = vsel %vm1200, %v3395, %v3399
      %v3402 = vshrl.u32 %v3265, 16
      %v3404 = vrot.slane %v3402, 4
      %v3405 = vshll.u32 %v3265, 16
      %v3407 = vrot.slane %v3405, 5
      %v3408 = vor.u32 %v3404, %v3407
      %v3409 = vrot.slane %v3408, 4
      %v3411 = vshll.u32 %v3266, 16
      %v3413 = vrot.slane %v3411, 5
      %v3414 = vsel %vm1200, %v3409, %v3413
      %v3415 = vshrl.u32 %v3266, 16
      %v3417 = vrot.slane %v3415, 4
      %v3418 = vor.u32 %v3417, %v3413
      %v3419 = vrot.slane %v3418, 4
      %v3421 = vshll.u32 %v3293, 16
      %v3423 = vrot.slane %v3421, 5
      %v3424 = vsel %vm1200, %v3419, %v3423
      %v3426 = vshrl.u32 %v3267, 16
      %v3428 = vrot.slane %v3426, 4
      %v3429 = vshll.u32 %v3267, 16
      %v3431 = vrot.slane %v3429, 5
      %v3432 = vor.u32 %v3428, %v3431
      %v3433 = vrot.slane %v3432, 4
      %v3435 = vshll.u32 %v3268, 16
      %v3437 = vrot.slane %v3435, 5
      %v3438 = vsel %vm1200, %v3433, %v3437
      %v3439 = vshrl.u32 %v3268, 16
      %v3441 = vrot.slane %v3439, 4
      %v3442 = vor.u32 %v3441, %v3437
      %v3443 = vrot.slane %v3442, 4
      %v3445 = vshll.u32 %v3294, 16
      %v3447 = vrot.slane %v3445, 5
      %v3448 = vsel %vm1200, %v3443, %v3447
      %v3450 = vshrl.u32 %v3269, 16
      %v3452 = vrot.slane %v3450, 4
      %v3453 = vshll.u32 %v3269, 16
      %v3455 = vrot.slane %v3453, 5
      %v3456 = vor.u32 %v3452, %v3455
      %v3457 = vrot.slane %v3456, 4
      %v3459 = vshll.u32 %v3270, 16
      %v3461 = vrot.slane %v3459, 5
      %v3462 = vsel %vm1200, %v3457, %v3461
      %v3463 = vshrl.u32 %v3270, 16
      %v3465 = vrot.slane %v3463, 4
      %v3466 = vor.u32 %v3465, %v3461
      %v3467 = vrot.slane %v3466, 4
      %v3469 = vshll.u32 %v3295, 16
      %v3471 = vrot.slane %v3469, 5
      %v3472 = vsel %vm1200, %v3467, %v3471
      %v3474 = vshrl.u32 %v3271, 16
      %v3476 = vrot.slane %v3474, 4
      %v3477 = vshll.u32 %v3271, 16
      %v3479 = vrot.slane %v3477, 5
      %v3480 = vor.u32 %v3476, %v3479
      %v3481 = vrot.slane %v3480, 4
      %v3483 = vshll.u32 %v3272, 16
      %v3485 = vrot.slane %v3483, 5
      %v3486 = vsel %vm1200, %v3481, %v3485
      %v3487 = vshrl.u32 %v3272, 16
      %v3489 = vrot.slane %v3487, 4
      %v3490 = vor.u32 %v3489, %v3485
      %v3491 = vrot.slane %v3490, 4
      %v3493 = vshll.u32 %v3296, 16
      %v3495 = vrot.slane %v3493, 5
      %v3496 = vsel %vm1200, %v3491, %v3495
      %v3498 = vshrl.u32 %v3273, 16
      %v3500 = vrot.slane %v3498, 4
      %v3501 = vshll.u32 %v3273, 16
      %v3503 = vrot.slane %v3501, 5
      %v3504 = vor.u32 %v3500, %v3503
      %v3505 = vrot.slane %v3504, 4
      %v3507 = vshll.u32 %v3274, 16
      %v3509 = vrot.slane %v3507, 5
      %v3510 = vsel %vm1200, %v3505, %v3509
      %v3511 = vshrl.u32 %v3274, 16
      %v3513 = vrot.slane %v3511, 4
      %v3514 = vor.u32 %v3513, %v3509
      %v3515 = vrot.slane %v3514, 4
      %v3517 = vshll.u32 %v3297, 16
      %v3519 = vrot.slane %v3517, 5
      %v3520 = vsel %vm1200, %v3515, %v3519
      %v3522 = vshrl.u32 %v3275, 16
      %v3524 = vrot.slane %v3522, 4
      %v3525 = vshll.u32 %v3275, 16
      %v3527 = vrot.slane %v3525, 5
      %v3528 = vor.u32 %v3524, %v3527
      %v3529 = vrot.slane %v3528, 4
      %v3531 = vshll.u32 %v3276, 16
      %v3533 = vrot.slane %v3531, 5
      %v3534 = vsel %vm1200, %v3529, %v3533
      %v3535 = vshrl.u32 %v3276, 16
      %v3537 = vrot.slane %v3535, 4
      %v3538 = vor.u32 %v3537, %v3533
      %v3539 = vrot.slane %v3538, 4
      %v3541 = vshll.u32 %v3298, 16
      %v3543 = vrot.slane %v3541, 5
      %v3544 = vsel %vm1200, %v3539, %v3543
      %v3546 = vshrl.u32 %v3277, 16
      %v3548 = vrot.slane %v3546, 4
      %v3549 = vshll.u32 %v3277, 16
      %v3551 = vrot.slane %v3549, 5
      %v3552 = vor.u32 %v3548, %v3551
      %v3553 = vrot.slane %v3552, 4
      %v3555 = vshll.u32 %v3278, 16
      %v3557 = vrot.slane %v3555, 5
      %v3558 = vsel %vm1200, %v3553, %v3557
      %v3559 = vshrl.u32 %v3278, 16
      %v3561 = vrot.slane %v3559, 4
      %v3562 = vor.u32 %v3561, %v3557
      %v3563 = vrot.slane %v3562, 4
      %v3565 = vshll.u32 %v3299, 16
      %v3567 = vrot.slane %v3565, 5
      %v3568 = vsel %vm1200, %v3563, %v3567
      %v3570 = vshrl.u32 %v3279, 16
      %v3572 = vrot.slane %v3570, 4
      %v3573 = vshll.u32 %v3279, 16
      %v3575 = vrot.slane %v3573, 5
      %v3576 = vor.u32 %v3572, %v3575
      %v3577 = vrot.slane %v3576, 4
      %v3579 = vshll.u32 %v3280, 16
      %v3581 = vrot.slane %v3579, 5
      %v3582 = vsel %vm1200, %v3577, %v3581
      %v3583 = vshrl.u32 %v3280, 16
      %v3585 = vrot.slane %v3583, 4
      %v3586 = vor.u32 %v3585, %v3581
      %v3587 = vrot.slane %v3586, 4
      %v3589 = vshll.u32 %v3300, 16
      %v3591 = vrot.slane %v3589, 5
      %v3592 = vsel %vm1200, %v3587, %v3591
      %v3594 = vshrl.u32 %v3281, 16
      %v3596 = vrot.slane %v3594, 4
      %v3597 = vshll.u32 %v3281, 16
      %v3599 = vrot.slane %v3597, 5
      %v3600 = vor.u32 %v3596, %v3599
      %v3601 = vrot.slane %v3600, 4
      %v3603 = vshll.u32 %v3282, 16
      %v3605 = vrot.slane %v3603, 5
      %v3606 = vsel %vm1200, %v3601, %v3605
      %v3607 = vshrl.u32 %v3282, 16
      %v3609 = vrot.slane %v3607, 4
      %v3610 = vor.u32 %v3609, %v3605
      %v3611 = vrot.slane %v3610, 4
      %v3613 = vshll.u32 %v3301, 16
      %v3615 = vrot.slane %v3613, 5
      %v3616 = vsel %vm1200, %v3611, %v3615
      %v3618 = vshrl.u32 %v3283, 16
      %v3620 = vrot.slane %v3618, 4
      %v3621 = vshll.u32 %v3283, 16
      %v3623 = vrot.slane %v3621, 5
      %v3624 = vor.u32 %v3620, %v3623
      %v3625 = vrot.slane %v3624, 4
      %v3627 = vshll.u32 %v3284, 16
      %v3629 = vrot.slane %v3627, 5
      %v3630 = vsel %vm1200, %v3625, %v3629
      %v3631 = vshrl.u32 %v3284, 16
      %v3633 = vrot.slane %v3631, 4
      %v3634 = vor.u32 %v3633, %v3629
      %v3635 = vrot.slane %v3634, 4
      %v3637 = vshll.u32 %v3302, 16
      %v3639 = vrot.slane %v3637, 5
      %v3640 = vsel %vm1200, %v3635, %v3639
      %v3642 = vshrl.u32 %v3285, 16
      %v3644 = vrot.slane %v3642, 4
      %v3645 = vshll.u32 %v3285, 16
      %v3647 = vrot.slane %v3645, 5
      %v3648 = vor.u32 %v3644, %v3647
      %v3649 = vrot.slane %v3648, 4
      %v3651 = vshll.u32 %v3286, 16
      %v3653 = vrot.slane %v3651, 5
      %v3654 = vsel %vm1200, %v3649, %v3653
      %v3655 = vshrl.u32 %v3286, 16
      %v3657 = vrot.slane %v3655, 4
      %v3658 = vor.u32 %v3657, %v3653
      %v3659 = vrot.slane %v3658, 4
      %v3661 = vshll.u32 %v3303, 16
      %v3663 = vrot.slane %v3661, 5
      %v3664 = vsel %vm1200, %v3659, %v3663
      %v3666 = vshrl.u32 %v3287, 16
      %v3668 = vrot.slane %v3666, 4
      %v3669 = vshll.u32 %v3287, 16
      %v3671 = vrot.slane %v3669, 5
      %v3672 = vor.u32 %v3668, %v3671
      %v3673 = vrot.slane %v3672, 4
      %v3675 = vshll.u32 %v3288, 16
      %v3677 = vrot.slane %v3675, 5
      %v3678 = vsel %vm1200, %v3673, %v3677
      %v3679 = vshrl.u32 %v3288, 16
      %v3681 = vrot.slane %v3679, 4
      %v3682 = vor.u32 %v3681, %v3677
      %v3683 = vrot.slane %v3682, 4
      %v3685 = vshll.u32 %v3304, 16
      %v3687 = vrot.slane %v3685, 5
      %v3688 = vsel %vm1200, %v3683, %v3687
      %v3689 = vld [vmem:[%s3256] sm:$0xe]
      %v3690 = vld [vmem:[%s3256 + $0xc] sm:$0xe]
      %v3691 = vld [vmem:[%s3256 + $0x18] sm:$0xe]
      %v3692 = vld [vmem:[%s3256 + $0x24] sm:$0xe]
      %v3693 = vld [vmem:[%s3256 + $0x30] sm:$0xe]
      %v3694 = vld [vmem:[%s3256 + $0x3c] sm:$0xe]
      %v3695 = vld [vmem:[%s3256 + $0x48] sm:$0xe]
      %v3696 = vld [vmem:[%s3256 + $0x54] sm:$0xe]
      %v3697 = vld [vmem:[%s3256 + $0x60] sm:$0xe]
      %v3698 = vld [vmem:[%s3256 + $0x6c] sm:$0xe]
      %v3699 = vld [vmem:[%s3256 + $0x78] sm:$0xe]
      %v3700 = vld [vmem:[%s3256 + $0x84] sm:$0xe]
      %v3701 = vld [vmem:[%s3256 + $0x90] sm:$0xe]
      %v3702 = vld [vmem:[%s3256 + $0x9c] sm:$0xe]
      %v3703 = vld [vmem:[%s3256 + $0xa8] sm:$0xe]
      %v3704 = vld [vmem:[%s3256 + $0xb4] sm:$0xe]
      %v3753 = vrot.slane %v3689, 5
      %v3754 = vrot.slane %v3753, 4
      %v3755 = vrot.slane %v3258, 5
      %v3756 = vsel %vm1651, %v3754, %v3755
      %v3757 = vrot.slane %v3755, 4
      %v3758 = vrot.slane %v3289, 5
      %v3759 = vsel %vm1651, %v3757, %v3758
      %v3760 = vrot.slane %v3690, 5
      %v3761 = vrot.slane %v3760, 4
      %v3762 = vrot.slane %v3260, 5
      %v3763 = vsel %vm1651, %v3761, %v3762
      %v3764 = vrot.slane %v3762, 4
      %v3765 = vrot.slane %v3290, 5
      %v3766 = vsel %vm1651, %v3764, %v3765
      %v3767 = vrot.slane %v3691, 5
      %v3768 = vrot.slane %v3767, 4
      %v3769 = vrot.slane %v3262, 5
      %v3770 = vsel %vm1651, %v3768, %v3769
      %v3771 = vrot.slane %v3769, 4
      %v3772 = vrot.slane %v3291, 5
      %v3773 = vsel %vm1651, %v3771, %v3772
      %v3774 = vrot.slane %v3692, 5
      %v3775 = vrot.slane %v3774, 4
      %v3776 = vrot.slane %v3264, 5
      %v3777 = vsel %vm1651, %v3775, %v3776
      %v3778 = vrot.slane %v3776, 4
      %v3779 = vrot.slane %v3292, 5
      %v3780 = vsel %vm1651, %v3778, %v3779
      %v3781 = vrot.slane %v3693, 5
      %v3782 = vrot.slane %v3781, 4
      %v3783 = vrot.slane %v3266, 5
      %v3784 = vsel %vm1651, %v3782, %v3783
      %v3785 = vrot.slane %v3783, 4
      %v3786 = vrot.slane %v3293, 5
      %v3787 = vsel %vm1651, %v3785, %v3786
      %v3788 = vrot.slane %v3694, 5
      %v3789 = vrot.slane %v3788, 4
      %v3790 = vrot.slane %v3268, 5
      %v3791 = vsel %vm1651, %v3789, %v3790
      %v3792 = vrot.slane %v3790, 4
      %v3793 = vrot.slane %v3294, 5
      %v3794 = vsel %vm1651, %v3792, %v3793
      %v3795 = vrot.slane %v3695, 5
      %v3796 = vrot.slane %v3795, 4
      %v3797 = vrot.slane %v3270, 5
      %v3798 = vsel %vm1651, %v3796, %v3797
      %v3799 = vrot.slane %v3797, 4
      %v3800 = vrot.slane %v3295, 5
      %v3801 = vsel %vm1651, %v3799, %v3800
      %v3802 = vrot.slane %v3696, 5
      %v3803 = vrot.slane %v3802, 4
      %v3804 = vrot.slane %v3272, 5
      %v3805 = vsel %vm1651, %v3803, %v3804
      %v3806 = vrot.slane %v3804, 4
      %v3807 = vrot.slane %v3296, 5
      %v3808 = vsel %vm1651, %v3806, %v3807
      %v3809 = vrot.slane %v3697, 5
      %v3810 = vrot.slane %v3809, 4
      %v3811 = vrot.slane %v3274, 5
      %v3812 = vsel %vm1651, %v3810, %v3811
      %v3813 = vrot.slane %v3811, 4
      %v3814 = vrot.slane %v3297, 5
      %v3815 = vsel %vm1651, %v3813, %v3814
      %v3816 = vrot.slane %v3698, 5
      %v3817 = vrot.slane %v3816, 4
      %v3818 = vrot.slane %v3276, 5
      %v3819 = vsel %vm1651, %v3817, %v3818
      %v3820 = vrot.slane %v3818, 4
      %v3821 = vrot.slane %v3298, 5
      %v3822 = vsel %vm1651, %v3820, %v3821
      %v3823 = vrot.slane %v3699, 5
      %v3824 = vrot.slane %v3823, 4
      %v3825 = vrot.slane %v3278, 5
      %v3826 = vsel %vm1651, %v3824, %v3825
      %v3827 = vrot.slane %v3825, 4
      %v3828 = vrot.slane %v3299, 5
      %v3829 = vsel %vm1651, %v3827, %v3828
      %v3830 = vrot.slane %v3700, 5
      %v3831 = vrot.slane %v3830, 4
      %v3832 = vrot.slane %v3280, 5
      %v3833 = vsel %vm1651, %v3831, %v3832
      %v3834 = vrot.slane %v3832, 4
      %v3835 = vrot.slane %v3300, 5
      %v3836 = vsel %vm1651, %v3834, %v3835
      %v3837 = vrot.slane %v3701, 5
      %v3838 = vrot.slane %v3837, 4
      %v3839 = vrot.slane %v3282, 5
      %v3840 = vsel %vm1651, %v3838, %v3839
      %v3841 = vrot.slane %v3839, 4
      %v3842 = vrot.slane %v3301, 5
      %v3843 = vsel %vm1651, %v3841, %v3842
      %v3844 = vrot.slane %v3702, 5
      %v3845 = vrot.slane %v3844, 4
      %v3846 = vrot.slane %v3284, 5
      %v3847 = vsel %vm1651, %v3845, %v3846
      %v3848 = vrot.slane %v3846, 4
      %v3849 = vrot.slane %v3302, 5
      %v3850 = vsel %vm1651, %v3848, %v3849
      %v3851 = vrot.slane %v3703, 5
      %v3852 = vrot.slane %v3851, 4
      %v3853 = vrot.slane %v3286, 5
      %v3854 = vsel %vm1651, %v3852, %v3853
      %v3855 = vrot.slane %v3853, 4
      %v3856 = vrot.slane %v3303, 5
      %v3857 = vsel %vm1651, %v3855, %v3856
      %v3858 = vrot.slane %v3704, 5
      %v3859 = vrot.slane %v3858, 4
      %v3860 = vrot.slane %v3288, 5
      %v3861 = vsel %vm1651, %v3859, %v3860
      %v3862 = vrot.slane %v3860, 4
      %v3863 = vrot.slane %v3304, 5
      %v3864 = vsel %vm1651, %v3862, %v3863
      %v3881 = vunpack.c.l.b16 %v3257
      %v3882 = vunpack.c.l.b16 %v3258
      %v3883 = vunpack.c.l.b16 %v3259
      %v3884 = vunpack.c.l.b16 %v3260
      %v3885 = vunpack.c.l.b16 %v3261
      %v3886 = vunpack.c.l.b16 %v3262
      %v3887 = vunpack.c.l.b16 %v3263
      %v3888 = vunpack.c.l.b16 %v3264
      %v3889 = vunpack.c.l.b16 %v3265
      %v3890 = vunpack.c.l.b16 %v3266
      %v3891 = vunpack.c.l.b16 %v3267
      %v3892 = vunpack.c.l.b16 %v3268
      %v3893 = vunpack.c.l.b16 %v3269
      %v3894 = vunpack.c.l.b16 %v3270
      %v3895 = vunpack.c.l.b16 %v3271
      %v3896 = vunpack.c.l.b16 %v3272
      %v3897 = vunpack.c.l.b16 %v3273
      %v3898 = vunpack.c.l.b16 %v3274
      %v3899 = vunpack.c.l.b16 %v3275
      %v3900 = vunpack.c.l.b16 %v3276
      %v3901 = vunpack.c.l.b16 %v3277
      %v3902 = vunpack.c.l.b16 %v3278
      %v3903 = vunpack.c.l.b16 %v3279
      %v3904 = vunpack.c.l.b16 %v3280
      %v3905 = vunpack.c.l.b16 %v3281
      %v3906 = vunpack.c.l.b16 %v3282
      %v3907 = vunpack.c.l.b16 %v3283
      %v3908 = vunpack.c.l.b16 %v3284
      %v3909 = vunpack.c.l.b16 %v3285
      %v3910 = vunpack.c.l.b16 %v3286
      %v3911 = vunpack.c.l.b16 %v3287
      %v3912 = vunpack.c.l.b16 %v3288
      %v3913 = vpack.c.b16 %v3882, %v3881
      %v3914 = vpack.c.b16 %v3884, %v3883
      %v3915 = vpack.c.b16 %v3886, %v3885
      %v3916 = vpack.c.b16 %v3888, %v3887
      %v3917 = vpack.c.b16 %v3890, %v3889
      %v3918 = vpack.c.b16 %v3892, %v3891
      %v3919 = vpack.c.b16 %v3894, %v3893
      %v3920 = vpack.c.b16 %v3896, %v3895
      %v3921 = vpack.c.b16 %v3898, %v3897
      %v3922 = vpack.c.b16 %v3900, %v3899
      %v3923 = vpack.c.b16 %v3902, %v3901
      %v3924 = vpack.c.b16 %v3904, %v3903
      %v3925 = vpack.c.b16 %v3906, %v3905
      %v3926 = vpack.c.b16 %v3908, %v3907
      %v3927 = vpack.c.b16 %v3910, %v3909
      %v3928 = vpack.c.b16 %v3912, %v3911
      %v3929 = vunpack.c.l.b16 %v3318
      %v3930 = vunpack.c.l.b16 %v3328
      %v3931 = vunpack.c.l.b16 %v3342
      %v3932 = vunpack.c.l.b16 %v3352
      %v3933 = vunpack.c.l.b16 %v3366
      %v3934 = vunpack.c.l.b16 %v3376
      %v3935 = vunpack.c.l.b16 %v3390
      %v3936 = vunpack.c.l.b16 %v3400
      %v3937 = vunpack.c.l.b16 %v3414
      %v3938 = vunpack.c.l.b16 %v3424
      %v3939 = vunpack.c.l.b16 %v3438
      %v3940 = vunpack.c.l.b16 %v3448
      %v3941 = vunpack.c.l.b16 %v3462
      %v3942 = vunpack.c.l.b16 %v3472
      %v3943 = vunpack.c.l.b16 %v3486
      %v3944 = vunpack.c.l.b16 %v3496
      %v3945 = vunpack.c.l.b16 %v3510
      %v3946 = vunpack.c.l.b16 %v3520
      %v3947 = vunpack.c.l.b16 %v3534
      %v3948 = vunpack.c.l.b16 %v3544
      %v3949 = vunpack.c.l.b16 %v3558
      %v3950 = vunpack.c.l.b16 %v3568
      %v3951 = vunpack.c.l.b16 %v3582
      %v3952 = vunpack.c.l.b16 %v3592
      %v3953 = vunpack.c.l.b16 %v3606
      %v3954 = vunpack.c.l.b16 %v3616
      %v3955 = vunpack.c.l.b16 %v3630
      %v3956 = vunpack.c.l.b16 %v3640
      %v3957 = vunpack.c.l.b16 %v3654
      %v3958 = vunpack.c.l.b16 %v3664
      %v3959 = vunpack.c.l.b16 %v3678
      %v3960 = vunpack.c.l.b16 %v3688
      %v3961 = vpack.c.b16 %v3930, %v3929
      %v3962 = vpack.c.b16 %v3932, %v3931
      %v3963 = vpack.c.b16 %v3934, %v3933
      %v3964 = vpack.c.b16 %v3936, %v3935
      %v3965 = vpack.c.b16 %v3938, %v3937
      %v3966 = vpack.c.b16 %v3940, %v3939
      %v3967 = vpack.c.b16 %v3942, %v3941
      %v3968 = vpack.c.b16 %v3944, %v3943
      %v3969 = vpack.c.b16 %v3946, %v3945
      %v3970 = vpack.c.b16 %v3948, %v3947
      %v3971 = vpack.c.b16 %v3950, %v3949
      %v3972 = vpack.c.b16 %v3952, %v3951
      %v3973 = vpack.c.b16 %v3954, %v3953
      %v3974 = vpack.c.b16 %v3956, %v3955
      %v3975 = vpack.c.b16 %v3958, %v3957
      %v3976 = vpack.c.b16 %v3960, %v3959
      %3977 = vrot.lane.b32.xlu0 %v3961, 8
      %v3978 = vpop.permute.xlu0 %3977
      %3979 = vrot.lane.b32.xlu0 %v3962, 8
      %v3980 = vpop.permute.xlu0 %3979
      %3981 = vrot.lane.b32.xlu0 %v3963, 8
      %v3982 = vpop.permute.xlu0 %3981
      %3983 = vrot.lane.b32.xlu0 %v3964, 8
      %v3984 = vpop.permute.xlu0 %3983
      %3985 = vrot.lane.b32.xlu0 %v3965, 8
      %v3986 = vpop.permute.xlu0 %3985
      %3987 = vrot.lane.b32.xlu0 %v3966, 8
      %v3988 = vpop.permute.xlu0 %3987
      %3989 = vrot.lane.b32.xlu0 %v3967, 8
      %v3990 = vpop.permute.xlu0 %3989
      %3991 = vrot.lane.b32.xlu0 %v3968, 8
      %v3992 = vpop.permute.xlu0 %3991
      %3993 = vrot.lane.b32.xlu0 %v3969, 8
      %v3994 = vpop.permute.xlu0 %3993
      %3995 = vrot.lane.b32.xlu0 %v3970, 8
      %v3996 = vpop.permute.xlu0 %3995
      %3997 = vrot.lane.b32.xlu0 %v3971, 8
      %v3998 = vpop.permute.xlu0 %3997
      %3999 = vrot.lane.b32.xlu0 %v3972, 8
      %v4000 = vpop.permute.xlu0 %3999
      %4001 = vrot.lane.b32.xlu0 %v3973, 8
      %v4002 = vpop.permute.xlu0 %4001
      %4003 = vrot.lane.b32.xlu0 %v3974, 8
      %v4004 = vpop.permute.xlu0 %4003
      %4005 = vrot.lane.b32.xlu0 %v3975, 8
      %v4006 = vpop.permute.xlu0 %4005
      %4007 = vrot.lane.b32.xlu0 %v3976, 8
      %v4008 = vpop.permute.xlu0 %4007
      %v4009 = vunpack.c.l.b16 %v3756
      %v4010 = vunpack.c.l.b16 %v3759
      %v4011 = vunpack.c.l.b16 %v3763
      %v4012 = vunpack.c.l.b16 %v3766
      %v4013 = vunpack.c.l.b16 %v3770
      %v4014 = vunpack.c.l.b16 %v3773
      %v4015 = vunpack.c.l.b16 %v3777
      %v4016 = vunpack.c.l.b16 %v3780
      %v4017 = vunpack.c.l.b16 %v3784
      %v4018 = vunpack.c.l.b16 %v3787
      %v4019 = vunpack.c.l.b16 %v3791
      %v4020 = vunpack.c.l.b16 %v3794
      %v4021 = vunpack.c.l.b16 %v3798
      %v4022 = vunpack.c.l.b16 %v3801
      %v4023 = vunpack.c.l.b16 %v3805
      %v4024 = vunpack.c.l.b16 %v3808
      %v4025 = vunpack.c.l.b16 %v3812
      %v4026 = vunpack.c.l.b16 %v3815
      %v4027 = vunpack.c.l.b16 %v3819
      %v4028 = vunpack.c.l.b16 %v3822
      %v4029 = vunpack.c.l.b16 %v3826
      %v4030 = vunpack.c.l.b16 %v3829
      %v4031 = vunpack.c.l.b16 %v3833
      %v4032 = vunpack.c.l.b16 %v3836
      %v4033 = vunpack.c.l.b16 %v3840
      %v4034 = vunpack.c.l.b16 %v3843
      %v4035 = vunpack.c.l.b16 %v3847
      %v4036 = vunpack.c.l.b16 %v3850
      %v4037 = vunpack.c.l.b16 %v3854
      %v4038 = vunpack.c.l.b16 %v3857
      %v4039 = vunpack.c.l.b16 %v3861
      %v4040 = vunpack.c.l.b16 %v3864
      %v4041 = vpack.c.b16 %v4010, %v4009
      %v4042 = vpack.c.b16 %v4012, %v4011
      %v4043 = vpack.c.b16 %v4014, %v4013
      %v4044 = vpack.c.b16 %v4016, %v4015
      %v4045 = vpack.c.b16 %v4018, %v4017
      %v4046 = vpack.c.b16 %v4020, %v4019
      %v4047 = vpack.c.b16 %v4022, %v4021
      %v4048 = vpack.c.b16 %v4024, %v4023
      %v4049 = vpack.c.b16 %v4026, %v4025
      %v4050 = vpack.c.b16 %v4028, %v4027
      %v4051 = vpack.c.b16 %v4030, %v4029
      %v4052 = vpack.c.b16 %v4032, %v4031
      %v4053 = vpack.c.b16 %v4034, %v4033
      %v4054 = vpack.c.b16 %v4036, %v4035
      %v4055 = vpack.c.b16 %v4038, %v4037
      %v4056 = vpack.c.b16 %v4040, %v4039
      %4057 = vrot.lane.b32.xlu0 %v4041, 16
      %v4058 = vpop.permute.xlu0 %4057
      %4059 = vrot.lane.b32.xlu0 %v4042, 16
      %v4060 = vpop.permute.xlu0 %4059
      %4061 = vrot.lane.b32.xlu0 %v4043, 16
      %v4062 = vpop.permute.xlu0 %4061
      %4063 = vrot.lane.b32.xlu0 %v4044, 16
      %v4064 = vpop.permute.xlu0 %4063
      %4065 = vrot.lane.b32.xlu0 %v4045, 16
      %v4066 = vpop.permute.xlu0 %4065
      %4067 = vrot.lane.b32.xlu0 %v4046, 16
      %v4068 = vpop.permute.xlu0 %4067
      %4069 = vrot.lane.b32.xlu0 %v4047, 16
      %v4070 = vpop.permute.xlu0 %4069
      %4071 = vrot.lane.b32.xlu0 %v4048, 16
      %v4072 = vpop.permute.xlu0 %4071
      %4073 = vrot.lane.b32.xlu0 %v4049, 16
      %v4074 = vpop.permute.xlu0 %4073
      %4075 = vrot.lane.b32.xlu0 %v4050, 16
      %v4076 = vpop.permute.xlu0 %4075
      %4077 = vrot.lane.b32.xlu0 %v4051, 16
      %v4078 = vpop.permute.xlu0 %4077
      %4079 = vrot.lane.b32.xlu0 %v4052, 16
      %v4080 = vpop.permute.xlu0 %4079
      %4081 = vrot.lane.b32.xlu0 %v4053, 16
      %v4082 = vpop.permute.xlu0 %4081
      %4083 = vrot.lane.b32.xlu0 %v4054, 16
      %v4084 = vpop.permute.xlu0 %4083
      %4085 = vrot.lane.b32.xlu0 %v4055, 16
      %v4086 = vpop.permute.xlu0 %4085
      %4087 = vrot.lane.b32.xlu0 %v4056, 16
      %v4088 = vpop.permute.xlu0 %4087
      %v4091 = vsel %vm1988, %v3913, %v3978
      %v4094 = vsel %vm1988, %v3914, %v3980
      %v4097 = vsel %vm1988, %v3915, %v3982
      %v4100 = vsel %vm1988, %v3916, %v3984
      %v4103 = vsel %vm1988, %v3917, %v3986
      %v4106 = vsel %vm1988, %v3918, %v3988
      %v4109 = vsel %vm1988, %v3919, %v3990
      %v4112 = vsel %vm1988, %v3920, %v3992
      %v4115 = vsel %vm1988, %v3921, %v3994
      %v4118 = vsel %vm1988, %v3922, %v3996
      %v4121 = vsel %vm1988, %v3923, %v3998
      %v4124 = vsel %vm1988, %v3924, %v4000
      %v4127 = vsel %vm1988, %v3925, %v4002
      %v4130 = vsel %vm1988, %v3926, %v4004
      %v4133 = vsel %vm1988, %v3927, %v4006
      %v4136 = vsel %vm1988, %v3928, %v4008
      %v4138 = vsel %vm2037, %v4091, %v4058
      %v4140 = vsel %vm2037, %v4094, %v4060
      %v4142 = vsel %vm2037, %v4097, %v4062
      %v4144 = vsel %vm2037, %v4100, %v4064
      %v4146 = vsel %vm2037, %v4103, %v4066
      %v4148 = vsel %vm2037, %v4106, %v4068
      %v4150 = vsel %vm2037, %v4109, %v4070
      %v4152 = vsel %vm2037, %v4112, %v4072
      %v4154 = vsel %vm2037, %v4115, %v4074
      %v4156 = vsel %vm2037, %v4118, %v4076
      %v4158 = vsel %vm2037, %v4121, %v4078
      %v4160 = vsel %vm2037, %v4124, %v4080
      %v4162 = vsel %vm2037, %v4127, %v4082
      %v4164 = vsel %vm2037, %v4130, %v4084
      %v4166 = vsel %vm2037, %v4133, %v4086
      %v4168 = vsel %vm2037, %v4136, %v4088
      %v4169 = vld [vmem:[%s2 + $0x18] sm:$0xf]
      %v4170 = vld [vmem:[%s2 + $0x1c] sm:$0xf]
      %v4171 = vld [vmem:[%s2 + $0x20] sm:$0xf]
      %v4175 = vunpack.c.l.b16 %v4169
      %v4176 = vunpack.c.l.b16 %v4170
      %v4177 = vunpack.c.l.b16 %v4171
      %v4178 = vpack.c.b16 %v4176, %v4175
      %v4179 = vpack.c.b16 %v4177, %v4177
      %v4181 = vsel %vm2997, %v4138, 0
      %v4183 = vsel %vm2997, %v4140, 0
      %v4185 = vsel %vm2997, %v4142, 0
      %v4187 = vsel %vm2997, %v4144, 0
      %v4189 = vsel %vm2997, %v4146, 0
      %v4191 = vsel %vm2997, %v4148, 0
      %v4193 = vsel %vm2997, %v4150, 0
      %v4195 = vsel %vm2997, %v4152, 0
      %v4197 = vsel %vm2997, %v4154, 0
      %v4199 = vsel %vm2997, %v4156, 0
      %v4201 = vsel %vm2997, %v4158, 0
      %v4203 = vsel %vm2997, %v4160, 0
      %v4205 = vsel %vm2997, %v4162, 0
      %v4207 = vsel %vm2997, %v4164, 0
      %v4209 = vsel %vm2997, %v4166, 0
      %v4211 = vsel %vm2997, %v4168, 0
      %v4214 = vsel %vm3030, %v4179, 0
      %4216 = vmatpush.bf16.msra.mxu0 0
      %4217 = vmatpush.bf16.msra.mxu0 0
      %4218 = vmatpush.bf16.msra.mxu0 0
      %4219 = vmatpush.bf16.msra.mxu0 0
      %4220 = vmatpush.bf16.msra.mxu0 0
      %4221 = vmatpush.bf16.msra.mxu0 0
      %4222 = vmatpush.bf16.msra.mxu0 %v4214
      %4223 = vmatpush.bf16.msra.mxu0 %v4178
      %4224 = vmatmul.bf16.gmra.mxu0 %v4181
      %v4225 = vpop.f32.mrf.mxu0
      %v4226 = vadd.f32 0.0, %v4225
      %v4227 = vpop.f32.mrf.mxu0
      %v4228 = vadd.f32 0.0, %v4227
      %4229 = vmatmul.bf16.gmra.mxu0 %v4183
      %v4230 = vpop.f32.mrf.mxu0
      %v4231 = vadd.f32 0.0, %v4230
      %v4232 = vpop.f32.mrf.mxu0
      %v4233 = vadd.f32 0.0, %v4232
      %4234 = vmatmul.bf16.gmra.mxu0 %v4185
      %v4235 = vpop.f32.mrf.mxu0
      %v4236 = vadd.f32 0.0, %v4235
      %v4237 = vpop.f32.mrf.mxu0
      %v4238 = vadd.f32 0.0, %v4237
      %4239 = vmatmul.bf16.gmra.mxu0 %v4187
      %v4240 = vpop.f32.mrf.mxu0
      %v4241 = vadd.f32 0.0, %v4240
      %v4242 = vpop.f32.mrf.mxu0
      %v4243 = vadd.f32 0.0, %v4242
      %4244 = vmatmul.bf16.gmra.mxu0 %v4189
      %v4245 = vpop.f32.mrf.mxu0
      %v4246 = vadd.f32 0.0, %v4245
      %v4247 = vpop.f32.mrf.mxu0
      %v4248 = vadd.f32 0.0, %v4247
      %4249 = vmatmul.bf16.gmra.mxu0 %v4191
      %v4250 = vpop.f32.mrf.mxu0
      %v4251 = vadd.f32 0.0, %v4250
      %v4252 = vpop.f32.mrf.mxu0
      %v4253 = vadd.f32 0.0, %v4252
      %4254 = vmatmul.bf16.gmra.mxu0 %v4193
      %v4255 = vpop.f32.mrf.mxu0
      %v4256 = vadd.f32 0.0, %v4255
      %v4257 = vpop.f32.mrf.mxu0
      %v4258 = vadd.f32 0.0, %v4257
      %4259 = vmatmul.bf16.gmra.mxu0 %v4195
      %v4260 = vpop.f32.mrf.mxu0
      %v4261 = vadd.f32 0.0, %v4260
      %v4262 = vpop.f32.mrf.mxu0
      %v4263 = vadd.f32 0.0, %v4262
      %4264 = vmatmul.bf16.gmra.mxu0 %v4197
      %v4265 = vpop.f32.mrf.mxu0
      %v4266 = vadd.f32 0.0, %v4265
      %v4267 = vpop.f32.mrf.mxu0
      %v4268 = vadd.f32 0.0, %v4267
      %4269 = vmatmul.bf16.gmra.mxu0 %v4199
      %v4270 = vpop.f32.mrf.mxu0
      %v4271 = vadd.f32 0.0, %v4270
      %v4272 = vpop.f32.mrf.mxu0
      %v4273 = vadd.f32 0.0, %v4272
      %4274 = vmatmul.bf16.gmra.mxu0 %v4201
      %v4275 = vpop.f32.mrf.mxu0
      %v4276 = vadd.f32 0.0, %v4275
      %v4277 = vpop.f32.mrf.mxu0
      %v4278 = vadd.f32 0.0, %v4277
      %4279 = vmatmul.bf16.gmra.mxu0 %v4203
      %v4280 = vpop.f32.mrf.mxu0
      %v4281 = vadd.f32 0.0, %v4280
      %v4282 = vpop.f32.mrf.mxu0
      %v4283 = vadd.f32 0.0, %v4282
      %4284 = vmatmul.bf16.gmra.mxu0 %v4205
      %v4285 = vpop.f32.mrf.mxu0
      %v4286 = vadd.f32 0.0, %v4285
      %v4287 = vpop.f32.mrf.mxu0
      %v4288 = vadd.f32 0.0, %v4287
      %4289 = vmatmul.bf16.gmra.mxu0 %v4207
      %v4290 = vpop.f32.mrf.mxu0
      %v4291 = vadd.f32 0.0, %v4290
      %v4292 = vpop.f32.mrf.mxu0
      %v4293 = vadd.f32 0.0, %v4292
      %4294 = vmatmul.bf16.gmra.mxu0 %v4209
      %v4295 = vpop.f32.mrf.mxu0
      %v4296 = vadd.f32 0.0, %v4295
      %v4297 = vpop.f32.mrf.mxu0
      %v4298 = vadd.f32 0.0, %v4297
      %4299 = vmatmul.bf16.gmra.mxu0 %v4211
      %v4300 = vpop.f32.mrf.mxu0
      %v4301 = vadd.f32 0.0, %v4300
      %v4302 = vpop.f32.mrf.mxu0
      %v4303 = vadd.f32 0.0, %v4302
      %4304 = vdwg.mxu0
      %v4305 = vadd.f32 %v3177, %v4226
      %v4306 = vadd.f32 %v3179, %v4228
      %v4307 = vadd.f32 %v3182, %v4231
      %v4308 = vadd.f32 %v3184, %v4233
      %v4309 = vadd.f32 %v3187, %v4236
      %v4310 = vadd.f32 %v3189, %v4238
      %v4311 = vadd.f32 %v3192, %v4241
      %v4312 = vadd.f32 %v3194, %v4243
      %v4313 = vadd.f32 %v3197, %v4246
      %v4314 = vadd.f32 %v3199, %v4248
      %v4315 = vadd.f32 %v3202, %v4251
      %v4316 = vadd.f32 %v3204, %v4253
      %v4317 = vadd.f32 %v3207, %v4256
      %v4318 = vadd.f32 %v3209, %v4258
      %v4319 = vadd.f32 %v3212, %v4261
      %v4320 = vadd.f32 %v3214, %v4263
      %v4321 = vadd.f32 %v3217, %v4266
      %v4322 = vadd.f32 %v3219, %v4268
      %v4323 = vadd.f32 %v3222, %v4271
      %v4324 = vadd.f32 %v3224, %v4273
      %v4325 = vadd.f32 %v3227, %v4276
      %v4326 = vadd.f32 %v3229, %v4278
      %v4327 = vadd.f32 %v3232, %v4281
      %v4328 = vadd.f32 %v3234, %v4283
      %v4329 = vadd.f32 %v3237, %v4286
      %v4330 = vadd.f32 %v3239, %v4288
      %v4331 = vadd.f32 %v3242, %v4291
      %v4332 = vadd.f32 %v3244, %v4293
      %v4333 = vadd.f32 %v3247, %v4296
      %v4334 = vadd.f32 %v3249, %v4298
      %v4335 = vadd.f32 %v3252, %v4301
      %v4336 = vadd.f32 %v3254, %v4303
      %v4337 = vsel %vm1988, %v4305, 0.0
      %v4338 = vsel %vm1988, %v4306, 0.0
      %v4339 = vadd.f32 %v4337, %v4338
      %v4340 = vsel %vm1988, %v4307, 0.0
      %v4341 = vadd.f32 %v4339, %v4340
      %v4342 = vsel %vm1988, %v4308, 0.0
      %v4343 = vadd.f32 %v4341, %v4342
      %v4344 = vsel %vm1988, %v4309, 0.0
      %v4345 = vadd.f32 %v4343, %v4344
      %v4346 = vsel %vm1988, %v4310, 0.0
      %v4347 = vadd.f32 %v4345, %v4346
      %v4348 = vsel %vm1988, %v4311, 0.0
      %v4349 = vadd.f32 %v4347, %v4348
      %v4350 = vsel %vm1988, %v4312, 0.0
      %v4351 = vadd.f32 %v4349, %v4350
      %v4352 = vsel %vm1988, %v4313, 0.0
      %v4353 = vadd.f32 %v4351, %v4352
      %v4354 = vsel %vm1988, %v4314, 0.0
      %v4355 = vadd.f32 %v4353, %v4354
      %v4356 = vsel %vm1988, %v4315, 0.0
      %v4357 = vadd.f32 %v4355, %v4356
      %v4358 = vsel %vm1988, %v4316, 0.0
      %v4359 = vadd.f32 %v4357, %v4358
      %v4360 = vsel %vm1988, %v4317, 0.0
      %v4361 = vadd.f32 %v4359, %v4360
      %v4362 = vsel %vm1988, %v4318, 0.0
      %v4363 = vadd.f32 %v4361, %v4362
      %v4364 = vsel %vm1988, %v4319, 0.0
      %v4365 = vadd.f32 %v4363, %v4364
      %v4366 = vsel %vm1988, %v4320, 0.0
      %v4367 = vadd.f32 %v4365, %v4366
      %v4368 = vsel %vm1988, %v4321, 0.0
      %v4369 = vadd.f32 %v4367, %v4368
      %v4370 = vsel %vm1988, %v4322, 0.0
      %v4371 = vadd.f32 %v4369, %v4370
      %v4372 = vsel %vm1988, %v4323, 0.0
      %v4373 = vadd.f32 %v4371, %v4372
      %v4374 = vsel %vm1988, %v4324, 0.0
      %v4375 = vadd.f32 %v4373, %v4374
      %v4376 = vsel %vm1988, %v4325, 0.0
      %v4377 = vadd.f32 %v4375, %v4376
      %v4378 = vsel %vm1988, %v4326, 0.0
      %v4379 = vadd.f32 %v4377, %v4378
      %v4380 = vsel %vm1988, %v4327, 0.0
      %v4381 = vadd.f32 %v4379, %v4380
      %v4382 = vsel %vm1988, %v4328, 0.0
      %v4383 = vadd.f32 %v4381, %v4382
      %v4384 = vsel %vm1988, %v4329, 0.0
      %v4385 = vadd.f32 %v4383, %v4384
      %v4386 = vsel %vm1988, %v4330, 0.0
      %v4387 = vadd.f32 %v4385, %v4386
      %v4388 = vsel %vm1988, %v4331, 0.0
      %v4389 = vadd.f32 %v4387, %v4388
      %v4390 = vsel %vm1988, %v4332, 0.0
      %v4391 = vadd.f32 %v4389, %v4390
      %v4392 = vsel %vm1988, %v4333, 0.0
      %v4393 = vadd.f32 %v4391, %v4392
      %v4394 = vsel %vm1988, %v4334, 0.0
      %v4395 = vadd.f32 %v4393, %v4394
      %v4396 = vsel %vm1988, %v4335, 0.0
      %v4397 = vadd.f32 %v4395, %v4396
      %v4398 = vsel %vm1988, %v4336, 0.0
      %v4399 = vadd.f32 %v4397, %v4398
      %v4400 = vrot.slane %v4399, 4
      %v4401 = vadd.f32 %v4399, %v4400
      %v4402 = vrot.slane %v4401, 2
      %v4403 = vadd.f32 %v4401, %v4402
      %v4404 = vrot.slane %v4403, 1
      %v4405 = vadd.f32 %v4403, %v4404
      %v4406 = vmul.f32 %v4305, %v4305
      %v4407 = vmul.f32 %v4306, %v4306
      %v4408 = vmul.f32 %v4307, %v4307
      %v4409 = vmul.f32 %v4308, %v4308
      %v4410 = vmul.f32 %v4309, %v4309
      %v4411 = vmul.f32 %v4310, %v4310
      %v4412 = vmul.f32 %v4311, %v4311
      %v4413 = vmul.f32 %v4312, %v4312
      %v4414 = vmul.f32 %v4313, %v4313
      %v4415 = vmul.f32 %v4314, %v4314
      %v4416 = vmul.f32 %v4315, %v4315
      %v4417 = vmul.f32 %v4316, %v4316
      %v4418 = vmul.f32 %v4317, %v4317
      %v4419 = vmul.f32 %v4318, %v4318
      %v4420 = vmul.f32 %v4319, %v4319
      %v4421 = vmul.f32 %v4320, %v4320
      %v4422 = vmul.f32 %v4321, %v4321
      %v4423 = vmul.f32 %v4322, %v4322
      %v4424 = vmul.f32 %v4323, %v4323
      %v4425 = vmul.f32 %v4324, %v4324
      %v4426 = vmul.f32 %v4325, %v4325
      %v4427 = vmul.f32 %v4326, %v4326
      %v4428 = vmul.f32 %v4327, %v4327
      %v4429 = vmul.f32 %v4328, %v4328
      %v4430 = vmul.f32 %v4329, %v4329
      %v4431 = vmul.f32 %v4330, %v4330
      %v4432 = vmul.f32 %v4331, %v4331
      %v4433 = vmul.f32 %v4332, %v4332
      %v4434 = vmul.f32 %v4333, %v4333
      %v4435 = vmul.f32 %v4334, %v4334
      %v4436 = vmul.f32 %v4335, %v4335
      %v4437 = vmul.f32 %v4336, %v4336
      %v4438 = vsel %vm1988, %v4406, 0.0
      %v4439 = vsel %vm1988, %v4407, 0.0
      %v4440 = vadd.f32 %v4438, %v4439
      %v4441 = vsel %vm1988, %v4408, 0.0
      %v4442 = vadd.f32 %v4440, %v4441
      %v4443 = vsel %vm1988, %v4409, 0.0
      %v4444 = vadd.f32 %v4442, %v4443
      %v4445 = vsel %vm1988, %v4410, 0.0
      %v4446 = vadd.f32 %v4444, %v4445
      %v4447 = vsel %vm1988, %v4411, 0.0
      %v4448 = vadd.f32 %v4446, %v4447
      %v4449 = vsel %vm1988, %v4412, 0.0
      %v4450 = vadd.f32 %v4448, %v4449
      %v4451 = vsel %vm1988, %v4413, 0.0
      %v4452 = vadd.f32 %v4450, %v4451
      %v4453 = vsel %vm1988, %v4414, 0.0
      %v4454 = vadd.f32 %v4452, %v4453
      %v4455 = vsel %vm1988, %v4415, 0.0
      %v4456 = vadd.f32 %v4454, %v4455
      %v4457 = vsel %vm1988, %v4416, 0.0
      %v4458 = vadd.f32 %v4456, %v4457
      %v4459 = vsel %vm1988, %v4417, 0.0
      %v4460 = vadd.f32 %v4458, %v4459
      %v4461 = vsel %vm1988, %v4418, 0.0
      %v4462 = vadd.f32 %v4460, %v4461
      %v4463 = vsel %vm1988, %v4419, 0.0
      %v4464 = vadd.f32 %v4462, %v4463
      %v4465 = vsel %vm1988, %v4420, 0.0
      %v4466 = vadd.f32 %v4464, %v4465
      %v4467 = vsel %vm1988, %v4421, 0.0
      %v4468 = vadd.f32 %v4466, %v4467
      %v4469 = vsel %vm1988, %v4422, 0.0
      %v4470 = vadd.f32 %v4468, %v4469
      %v4471 = vsel %vm1988, %v4423, 0.0
      %v4472 = vadd.f32 %v4470, %v4471
      %v4473 = vsel %vm1988, %v4424, 0.0
      %v4474 = vadd.f32 %v4472, %v4473
      %v4475 = vsel %vm1988, %v4425, 0.0
      %v4476 = vadd.f32 %v4474, %v4475
      %v4477 = vsel %vm1988, %v4426, 0.0
      %v4478 = vadd.f32 %v4476, %v4477
      %v4479 = vsel %vm1988, %v4427, 0.0
      %v4480 = vadd.f32 %v4478, %v4479
      %v4481 = vsel %vm1988, %v4428, 0.0
      %v4482 = vadd.f32 %v4480, %v4481
      %v4483 = vsel %vm1988, %v4429, 0.0
      %v4484 = vadd.f32 %v4482, %v4483
      %v4485 = vsel %vm1988, %v4430, 0.0
      %v4486 = vadd.f32 %v4484, %v4485
      %v4487 = vsel %vm1988, %v4431, 0.0
      %v4488 = vadd.f32 %v4486, %v4487
      %v4489 = vsel %vm1988, %v4432, 0.0
      %v4490 = vadd.f32 %v4488, %v4489
      %v4491 = vsel %vm1988, %v4433, 0.0
      %v4492 = vadd.f32 %v4490, %v4491
      %v4493 = vsel %vm1988, %v4434, 0.0
      %v4494 = vadd.f32 %v4492, %v4493
      %v4495 = vsel %vm1988, %v4435, 0.0
      %v4496 = vadd.f32 %v4494, %v4495
      %v4497 = vsel %vm1988, %v4436, 0.0
      %v4498 = vadd.f32 %v4496, %v4497
      %v4499 = vsel %vm1988, %v4437, 0.0
      %v4500 = vadd.f32 %v4498, %v4499
      %v4501 = vrot.slane %v4500, 4
      %v4502 = vadd.f32 %v4500, %v4501
      %v4503 = vrot.slane %v4502, 2
      %v4504 = vadd.f32 %v4502, %v4503
      %v4505 = vrot.slane %v4504, 1
      %v4506 = vadd.f32 %v4504, %v4505
      %v4507 = vmul.f32 %v4405, 0.00390625
      %v4508 = vmul.f32 %v4506, 0.00390625
      %v4509 = vmul.f32 %v4507, %v4507
      %v4510 = vsub.f32 %v4508, %v4509
      %v4511 = vmax.f32 %v4510, 0.0
      %v4512 = vsub.f32 %v4305, %v4507
      %v4513 = vsub.f32 %v4306, %v4507
      %v4514 = vsub.f32 %v4307, %v4507
      %v4515 = vsub.f32 %v4308, %v4507
      %v4516 = vsub.f32 %v4309, %v4507
      %v4517 = vsub.f32 %v4310, %v4507
      %v4518 = vsub.f32 %v4311, %v4507
      %v4519 = vsub.f32 %v4312, %v4507
      %v4520 = vsub.f32 %v4313, %v4507
      %v4521 = vsub.f32 %v4314, %v4507
      %v4522 = vsub.f32 %v4315, %v4507
      %v4523 = vsub.f32 %v4316, %v4507
      %v4524 = vsub.f32 %v4317, %v4507
      %v4525 = vsub.f32 %v4318, %v4507
      %v4526 = vsub.f32 %v4319, %v4507
      %v4527 = vsub.f32 %v4320, %v4507
      %v4528 = vsub.f32 %v4321, %v4507
      %v4529 = vsub.f32 %v4322, %v4507
      %v4530 = vsub.f32 %v4323, %v4507
      %v4531 = vsub.f32 %v4324, %v4507
      %v4532 = vsub.f32 %v4325, %v4507
      %v4533 = vsub.f32 %v4326, %v4507
      %v4534 = vsub.f32 %v4327, %v4507
      %v4535 = vsub.f32 %v4328, %v4507
      %v4536 = vsub.f32 %v4329, %v4507
      %v4537 = vsub.f32 %v4330, %v4507
      %v4538 = vsub.f32 %v4331, %v4507
      %v4539 = vsub.f32 %v4332, %v4507
      %v4540 = vsub.f32 %v4333, %v4507
      %v4541 = vsub.f32 %v4334, %v4507
      %v4542 = vsub.f32 %v4335, %v4507
      %v4543 = vsub.f32 %v4336, %v4507
      %v4544 = vadd.f32 %v4511, 1e-05
      %v4545 = vrsqrt.pop %v4544
      %v4546 = vmul.f32 %v4545, %v4544
      %v4547 = vmul.f32 %v4546, %v4545
      %v4548 = vmul.f32 0.5, %v4547
      %v4549 = vsub.f32 1.5, %v4548
      %v4550 = vmul.f32 %v4545, %v4549
      %vm4551 = vweird.f32 %v4544
      %vm4552 = vweird.f32 %v4545
      %vm4553 = vmor %vm4551, %vm4552
      %v4554 = vsel %vm4553, %v4545, %v4550
      %v4555 = vmul.f32 %v4512, %v4554
      %v4556 = vmul.f32 %v4513, %v4554
      %v4557 = vmul.f32 %v4514, %v4554
      %v4558 = vmul.f32 %v4515, %v4554
      %v4559 = vmul.f32 %v4516, %v4554
      %v4560 = vmul.f32 %v4517, %v4554
      %v4561 = vmul.f32 %v4518, %v4554
      %v4562 = vmul.f32 %v4519, %v4554
      %v4563 = vmul.f32 %v4520, %v4554
      %v4564 = vmul.f32 %v4521, %v4554
      %v4565 = vmul.f32 %v4522, %v4554
      %v4566 = vmul.f32 %v4523, %v4554
      %v4567 = vmul.f32 %v4524, %v4554
      %v4568 = vmul.f32 %v4525, %v4554
      %v4569 = vmul.f32 %v4526, %v4554
      %v4570 = vmul.f32 %v4527, %v4554
      %v4571 = vmul.f32 %v4528, %v4554
      %v4572 = vmul.f32 %v4529, %v4554
      %v4573 = vmul.f32 %v4530, %v4554
      %v4574 = vmul.f32 %v4531, %v4554
      %v4575 = vmul.f32 %v4532, %v4554
      %v4576 = vmul.f32 %v4533, %v4554
      %v4577 = vmul.f32 %v4534, %v4554
      %v4578 = vmul.f32 %v4535, %v4554
      %v4579 = vmul.f32 %v4536, %v4554
      %v4580 = vmul.f32 %v4537, %v4554
      %v4581 = vmul.f32 %v4538, %v4554
      %v4582 = vmul.f32 %v4539, %v4554
      %v4583 = vmul.f32 %v4540, %v4554
      %v4584 = vmul.f32 %v4541, %v4554
      %v4585 = vmul.f32 %v4542, %v4554
      %v4586 = vmul.f32 %v4543, %v4554
      %v4587 = vmax.f32 %v4555, 0.0
      %v4588 = vmax.f32 %v4556, 0.0
      %v4589 = vmax.f32 %v4557, 0.0
      %v4590 = vmax.f32 %v4558, 0.0
      %v4591 = vmax.f32 %v4559, 0.0
      %v4592 = vmax.f32 %v4560, 0.0
      %v4593 = vmax.f32 %v4561, 0.0
      %v4594 = vmax.f32 %v4562, 0.0
      %v4595 = vmax.f32 %v4563, 0.0
      %v4596 = vmax.f32 %v4564, 0.0
      %v4597 = vmax.f32 %v4565, 0.0
      %v4598 = vmax.f32 %v4566, 0.0
      %v4599 = vmax.f32 %v4567, 0.0
      %v4600 = vmax.f32 %v4568, 0.0
      %v4601 = vmax.f32 %v4569, 0.0
      %v4602 = vmax.f32 %v4570, 0.0
      %v4603 = vmax.f32 %v4571, 0.0
      %v4604 = vmax.f32 %v4572, 0.0
      %v4605 = vmax.f32 %v4573, 0.0
      %v4606 = vmax.f32 %v4574, 0.0
      %v4607 = vmax.f32 %v4575, 0.0
      %v4608 = vmax.f32 %v4576, 0.0
      %v4609 = vmax.f32 %v4577, 0.0
      %v4610 = vmax.f32 %v4578, 0.0
      %v4611 = vmax.f32 %v4579, 0.0
      %v4612 = vmax.f32 %v4580, 0.0
      %v4613 = vmax.f32 %v4581, 0.0
      %v4614 = vmax.f32 %v4582, 0.0
      %v4615 = vmax.f32 %v4583, 0.0
      %v4616 = vmax.f32 %v4584, 0.0
      %v4617 = vmax.f32 %v4585, 0.0
      %v4618 = vmax.f32 %v4586, 0.0
      %v4619 = vpack.c.bf16 %v4587, %v4587
      %v4620 = vpack.c.bf16 %v4588, %v4588
      %v4621 = vpack.c.bf16 %v4589, %v4589
      %v4622 = vpack.c.bf16 %v4590, %v4590
      %v4623 = vpack.c.bf16 %v4591, %v4591
      %v4624 = vpack.c.bf16 %v4592, %v4592
      %v4625 = vpack.c.bf16 %v4593, %v4593
      %v4626 = vpack.c.bf16 %v4594, %v4594
      %v4627 = vpack.c.bf16 %v4595, %v4595
      %v4628 = vpack.c.bf16 %v4596, %v4596
      %v4629 = vpack.c.bf16 %v4597, %v4597
      %v4630 = vpack.c.bf16 %v4598, %v4598
      %v4631 = vpack.c.bf16 %v4599, %v4599
      %v4632 = vpack.c.bf16 %v4600, %v4600
      %v4633 = vpack.c.bf16 %v4601, %v4601
      %v4634 = vpack.c.bf16 %v4602, %v4602
      %v4635 = vpack.c.bf16 %v4603, %v4603
      %v4636 = vpack.c.bf16 %v4604, %v4604
      %v4637 = vpack.c.bf16 %v4605, %v4605
      %v4638 = vpack.c.bf16 %v4606, %v4606
      %v4639 = vpack.c.bf16 %v4607, %v4607
      %v4640 = vpack.c.bf16 %v4608, %v4608
      %v4641 = vpack.c.bf16 %v4609, %v4609
      %v4642 = vpack.c.bf16 %v4610, %v4610
      %v4643 = vpack.c.bf16 %v4611, %v4611
      %v4644 = vpack.c.bf16 %v4612, %v4612
      %v4645 = vpack.c.bf16 %v4613, %v4613
      %v4646 = vpack.c.bf16 %v4614, %v4614
      %v4647 = vpack.c.bf16 %v4615, %v4615
      %v4648 = vpack.c.bf16 %v4616, %v4616
      %v4649 = vpack.c.bf16 %v4617, %v4617
      %v4650 = vpack.c.bf16 %v4618, %v4618
      %v4652 = vshrl.u32 %v4619, 16
      %v4654 = vrot.slane %v4652, 7
      %v4655 = vshll.u32 %v4619, 16
      %v4657 = vor.u32 %v4654, %v4655
      %v4658 = vrot.slane %v4654, 4
      %v4660 = vshrl.u32 %v4620, 16
      %v4662 = vrot.slane %v4660, 7
      %v4663 = vshll.u32 %v4620, 16
      %v4665 = vor.u32 %v4662, %v4663
      %v4666 = vsel %vm714, %v4658, %v4665
      %v4667 = vrot.slane %v4662, 4
      %v4669 = vshrl.u32 %v4621, 16
      %v4671 = vrot.slane %v4669, 7
      %v4672 = vshll.u32 %v4621, 16
      %v4674 = vor.u32 %v4671, %v4672
      %v4675 = vrot.slane %v4671, 4
      %v4677 = vshrl.u32 %v4622, 16
      %v4679 = vrot.slane %v4677, 7
      %v4680 = vshll.u32 %v4622, 16
      %v4682 = vor.u32 %v4679, %v4680
      %v4683 = vsel %vm714, %v4675, %v4682
      %v4684 = vrot.slane %v4679, 4
      %v4686 = vshrl.u32 %v4623, 16
      %v4688 = vrot.slane %v4686, 7
      %v4689 = vshll.u32 %v4623, 16
      %v4691 = vor.u32 %v4688, %v4689
      %v4692 = vrot.slane %v4688, 4
      %v4694 = vshrl.u32 %v4624, 16
      %v4696 = vrot.slane %v4694, 7
      %v4697 = vshll.u32 %v4624, 16
      %v4699 = vor.u32 %v4696, %v4697
      %v4700 = vsel %vm714, %v4692, %v4699
      %v4701 = vrot.slane %v4696, 4
      %v4703 = vshrl.u32 %v4625, 16
      %v4705 = vrot.slane %v4703, 7
      %v4706 = vshll.u32 %v4625, 16
      %v4708 = vor.u32 %v4705, %v4706
      %v4709 = vrot.slane %v4705, 4
      %v4711 = vshrl.u32 %v4626, 16
      %v4713 = vrot.slane %v4711, 7
      %v4714 = vshll.u32 %v4626, 16
      %v4716 = vor.u32 %v4713, %v4714
      %v4717 = vsel %vm714, %v4709, %v4716
      %v4718 = vrot.slane %v4713, 4
      %v4720 = vshrl.u32 %v4627, 16
      %v4722 = vrot.slane %v4720, 7
      %v4723 = vshll.u32 %v4627, 16
      %v4725 = vor.u32 %v4722, %v4723
      %v4726 = vrot.slane %v4722, 4
      %v4728 = vshrl.u32 %v4628, 16
      %v4730 = vrot.slane %v4728, 7
      %v4731 = vshll.u32 %v4628, 16
      %v4733 = vor.u32 %v4730, %v4731
      %v4734 = vsel %vm714, %v4726, %v4733
      %v4735 = vrot.slane %v4730, 4
      %v4737 = vshrl.u32 %v4629, 16
      %v4739 = vrot.slane %v4737, 7
      %v4740 = vshll.u32 %v4629, 16
      %v4742 = vor.u32 %v4739, %v4740
      %v4743 = vrot.slane %v4739, 4
      %v4745 = vshrl.u32 %v4630, 16
      %v4747 = vrot.slane %v4745, 7
      %v4748 = vshll.u32 %v4630, 16
      %v4750 = vor.u32 %v4747, %v4748
      %v4751 = vsel %vm714, %v4743, %v4750
      %v4752 = vrot.slane %v4747, 4
      %v4754 = vshrl.u32 %v4631, 16
      %v4756 = vrot.slane %v4754, 7
      %v4757 = vshll.u32 %v4631, 16
      %v4759 = vor.u32 %v4756, %v4757
      %v4760 = vrot.slane %v4756, 4
      %v4762 = vshrl.u32 %v4632, 16
      %v4764 = vrot.slane %v4762, 7
      %v4765 = vshll.u32 %v4632, 16
      %v4767 = vor.u32 %v4764, %v4765
      %v4768 = vsel %vm714, %v4760, %v4767
      %v4769 = vrot.slane %v4764, 4
      %v4771 = vshrl.u32 %v4633, 16
      %v4773 = vrot.slane %v4771, 7
      %v4774 = vshll.u32 %v4633, 16
      %v4776 = vor.u32 %v4773, %v4774
      %v4777 = vrot.slane %v4773, 4
      %v4779 = vshrl.u32 %v4634, 16
      %v4781 = vrot.slane %v4779, 7
      %v4782 = vshll.u32 %v4634, 16
      %v4784 = vor.u32 %v4781, %v4782
      %v4785 = vsel %vm714, %v4777, %v4784
      %v4786 = vrot.slane %v4781, 4
      %v4788 = vshrl.u32 %v4635, 16
      %v4790 = vrot.slane %v4788, 7
      %v4791 = vshll.u32 %v4635, 16
      %v4793 = vor.u32 %v4790, %v4791
      %v4794 = vrot.slane %v4790, 4
      %v4796 = vshrl.u32 %v4636, 16
      %v4798 = vrot.slane %v4796, 7
      %v4799 = vshll.u32 %v4636, 16
      %v4801 = vor.u32 %v4798, %v4799
      %v4802 = vsel %vm714, %v4794, %v4801
      %v4803 = vrot.slane %v4798, 4
      %v4805 = vshrl.u32 %v4637, 16
      %v4807 = vrot.slane %v4805, 7
      %v4808 = vshll.u32 %v4637, 16
      %v4810 = vor.u32 %v4807, %v4808
      %v4811 = vrot.slane %v4807, 4
      %v4813 = vshrl.u32 %v4638, 16
      %v4815 = vrot.slane %v4813, 7
      %v4816 = vshll.u32 %v4638, 16
      %v4818 = vor.u32 %v4815, %v4816
      %v4819 = vsel %vm714, %v4811, %v4818
      %v4820 = vrot.slane %v4815, 4
      %v4822 = vshrl.u32 %v4639, 16
      %v4824 = vrot.slane %v4822, 7
      %v4825 = vshll.u32 %v4639, 16
      %v4827 = vor.u32 %v4824, %v4825
      %v4828 = vrot.slane %v4824, 4
      %v4830 = vshrl.u32 %v4640, 16
      %v4832 = vrot.slane %v4830, 7
      %v4833 = vshll.u32 %v4640, 16
      %v4835 = vor.u32 %v4832, %v4833
      %v4836 = vsel %vm714, %v4828, %v4835
      %v4837 = vrot.slane %v4832, 4
      %v4839 = vshrl.u32 %v4641, 16
      %v4841 = vrot.slane %v4839, 7
      %v4842 = vshll.u32 %v4641, 16
      %v4844 = vor.u32 %v4841, %v4842
      %v4845 = vrot.slane %v4841, 4
      %v4847 = vshrl.u32 %v4642, 16
      %v4849 = vrot.slane %v4847, 7
      %v4850 = vshll.u32 %v4642, 16
      %v4852 = vor.u32 %v4849, %v4850
      %v4853 = vsel %vm714, %v4845, %v4852
      %v4854 = vrot.slane %v4849, 4
      %v4856 = vshrl.u32 %v4643, 16
      %v4858 = vrot.slane %v4856, 7
      %v4859 = vshll.u32 %v4643, 16
      %v4861 = vor.u32 %v4858, %v4859
      %v4862 = vrot.slane %v4858, 4
      %v4864 = vshrl.u32 %v4644, 16
      %v4866 = vrot.slane %v4864, 7
      %v4867 = vshll.u32 %v4644, 16
      %v4869 = vor.u32 %v4866, %v4867
      %v4870 = vsel %vm714, %v4862, %v4869
      %v4871 = vrot.slane %v4866, 4
      %v4873 = vshrl.u32 %v4645, 16
      %v4875 = vrot.slane %v4873, 7
      %v4876 = vshll.u32 %v4645, 16
      %v4878 = vor.u32 %v4875, %v4876
      %v4879 = vrot.slane %v4875, 4
      %v4881 = vshrl.u32 %v4646, 16
      %v4883 = vrot.slane %v4881, 7
      %v4884 = vshll.u32 %v4646, 16
      %v4886 = vor.u32 %v4883, %v4884
      %v4887 = vsel %vm714, %v4879, %v4886
      %v4888 = vrot.slane %v4883, 4
      %v4890 = vshrl.u32 %v4647, 16
      %v4892 = vrot.slane %v4890, 7
      %v4893 = vshll.u32 %v4647, 16
      %v4895 = vor.u32 %v4892, %v4893
      %v4896 = vrot.slane %v4892, 4
      %v4898 = vshrl.u32 %v4648, 16
      %v4900 = vrot.slane %v4898, 7
      %v4901 = vshll.u32 %v4648, 16
      %v4903 = vor.u32 %v4900, %v4901
      %v4904 = vsel %vm714, %v4896, %v4903
      %v4905 = vrot.slane %v4900, 4
      %v4907 = vshrl.u32 %v4649, 16
      %v4909 = vrot.slane %v4907, 7
      %v4910 = vshll.u32 %v4649, 16
      %v4912 = vor.u32 %v4909, %v4910
      %v4913 = vrot.slane %v4909, 4
      %v4915 = vshrl.u32 %v4650, 16
      %v4917 = vrot.slane %v4915, 7
      %v4918 = vshll.u32 %v4650, 16
      %v4920 = vor.u32 %v4917, %v4918
      %v4921 = vsel %vm714, %v4913, %v4920
      %v4922 = vrot.slane %v4917, 4
      %s4971 = scalar_lea.vmem [#allocation3], 12
      %v4972 = vld [vmem:[%s4971] sm:$0xf]
      %v4973 = vsel %vm1037, %v4657, %v4972
      %4974 = vst [vmem:[%s4971] sm:$0xf] %v4973
      %4975 = vst.msk [vmem:[%s4971 + $0x4] sm:$0xf] %vm219, %v4666
      %v4976 = vld [vmem:[%s4971 + $0x8] sm:$0x1]
      %v4977 = vsel %vm230, %v4667, %v4976
      %4978 = vst [vmem:[%s4971 + $0x8] sm:$0x1] %v4977
      %v4979 = vld [vmem:[%s4971 + $0xc] sm:$0xf]
      %v4980 = vsel %vm1037, %v4674, %v4979
      %4981 = vst [vmem:[%s4971 + $0xc] sm:$0xf] %v4980
      %4982 = vst.msk [vmem:[%s4971 + $0x10] sm:$0xf] %vm219, %v4683
      %v4983 = vld [vmem:[%s4971 + $0x14] sm:$0x1]
      %v4984 = vsel %vm230, %v4684, %v4983
      %4985 = vst [vmem:[%s4971 + $0x14] sm:$0x1] %v4984
      %v4986 = vld [vmem:[%s4971 + $0x18] sm:$0xf]
      %v4987 = vsel %vm1037, %v4691, %v4986
      %4988 = vst [vmem:[%s4971 + $0x18] sm:$0xf] %v4987
      %4989 = vst.msk [vmem:[%s4971 + $0x1c] sm:$0xf] %vm219, %v4700
      %v4990 = vld [vmem:[%s4971 + $0x20] sm:$0x1]
      %v4991 = vsel %vm230, %v4701, %v4990
      %4992 = vst [vmem:[%s4971 + $0x20] sm:$0x1] %v4991
      %v4993 = vld [vmem:[%s4971 + $0x24] sm:$0xf]
      %v4994 = vsel %vm1037, %v4708, %v4993
      %4995 = vst [vmem:[%s4971 + $0x24] sm:$0xf] %v4994
      %4996 = vst.msk [vmem:[%s4971 + $0x28] sm:$0xf] %vm219, %v4717
      %v4997 = vld [vmem:[%s4971 + $0x2c] sm:$0x1]
      %v4998 = vsel %vm230, %v4718, %v4997
      %4999 = vst [vmem:[%s4971 + $0x2c] sm:$0x1] %v4998
      %v5000 = vld [vmem:[%s4971 + $0x30] sm:$0xf]
      %v5001 = vsel %vm1037, %v4725, %v5000
      %5002 = vst [vmem:[%s4971 + $0x30] sm:$0xf] %v5001
      %5003 = vst.msk [vmem:[%s4971 + $0x34] sm:$0xf] %vm219, %v4734
      %v5004 = vld [vmem:[%s4971 + $0x38] sm:$0x1]
      %v5005 = vsel %vm230, %v4735, %v5004
      %5006 = vst [vmem:[%s4971 + $0x38] sm:$0x1] %v5005
      %v5007 = vld [vmem:[%s4971 + $0x3c] sm:$0xf]
      %v5008 = vsel %vm1037, %v4742, %v5007
      %5009 = vst [vmem:[%s4971 + $0x3c] sm:$0xf] %v5008
      %5010 = vst.msk [vmem:[%s4971 + $0x40] sm:$0xf] %vm219, %v4751
      %v5011 = vld [vmem:[%s4971 + $0x44] sm:$0x1]
      %v5012 = vsel %vm230, %v4752, %v5011
      %5013 = vst [vmem:[%s4971 + $0x44] sm:$0x1] %v5012
      %v5014 = vld [vmem:[%s4971 + $0x48] sm:$0xf]
      %v5015 = vsel %vm1037, %v4759, %v5014
      %5016 = vst [vmem:[%s4971 + $0x48] sm:$0xf] %v5015
      %5017 = vst.msk [vmem:[%s4971 + $0x4c] sm:$0xf] %vm219, %v4768
      %v5018 = vld [vmem:[%s4971 + $0x50] sm:$0x1]
      %v5019 = vsel %vm230, %v4769, %v5018
      %5020 = vst [vmem:[%s4971 + $0x50] sm:$0x1] %v5019
      %v5021 = vld [vmem:[%s4971 + $0x54] sm:$0xf]
      %v5022 = vsel %vm1037, %v4776, %v5021
      %5023 = vst [vmem:[%s4971 + $0x54] sm:$0xf] %v5022
      %5024 = vst.msk [vmem:[%s4971 + $0x58] sm:$0xf] %vm219, %v4785
      %v5025 = vld [vmem:[%s4971 + $0x5c] sm:$0x1]
      %v5026 = vsel %vm230, %v4786, %v5025
      %5027 = vst [vmem:[%s4971 + $0x5c] sm:$0x1] %v5026
      %v5028 = vld [vmem:[%s4971 + $0x60] sm:$0xf]
      %v5029 = vsel %vm1037, %v4793, %v5028
      %5030 = vst [vmem:[%s4971 + $0x60] sm:$0xf] %v5029
      %5031 = vst.msk [vmem:[%s4971 + $0x64] sm:$0xf] %vm219, %v4802
      %v5032 = vld [vmem:[%s4971 + $0x68] sm:$0x1]
      %v5033 = vsel %vm230, %v4803, %v5032
      %5034 = vst [vmem:[%s4971 + $0x68] sm:$0x1] %v5033
      %v5035 = vld [vmem:[%s4971 + $0x6c] sm:$0xf]
      %v5036 = vsel %vm1037, %v4810, %v5035
      %5037 = vst [vmem:[%s4971 + $0x6c] sm:$0xf] %v5036
      %5038 = vst.msk [vmem:[%s4971 + $0x70] sm:$0xf] %vm219, %v4819
      %v5039 = vld [vmem:[%s4971 + $0x74] sm:$0x1]
      %v5040 = vsel %vm230, %v4820, %v5039
      %5041 = vst [vmem:[%s4971 + $0x74] sm:$0x1] %v5040
      %v5042 = vld [vmem:[%s4971 + $0x78] sm:$0xf]
      %v5043 = vsel %vm1037, %v4827, %v5042
      %5044 = vst [vmem:[%s4971 + $0x78] sm:$0xf] %v5043
      %5045 = vst.msk [vmem:[%s4971 + $0x7c] sm:$0xf] %vm219, %v4836
      %v5046 = vld [vmem:[%s4971 + $0x80] sm:$0x1]
      %v5047 = vsel %vm230, %v4837, %v5046
      %5048 = vst [vmem:[%s4971 + $0x80] sm:$0x1] %v5047
      %v5049 = vld [vmem:[%s4971 + $0x84] sm:$0xf]
      %v5050 = vsel %vm1037, %v4844, %v5049
      %5051 = vst [vmem:[%s4971 + $0x84] sm:$0xf] %v5050
      %5052 = vst.msk [vmem:[%s4971 + $0x88] sm:$0xf] %vm219, %v4853
      %v5053 = vld [vmem:[%s4971 + $0x8c] sm:$0x1]
      %v5054 = vsel %vm230, %v4854, %v5053
      %5055 = vst [vmem:[%s4971 + $0x8c] sm:$0x1] %v5054
      %v5056 = vld [vmem:[%s4971 + $0x90] sm:$0xf]
      %v5057 = vsel %vm1037, %v4861, %v5056
      %5058 = vst [vmem:[%s4971 + $0x90] sm:$0xf] %v5057
      %5059 = vst.msk [vmem:[%s4971 + $0x94] sm:$0xf] %vm219, %v4870
      %v5060 = vld [vmem:[%s4971 + $0x98] sm:$0x1]
      %v5061 = vsel %vm230, %v4871, %v5060
      %5062 = vst [vmem:[%s4971 + $0x98] sm:$0x1] %v5061
      %v5063 = vld [vmem:[%s4971 + $0x9c] sm:$0xf]
      %v5064 = vsel %vm1037, %v4878, %v5063
      %5065 = vst [vmem:[%s4971 + $0x9c] sm:$0xf] %v5064
      %5066 = vst.msk [vmem:[%s4971 + $0xa0] sm:$0xf] %vm219, %v4887
      %v5067 = vld [vmem:[%s4971 + $0xa4] sm:$0x1]
      %v5068 = vsel %vm230, %v4888, %v5067
      %5069 = vst [vmem:[%s4971 + $0xa4] sm:$0x1] %v5068
      %v5070 = vld [vmem:[%s4971 + $0xa8] sm:$0xf]
      %v5071 = vsel %vm1037, %v4895, %v5070
      %5072 = vst [vmem:[%s4971 + $0xa8] sm:$0xf] %v5071
      %5073 = vst.msk [vmem:[%s4971 + $0xac] sm:$0xf] %vm219, %v4904
      %v5074 = vld [vmem:[%s4971 + $0xb0] sm:$0x1]
      %v5075 = vsel %vm230, %v4905, %v5074
      %5076 = vst [vmem:[%s4971 + $0xb0] sm:$0x1] %v5075
      %v5077 = vld [vmem:[%s4971 + $0xb4] sm:$0xf]
      %v5078 = vsel %vm1037, %v4912, %v5077
      %5079 = vst [vmem:[%s4971 + $0xb4] sm:$0xf] %v5078
      %5080 = vst.msk [vmem:[%s4971 + $0xb8] sm:$0xf] %vm219, %v4921
      %v5081 = vld [vmem:[%s4971 + $0xbc] sm:$0x1]
      %v5082 = vsel %vm230, %v4922, %v5081
      %5083 = vst [vmem:[%s4971 + $0xbc] sm:$0x1] %v5082
      %v5084 = vld [vmem:[#allocation3] sm:$0xf]
      %v5085 = vld [vmem:[#allocation3 + $0x4] sm:$0xf]
      %v5086 = vld [vmem:[#allocation3 + $0xc] sm:$0xf]
      %v5087 = vld [vmem:[#allocation3 + $0x10] sm:$0xf]
      %v5088 = vld [vmem:[#allocation3 + $0x18] sm:$0xf]
      %v5089 = vld [vmem:[#allocation3 + $0x1c] sm:$0xf]
      %v5090 = vld [vmem:[#allocation3 + $0x24] sm:$0xf]
      %v5091 = vld [vmem:[#allocation3 + $0x28] sm:$0xf]
      %v5092 = vld [vmem:[#allocation3 + $0x30] sm:$0xf]
      %v5093 = vld [vmem:[#allocation3 + $0x34] sm:$0xf]
      %v5094 = vld [vmem:[#allocation3 + $0x3c] sm:$0xf]
      %v5095 = vld [vmem:[#allocation3 + $0x40] sm:$0xf]
      %v5096 = vld [vmem:[#allocation3 + $0x48] sm:$0xf]
      %v5097 = vld [vmem:[#allocation3 + $0x4c] sm:$0xf]
      %v5098 = vld [vmem:[#allocation3 + $0x54] sm:$0xf]
      %v5099 = vld [vmem:[#allocation3 + $0x58] sm:$0xf]
      %v5100 = vld [vmem:[#allocation3 + $0x60] sm:$0xf]
      %v5101 = vld [vmem:[#allocation3 + $0x64] sm:$0xf]
      %v5102 = vld [vmem:[#allocation3 + $0x6c] sm:$0xf]
      %v5103 = vld [vmem:[#allocation3 + $0x70] sm:$0xf]
      %v5104 = vld [vmem:[#allocation3 + $0x78] sm:$0xf]
      %v5105 = vld [vmem:[#allocation3 + $0x7c] sm:$0xf]
      %v5106 = vld [vmem:[#allocation3 + $0x84] sm:$0xf]
      %v5107 = vld [vmem:[#allocation3 + $0x88] sm:$0xf]
      %v5108 = vld [vmem:[#allocation3 + $0x90] sm:$0xf]
      %v5109 = vld [vmem:[#allocation3 + $0x94] sm:$0xf]
      %v5110 = vld [vmem:[#allocation3 + $0x9c] sm:$0xf]
      %v5111 = vld [vmem:[#allocation3 + $0xa0] sm:$0xf]
      %v5112 = vld [vmem:[#allocation3 + $0xa8] sm:$0xf]
      %v5113 = vld [vmem:[#allocation3 + $0xac] sm:$0xf]
      %v5114 = vld [vmem:[#allocation3 + $0xb4] sm:$0xf]
      %v5115 = vld [vmem:[#allocation3 + $0xb8] sm:$0xf]
      %v5116 = vld [vmem:[#allocation3 + $0x8] sm:$0x1]
      %v5117 = vld [vmem:[#allocation3 + $0x14] sm:$0x1]
      %v5118 = vld [vmem:[#allocation3 + $0x20] sm:$0x1]
      %v5119 = vld [vmem:[#allocation3 + $0x2c] sm:$0x1]
      %v5120 = vld [vmem:[#allocation3 + $0x38] sm:$0x1]
      %v5121 = vld [vmem:[#allocation3 + $0x44] sm:$0x1]
      %v5122 = vld [vmem:[#allocation3 + $0x50] sm:$0x1]
      %v5123 = vld [vmem:[#allocation3 + $0x5c] sm:$0x1]
      %v5124 = vld [vmem:[#allocation3 + $0x68] sm:$0x1]
      %v5125 = vld [vmem:[#allocation3 + $0x74] sm:$0x1]
      %v5126 = vld [vmem:[#allocation3 + $0x80] sm:$0x1]
      %v5127 = vld [vmem:[#allocation3 + $0x8c] sm:$0x1]
      %v5128 = vld [vmem:[#allocation3 + $0x98] sm:$0x1]
      %v5129 = vld [vmem:[#allocation3 + $0xa4] sm:$0x1]
      %v5130 = vld [vmem:[#allocation3 + $0xb0] sm:$0x1]
      %v5131 = vld [vmem:[#allocation3 + $0xbc] sm:$0x1]
      %v5133 = vshrl.u32 %v5084, 16
      %v5135 = vrot.slane %v5133, 4
      %v5136 = vshll.u32 %v5084, 16
      %v5138 = vrot.slane %v5136, 5
      %v5139 = vor.u32 %v5135, %v5138
      %v5140 = vrot.slane %v5139, 4
      %v5142 = vshll.u32 %v5085, 16
      %v5144 = vrot.slane %v5142, 5
      %v5145 = vsel %vm1200, %v5140, %v5144
      %v5146 = vshrl.u32 %v5085, 16
      %v5148 = vrot.slane %v5146, 4
      %v5149 = vor.u32 %v5148, %v5144
      %v5150 = vrot.slane %v5149, 4
      %v5152 = vshll.u32 %v5116, 16
      %v5154 = vrot.slane %v5152, 5
      %v5155 = vsel %vm1200, %v5150, %v5154
      %v5157 = vshrl.u32 %v5086, 16
      %v5159 = vrot.slane %v5157, 4
      %v5160 = vshll.u32 %v5086, 16
      %v5162 = vrot.slane %v5160, 5
      %v5163 = vor.u32 %v5159, %v5162
      %v5164 = vrot.slane %v5163, 4
      %v5166 = vshll.u32 %v5087, 16
      %v5168 = vrot.slane %v5166, 5
      %v5169 = vsel %vm1200, %v5164, %v5168
      %v5170 = vshrl.u32 %v5087, 16
      %v5172 = vrot.slane %v5170, 4
      %v5173 = vor.u32 %v5172, %v5168
      %v5174 = vrot.slane %v5173, 4
      %v5176 = vshll.u32 %v5117, 16
      %v5178 = vrot.slane %v5176, 5
      %v5179 = vsel %vm1200, %v5174, %v5178
      %v5181 = vshrl.u32 %v5088, 16
      %v5183 = vrot.slane %v5181, 4
      %v5184 = vshll.u32 %v5088, 16
      %v5186 = vrot.slane %v5184, 5
      %v5187 = vor.u32 %v5183, %v5186
      %v5188 = vrot.slane %v5187, 4
      %v5190 = vshll.u32 %v5089, 16
      %v5192 = vrot.slane %v5190, 5
      %v5193 = vsel %vm1200, %v5188, %v5192
      %v5194 = vshrl.u32 %v5089, 16
      %v5196 = vrot.slane %v5194, 4
      %v5197 = vor.u32 %v5196, %v5192
      %v5198 = vrot.slane %v5197, 4
      %v5200 = vshll.u32 %v5118, 16
      %v5202 = vrot.slane %v5200, 5
      %v5203 = vsel %vm1200, %v5198, %v5202
      %v5205 = vshrl.u32 %v5090, 16
      %v5207 = vrot.slane %v5205, 4
      %v5208 = vshll.u32 %v5090, 16
      %v5210 = vrot.slane %v5208, 5
      %v5211 = vor.u32 %v5207, %v5210
      %v5212 = vrot.slane %v5211, 4
      %v5214 = vshll.u32 %v5091, 16
      %v5216 = vrot.slane %v5214, 5
      %v5217 = vsel %vm1200, %v5212, %v5216
      %v5218 = vshrl.u32 %v5091, 16
      %v5220 = vrot.slane %v5218, 4
      %v5221 = vor.u32 %v5220, %v5216
      %v5222 = vrot.slane %v5221, 4
      %v5224 = vshll.u32 %v5119, 16
      %v5226 = vrot.slane %v5224, 5
      %v5227 = vsel %vm1200, %v5222, %v5226
      %v5229 = vshrl.u32 %v5092, 16
      %v5231 = vrot.slane %v5229, 4
      %v5232 = vshll.u32 %v5092, 16
      %v5234 = vrot.slane %v5232, 5
      %v5235 = vor.u32 %v5231, %v5234
      %v5236 = vrot.slane %v5235, 4
      %v5238 = vshll.u32 %v5093, 16
      %v5240 = vrot.slane %v5238, 5
      %v5241 = vsel %vm1200, %v5236, %v5240
      %v5242 = vshrl.u32 %v5093, 16
      %v5244 = vrot.slane %v5242, 4
      %v5245 = vor.u32 %v5244, %v5240
      %v5246 = vrot.slane %v5245, 4
      %v5248 = vshll.u32 %v5120, 16
      %v5250 = vrot.slane %v5248, 5
      %v5251 = vsel %vm1200, %v5246, %v5250
      %v5253 = vshrl.u32 %v5094, 16
      %v5255 = vrot.slane %v5253, 4
      %v5256 = vshll.u32 %v5094, 16
      %v5258 = vrot.slane %v5256, 5
      %v5259 = vor.u32 %v5255, %v5258
      %v5260 = vrot.slane %v5259, 4
      %v5262 = vshll.u32 %v5095, 16
      %v5264 = vrot.slane %v5262, 5
      %v5265 = vsel %vm1200, %v5260, %v5264
      %v5266 = vshrl.u32 %v5095, 16
      %v5268 = vrot.slane %v5266, 4
      %v5269 = vor.u32 %v5268, %v5264
      %v5270 = vrot.slane %v5269, 4
      %v5272 = vshll.u32 %v5121, 16
      %v5274 = vrot.slane %v5272, 5
      %v5275 = vsel %vm1200, %v5270, %v5274
      %v5277 = vshrl.u32 %v5096, 16
      %v5279 = vrot.slane %v5277, 4
      %v5280 = vshll.u32 %v5096, 16
      %v5282 = vrot.slane %v5280, 5
      %v5283 = vor.u32 %v5279, %v5282
      %v5284 = vrot.slane %v5283, 4
      %v5286 = vshll.u32 %v5097, 16
      %v5288 = vrot.slane %v5286, 5
      %v5289 = vsel %vm1200, %v5284, %v5288
      %v5290 = vshrl.u32 %v5097, 16
      %v5292 = vrot.slane %v5290, 4
      %v5293 = vor.u32 %v5292, %v5288
      %v5294 = vrot.slane %v5293, 4
      %v5296 = vshll.u32 %v5122, 16
      %v5298 = vrot.slane %v5296, 5
      %v5299 = vsel %vm1200, %v5294, %v5298
      %v5301 = vshrl.u32 %v5098, 16
      %v5303 = vrot.slane %v5301, 4
      %v5304 = vshll.u32 %v5098, 16
      %v5306 = vrot.slane %v5304, 5
      %v5307 = vor.u32 %v5303, %v5306
      %v5308 = vrot.slane %v5307, 4
      %v5310 = vshll.u32 %v5099, 16
      %v5312 = vrot.slane %v5310, 5
      %v5313 = vsel %vm1200, %v5308, %v5312
      %v5314 = vshrl.u32 %v5099, 16
      %v5316 = vrot.slane %v5314, 4
      %v5317 = vor.u32 %v5316, %v5312
      %v5318 = vrot.slane %v5317, 4
      %v5320 = vshll.u32 %v5123, 16
      %v5322 = vrot.slane %v5320, 5
      %v5323 = vsel %vm1200, %v5318, %v5322
      %v5325 = vshrl.u32 %v5100, 16
      %v5327 = vrot.slane %v5325, 4
      %v5328 = vshll.u32 %v5100, 16
      %v5330 = vrot.slane %v5328, 5
      %v5331 = vor.u32 %v5327, %v5330
      %v5332 = vrot.slane %v5331, 4
      %v5334 = vshll.u32 %v5101, 16
      %v5336 = vrot.slane %v5334, 5
      %v5337 = vsel %vm1200, %v5332, %v5336
      %v5338 = vshrl.u32 %v5101, 16
      %v5340 = vrot.slane %v5338, 4
      %v5341 = vor.u32 %v5340, %v5336
      %v5342 = vrot.slane %v5341, 4
      %v5344 = vshll.u32 %v5124, 16
      %v5346 = vrot.slane %v5344, 5
      %v5347 = vsel %vm1200, %v5342, %v5346
      %v5349 = vshrl.u32 %v5102, 16
      %v5351 = vrot.slane %v5349, 4
      %v5352 = vshll.u32 %v5102, 16
      %v5354 = vrot.slane %v5352, 5
      %v5355 = vor.u32 %v5351, %v5354
      %v5356 = vrot.slane %v5355, 4
      %v5358 = vshll.u32 %v5103, 16
      %v5360 = vrot.slane %v5358, 5
      %v5361 = vsel %vm1200, %v5356, %v5360
      %v5362 = vshrl.u32 %v5103, 16
      %v5364 = vrot.slane %v5362, 4
      %v5365 = vor.u32 %v5364, %v5360
      %v5366 = vrot.slane %v5365, 4
      %v5368 = vshll.u32 %v5125, 16
      %v5370 = vrot.slane %v5368, 5
      %v5371 = vsel %vm1200, %v5366, %v5370
      %v5373 = vshrl.u32 %v5104, 16
      %v5375 = vrot.slane %v5373, 4
      %v5376 = vshll.u32 %v5104, 16
      %v5378 = vrot.slane %v5376, 5
      %v5379 = vor.u32 %v5375, %v5378
      %v5380 = vrot.slane %v5379, 4
      %v5382 = vshll.u32 %v5105, 16
      %v5384 = vrot.slane %v5382, 5
      %v5385 = vsel %vm1200, %v5380, %v5384
      %v5386 = vshrl.u32 %v5105, 16
      %v5388 = vrot.slane %v5386, 4
      %v5389 = vor.u32 %v5388, %v5384
      %v5390 = vrot.slane %v5389, 4
      %v5392 = vshll.u32 %v5126, 16
      %v5394 = vrot.slane %v5392, 5
      %v5395 = vsel %vm1200, %v5390, %v5394
      %v5397 = vshrl.u32 %v5106, 16
      %v5399 = vrot.slane %v5397, 4
      %v5400 = vshll.u32 %v5106, 16
      %v5402 = vrot.slane %v5400, 5
      %v5403 = vor.u32 %v5399, %v5402
      %v5404 = vrot.slane %v5403, 4
      %v5406 = vshll.u32 %v5107, 16
      %v5408 = vrot.slane %v5406, 5
      %v5409 = vsel %vm1200, %v5404, %v5408
      %v5410 = vshrl.u32 %v5107, 16
      %v5412 = vrot.slane %v5410, 4
      %v5413 = vor.u32 %v5412, %v5408
      %v5414 = vrot.slane %v5413, 4
      %v5416 = vshll.u32 %v5127, 16
      %v5418 = vrot.slane %v5416, 5
      %v5419 = vsel %vm1200, %v5414, %v5418
      %v5421 = vshrl.u32 %v5108, 16
      %v5423 = vrot.slane %v5421, 4
      %v5424 = vshll.u32 %v5108, 16
      %v5426 = vrot.slane %v5424, 5
      %v5427 = vor.u32 %v5423, %v5426
      %v5428 = vrot.slane %v5427, 4
      %v5430 = vshll.u32 %v5109, 16
      %v5432 = vrot.slane %v5430, 5
      %v5433 = vsel %vm1200, %v5428, %v5432
      %v5434 = vshrl.u32 %v5109, 16
      %v5436 = vrot.slane %v5434, 4
      %v5437 = vor.u32 %v5436, %v5432
      %v5438 = vrot.slane %v5437, 4
      %v5440 = vshll.u32 %v5128, 16
      %v5442 = vrot.slane %v5440, 5
      %v5443 = vsel %vm1200, %v5438, %v5442
      %v5445 = vshrl.u32 %v5110, 16
      %v5447 = vrot.slane %v5445, 4
      %v5448 = vshll.u32 %v5110, 16
      %v5450 = vrot.slane %v5448, 5
      %v5451 = vor.u32 %v5447, %v5450
      %v5452 = vrot.slane %v5451, 4
      %v5454 = vshll.u32 %v5111, 16
      %v5456 = vrot.slane %v5454, 5
      %v5457 = vsel %vm1200, %v5452, %v5456
      %v5458 = vshrl.u32 %v5111, 16
      %v5460 = vrot.slane %v5458, 4
      %v5461 = vor.u32 %v5460, %v5456
      %v5462 = vrot.slane %v5461, 4
      %v5464 = vshll.u32 %v5129, 16
      %v5466 = vrot.slane %v5464, 5
      %v5467 = vsel %vm1200, %v5462, %v5466
      %v5469 = vshrl.u32 %v5112, 16
      %v5471 = vrot.slane %v5469, 4
      %v5472 = vshll.u32 %v5112, 16
      %v5474 = vrot.slane %v5472, 5
      %v5475 = vor.u32 %v5471, %v5474
      %v5476 = vrot.slane %v5475, 4
      %v5478 = vshll.u32 %v5113, 16
      %v5480 = vrot.slane %v5478, 5
      %v5481 = vsel %vm1200, %v5476, %v5480
      %v5482 = vshrl.u32 %v5113, 16
      %v5484 = vrot.slane %v5482, 4
      %v5485 = vor.u32 %v5484, %v5480
      %v5486 = vrot.slane %v5485, 4
      %v5488 = vshll.u32 %v5130, 16
      %v5490 = vrot.slane %v5488, 5
      %v5491 = vsel %vm1200, %v5486, %v5490
      %v5493 = vshrl.u32 %v5114, 16
      %v5495 = vrot.slane %v5493, 4
      %v5496 = vshll.u32 %v5114, 16
      %v5498 = vrot.slane %v5496, 5
      %v5499 = vor.u32 %v5495, %v5498
      %v5500 = vrot.slane %v5499, 4
      %v5502 = vshll.u32 %v5115, 16
      %v5504 = vrot.slane %v5502, 5
      %v5505 = vsel %vm1200, %v5500, %v5504
      %v5506 = vshrl.u32 %v5115, 16
      %v5508 = vrot.slane %v5506, 4
      %v5509 = vor.u32 %v5508, %v5504
      %v5510 = vrot.slane %v5509, 4
      %v5512 = vshll.u32 %v5131, 16
      %v5514 = vrot.slane %v5512, 5
      %v5515 = vsel %vm1200, %v5510, %v5514
      %v5516 = vld [vmem:[#allocation3] sm:$0xe]
      %v5517 = vld [vmem:[#allocation3 + $0xc] sm:$0xe]
      %v5518 = vld [vmem:[#allocation3 + $0x18] sm:$0xe]
      %v5519 = vld [vmem:[#allocation3 + $0x24] sm:$0xe]
      %v5520 = vld [vmem:[#allocation3 + $0x30] sm:$0xe]
      %v5521 = vld [vmem:[#allocation3 + $0x3c] sm:$0xe]
      %v5522 = vld [vmem:[#allocation3 + $0x48] sm:$0xe]
      %v5523 = vld [vmem:[#allocation3 + $0x54] sm:$0xe]
      %v5524 = vld [vmem:[#allocation3 + $0x60] sm:$0xe]
      %v5525 = vld [vmem:[#allocation3 + $0x6c] sm:$0xe]
      %v5526 = vld [vmem:[#allocation3 + $0x78] sm:$0xe]
      %v5527 = vld [vmem:[#allocation3 + $0x84] sm:$0xe]
      %v5528 = vld [vmem:[#allocation3 + $0x90] sm:$0xe]
      %v5529 = vld [vmem:[#allocation3 + $0x9c] sm:$0xe]
      %v5530 = vld [vmem:[#allocation3 + $0xa8] sm:$0xe]
      %v5531 = vld [vmem:[#allocation3 + $0xb4] sm:$0xe]
      %v5580 = vrot.slane %v5516, 5
      %v5581 = vrot.slane %v5580, 4
      %v5582 = vrot.slane %v5085, 5
      %v5583 = vsel %vm1651, %v5581, %v5582
      %v5584 = vrot.slane %v5582, 4
      %v5585 = vrot.slane %v5116, 5
      %v5586 = vsel %vm1651, %v5584, %v5585
      %v5587 = vrot.slane %v5517, 5
      %v5588 = vrot.slane %v5587, 4
      %v5589 = vrot.slane %v5087, 5
      %v5590 = vsel %vm1651, %v5588, %v5589
      %v5591 = vrot.slane %v5589, 4
      %v5592 = vrot.slane %v5117, 5
      %v5593 = vsel %vm1651, %v5591, %v5592
      %v5594 = vrot.slane %v5518, 5
      %v5595 = vrot.slane %v5594, 4
      %v5596 = vrot.slane %v5089, 5
      %v5597 = vsel %vm1651, %v5595, %v5596
      %v5598 = vrot.slane %v5596, 4
      %v5599 = vrot.slane %v5118, 5
      %v5600 = vsel %vm1651, %v5598, %v5599
      %v5601 = vrot.slane %v5519, 5
      %v5602 = vrot.slane %v5601, 4
      %v5603 = vrot.slane %v5091, 5
      %v5604 = vsel %vm1651, %v5602, %v5603
      %v5605 = vrot.slane %v5603, 4
      %v5606 = vrot.slane %v5119, 5
      %v5607 = vsel %vm1651, %v5605, %v5606
      %v5608 = vrot.slane %v5520, 5
      %v5609 = vrot.slane %v5608, 4
      %v5610 = vrot.slane %v5093, 5
      %v5611 = vsel %vm1651, %v5609, %v5610
      %v5612 = vrot.slane %v5610, 4
      %v5613 = vrot.slane %v5120, 5
      %v5614 = vsel %vm1651, %v5612, %v5613
      %v5615 = vrot.slane %v5521, 5
      %v5616 = vrot.slane %v5615, 4
      %v5617 = vrot.slane %v5095, 5
      %v5618 = vsel %vm1651, %v5616, %v5617
      %v5619 = vrot.slane %v5617, 4
      %v5620 = vrot.slane %v5121, 5
      %v5621 = vsel %vm1651, %v5619, %v5620
      %v5622 = vrot.slane %v5522, 5
      %v5623 = vrot.slane %v5622, 4
      %v5624 = vrot.slane %v5097, 5
      %v5625 = vsel %vm1651, %v5623, %v5624
      %v5626 = vrot.slane %v5624, 4
      %v5627 = vrot.slane %v5122, 5
      %v5628 = vsel %vm1651, %v5626, %v5627
      %v5629 = vrot.slane %v5523, 5
      %v5630 = vrot.slane %v5629, 4
      %v5631 = vrot.slane %v5099, 5
      %v5632 = vsel %vm1651, %v5630, %v5631
      %v5633 = vrot.slane %v5631, 4
      %v5634 = vrot.slane %v5123, 5
      %v5635 = vsel %vm1651, %v5633, %v5634
      %v5636 = vrot.slane %v5524, 5
      %v5637 = vrot.slane %v5636, 4
      %v5638 = vrot.slane %v5101, 5
      %v5639 = vsel %vm1651, %v5637, %v5638
      %v5640 = vrot.slane %v5638, 4
      %v5641 = vrot.slane %v5124, 5
      %v5642 = vsel %vm1651, %v5640, %v5641
      %v5643 = vrot.slane %v5525, 5
      %v5644 = vrot.slane %v5643, 4
      %v5645 = vrot.slane %v5103, 5
      %v5646 = vsel %vm1651, %v5644, %v5645
      %v5647 = vrot.slane %v5645, 4
      %v5648 = vrot.slane %v5125, 5
      %v5649 = vsel %vm1651, %v5647, %v5648
      %v5650 = vrot.slane %v5526, 5
      %v5651 = vrot.slane %v5650, 4
      %v5652 = vrot.slane %v5105, 5
      %v5653 = vsel %vm1651, %v5651, %v5652
      %v5654 = vrot.slane %v5652, 4
      %v5655 = vrot.slane %v5126, 5
      %v5656 = vsel %vm1651, %v5654, %v5655
      %v5657 = vrot.slane %v5527, 5
      %v5658 = vrot.slane %v5657, 4
      %v5659 = vrot.slane %v5107, 5
      %v5660 = vsel %vm1651, %v5658, %v5659
      %v5661 = vrot.slane %v5659, 4
      %v5662 = vrot.slane %v5127, 5
      %v5663 = vsel %vm1651, %v5661, %v5662
      %v5664 = vrot.slane %v5528, 5
      %v5665 = vrot.slane %v5664, 4
      %v5666 = vrot.slane %v5109, 5
      %v5667 = vsel %vm1651, %v5665, %v5666
      %v5668 = vrot.slane %v5666, 4
      %v5669 = vrot.slane %v5128, 5
      %v5670 = vsel %vm1651, %v5668, %v5669
      %v5671 = vrot.slane %v5529, 5
      %v5672 = vrot.slane %v5671, 4
      %v5673 = vrot.slane %v5111, 5
      %v5674 = vsel %vm1651, %v5672, %v5673
      %v5675 = vrot.slane %v5673, 4
      %v5676 = vrot.slane %v5129, 5
      %v5677 = vsel %vm1651, %v5675, %v5676
      %v5678 = vrot.slane %v5530, 5
      %v5679 = vrot.slane %v5678, 4
      %v5680 = vrot.slane %v5113, 5
      %v5681 = vsel %vm1651, %v5679, %v5680
      %v5682 = vrot.slane %v5680, 4
      %v5683 = vrot.slane %v5130, 5
      %v5684 = vsel %vm1651, %v5682, %v5683
      %v5685 = vrot.slane %v5531, 5
      %v5686 = vrot.slane %v5685, 4
      %v5687 = vrot.slane %v5115, 5
      %v5688 = vsel %vm1651, %v5686, %v5687
      %v5689 = vrot.slane %v5687, 4
      %v5690 = vrot.slane %v5131, 5
      %v5691 = vsel %vm1651, %v5689, %v5690
      %v5708 = vunpack.c.l.b16 %v5084
      %v5709 = vunpack.c.l.b16 %v5085
      %v5710 = vunpack.c.l.b16 %v5086
      %v5711 = vunpack.c.l.b16 %v5087
      %v5712 = vunpack.c.l.b16 %v5088
      %v5713 = vunpack.c.l.b16 %v5089
      %v5714 = vunpack.c.l.b16 %v5090
      %v5715 = vunpack.c.l.b16 %v5091
      %v5716 = vunpack.c.l.b16 %v5092
      %v5717 = vunpack.c.l.b16 %v5093
      %v5718 = vunpack.c.l.b16 %v5094
      %v5719 = vunpack.c.l.b16 %v5095
      %v5720 = vunpack.c.l.b16 %v5096
      %v5721 = vunpack.c.l.b16 %v5097
      %v5722 = vunpack.c.l.b16 %v5098
      %v5723 = vunpack.c.l.b16 %v5099
      %v5724 = vunpack.c.l.b16 %v5100
      %v5725 = vunpack.c.l.b16 %v5101
      %v5726 = vunpack.c.l.b16 %v5102
      %v5727 = vunpack.c.l.b16 %v5103
      %v5728 = vunpack.c.l.b16 %v5104
      %v5729 = vunpack.c.l.b16 %v5105
      %v5730 = vunpack.c.l.b16 %v5106
      %v5731 = vunpack.c.l.b16 %v5107
      %v5732 = vunpack.c.l.b16 %v5108
      %v5733 = vunpack.c.l.b16 %v5109
      %v5734 = vunpack.c.l.b16 %v5110
      %v5735 = vunpack.c.l.b16 %v5111
      %v5736 = vunpack.c.l.b16 %v5112
      %v5737 = vunpack.c.l.b16 %v5113
      %v5738 = vunpack.c.l.b16 %v5114
      %v5739 = vunpack.c.l.b16 %v5115
      %v5740 = vpack.c.b16 %v5709, %v5708
      %v5741 = vpack.c.b16 %v5711, %v5710
      %v5742 = vpack.c.b16 %v5713, %v5712
      %v5743 = vpack.c.b16 %v5715, %v5714
      %v5744 = vpack.c.b16 %v5717, %v5716
      %v5745 = vpack.c.b16 %v5719, %v5718
      %v5746 = vpack.c.b16 %v5721, %v5720
      %v5747 = vpack.c.b16 %v5723, %v5722
      %v5748 = vpack.c.b16 %v5725, %v5724
      %v5749 = vpack.c.b16 %v5727, %v5726
      %v5750 = vpack.c.b16 %v5729, %v5728
      %v5751 = vpack.c.b16 %v5731, %v5730
      %v5752 = vpack.c.b16 %v5733, %v5732
      %v5753 = vpack.c.b16 %v5735, %v5734
      %v5754 = vpack.c.b16 %v5737, %v5736
      %v5755 = vpack.c.b16 %v5739, %v5738
      %v5756 = vunpack.c.l.b16 %v5145
      %v5757 = vunpack.c.l.b16 %v5155
      %v5758 = vunpack.c.l.b16 %v5169
      %v5759 = vunpack.c.l.b16 %v5179
      %v5760 = vunpack.c.l.b16 %v5193
      %v5761 = vunpack.c.l.b16 %v5203
      %v5762 = vunpack.c.l.b16 %v5217
      %v5763 = vunpack.c.l.b16 %v5227
      %v5764 = vunpack.c.l.b16 %v5241
      %v5765 = vunpack.c.l.b16 %v5251
      %v5766 = vunpack.c.l.b16 %v5265
      %v5767 = vunpack.c.l.b16 %v5275
      %v5768 = vunpack.c.l.b16 %v5289
      %v5769 = vunpack.c.l.b16 %v5299
      %v5770 = vunpack.c.l.b16 %v5313
      %v5771 = vunpack.c.l.b16 %v5323
      %v5772 = vunpack.c.l.b16 %v5337
      %v5773 = vunpack.c.l.b16 %v5347
      %v5774 = vunpack.c.l.b16 %v5361
      %v5775 = vunpack.c.l.b16 %v5371
      %v5776 = vunpack.c.l.b16 %v5385
      %v5777 = vunpack.c.l.b16 %v5395
      %v5778 = vunpack.c.l.b16 %v5409
      %v5779 = vunpack.c.l.b16 %v5419
      %v5780 = vunpack.c.l.b16 %v5433
      %v5781 = vunpack.c.l.b16 %v5443
      %v5782 = vunpack.c.l.b16 %v5457
      %v5783 = vunpack.c.l.b16 %v5467
      %v5784 = vunpack.c.l.b16 %v5481
      %v5785 = vunpack.c.l.b16 %v5491
      %v5786 = vunpack.c.l.b16 %v5505
      %v5787 = vunpack.c.l.b16 %v5515
      %v5788 = vpack.c.b16 %v5757, %v5756
      %v5789 = vpack.c.b16 %v5759, %v5758
      %v5790 = vpack.c.b16 %v5761, %v5760
      %v5791 = vpack.c.b16 %v5763, %v5762
      %v5792 = vpack.c.b16 %v5765, %v5764
      %v5793 = vpack.c.b16 %v5767, %v5766
      %v5794 = vpack.c.b16 %v5769, %v5768
      %v5795 = vpack.c.b16 %v5771, %v5770
      %v5796 = vpack.c.b16 %v5773, %v5772
      %v5797 = vpack.c.b16 %v5775, %v5774
      %v5798 = vpack.c.b16 %v5777, %v5776
      %v5799 = vpack.c.b16 %v5779, %v5778
      %v5800 = vpack.c.b16 %v5781, %v5780
      %v5801 = vpack.c.b16 %v5783, %v5782
      %v5802 = vpack.c.b16 %v5785, %v5784
      %v5803 = vpack.c.b16 %v5787, %v5786
      %5804 = vrot.lane.b32.xlu0 %v5788, 8
      %v5805 = vpop.permute.xlu0 %5804
      %5806 = vrot.lane.b32.xlu0 %v5789, 8
      %v5807 = vpop.permute.xlu0 %5806
      %5808 = vrot.lane.b32.xlu0 %v5790, 8
      %v5809 = vpop.permute.xlu0 %5808
      %5810 = vrot.lane.b32.xlu0 %v5791, 8
      %v5811 = vpop.permute.xlu0 %5810
      %5812 = vrot.lane.b32.xlu0 %v5792, 8
      %v5813 = vpop.permute.xlu0 %5812
      %5814 = vrot.lane.b32.xlu0 %v5793, 8
      %v5815 = vpop.permute.xlu0 %5814
      %5816 = vrot.lane.b32.xlu0 %v5794, 8
      %v5817 = vpop.permute.xlu0 %5816
      %5818 = vrot.lane.b32.xlu0 %v5795, 8
      %v5819 = vpop.permute.xlu0 %5818
      %5820 = vrot.lane.b32.xlu0 %v5796, 8
      %v5821 = vpop.permute.xlu0 %5820
      %5822 = vrot.lane.b32.xlu0 %v5797, 8
      %v5823 = vpop.permute.xlu0 %5822
      %5824 = vrot.lane.b32.xlu0 %v5798, 8
      %v5825 = vpop.permute.xlu0 %5824
      %5826 = vrot.lane.b32.xlu0 %v5799, 8
      %v5827 = vpop.permute.xlu0 %5826
      %5828 = vrot.lane.b32.xlu0 %v5800, 8
      %v5829 = vpop.permute.xlu0 %5828
      %5830 = vrot.lane.b32.xlu0 %v5801, 8
      %v5831 = vpop.permute.xlu0 %5830
      %5832 = vrot.lane.b32.xlu0 %v5802, 8
      %v5833 = vpop.permute.xlu0 %5832
      %5834 = vrot.lane.b32.xlu0 %v5803, 8
      %v5835 = vpop.permute.xlu0 %5834
      %v5836 = vunpack.c.l.b16 %v5583
      %v5837 = vunpack.c.l.b16 %v5586
      %v5838 = vunpack.c.l.b16 %v5590
      %v5839 = vunpack.c.l.b16 %v5593
      %v5840 = vunpack.c.l.b16 %v5597
      %v5841 = vunpack.c.l.b16 %v5600
      %v5842 = vunpack.c.l.b16 %v5604
      %v5843 = vunpack.c.l.b16 %v5607
      %v5844 = vunpack.c.l.b16 %v5611
      %v5845 = vunpack.c.l.b16 %v5614
      %v5846 = vunpack.c.l.b16 %v5618
      %v5847 = vunpack.c.l.b16 %v5621
      %v5848 = vunpack.c.l.b16 %v5625
      %v5849 = vunpack.c.l.b16 %v5628
      %v5850 = vunpack.c.l.b16 %v5632
      %v5851 = vunpack.c.l.b16 %v5635
      %v5852 = vunpack.c.l.b16 %v5639
      %v5853 = vunpack.c.l.b16 %v5642
      %v5854 = vunpack.c.l.b16 %v5646
      %v5855 = vunpack.c.l.b16 %v5649
      %v5856 = vunpack.c.l.b16 %v5653
      %v5857 = vunpack.c.l.b16 %v5656
      %v5858 = vunpack.c.l.b16 %v5660
      %v5859 = vunpack.c.l.b16 %v5663
      %v5860 = vunpack.c.l.b16 %v5667
      %v5861 = vunpack.c.l.b16 %v5670
      %v5862 = vunpack.c.l.b16 %v5674
      %v5863 = vunpack.c.l.b16 %v5677
      %v5864 = vunpack.c.l.b16 %v5681
      %v5865 = vunpack.c.l.b16 %v5684
      %v5866 = vunpack.c.l.b16 %v5688
      %v5867 = vunpack.c.l.b16 %v5691
      %v5868 = vpack.c.b16 %v5837, %v5836
      %v5869 = vpack.c.b16 %v5839, %v5838
      %v5870 = vpack.c.b16 %v5841, %v5840
      %v5871 = vpack.c.b16 %v5843, %v5842
      %v5872 = vpack.c.b16 %v5845, %v5844
      %v5873 = vpack.c.b16 %v5847, %v5846
      %v5874 = vpack.c.b16 %v5849, %v5848
      %v5875 = vpack.c.b16 %v5851, %v5850
      %v5876 = vpack.c.b16 %v5853, %v5852
      %v5877 = vpack.c.b16 %v5855, %v5854
      %v5878 = vpack.c.b16 %v5857, %v5856
      %v5879 = vpack.c.b16 %v5859, %v5858
      %v5880 = vpack.c.b16 %v5861, %v5860
      %v5881 = vpack.c.b16 %v5863, %v5862
      %v5882 = vpack.c.b16 %v5865, %v5864
      %v5883 = vpack.c.b16 %v5867, %v5866
      %5884 = vrot.lane.b32.xlu0 %v5868, 16
      %v5885 = vpop.permute.xlu0 %5884
      %5886 = vrot.lane.b32.xlu0 %v5869, 16
      %v5887 = vpop.permute.xlu0 %5886
      %5888 = vrot.lane.b32.xlu0 %v5870, 16
      %v5889 = vpop.permute.xlu0 %5888
      %5890 = vrot.lane.b32.xlu0 %v5871, 16
      %v5891 = vpop.permute.xlu0 %5890
      %5892 = vrot.lane.b32.xlu0 %v5872, 16
      %v5893 = vpop.permute.xlu0 %5892
      %5894 = vrot.lane.b32.xlu0 %v5873, 16
      %v5895 = vpop.permute.xlu0 %5894
      %5896 = vrot.lane.b32.xlu0 %v5874, 16
      %v5897 = vpop.permute.xlu0 %5896
      %5898 = vrot.lane.b32.xlu0 %v5875, 16
      %v5899 = vpop.permute.xlu0 %5898
      %5900 = vrot.lane.b32.xlu0 %v5876, 16
      %v5901 = vpop.permute.xlu0 %5900
      %5902 = vrot.lane.b32.xlu0 %v5877, 16
      %v5903 = vpop.permute.xlu0 %5902
      %5904 = vrot.lane.b32.xlu0 %v5878, 16
      %v5905 = vpop.permute.xlu0 %5904
      %5906 = vrot.lane.b32.xlu0 %v5879, 16
      %v5907 = vpop.permute.xlu0 %5906
      %5908 = vrot.lane.b32.xlu0 %v5880, 16
      %v5909 = vpop.permute.xlu0 %5908
      %5910 = vrot.lane.b32.xlu0 %v5881, 16
      %v5911 = vpop.permute.xlu0 %5910
      %5912 = vrot.lane.b32.xlu0 %v5882, 16
      %v5913 = vpop.permute.xlu0 %5912
      %5914 = vrot.lane.b32.xlu0 %v5883, 16
      %v5915 = vpop.permute.xlu0 %5914
      %v5918 = vsel %vm1988, %v5740, %v5805
      %v5921 = vsel %vm1988, %v5741, %v5807
      %v5924 = vsel %vm1988, %v5742, %v5809
      %v5927 = vsel %vm1988, %v5743, %v5811
      %v5930 = vsel %vm1988, %v5744, %v5813
      %v5933 = vsel %vm1988, %v5745, %v5815
      %v5936 = vsel %vm1988, %v5746, %v5817
      %v5939 = vsel %vm1988, %v5747, %v5819
      %v5942 = vsel %vm1988, %v5748, %v5821
      %v5945 = vsel %vm1988, %v5749, %v5823
      %v5948 = vsel %vm1988, %v5750, %v5825
      %v5951 = vsel %vm1988, %v5751, %v5827
      %v5954 = vsel %vm1988, %v5752, %v5829
      %v5957 = vsel %vm1988, %v5753, %v5831
      %v5960 = vsel %vm1988, %v5754, %v5833
      %v5963 = vsel %vm1988, %v5755, %v5835
      %v5965 = vsel %vm2037, %v5918, %v5885
      %v5967 = vsel %vm2037, %v5921, %v5887
      %v5969 = vsel %vm2037, %v5924, %v5889
      %v5971 = vsel %vm2037, %v5927, %v5891
      %v5973 = vsel %vm2037, %v5930, %v5893
      %v5975 = vsel %vm2037, %v5933, %v5895
      %v5977 = vsel %vm2037, %v5936, %v5897
      %v5979 = vsel %vm2037, %v5939, %v5899
      %v5981 = vsel %vm2037, %v5942, %v5901
      %v5983 = vsel %vm2037, %v5945, %v5903
      %v5985 = vsel %vm2037, %v5948, %v5905
      %v5987 = vsel %vm2037, %v5951, %v5907
      %v5989 = vsel %vm2037, %v5954, %v5909
      %v5991 = vsel %vm2037, %v5957, %v5911
      %v5993 = vsel %vm2037, %v5960, %v5913
      %v5995 = vsel %vm2037, %v5963, %v5915
      %v5996 = vld [vmem:[%s3] sm:$0xf]
      %v5997 = vld [vmem:[%s3 + $0x4] sm:$0xf]
      %v5998 = vld [vmem:[%s3 + $0x8] sm:$0xf]
      %v5999 = vld [vmem:[%s4971] sm:$0xf]
      %v6000 = vld [vmem:[%s4971 + $0x4] sm:$0xf]
      %v6001 = vld [vmem:[%s4971 + $0xc] sm:$0xf]
      %v6002 = vld [vmem:[%s4971 + $0x10] sm:$0xf]
      %v6003 = vld [vmem:[%s4971 + $0x18] sm:$0xf]
      %v6004 = vld [vmem:[%s4971 + $0x1c] sm:$0xf]
      %v6005 = vld [vmem:[%s4971 + $0x24] sm:$0xf]
      %v6006 = vld [vmem:[%s4971 + $0x28] sm:$0xf]
      %v6007 = vld [vmem:[%s4971 + $0x30] sm:$0xf]
      %v6008 = vld [vmem:[%s4971 + $0x34] sm:$0xf]
      %v6009 = vld [vmem:[%s4971 + $0x3c] sm:$0xf]
      %v6010 = vld [vmem:[%s4971 + $0x40] sm:$0xf]
      %v6011 = vld [vmem:[%s4971 + $0x48] sm:$0xf]
      %v6012 = vld [vmem:[%s4971 + $0x4c] sm:$0xf]
      %v6013 = vld [vmem:[%s4971 + $0x54] sm:$0xf]
      %v6014 = vld [vmem:[%s4971 + $0x58] sm:$0xf]
      %v6015 = vld [vmem:[%s4971 + $0x60] sm:$0xf]
      %v6016 = vld [vmem:[%s4971 + $0x64] sm:$0xf]
      %v6017 = vld [vmem:[%s4971 + $0x6c] sm:$0xf]
      %v6018 = vld [vmem:[%s4971 + $0x70] sm:$0xf]
      %v6019 = vld [vmem:[%s4971 + $0x78] sm:$0xf]
      %v6020 = vld [vmem:[%s4971 + $0x7c] sm:$0xf]
      %v6021 = vld [vmem:[%s4971 + $0x84] sm:$0xf]
      %v6022 = vld [vmem:[%s4971 + $0x88] sm:$0xf]
      %v6023 = vld [vmem:[%s4971 + $0x90] sm:$0xf]
      %v6024 = vld [vmem:[%s4971 + $0x94] sm:$0xf]
      %v6025 = vld [vmem:[%s4971 + $0x9c] sm:$0xf]
      %v6026 = vld [vmem:[%s4971 + $0xa0] sm:$0xf]
      %v6027 = vld [vmem:[%s4971 + $0xa8] sm:$0xf]
      %v6028 = vld [vmem:[%s4971 + $0xac] sm:$0xf]
      %v6029 = vld [vmem:[%s4971 + $0xb4] sm:$0xf]
      %v6030 = vld [vmem:[%s4971 + $0xb8] sm:$0xf]
      %v6031 = vld [vmem:[%s4971 + $0x8] sm:$0x1]
      %v6032 = vld [vmem:[%s4971 + $0x14] sm:$0x1]
      %v6033 = vld [vmem:[%s4971 + $0x20] sm:$0x1]
      %v6034 = vld [vmem:[%s4971 + $0x2c] sm:$0x1]
      %v6035 = vld [vmem:[%s4971 + $0x38] sm:$0x1]
      %v6036 = vld [vmem:[%s4971 + $0x44] sm:$0x1]
      %v6037 = vld [vmem:[%s4971 + $0x50] sm:$0x1]
      %v6038 = vld [vmem:[%s4971 + $0x5c] sm:$0x1]
      %v6039 = vld [vmem:[%s4971 + $0x68] sm:$0x1]
      %v6040 = vld [vmem:[%s4971 + $0x74] sm:$0x1]
      %v6041 = vld [vmem:[%s4971 + $0x80] sm:$0x1]
      %v6042 = vld [vmem:[%s4971 + $0x8c] sm:$0x1]
      %v6043 = vld [vmem:[%s4971 + $0x98] sm:$0x1]
      %v6044 = vld [vmem:[%s4971 + $0xa4] sm:$0x1]
      %v6045 = vld [vmem:[%s4971 + $0xb0] sm:$0x1]
      %v6046 = vld [vmem:[%s4971 + $0xbc] sm:$0x1]
      %v6048 = vshrl.u32 %v5999, 16
      %v6050 = vrot.slane %v6048, 4
      %v6051 = vshll.u32 %v5999, 16
      %v6053 = vrot.slane %v6051, 5
      %v6054 = vor.u32 %v6050, %v6053
      %v6055 = vrot.slane %v6054, 4
      %v6057 = vshll.u32 %v6000, 16
      %v6059 = vrot.slane %v6057, 5
      %v6060 = vsel %vm1200, %v6055, %v6059
      %v6061 = vshrl.u32 %v6000, 16
      %v6063 = vrot.slane %v6061, 4
      %v6064 = vor.u32 %v6063, %v6059
      %v6065 = vrot.slane %v6064, 4
      %v6067 = vshll.u32 %v6031, 16
      %v6069 = vrot.slane %v6067, 5
      %v6070 = vsel %vm1200, %v6065, %v6069
      %v6072 = vshrl.u32 %v6001, 16
      %v6074 = vrot.slane %v6072, 4
      %v6075 = vshll.u32 %v6001, 16
      %v6077 = vrot.slane %v6075, 5
      %v6078 = vor.u32 %v6074, %v6077
      %v6079 = vrot.slane %v6078, 4
      %v6081 = vshll.u32 %v6002, 16
      %v6083 = vrot.slane %v6081, 5
      %v6084 = vsel %vm1200, %v6079, %v6083
      %v6085 = vshrl.u32 %v6002, 16
      %v6087 = vrot.slane %v6085, 4
      %v6088 = vor.u32 %v6087, %v6083
      %v6089 = vrot.slane %v6088, 4
      %v6091 = vshll.u32 %v6032, 16
      %v6093 = vrot.slane %v6091, 5
      %v6094 = vsel %vm1200, %v6089, %v6093
      %v6096 = vshrl.u32 %v6003, 16
      %v6098 = vrot.slane %v6096, 4
      %v6099 = vshll.u32 %v6003, 16
      %v6101 = vrot.slane %v6099, 5
      %v6102 = vor.u32 %v6098, %v6101
      %v6103 = vrot.slane %v6102, 4
      %v6105 = vshll.u32 %v6004, 16
      %v6107 = vrot.slane %v6105, 5
      %v6108 = vsel %vm1200, %v6103, %v6107
      %v6109 = vshrl.u32 %v6004, 16
      %v6111 = vrot.slane %v6109, 4
      %v6112 = vor.u32 %v6111, %v6107
      %v6113 = vrot.slane %v6112, 4
      %v6115 = vshll.u32 %v6033, 16
      %v6117 = vrot.slane %v6115, 5
      %v6118 = vsel %vm1200, %v6113, %v6117
      %v6120 = vshrl.u32 %v6005, 16
      %v6122 = vrot.slane %v6120, 4
      %v6123 = vshll.u32 %v6005, 16
      %v6125 = vrot.slane %v6123, 5
      %v6126 = vor.u32 %v6122, %v6125
      %v6127 = vrot.slane %v6126, 4
      %v6129 = vshll.u32 %v6006, 16
      %v6131 = vrot.slane %v6129, 5
      %v6132 = vsel %vm1200, %v6127, %v6131
      %v6133 = vshrl.u32 %v6006, 16
      %v6135 = vrot.slane %v6133, 4
      %v6136 = vor.u32 %v6135, %v6131
      %v6137 = vrot.slane %v6136, 4
      %v6139 = vshll.u32 %v6034, 16
      %v6141 = vrot.slane %v6139, 5
      %v6142 = vsel %vm1200, %v6137, %v6141
      %v6144 = vshrl.u32 %v6007, 16
      %v6146 = vrot.slane %v6144, 4
      %v6147 = vshll.u32 %v6007, 16
      %v6149 = vrot.slane %v6147, 5
      %v6150 = vor.u32 %v6146, %v6149
      %v6151 = vrot.slane %v6150, 4
      %v6153 = vshll.u32 %v6008, 16
      %v6155 = vrot.slane %v6153, 5
      %v6156 = vsel %vm1200, %v6151, %v6155
      %v6157 = vshrl.u32 %v6008, 16
      %v6159 = vrot.slane %v6157, 4
      %v6160 = vor.u32 %v6159, %v6155
      %v6161 = vrot.slane %v6160, 4
      %v6163 = vshll.u32 %v6035, 16
      %v6165 = vrot.slane %v6163, 5
      %v6166 = vsel %vm1200, %v6161, %v6165
      %v6168 = vshrl.u32 %v6009, 16
      %v6170 = vrot.slane %v6168, 4
      %v6171 = vshll.u32 %v6009, 16
      %v6173 = vrot.slane %v6171, 5
      %v6174 = vor.u32 %v6170, %v6173
      %v6175 = vrot.slane %v6174, 4
      %v6177 = vshll.u32 %v6010, 16
      %v6179 = vrot.slane %v6177, 5
      %v6180 = vsel %vm1200, %v6175, %v6179
      %v6181 = vshrl.u32 %v6010, 16
      %v6183 = vrot.slane %v6181, 4
      %v6184 = vor.u32 %v6183, %v6179
      %v6185 = vrot.slane %v6184, 4
      %v6187 = vshll.u32 %v6036, 16
      %v6189 = vrot.slane %v6187, 5
      %v6190 = vsel %vm1200, %v6185, %v6189
      %v6192 = vshrl.u32 %v6011, 16
      %v6194 = vrot.slane %v6192, 4
      %v6195 = vshll.u32 %v6011, 16
      %v6197 = vrot.slane %v6195, 5
      %v6198 = vor.u32 %v6194, %v6197
      %v6199 = vrot.slane %v6198, 4
      %v6201 = vshll.u32 %v6012, 16
      %v6203 = vrot.slane %v6201, 5
      %v6204 = vsel %vm1200, %v6199, %v6203
      %v6205 = vshrl.u32 %v6012, 16
      %v6207 = vrot.slane %v6205, 4
      %v6208 = vor.u32 %v6207, %v6203
      %v6209 = vrot.slane %v6208, 4
      %v6211 = vshll.u32 %v6037, 16
      %v6213 = vrot.slane %v6211, 5
      %v6214 = vsel %vm1200, %v6209, %v6213
      %v6216 = vshrl.u32 %v6013, 16
      %v6218 = vrot.slane %v6216, 4
      %v6219 = vshll.u32 %v6013, 16
      %v6221 = vrot.slane %v6219, 5
      %v6222 = vor.u32 %v6218, %v6221
      %v6223 = vrot.slane %v6222, 4
      %v6225 = vshll.u32 %v6014, 16
      %v6227 = vrot.slane %v6225, 5
      %v6228 = vsel %vm1200, %v6223, %v6227
      %v6229 = vshrl.u32 %v6014, 16
      %v6231 = vrot.slane %v6229, 4
      %v6232 = vor.u32 %v6231, %v6227
      %v6233 = vrot.slane %v6232, 4
      %v6235 = vshll.u32 %v6038, 16
      %v6237 = vrot.slane %v6235, 5
      %v6238 = vsel %vm1200, %v6233, %v6237
      %v6240 = vshrl.u32 %v6015, 16
      %v6242 = vrot.slane %v6240, 4
      %v6243 = vshll.u32 %v6015, 16
      %v6245 = vrot.slane %v6243, 5
      %v6246 = vor.u32 %v6242, %v6245
      %v6247 = vrot.slane %v6246, 4
      %v6249 = vshll.u32 %v6016, 16
      %v6251 = vrot.slane %v6249, 5
      %v6252 = vsel %vm1200, %v6247, %v6251
      %v6253 = vshrl.u32 %v6016, 16
      %v6255 = vrot.slane %v6253, 4
      %v6256 = vor.u32 %v6255, %v6251
      %v6257 = vrot.slane %v6256, 4
      %v6259 = vshll.u32 %v6039, 16
      %v6261 = vrot.slane %v6259, 5
      %v6262 = vsel %vm1200, %v6257, %v6261
      %v6264 = vshrl.u32 %v6017, 16
      %v6266 = vrot.slane %v6264, 4
      %v6267 = vshll.u32 %v6017, 16
      %v6269 = vrot.slane %v6267, 5
      %v6270 = vor.u32 %v6266, %v6269
      %v6271 = vrot.slane %v6270, 4
      %v6273 = vshll.u32 %v6018, 16
      %v6275 = vrot.slane %v6273, 5
      %v6276 = vsel %vm1200, %v6271, %v6275
      %v6277 = vshrl.u32 %v6018, 16
      %v6279 = vrot.slane %v6277, 4
      %v6280 = vor.u32 %v6279, %v6275
      %v6281 = vrot.slane %v6280, 4
      %v6283 = vshll.u32 %v6040, 16
      %v6285 = vrot.slane %v6283, 5
      %v6286 = vsel %vm1200, %v6281, %v6285
      %v6288 = vshrl.u32 %v6019, 16
      %v6290 = vrot.slane %v6288, 4
      %v6291 = vshll.u32 %v6019, 16
      %v6293 = vrot.slane %v6291, 5
      %v6294 = vor.u32 %v6290, %v6293
      %v6295 = vrot.slane %v6294, 4
      %v6297 = vshll.u32 %v6020, 16
      %v6299 = vrot.slane %v6297, 5
      %v6300 = vsel %vm1200, %v6295, %v6299
      %v6301 = vshrl.u32 %v6020, 16
      %v6303 = vrot.slane %v6301, 4
      %v6304 = vor.u32 %v6303, %v6299
      %v6305 = vrot.slane %v6304, 4
      %v6307 = vshll.u32 %v6041, 16
      %v6309 = vrot.slane %v6307, 5
      %v6310 = vsel %vm1200, %v6305, %v6309
      %v6312 = vshrl.u32 %v6021, 16
      %v6314 = vrot.slane %v6312, 4
      %v6315 = vshll.u32 %v6021, 16
      %v6317 = vrot.slane %v6315, 5
      %v6318 = vor.u32 %v6314, %v6317
      %v6319 = vrot.slane %v6318, 4
      %v6321 = vshll.u32 %v6022, 16
      %v6323 = vrot.slane %v6321, 5
      %v6324 = vsel %vm1200, %v6319, %v6323
      %v6325 = vshrl.u32 %v6022, 16
      %v6327 = vrot.slane %v6325, 4
      %v6328 = vor.u32 %v6327, %v6323
      %v6329 = vrot.slane %v6328, 4
      %v6331 = vshll.u32 %v6042, 16
      %v6333 = vrot.slane %v6331, 5
      %v6334 = vsel %vm1200, %v6329, %v6333
      %v6336 = vshrl.u32 %v6023, 16
      %v6338 = vrot.slane %v6336, 4
      %v6339 = vshll.u32 %v6023, 16
      %v6341 = vrot.slane %v6339, 5
      %v6342 = vor.u32 %v6338, %v6341
      %v6343 = vrot.slane %v6342, 4
      %v6345 = vshll.u32 %v6024, 16
      %v6347 = vrot.slane %v6345, 5
      %v6348 = vsel %vm1200, %v6343, %v6347
      %v6349 = vshrl.u32 %v6024, 16
      %v6351 = vrot.slane %v6349, 4
      %v6352 = vor.u32 %v6351, %v6347
      %v6353 = vrot.slane %v6352, 4
      %v6355 = vshll.u32 %v6043, 16
      %v6357 = vrot.slane %v6355, 5
      %v6358 = vsel %vm1200, %v6353, %v6357
      %v6360 = vshrl.u32 %v6025, 16
      %v6362 = vrot.slane %v6360, 4
      %v6363 = vshll.u32 %v6025, 16
      %v6365 = vrot.slane %v6363, 5
      %v6366 = vor.u32 %v6362, %v6365
      %v6367 = vrot.slane %v6366, 4
      %v6369 = vshll.u32 %v6026, 16
      %v6371 = vrot.slane %v6369, 5
      %v6372 = vsel %vm1200, %v6367, %v6371
      %v6373 = vshrl.u32 %v6026, 16
      %v6375 = vrot.slane %v6373, 4
      %v6376 = vor.u32 %v6375, %v6371
      %v6377 = vrot.slane %v6376, 4
      %v6379 = vshll.u32 %v6044, 16
      %v6381 = vrot.slane %v6379, 5
      %v6382 = vsel %vm1200, %v6377, %v6381
      %v6384 = vshrl.u32 %v6027, 16
      %v6386 = vrot.slane %v6384, 4
      %v6387 = vshll.u32 %v6027, 16
      %v6389 = vrot.slane %v6387, 5
      %v6390 = vor.u32 %v6386, %v6389
      %v6391 = vrot.slane %v6390, 4
      %v6393 = vshll.u32 %v6028, 16
      %v6395 = vrot.slane %v6393, 5
      %v6396 = vsel %vm1200, %v6391, %v6395
      %v6397 = vshrl.u32 %v6028, 16
      %v6399 = vrot.slane %v6397, 4
      %v6400 = vor.u32 %v6399, %v6395
      %v6401 = vrot.slane %v6400, 4
      %v6403 = vshll.u32 %v6045, 16
      %v6405 = vrot.slane %v6403, 5
      %v6406 = vsel %vm1200, %v6401, %v6405
      %v6408 = vshrl.u32 %v6029, 16
      %v6410 = vrot.slane %v6408, 4
      %v6411 = vshll.u32 %v6029, 16
      %v6413 = vrot.slane %v6411, 5
      %v6414 = vor.u32 %v6410, %v6413
      %v6415 = vrot.slane %v6414, 4
      %v6417 = vshll.u32 %v6030, 16
      %v6419 = vrot.slane %v6417, 5
      %v6420 = vsel %vm1200, %v6415, %v6419
      %v6421 = vshrl.u32 %v6030, 16
      %v6423 = vrot.slane %v6421, 4
      %v6424 = vor.u32 %v6423, %v6419
      %v6425 = vrot.slane %v6424, 4
      %v6427 = vshll.u32 %v6046, 16
      %v6429 = vrot.slane %v6427, 5
      %v6430 = vsel %vm1200, %v6425, %v6429
      %v6431 = vld [vmem:[%s4971] sm:$0xe]
      %v6432 = vld [vmem:[%s4971 + $0xc] sm:$0xe]
      %v6433 = vld [vmem:[%s4971 + $0x18] sm:$0xe]
      %v6434 = vld [vmem:[%s4971 + $0x24] sm:$0xe]
      %v6435 = vld [vmem:[%s4971 + $0x30] sm:$0xe]
      %v6436 = vld [vmem:[%s4971 + $0x3c] sm:$0xe]
      %v6437 = vld [vmem:[%s4971 + $0x48] sm:$0xe]
      %v6438 = vld [vmem:[%s4971 + $0x54] sm:$0xe]
      %v6439 = vld [vmem:[%s4971 + $0x60] sm:$0xe]
      %v6440 = vld [vmem:[%s4971 + $0x6c] sm:$0xe]
      %v6441 = vld [vmem:[%s4971 + $0x78] sm:$0xe]
      %v6442 = vld [vmem:[%s4971 + $0x84] sm:$0xe]
      %v6443 = vld [vmem:[%s4971 + $0x90] sm:$0xe]
      %v6444 = vld [vmem:[%s4971 + $0x9c] sm:$0xe]
      %v6445 = vld [vmem:[%s4971 + $0xa8] sm:$0xe]
      %v6446 = vld [vmem:[%s4971 + $0xb4] sm:$0xe]
      %v6495 = vrot.slane %v6431, 5
      %v6496 = vrot.slane %v6495, 4
      %v6497 = vrot.slane %v6000, 5
      %v6498 = vsel %vm1651, %v6496, %v6497
      %v6499 = vrot.slane %v6497, 4
      %v6500 = vrot.slane %v6031, 5
      %v6501 = vsel %vm1651, %v6499, %v6500
      %v6502 = vrot.slane %v6432, 5
      %v6503 = vrot.slane %v6502, 4
      %v6504 = vrot.slane %v6002, 5
      %v6505 = vsel %vm1651, %v6503, %v6504
      %v6506 = vrot.slane %v6504, 4
      %v6507 = vrot.slane %v6032, 5
      %v6508 = vsel %vm1651, %v6506, %v6507
      %v6509 = vrot.slane %v6433, 5
      %v6510 = vrot.slane %v6509, 4
      %v6511 = vrot.slane %v6004, 5
      %v6512 = vsel %vm1651, %v6510, %v6511
      %v6513 = vrot.slane %v6511, 4
      %v6514 = vrot.slane %v6033, 5
      %v6515 = vsel %vm1651, %v6513, %v6514
      %v6516 = vrot.slane %v6434, 5
      %v6517 = vrot.slane %v6516, 4
      %v6518 = vrot.slane %v6006, 5
      %v6519 = vsel %vm1651, %v6517, %v6518
      %v6520 = vrot.slane %v6518, 4
      %v6521 = vrot.slane %v6034, 5
      %v6522 = vsel %vm1651, %v6520, %v6521
      %v6523 = vrot.slane %v6435, 5
      %v6524 = vrot.slane %v6523, 4
      %v6525 = vrot.slane %v6008, 5
      %v6526 = vsel %vm1651, %v6524, %v6525
      %v6527 = vrot.slane %v6525, 4
      %v6528 = vrot.slane %v6035, 5
      %v6529 = vsel %vm1651, %v6527, %v6528
      %v6530 = vrot.slane %v6436, 5
      %v6531 = vrot.slane %v6530, 4
      %v6532 = vrot.slane %v6010, 5
      %v6533 = vsel %vm1651, %v6531, %v6532
      %v6534 = vrot.slane %v6532, 4
      %v6535 = vrot.slane %v6036, 5
      %v6536 = vsel %vm1651, %v6534, %v6535
      %v6537 = vrot.slane %v6437, 5
      %v6538 = vrot.slane %v6537, 4
      %v6539 = vrot.slane %v6012, 5
      %v6540 = vsel %vm1651, %v6538, %v6539
      %v6541 = vrot.slane %v6539, 4
      %v6542 = vrot.slane %v6037, 5
      %v6543 = vsel %vm1651, %v6541, %v6542
      %v6544 = vrot.slane %v6438, 5
      %v6545 = vrot.slane %v6544, 4
      %v6546 = vrot.slane %v6014, 5
      %v6547 = vsel %vm1651, %v6545, %v6546
      %v6548 = vrot.slane %v6546, 4
      %v6549 = vrot.slane %v6038, 5
      %v6550 = vsel %vm1651, %v6548, %v6549
      %v6551 = vrot.slane %v6439, 5
      %v6552 = vrot.slane %v6551, 4
      %v6553 = vrot.slane %v6016, 5
      %v6554 = vsel %vm1651, %v6552, %v6553
      %v6555 = vrot.slane %v6553, 4
      %v6556 = vrot.slane %v6039, 5
      %v6557 = vsel %vm1651, %v6555, %v6556
      %v6558 = vrot.slane %v6440, 5
      %v6559 = vrot.slane %v6558, 4
      %v6560 = vrot.slane %v6018, 5
      %v6561 = vsel %vm1651, %v6559, %v6560
      %v6562 = vrot.slane %v6560, 4
      %v6563 = vrot.slane %v6040, 5
      %v6564 = vsel %vm1651, %v6562, %v6563
      %v6565 = vrot.slane %v6441, 5
      %v6566 = vrot.slane %v6565, 4
      %v6567 = vrot.slane %v6020, 5
      %v6568 = vsel %vm1651, %v6566, %v6567
      %v6569 = vrot.slane %v6567, 4
      %v6570 = vrot.slane %v6041, 5
      %v6571 = vsel %vm1651, %v6569, %v6570
      %v6572 = vrot.slane %v6442, 5
      %v6573 = vrot.slane %v6572, 4
      %v6574 = vrot.slane %v6022, 5
      %v6575 = vsel %vm1651, %v6573, %v6574
      %v6576 = vrot.slane %v6574, 4
      %v6577 = vrot.slane %v6042, 5
      %v6578 = vsel %vm1651, %v6576, %v6577
      %v6579 = vrot.slane %v6443, 5
      %v6580 = vrot.slane %v6579, 4
      %v6581 = vrot.slane %v6024, 5
      %v6582 = vsel %vm1651, %v6580, %v6581
      %v6583 = vrot.slane %v6581, 4
      %v6584 = vrot.slane %v6043, 5
      %v6585 = vsel %vm1651, %v6583, %v6584
      %v6586 = vrot.slane %v6444, 5
      %v6587 = vrot.slane %v6586, 4
      %v6588 = vrot.slane %v6026, 5
      %v6589 = vsel %vm1651, %v6587, %v6588
      %v6590 = vrot.slane %v6588, 4
      %v6591 = vrot.slane %v6044, 5
      %v6592 = vsel %vm1651, %v6590, %v6591
      %v6593 = vrot.slane %v6445, 5
      %v6594 = vrot.slane %v6593, 4
      %v6595 = vrot.slane %v6028, 5
      %v6596 = vsel %vm1651, %v6594, %v6595
      %v6597 = vrot.slane %v6595, 4
      %v6598 = vrot.slane %v6045, 5
      %v6599 = vsel %vm1651, %v6597, %v6598
      %v6600 = vrot.slane %v6446, 5
      %v6601 = vrot.slane %v6600, 4
      %v6602 = vrot.slane %v6030, 5
      %v6603 = vsel %vm1651, %v6601, %v6602
      %v6604 = vrot.slane %v6602, 4
      %v6605 = vrot.slane %v6046, 5
      %v6606 = vsel %vm1651, %v6604, %v6605
      %v6623 = vunpack.c.l.b16 %v5999
      %v6624 = vunpack.c.l.b16 %v6000
      %v6625 = vunpack.c.l.b16 %v6001
      %v6626 = vunpack.c.l.b16 %v6002
      %v6627 = vunpack.c.l.b16 %v6003
      %v6628 = vunpack.c.l.b16 %v6004
      %v6629 = vunpack.c.l.b16 %v6005
      %v6630 = vunpack.c.l.b16 %v6006
      %v6631 = vunpack.c.l.b16 %v6007
      %v6632 = vunpack.c.l.b16 %v6008
      %v6633 = vunpack.c.l.b16 %v6009
      %v6634 = vunpack.c.l.b16 %v6010
      %v6635 = vunpack.c.l.b16 %v6011
      %v6636 = vunpack.c.l.b16 %v6012
      %v6637 = vunpack.c.l.b16 %v6013
      %v6638 = vunpack.c.l.b16 %v6014
      %v6639 = vunpack.c.l.b16 %v6015
      %v6640 = vunpack.c.l.b16 %v6016
      %v6641 = vunpack.c.l.b16 %v6017
      %v6642 = vunpack.c.l.b16 %v6018
      %v6643 = vunpack.c.l.b16 %v6019
      %v6644 = vunpack.c.l.b16 %v6020
      %v6645 = vunpack.c.l.b16 %v6021
      %v6646 = vunpack.c.l.b16 %v6022
      %v6647 = vunpack.c.l.b16 %v6023
      %v6648 = vunpack.c.l.b16 %v6024
      %v6649 = vunpack.c.l.b16 %v6025
      %v6650 = vunpack.c.l.b16 %v6026
      %v6651 = vunpack.c.l.b16 %v6027
      %v6652 = vunpack.c.l.b16 %v6028
      %v6653 = vunpack.c.l.b16 %v6029
      %v6654 = vunpack.c.l.b16 %v6030
      %v6655 = vpack.c.b16 %v6624, %v6623
      %v6656 = vpack.c.b16 %v6626, %v6625
      %v6657 = vpack.c.b16 %v6628, %v6627
      %v6658 = vpack.c.b16 %v6630, %v6629
      %v6659 = vpack.c.b16 %v6632, %v6631
      %v6660 = vpack.c.b16 %v6634, %v6633
      %v6661 = vpack.c.b16 %v6636, %v6635
      %v6662 = vpack.c.b16 %v6638, %v6637
      %v6663 = vpack.c.b16 %v6640, %v6639
      %v6664 = vpack.c.b16 %v6642, %v6641
      %v6665 = vpack.c.b16 %v6644, %v6643
      %v6666 = vpack.c.b16 %v6646, %v6645
      %v6667 = vpack.c.b16 %v6648, %v6647
      %v6668 = vpack.c.b16 %v6650, %v6649
      %v6669 = vpack.c.b16 %v6652, %v6651
      %v6670 = vpack.c.b16 %v6654, %v6653
      %v6671 = vunpack.c.l.b16 %v6060
      %v6672 = vunpack.c.l.b16 %v6070
      %v6673 = vunpack.c.l.b16 %v6084
      %v6674 = vunpack.c.l.b16 %v6094
      %v6675 = vunpack.c.l.b16 %v6108
      %v6676 = vunpack.c.l.b16 %v6118
      %v6677 = vunpack.c.l.b16 %v6132
      %v6678 = vunpack.c.l.b16 %v6142
      %v6679 = vunpack.c.l.b16 %v6156
      %v6680 = vunpack.c.l.b16 %v6166
      %v6681 = vunpack.c.l.b16 %v6180
      %v6682 = vunpack.c.l.b16 %v6190
      %v6683 = vunpack.c.l.b16 %v6204
      %v6684 = vunpack.c.l.b16 %v6214
      %v6685 = vunpack.c.l.b16 %v6228
      %v6686 = vunpack.c.l.b16 %v6238
      %v6687 = vunpack.c.l.b16 %v6252
      %v6688 = vunpack.c.l.b16 %v6262
      %v6689 = vunpack.c.l.b16 %v6276
      %v6690 = vunpack.c.l.b16 %v6286
      %v6691 = vunpack.c.l.b16 %v6300
      %v6692 = vunpack.c.l.b16 %v6310
      %v6693 = vunpack.c.l.b16 %v6324
      %v6694 = vunpack.c.l.b16 %v6334
      %v6695 = vunpack.c.l.b16 %v6348
      %v6696 = vunpack.c.l.b16 %v6358
      %v6697 = vunpack.c.l.b16 %v6372
      %v6698 = vunpack.c.l.b16 %v6382
      %v6699 = vunpack.c.l.b16 %v6396
      %v6700 = vunpack.c.l.b16 %v6406
      %v6701 = vunpack.c.l.b16 %v6420
      %v6702 = vunpack.c.l.b16 %v6430
      %v6703 = vpack.c.b16 %v6672, %v6671
      %v6704 = vpack.c.b16 %v6674, %v6673
      %v6705 = vpack.c.b16 %v6676, %v6675
      %v6706 = vpack.c.b16 %v6678, %v6677
      %v6707 = vpack.c.b16 %v6680, %v6679
      %v6708 = vpack.c.b16 %v6682, %v6681
      %v6709 = vpack.c.b16 %v6684, %v6683
      %v6710 = vpack.c.b16 %v6686, %v6685
      %v6711 = vpack.c.b16 %v6688, %v6687
      %v6712 = vpack.c.b16 %v6690, %v6689
      %v6713 = vpack.c.b16 %v6692, %v6691
      %v6714 = vpack.c.b16 %v6694, %v6693
      %v6715 = vpack.c.b16 %v6696, %v6695
      %v6716 = vpack.c.b16 %v6698, %v6697
      %v6717 = vpack.c.b16 %v6700, %v6699
      %v6718 = vpack.c.b16 %v6702, %v6701
      %6719 = vrot.lane.b32.xlu0 %v6703, 8
      %v6720 = vpop.permute.xlu0 %6719
      %6721 = vrot.lane.b32.xlu0 %v6704, 8
      %v6722 = vpop.permute.xlu0 %6721
      %6723 = vrot.lane.b32.xlu0 %v6705, 8
      %v6724 = vpop.permute.xlu0 %6723
      %6725 = vrot.lane.b32.xlu0 %v6706, 8
      %v6726 = vpop.permute.xlu0 %6725
      %6727 = vrot.lane.b32.xlu0 %v6707, 8
      %v6728 = vpop.permute.xlu0 %6727
      %6729 = vrot.lane.b32.xlu0 %v6708, 8
      %v6730 = vpop.permute.xlu0 %6729
      %6731 = vrot.lane.b32.xlu0 %v6709, 8
      %v6732 = vpop.permute.xlu0 %6731
      %6733 = vrot.lane.b32.xlu0 %v6710, 8
      %v6734 = vpop.permute.xlu0 %6733
      %6735 = vrot.lane.b32.xlu0 %v6711, 8
      %v6736 = vpop.permute.xlu0 %6735
      %6737 = vrot.lane.b32.xlu0 %v6712, 8
      %v6738 = vpop.permute.xlu0 %6737
      %6739 = vrot.lane.b32.xlu0 %v6713, 8
      %v6740 = vpop.permute.xlu0 %6739
      %6741 = vrot.lane.b32.xlu0 %v6714, 8
      %v6742 = vpop.permute.xlu0 %6741
      %6743 = vrot.lane.b32.xlu0 %v6715, 8
      %v6744 = vpop.permute.xlu0 %6743
      %6745 = vrot.lane.b32.xlu0 %v6716, 8
      %v6746 = vpop.permute.xlu0 %6745
      %6747 = vrot.lane.b32.xlu0 %v6717, 8
      %v6748 = vpop.permute.xlu0 %6747
      %6749 = vrot.lane.b32.xlu0 %v6718, 8
      %v6750 = vpop.permute.xlu0 %6749
      %v6751 = vunpack.c.l.b16 %v6498
      %v6752 = vunpack.c.l.b16 %v6501
      %v6753 = vunpack.c.l.b16 %v6505
      %v6754 = vunpack.c.l.b16 %v6508
      %v6755 = vunpack.c.l.b16 %v6512
      %v6756 = vunpack.c.l.b16 %v6515
      %v6757 = vunpack.c.l.b16 %v6519
      %v6758 = vunpack.c.l.b16 %v6522
      %v6759 = vunpack.c.l.b16 %v6526
      %v6760 = vunpack.c.l.b16 %v6529
      %v6761 = vunpack.c.l.b16 %v6533
      %v6762 = vunpack.c.l.b16 %v6536
      %v6763 = vunpack.c.l.b16 %v6540
      %v6764 = vunpack.c.l.b16 %v6543
      %v6765 = vunpack.c.l.b16 %v6547
      %v6766 = vunpack.c.l.b16 %v6550
      %v6767 = vunpack.c.l.b16 %v6554
      %v6768 = vunpack.c.l.b16 %v6557
      %v6769 = vunpack.c.l.b16 %v6561
      %v6770 = vunpack.c.l.b16 %v6564
      %v6771 = vunpack.c.l.b16 %v6568
      %v6772 = vunpack.c.l.b16 %v6571
      %v6773 = vunpack.c.l.b16 %v6575
      %v6774 = vunpack.c.l.b16 %v6578
      %v6775 = vunpack.c.l.b16 %v6582
      %v6776 = vunpack.c.l.b16 %v6585
      %v6777 = vunpack.c.l.b16 %v6589
      %v6778 = vunpack.c.l.b16 %v6592
      %v6779 = vunpack.c.l.b16 %v6596
      %v6780 = vunpack.c.l.b16 %v6599
      %v6781 = vunpack.c.l.b16 %v6603
      %v6782 = vunpack.c.l.b16 %v6606
      %v6783 = vpack.c.b16 %v6752, %v6751
      %v6784 = vpack.c.b16 %v6754, %v6753
      %v6785 = vpack.c.b16 %v6756, %v6755
      %v6786 = vpack.c.b16 %v6758, %v6757
      %v6787 = vpack.c.b16 %v6760, %v6759
      %v6788 = vpack.c.b16 %v6762, %v6761
      %v6789 = vpack.c.b16 %v6764, %v6763
      %v6790 = vpack.c.b16 %v6766, %v6765
      %v6791 = vpack.c.b16 %v6768, %v6767
      %v6792 = vpack.c.b16 %v6770, %v6769
      %v6793 = vpack.c.b16 %v6772, %v6771
      %v6794 = vpack.c.b16 %v6774, %v6773
      %v6795 = vpack.c.b16 %v6776, %v6775
      %v6796 = vpack.c.b16 %v6778, %v6777
      %v6797 = vpack.c.b16 %v6780, %v6779
      %v6798 = vpack.c.b16 %v6782, %v6781
      %6799 = vrot.lane.b32.xlu0 %v6783, 16
      %v6800 = vpop.permute.xlu0 %6799
      %6801 = vrot.lane.b32.xlu0 %v6784, 16
      %v6802 = vpop.permute.xlu0 %6801
      %6803 = vrot.lane.b32.xlu0 %v6785, 16
      %v6804 = vpop.permute.xlu0 %6803
      %6805 = vrot.lane.b32.xlu0 %v6786, 16
      %v6806 = vpop.permute.xlu0 %6805
      %6807 = vrot.lane.b32.xlu0 %v6787, 16
      %v6808 = vpop.permute.xlu0 %6807
      %6809 = vrot.lane.b32.xlu0 %v6788, 16
      %v6810 = vpop.permute.xlu0 %6809
      %6811 = vrot.lane.b32.xlu0 %v6789, 16
      %v6812 = vpop.permute.xlu0 %6811
      %6813 = vrot.lane.b32.xlu0 %v6790, 16
      %v6814 = vpop.permute.xlu0 %6813
      %6815 = vrot.lane.b32.xlu0 %v6791, 16
      %v6816 = vpop.permute.xlu0 %6815
      %6817 = vrot.lane.b32.xlu0 %v6792, 16
      %v6818 = vpop.permute.xlu0 %6817
      %6819 = vrot.lane.b32.xlu0 %v6793, 16
      %v6820 = vpop.permute.xlu0 %6819
      %6821 = vrot.lane.b32.xlu0 %v6794, 16
      %v6822 = vpop.permute.xlu0 %6821
      %6823 = vrot.lane.b32.xlu0 %v6795, 16
      %v6824 = vpop.permute.xlu0 %6823
      %6825 = vrot.lane.b32.xlu0 %v6796, 16
      %v6826 = vpop.permute.xlu0 %6825
      %6827 = vrot.lane.b32.xlu0 %v6797, 16
      %v6828 = vpop.permute.xlu0 %6827
      %6829 = vrot.lane.b32.xlu0 %v6798, 16
      %v6830 = vpop.permute.xlu0 %6829
      %v6833 = vsel %vm1988, %v6655, %v6720
      %v6836 = vsel %vm1988, %v6656, %v6722
      %v6839 = vsel %vm1988, %v6657, %v6724
      %v6842 = vsel %vm1988, %v6658, %v6726
      %v6845 = vsel %vm1988, %v6659, %v6728
      %v6848 = vsel %vm1988, %v6660, %v6730
      %v6851 = vsel %vm1988, %v6661, %v6732
      %v6854 = vsel %vm1988, %v6662, %v6734
      %v6857 = vsel %vm1988, %v6663, %v6736
      %v6860 = vsel %vm1988, %v6664, %v6738
      %v6863 = vsel %vm1988, %v6665, %v6740
      %v6866 = vsel %vm1988, %v6666, %v6742
      %v6869 = vsel %vm1988, %v6667, %v6744
      %v6872 = vsel %vm1988, %v6668, %v6746
      %v6875 = vsel %vm1988, %v6669, %v6748
      %v6878 = vsel %vm1988, %v6670, %v6750
      %v6880 = vsel %vm2037, %v6833, %v6800
      %v6882 = vsel %vm2037, %v6836, %v6802
      %v6884 = vsel %vm2037, %v6839, %v6804
      %v6886 = vsel %vm2037, %v6842, %v6806
      %v6888 = vsel %vm2037, %v6845, %v6808
      %v6890 = vsel %vm2037, %v6848, %v6810
      %v6892 = vsel %vm2037, %v6851, %v6812
      %v6894 = vsel %vm2037, %v6854, %v6814
      %v6896 = vsel %vm2037, %v6857, %v6816
      %v6898 = vsel %vm2037, %v6860, %v6818
      %v6900 = vsel %vm2037, %v6863, %v6820
      %v6902 = vsel %vm2037, %v6866, %v6822
      %v6904 = vsel %vm2037, %v6869, %v6824
      %v6906 = vsel %vm2037, %v6872, %v6826
      %v6908 = vsel %vm2037, %v6875, %v6828
      %v6910 = vsel %vm2037, %v6878, %v6830
      %v6911 = vld [vmem:[%s3 + $0xc] sm:$0xf]
      %v6912 = vld [vmem:[%s3 + $0x10] sm:$0xf]
      %v6913 = vld [vmem:[%s3 + $0x14] sm:$0xf]
      %v6917 = vunpack.c.l.b16 %v6911
      %v6918 = vunpack.c.l.b16 %v6912
      %v6919 = vunpack.c.l.b16 %v6913
      %v6920 = vpack.c.b16 %v6918, %v6917
      %v6921 = vpack.c.b16 %v6919, %v6919
      %v6923 = vsel %vm2997, %v6880, 0
      %v6925 = vsel %vm2997, %v6882, 0
      %v6927 = vsel %vm2997, %v6884, 0
      %v6929 = vsel %vm2997, %v6886, 0
      %v6931 = vsel %vm2997, %v6888, 0
      %v6933 = vsel %vm2997, %v6890, 0
      %v6935 = vsel %vm2997, %v6892, 0
      %v6937 = vsel %vm2997, %v6894, 0
      %v6939 = vsel %vm2997, %v6896, 0
      %v6941 = vsel %vm2997, %v6898, 0
      %v6943 = vsel %vm2997, %v6900, 0
      %v6945 = vsel %vm2997, %v6902, 0
      %v6947 = vsel %vm2997, %v6904, 0
      %v6949 = vsel %vm2997, %v6906, 0
      %v6951 = vsel %vm2997, %v6908, 0
      %v6953 = vsel %vm2997, %v6910, 0
      %v6956 = vsel %vm3030, %v6921, 0
      %6958 = vmatpush.bf16.msra.mxu0 0
      %6959 = vmatpush.bf16.msra.mxu0 0
      %6960 = vmatpush.bf16.msra.mxu0 0
      %6961 = vmatpush.bf16.msra.mxu0 0
      %6962 = vmatpush.bf16.msra.mxu0 0
      %6963 = vmatpush.bf16.msra.mxu0 0
      %6964 = vmatpush.bf16.msra.mxu0 %v6956
      %6965 = vmatpush.bf16.msra.mxu0 %v6920
      %6966 = vmatmul.bf16.gmra.mxu0 %v6923
      %v6967 = vpop.f32.mrf.mxu0
      %v6968 = vadd.f32 0.0, %v6967
      %v6969 = vpop.f32.mrf.mxu0
      %v6970 = vadd.f32 0.0, %v6969
      %6971 = vmatmul.bf16.gmra.mxu0 %v6925
      %v6972 = vpop.f32.mrf.mxu0
      %v6973 = vadd.f32 0.0, %v6972
      %v6974 = vpop.f32.mrf.mxu0
      %v6975 = vadd.f32 0.0, %v6974
      %6976 = vmatmul.bf16.gmra.mxu0 %v6927
      %v6977 = vpop.f32.mrf.mxu0
      %v6978 = vadd.f32 0.0, %v6977
      %v6979 = vpop.f32.mrf.mxu0
      %v6980 = vadd.f32 0.0, %v6979
      %6981 = vmatmul.bf16.gmra.mxu0 %v6929
      %v6982 = vpop.f32.mrf.mxu0
      %v6983 = vadd.f32 0.0, %v6982
      %v6984 = vpop.f32.mrf.mxu0
      %v6985 = vadd.f32 0.0, %v6984
      %6986 = vmatmul.bf16.gmra.mxu0 %v6931
      %v6987 = vpop.f32.mrf.mxu0
      %v6988 = vadd.f32 0.0, %v6987
      %v6989 = vpop.f32.mrf.mxu0
      %v6990 = vadd.f32 0.0, %v6989
      %6991 = vmatmul.bf16.gmra.mxu0 %v6933
      %v6992 = vpop.f32.mrf.mxu0
      %v6993 = vadd.f32 0.0, %v6992
      %v6994 = vpop.f32.mrf.mxu0
      %v6995 = vadd.f32 0.0, %v6994
      %6996 = vmatmul.bf16.gmra.mxu0 %v6935
      %v6997 = vpop.f32.mrf.mxu0
      %v6998 = vadd.f32 0.0, %v6997
      %v6999 = vpop.f32.mrf.mxu0
      %v7000 = vadd.f32 0.0, %v6999
      %7001 = vmatmul.bf16.gmra.mxu0 %v6937
      %v7002 = vpop.f32.mrf.mxu0
      %v7003 = vadd.f32 0.0, %v7002
      %v7004 = vpop.f32.mrf.mxu0
      %v7005 = vadd.f32 0.0, %v7004
      %7006 = vmatmul.bf16.gmra.mxu0 %v6939
      %v7007 = vpop.f32.mrf.mxu0
      %v7008 = vadd.f32 0.0, %v7007
      %v7009 = vpop.f32.mrf.mxu0
      %v7010 = vadd.f32 0.0, %v7009
      %7011 = vmatmul.bf16.gmra.mxu0 %v6941
      %v7012 = vpop.f32.mrf.mxu0
      %v7013 = vadd.f32 0.0, %v7012
      %v7014 = vpop.f32.mrf.mxu0
      %v7015 = vadd.f32 0.0, %v7014
      %7016 = vmatmul.bf16.gmra.mxu0 %v6943
      %v7017 = vpop.f32.mrf.mxu0
      %v7018 = vadd.f32 0.0, %v7017
      %v7019 = vpop.f32.mrf.mxu0
      %v7020 = vadd.f32 0.0, %v7019
      %7021 = vmatmul.bf16.gmra.mxu0 %v6945
      %v7022 = vpop.f32.mrf.mxu0
      %v7023 = vadd.f32 0.0, %v7022
      %v7024 = vpop.f32.mrf.mxu0
      %v7025 = vadd.f32 0.0, %v7024
      %7026 = vmatmul.bf16.gmra.mxu0 %v6947
      %v7027 = vpop.f32.mrf.mxu0
      %v7028 = vadd.f32 0.0, %v7027
      %v7029 = vpop.f32.mrf.mxu0
      %v7030 = vadd.f32 0.0, %v7029
      %7031 = vmatmul.bf16.gmra.mxu0 %v6949
      %v7032 = vpop.f32.mrf.mxu0
      %v7033 = vadd.f32 0.0, %v7032
      %v7034 = vpop.f32.mrf.mxu0
      %v7035 = vadd.f32 0.0, %v7034
      %7036 = vmatmul.bf16.gmra.mxu0 %v6951
      %v7037 = vpop.f32.mrf.mxu0
      %v7038 = vadd.f32 0.0, %v7037
      %v7039 = vpop.f32.mrf.mxu0
      %v7040 = vadd.f32 0.0, %v7039
      %7041 = vmatmul.bf16.gmra.mxu0 %v6953
      %v7042 = vpop.f32.mrf.mxu0
      %v7043 = vadd.f32 0.0, %v7042
      %v7044 = vpop.f32.mrf.mxu0
      %v7045 = vadd.f32 0.0, %v7044
      %7046 = vdwg.mxu0
      %v7050 = vunpack.c.l.b16 %v5996
      %v7051 = vunpack.c.l.b16 %v5997
      %v7052 = vunpack.c.l.b16 %v5998
      %v7053 = vpack.c.b16 %v7051, %v7050
      %v7054 = vpack.c.b16 %v7052, %v7052
      %v7056 = vsel %vm2997, %v5965, 0
      %v7058 = vsel %vm2997, %v5967, 0
      %v7060 = vsel %vm2997, %v5969, 0
      %v7062 = vsel %vm2997, %v5971, 0
      %v7064 = vsel %vm2997, %v5973, 0
      %v7066 = vsel %vm2997, %v5975, 0
      %v7068 = vsel %vm2997, %v5977, 0
      %v7070 = vsel %vm2997, %v5979, 0
      %v7072 = vsel %vm2997, %v5981, 0
      %v7074 = vsel %vm2997, %v5983, 0
      %v7076 = vsel %vm2997, %v5985, 0
      %v7078 = vsel %vm2997, %v5987, 0
      %v7080 = vsel %vm2997, %v5989, 0
      %v7082 = vsel %vm2997, %v5991, 0
      %v7084 = vsel %vm2997, %v5993, 0
      %v7086 = vsel %vm2997, %v5995, 0
      %v7089 = vsel %vm3030, %v7054, 0
      %7091 = vmatpush.bf16.msra.mxu0 0
      %7092 = vmatpush.bf16.msra.mxu0 0
      %7093 = vmatpush.bf16.msra.mxu0 0
      %7094 = vmatpush.bf16.msra.mxu0 0
      %7095 = vmatpush.bf16.msra.mxu0 0
      %7096 = vmatpush.bf16.msra.mxu0 0
      %7097 = vmatpush.bf16.msra.mxu0 %v7089
      %7098 = vmatpush.bf16.msra.mxu0 %v7053
      %7099 = vmatmul.bf16.gmra.mxu0 %v7056
      %v7100 = vpop.f32.mrf.mxu0
      %v7101 = vadd.f32 %v6968, %v7100
      %v7102 = vpop.f32.mrf.mxu0
      %v7103 = vadd.f32 %v6970, %v7102
      %7104 = vmatmul.bf16.gmra.mxu0 %v7058
      %v7105 = vpop.f32.mrf.mxu0
      %v7106 = vadd.f32 %v6973, %v7105
      %v7107 = vpop.f32.mrf.mxu0
      %v7108 = vadd.f32 %v6975, %v7107
      %7109 = vmatmul.bf16.gmra.mxu0 %v7060
      %v7110 = vpop.f32.mrf.mxu0
      %v7111 = vadd.f32 %v6978, %v7110
      %v7112 = vpop.f32.mrf.mxu0
      %v7113 = vadd.f32 %v6980, %v7112
      %7114 = vmatmul.bf16.gmra.mxu0 %v7062
      %v7115 = vpop.f32.mrf.mxu0
      %v7116 = vadd.f32 %v6983, %v7115
      %v7117 = vpop.f32.mrf.mxu0
      %v7118 = vadd.f32 %v6985, %v7117
      %7119 = vmatmul.bf16.gmra.mxu0 %v7064
      %v7120 = vpop.f32.mrf.mxu0
      %v7121 = vadd.f32 %v6988, %v7120
      %v7122 = vpop.f32.mrf.mxu0
      %v7123 = vadd.f32 %v6990, %v7122
      %7124 = vmatmul.bf16.gmra.mxu0 %v7066
      %v7125 = vpop.f32.mrf.mxu0
      %v7126 = vadd.f32 %v6993, %v7125
      %v7127 = vpop.f32.mrf.mxu0
      %v7128 = vadd.f32 %v6995, %v7127
      %7129 = vmatmul.bf16.gmra.mxu0 %v7068
      %v7130 = vpop.f32.mrf.mxu0
      %v7131 = vadd.f32 %v6998, %v7130
      %v7132 = vpop.f32.mrf.mxu0
      %v7133 = vadd.f32 %v7000, %v7132
      %7134 = vmatmul.bf16.gmra.mxu0 %v7070
      %v7135 = vpop.f32.mrf.mxu0
      %v7136 = vadd.f32 %v7003, %v7135
      %v7137 = vpop.f32.mrf.mxu0
      %v7138 = vadd.f32 %v7005, %v7137
      %7139 = vmatmul.bf16.gmra.mxu0 %v7072
      %v7140 = vpop.f32.mrf.mxu0
      %v7141 = vadd.f32 %v7008, %v7140
      %v7142 = vpop.f32.mrf.mxu0
      %v7143 = vadd.f32 %v7010, %v7142
      %7144 = vmatmul.bf16.gmra.mxu0 %v7074
      %v7145 = vpop.f32.mrf.mxu0
      %v7146 = vadd.f32 %v7013, %v7145
      %v7147 = vpop.f32.mrf.mxu0
      %v7148 = vadd.f32 %v7015, %v7147
      %7149 = vmatmul.bf16.gmra.mxu0 %v7076
      %v7150 = vpop.f32.mrf.mxu0
      %v7151 = vadd.f32 %v7018, %v7150
      %v7152 = vpop.f32.mrf.mxu0
      %v7153 = vadd.f32 %v7020, %v7152
      %7154 = vmatmul.bf16.gmra.mxu0 %v7078
      %v7155 = vpop.f32.mrf.mxu0
      %v7156 = vadd.f32 %v7023, %v7155
      %v7157 = vpop.f32.mrf.mxu0
      %v7158 = vadd.f32 %v7025, %v7157
      %7159 = vmatmul.bf16.gmra.mxu0 %v7080
      %v7160 = vpop.f32.mrf.mxu0
      %v7161 = vadd.f32 %v7028, %v7160
      %v7162 = vpop.f32.mrf.mxu0
      %v7163 = vadd.f32 %v7030, %v7162
      %7164 = vmatmul.bf16.gmra.mxu0 %v7082
      %v7165 = vpop.f32.mrf.mxu0
      %v7166 = vadd.f32 %v7033, %v7165
      %v7167 = vpop.f32.mrf.mxu0
      %v7168 = vadd.f32 %v7035, %v7167
      %7169 = vmatmul.bf16.gmra.mxu0 %v7084
      %v7170 = vpop.f32.mrf.mxu0
      %v7171 = vadd.f32 %v7038, %v7170
      %v7172 = vpop.f32.mrf.mxu0
      %v7173 = vadd.f32 %v7040, %v7172
      %7174 = vmatmul.bf16.gmra.mxu0 %v7086
      %v7175 = vpop.f32.mrf.mxu0
      %v7176 = vadd.f32 %v7043, %v7175
      %v7177 = vpop.f32.mrf.mxu0
      %v7178 = vadd.f32 %v7045, %v7177
      %7179 = vdwg.mxu0
      %s7180 = scalar_lea.vmem [#allocation3], 24
      %v7181 = vld [vmem:[%s7180] sm:$0xf]
      %v7182 = vld [vmem:[%s7180 + $0x4] sm:$0xf]
      %v7183 = vld [vmem:[%s7180 + $0xc] sm:$0xf]
      %v7184 = vld [vmem:[%s7180 + $0x10] sm:$0xf]
      %v7185 = vld [vmem:[%s7180 + $0x18] sm:$0xf]
      %v7186 = vld [vmem:[%s7180 + $0x1c] sm:$0xf]
      %v7187 = vld [vmem:[%s7180 + $0x24] sm:$0xf]
      %v7188 = vld [vmem:[%s7180 + $0x28] sm:$0xf]
      %v7189 = vld [vmem:[%s7180 + $0x30] sm:$0xf]
      %v7190 = vld [vmem:[%s7180 + $0x34] sm:$0xf]
      %v7191 = vld [vmem:[%s7180 + $0x3c] sm:$0xf]
      %v7192 = vld [vmem:[%s7180 + $0x40] sm:$0xf]
      %v7193 = vld [vmem:[%s7180 + $0x48] sm:$0xf]
      %v7194 = vld [vmem:[%s7180 + $0x4c] sm:$0xf]
      %v7195 = vld [vmem:[%s7180 + $0x54] sm:$0xf]
      %v7196 = vld [vmem:[%s7180 + $0x58] sm:$0xf]
      %v7197 = vld [vmem:[%s7180 + $0x60] sm:$0xf]
      %v7198 = vld [vmem:[%s7180 + $0x64] sm:$0xf]
      %v7199 = vld [vmem:[%s7180 + $0x6c] sm:$0xf]
      %v7200 = vld [vmem:[%s7180 + $0x70] sm:$0xf]
      %v7201 = vld [vmem:[%s7180 + $0x78] sm:$0xf]
      %v7202 = vld [vmem:[%s7180 + $0x7c] sm:$0xf]
      %v7203 = vld [vmem:[%s7180 + $0x84] sm:$0xf]
      %v7204 = vld [vmem:[%s7180 + $0x88] sm:$0xf]
      %v7205 = vld [vmem:[%s7180 + $0x90] sm:$0xf]
      %v7206 = vld [vmem:[%s7180 + $0x94] sm:$0xf]
      %v7207 = vld [vmem:[%s7180 + $0x9c] sm:$0xf]
      %v7208 = vld [vmem:[%s7180 + $0xa0] sm:$0xf]
      %v7209 = vld [vmem:[%s7180 + $0xa8] sm:$0xf]
      %v7210 = vld [vmem:[%s7180 + $0xac] sm:$0xf]
      %v7211 = vld [vmem:[%s7180 + $0xb4] sm:$0xf]
      %v7212 = vld [vmem:[%s7180 + $0xb8] sm:$0xf]
      %v7213 = vld [vmem:[%s7180 + $0x8] sm:$0x1]
      %v7214 = vld [vmem:[%s7180 + $0x14] sm:$0x1]
      %v7215 = vld [vmem:[%s7180 + $0x20] sm:$0x1]
      %v7216 = vld [vmem:[%s7180 + $0x2c] sm:$0x1]
      %v7217 = vld [vmem:[%s7180 + $0x38] sm:$0x1]
      %v7218 = vld [vmem:[%s7180 + $0x44] sm:$0x1]
      %v7219 = vld [vmem:[%s7180 + $0x50] sm:$0x1]
      %v7220 = vld [vmem:[%s7180 + $0x5c] sm:$0x1]
      %v7221 = vld [vmem:[%s7180 + $0x68] sm:$0x1]
      %v7222 = vld [vmem:[%s7180 + $0x74] sm:$0x1]
      %v7223 = vld [vmem:[%s7180 + $0x80] sm:$0x1]
      %v7224 = vld [vmem:[%s7180 + $0x8c] sm:$0x1]
      %v7225 = vld [vmem:[%s7180 + $0x98] sm:$0x1]
      %v7226 = vld [vmem:[%s7180 + $0xa4] sm:$0x1]
      %v7227 = vld [vmem:[%s7180 + $0xb0] sm:$0x1]
      %v7228 = vld [vmem:[%s7180 + $0xbc] sm:$0x1]
      %v7230 = vshrl.u32 %v7181, 16
      %v7232 = vrot.slane %v7230, 4
      %v7233 = vshll.u32 %v7181, 16
      %v7235 = vrot.slane %v7233, 5
      %v7236 = vor.u32 %v7232, %v7235
      %v7237 = vrot.slane %v7236, 4
      %v7239 = vshll.u32 %v7182, 16
      %v7241 = vrot.slane %v7239, 5
      %v7242 = vsel %vm1200, %v7237, %v7241
      %v7243 = vshrl.u32 %v7182, 16
      %v7245 = vrot.slane %v7243, 4
      %v7246 = vor.u32 %v7245, %v7241
      %v7247 = vrot.slane %v7246, 4
      %v7249 = vshll.u32 %v7213, 16
      %v7251 = vrot.slane %v7249, 5
      %v7252 = vsel %vm1200, %v7247, %v7251
      %v7254 = vshrl.u32 %v7183, 16
      %v7256 = vrot.slane %v7254, 4
      %v7257 = vshll.u32 %v7183, 16
      %v7259 = vrot.slane %v7257, 5
      %v7260 = vor.u32 %v7256, %v7259
      %v7261 = vrot.slane %v7260, 4
      %v7263 = vshll.u32 %v7184, 16
      %v7265 = vrot.slane %v7263, 5
      %v7266 = vsel %vm1200, %v7261, %v7265
      %v7267 = vshrl.u32 %v7184, 16
      %v7269 = vrot.slane %v7267, 4
      %v7270 = vor.u32 %v7269, %v7265
      %v7271 = vrot.slane %v7270, 4
      %v7273 = vshll.u32 %v7214, 16
      %v7275 = vrot.slane %v7273, 5
      %v7276 = vsel %vm1200, %v7271, %v7275
      %v7278 = vshrl.u32 %v7185, 16
      %v7280 = vrot.slane %v7278, 4
      %v7281 = vshll.u32 %v7185, 16
      %v7283 = vrot.slane %v7281, 5
      %v7284 = vor.u32 %v7280, %v7283
      %v7285 = vrot.slane %v7284, 4
      %v7287 = vshll.u32 %v7186, 16
      %v7289 = vrot.slane %v7287, 5
      %v7290 = vsel %vm1200, %v7285, %v7289
      %v7291 = vshrl.u32 %v7186, 16
      %v7293 = vrot.slane %v7291, 4
      %v7294 = vor.u32 %v7293, %v7289
      %v7295 = vrot.slane %v7294, 4
      %v7297 = vshll.u32 %v7215, 16
      %v7299 = vrot.slane %v7297, 5
      %v7300 = vsel %vm1200, %v7295, %v7299
      %v7302 = vshrl.u32 %v7187, 16
      %v7304 = vrot.slane %v7302, 4
      %v7305 = vshll.u32 %v7187, 16
      %v7307 = vrot.slane %v7305, 5
      %v7308 = vor.u32 %v7304, %v7307
      %v7309 = vrot.slane %v7308, 4
      %v7311 = vshll.u32 %v7188, 16
      %v7313 = vrot.slane %v7311, 5
      %v7314 = vsel %vm1200, %v7309, %v7313
      %v7315 = vshrl.u32 %v7188, 16
      %v7317 = vrot.slane %v7315, 4
      %v7318 = vor.u32 %v7317, %v7313
      %v7319 = vrot.slane %v7318, 4
      %v7321 = vshll.u32 %v7216, 16
      %v7323 = vrot.slane %v7321, 5
      %v7324 = vsel %vm1200, %v7319, %v7323
      %v7326 = vshrl.u32 %v7189, 16
      %v7328 = vrot.slane %v7326, 4
      %v7329 = vshll.u32 %v7189, 16
      %v7331 = vrot.slane %v7329, 5
      %v7332 = vor.u32 %v7328, %v7331
      %v7333 = vrot.slane %v7332, 4
      %v7335 = vshll.u32 %v7190, 16
      %v7337 = vrot.slane %v7335, 5
      %v7338 = vsel %vm1200, %v7333, %v7337
      %v7339 = vshrl.u32 %v7190, 16
      %v7341 = vrot.slane %v7339, 4
      %v7342 = vor.u32 %v7341, %v7337
      %v7343 = vrot.slane %v7342, 4
      %v7345 = vshll.u32 %v7217, 16
      %v7347 = vrot.slane %v7345, 5
      %v7348 = vsel %vm1200, %v7343, %v7347
      %v7350 = vshrl.u32 %v7191, 16
      %v7352 = vrot.slane %v7350, 4
      %v7353 = vshll.u32 %v7191, 16
      %v7355 = vrot.slane %v7353, 5
      %v7356 = vor.u32 %v7352, %v7355
      %v7357 = vrot.slane %v7356, 4
      %v7359 = vshll.u32 %v7192, 16
      %v7361 = vrot.slane %v7359, 5
      %v7362 = vsel %vm1200, %v7357, %v7361
      %v7363 = vshrl.u32 %v7192, 16
      %v7365 = vrot.slane %v7363, 4
      %v7366 = vor.u32 %v7365, %v7361
      %v7367 = vrot.slane %v7366, 4
      %v7369 = vshll.u32 %v7218, 16
      %v7371 = vrot.slane %v7369, 5
      %v7372 = vsel %vm1200, %v7367, %v7371
      %v7374 = vshrl.u32 %v7193, 16
      %v7376 = vrot.slane %v7374, 4
      %v7377 = vshll.u32 %v7193, 16
      %v7379 = vrot.slane %v7377, 5
      %v7380 = vor.u32 %v7376, %v7379
      %v7381 = vrot.slane %v7380, 4
      %v7383 = vshll.u32 %v7194, 16
      %v7385 = vrot.slane %v7383, 5
      %v7386 = vsel %vm1200, %v7381, %v7385
      %v7387 = vshrl.u32 %v7194, 16
      %v7389 = vrot.slane %v7387, 4
      %v7390 = vor.u32 %v7389, %v7385
      %v7391 = vrot.slane %v7390, 4
      %v7393 = vshll.u32 %v7219, 16
      %v7395 = vrot.slane %v7393, 5
      %v7396 = vsel %vm1200, %v7391, %v7395
      %v7398 = vshrl.u32 %v7195, 16
      %v7400 = vrot.slane %v7398, 4
      %v7401 = vshll.u32 %v7195, 16
      %v7403 = vrot.slane %v7401, 5
      %v7404 = vor.u32 %v7400, %v7403
      %v7405 = vrot.slane %v7404, 4
      %v7407 = vshll.u32 %v7196, 16
      %v7409 = vrot.slane %v7407, 5
      %v7410 = vsel %vm1200, %v7405, %v7409
      %v7411 = vshrl.u32 %v7196, 16
      %v7413 = vrot.slane %v7411, 4
      %v7414 = vor.u32 %v7413, %v7409
      %v7415 = vrot.slane %v7414, 4
      %v7417 = vshll.u32 %v7220, 16
      %v7419 = vrot.slane %v7417, 5
      %v7420 = vsel %vm1200, %v7415, %v7419
      %v7422 = vshrl.u32 %v7197, 16
      %v7424 = vrot.slane %v7422, 4
      %v7425 = vshll.u32 %v7197, 16
      %v7427 = vrot.slane %v7425, 5
      %v7428 = vor.u32 %v7424, %v7427
      %v7429 = vrot.slane %v7428, 4
      %v7431 = vshll.u32 %v7198, 16
      %v7433 = vrot.slane %v7431, 5
      %v7434 = vsel %vm1200, %v7429, %v7433
      %v7435 = vshrl.u32 %v7198, 16
      %v7437 = vrot.slane %v7435, 4
      %v7438 = vor.u32 %v7437, %v7433
      %v7439 = vrot.slane %v7438, 4
      %v7441 = vshll.u32 %v7221, 16
      %v7443 = vrot.slane %v7441, 5
      %v7444 = vsel %vm1200, %v7439, %v7443
      %v7446 = vshrl.u32 %v7199, 16
      %v7448 = vrot.slane %v7446, 4
      %v7449 = vshll.u32 %v7199, 16
      %v7451 = vrot.slane %v7449, 5
      %v7452 = vor.u32 %v7448, %v7451
      %v7453 = vrot.slane %v7452, 4
      %v7455 = vshll.u32 %v7200, 16
      %v7457 = vrot.slane %v7455, 5
      %v7458 = vsel %vm1200, %v7453, %v7457
      %v7459 = vshrl.u32 %v7200, 16
      %v7461 = vrot.slane %v7459, 4
      %v7462 = vor.u32 %v7461, %v7457
      %v7463 = vrot.slane %v7462, 4
      %v7465 = vshll.u32 %v7222, 16
      %v7467 = vrot.slane %v7465, 5
      %v7468 = vsel %vm1200, %v7463, %v7467
      %v7470 = vshrl.u32 %v7201, 16
      %v7472 = vrot.slane %v7470, 4
      %v7473 = vshll.u32 %v7201, 16
      %v7475 = vrot.slane %v7473, 5
      %v7476 = vor.u32 %v7472, %v7475
      %v7477 = vrot.slane %v7476, 4
      %v7479 = vshll.u32 %v7202, 16
      %v7481 = vrot.slane %v7479, 5
      %v7482 = vsel %vm1200, %v7477, %v7481
      %v7483 = vshrl.u32 %v7202, 16
      %v7485 = vrot.slane %v7483, 4
      %v7486 = vor.u32 %v7485, %v7481
      %v7487 = vrot.slane %v7486, 4
      %v7489 = vshll.u32 %v7223, 16
      %v7491 = vrot.slane %v7489, 5
      %v7492 = vsel %vm1200, %v7487, %v7491
      %v7494 = vshrl.u32 %v7203, 16
      %v7496 = vrot.slane %v7494, 4
      %v7497 = vshll.u32 %v7203, 16
      %v7499 = vrot.slane %v7497, 5
      %v7500 = vor.u32 %v7496, %v7499
      %v7501 = vrot.slane %v7500, 4
      %v7503 = vshll.u32 %v7204, 16
      %v7505 = vrot.slane %v7503, 5
      %v7506 = vsel %vm1200, %v7501, %v7505
      %v7507 = vshrl.u32 %v7204, 16
      %v7509 = vrot.slane %v7507, 4
      %v7510 = vor.u32 %v7509, %v7505
      %v7511 = vrot.slane %v7510, 4
      %v7513 = vshll.u32 %v7224, 16
      %v7515 = vrot.slane %v7513, 5
      %v7516 = vsel %vm1200, %v7511, %v7515
      %v7518 = vshrl.u32 %v7205, 16
      %v7520 = vrot.slane %v7518, 4
      %v7521 = vshll.u32 %v7205, 16
      %v7523 = vrot.slane %v7521, 5
      %v7524 = vor.u32 %v7520, %v7523
      %v7525 = vrot.slane %v7524, 4
      %v7527 = vshll.u32 %v7206, 16
      %v7529 = vrot.slane %v7527, 5
      %v7530 = vsel %vm1200, %v7525, %v7529
      %v7531 = vshrl.u32 %v7206, 16
      %v7533 = vrot.slane %v7531, 4
      %v7534 = vor.u32 %v7533, %v7529
      %v7535 = vrot.slane %v7534, 4
      %v7537 = vshll.u32 %v7225, 16
      %v7539 = vrot.slane %v7537, 5
      %v7540 = vsel %vm1200, %v7535, %v7539
      %v7542 = vshrl.u32 %v7207, 16
      %v7544 = vrot.slane %v7542, 4
      %v7545 = vshll.u32 %v7207, 16
      %v7547 = vrot.slane %v7545, 5
      %v7548 = vor.u32 %v7544, %v7547
      %v7549 = vrot.slane %v7548, 4
      %v7551 = vshll.u32 %v7208, 16
      %v7553 = vrot.slane %v7551, 5
      %v7554 = vsel %vm1200, %v7549, %v7553
      %v7555 = vshrl.u32 %v7208, 16
      %v7557 = vrot.slane %v7555, 4
      %v7558 = vor.u32 %v7557, %v7553
      %v7559 = vrot.slane %v7558, 4
      %v7561 = vshll.u32 %v7226, 16
      %v7563 = vrot.slane %v7561, 5
      %v7564 = vsel %vm1200, %v7559, %v7563
      %v7566 = vshrl.u32 %v7209, 16
      %v7568 = vrot.slane %v7566, 4
      %v7569 = vshll.u32 %v7209, 16
      %v7571 = vrot.slane %v7569, 5
      %v7572 = vor.u32 %v7568, %v7571
      %v7573 = vrot.slane %v7572, 4
      %v7575 = vshll.u32 %v7210, 16
      %v7577 = vrot.slane %v7575, 5
      %v7578 = vsel %vm1200, %v7573, %v7577
      %v7579 = vshrl.u32 %v7210, 16
      %v7581 = vrot.slane %v7579, 4
      %v7582 = vor.u32 %v7581, %v7577
      %v7583 = vrot.slane %v7582, 4
      %v7585 = vshll.u32 %v7227, 16
      %v7587 = vrot.slane %v7585, 5
      %v7588 = vsel %vm1200, %v7583, %v7587
      %v7590 = vshrl.u32 %v7211, 16
      %v7592 = vrot.slane %v7590, 4
      %v7593 = vshll.u32 %v7211, 16
      %v7595 = vrot.slane %v7593, 5
      %v7596 = vor.u32 %v7592, %v7595
      %v7597 = vrot.slane %v7596, 4
      %v7599 = vshll.u32 %v7212, 16
      %v7601 = vrot.slane %v7599, 5
      %v7602 = vsel %vm1200, %v7597, %v7601
      %v7603 = vshrl.u32 %v7212, 16
      %v7605 = vrot.slane %v7603, 4
      %v7606 = vor.u32 %v7605, %v7601
      %v7607 = vrot.slane %v7606, 4
      %v7609 = vshll.u32 %v7228, 16
      %v7611 = vrot.slane %v7609, 5
      %v7612 = vsel %vm1200, %v7607, %v7611
      %v7613 = vld [vmem:[%s7180] sm:$0xe]
      %v7614 = vld [vmem:[%s7180 + $0xc] sm:$0xe]
      %v7615 = vld [vmem:[%s7180 + $0x18] sm:$0xe]
      %v7616 = vld [vmem:[%s7180 + $0x24] sm:$0xe]
      %v7617 = vld [vmem:[%s7180 + $0x30] sm:$0xe]
      %v7618 = vld [vmem:[%s7180 + $0x3c] sm:$0xe]
      %v7619 = vld [vmem:[%s7180 + $0x48] sm:$0xe]
      %v7620 = vld [vmem:[%s7180 + $0x54] sm:$0xe]
      %v7621 = vld [vmem:[%s7180 + $0x60] sm:$0xe]
      %v7622 = vld [vmem:[%s7180 + $0x6c] sm:$0xe]
      %v7623 = vld [vmem:[%s7180 + $0x78] sm:$0xe]
      %v7624 = vld [vmem:[%s7180 + $0x84] sm:$0xe]
      %v7625 = vld [vmem:[%s7180 + $0x90] sm:$0xe]
      %v7626 = vld [vmem:[%s7180 + $0x9c] sm:$0xe]
      %v7627 = vld [vmem:[%s7180 + $0xa8] sm:$0xe]
      %v7628 = vld [vmem:[%s7180 + $0xb4] sm:$0xe]
      %v7677 = vrot.slane %v7613, 5
      %v7678 = vrot.slane %v7677, 4
      %v7679 = vrot.slane %v7182, 5
      %v7680 = vsel %vm1651, %v7678, %v7679
      %v7681 = vrot.slane %v7679, 4
      %v7682 = vrot.slane %v7213, 5
      %v7683 = vsel %vm1651, %v7681, %v7682
      %v7684 = vrot.slane %v7614, 5
      %v7685 = vrot.slane %v7684, 4
      %v7686 = vrot.slane %v7184, 5
      %v7687 = vsel %vm1651, %v7685, %v7686
      %v7688 = vrot.slane %v7686, 4
      %v7689 = vrot.slane %v7214, 5
      %v7690 = vsel %vm1651, %v7688, %v7689
      %v7691 = vrot.slane %v7615, 5
      %v7692 = vrot.slane %v7691, 4
      %v7693 = vrot.slane %v7186, 5
      %v7694 = vsel %vm1651, %v7692, %v7693
      %v7695 = vrot.slane %v7693, 4
      %v7696 = vrot.slane %v7215, 5
      %v7697 = vsel %vm1651, %v7695, %v7696
      %v7698 = vrot.slane %v7616, 5
      %v7699 = vrot.slane %v7698, 4
      %v7700 = vrot.slane %v7188, 5
      %v7701 = vsel %vm1651, %v7699, %v7700
      %v7702 = vrot.slane %v7700, 4
      %v7703 = vrot.slane %v7216, 5
      %v7704 = vsel %vm1651, %v7702, %v7703
      %v7705 = vrot.slane %v7617, 5
      %v7706 = vrot.slane %v7705, 4
      %v7707 = vrot.slane %v7190, 5
      %v7708 = vsel %vm1651, %v7706, %v7707
      %v7709 = vrot.slane %v7707, 4
      %v7710 = vrot.slane %v7217, 5
      %v7711 = vsel %vm1651, %v7709, %v7710
      %v7712 = vrot.slane %v7618, 5
      %v7713 = vrot.slane %v7712, 4
      %v7714 = vrot.slane %v7192, 5
      %v7715 = vsel %vm1651, %v7713, %v7714
      %v7716 = vrot.slane %v7714, 4
      %v7717 = vrot.slane %v7218, 5
      %v7718 = vsel %vm1651, %v7716, %v7717
      %v7719 = vrot.slane %v7619, 5
      %v7720 = vrot.slane %v7719, 4
      %v7721 = vrot.slane %v7194, 5
      %v7722 = vsel %vm1651, %v7720, %v7721
      %v7723 = vrot.slane %v7721, 4
      %v7724 = vrot.slane %v7219, 5
      %v7725 = vsel %vm1651, %v7723, %v7724
      %v7726 = vrot.slane %v7620, 5
      %v7727 = vrot.slane %v7726, 4
      %v7728 = vrot.slane %v7196, 5
      %v7729 = vsel %vm1651, %v7727, %v7728
      %v7730 = vrot.slane %v7728, 4
      %v7731 = vrot.slane %v7220, 5
      %v7732 = vsel %vm1651, %v7730, %v7731
      %v7733 = vrot.slane %v7621, 5
      %v7734 = vrot.slane %v7733, 4
      %v7735 = vrot.slane %v7198, 5
      %v7736 = vsel %vm1651, %v7734, %v7735
      %v7737 = vrot.slane %v7735, 4
      %v7738 = vrot.slane %v7221, 5
      %v7739 = vsel %vm1651, %v7737, %v7738
      %v7740 = vrot.slane %v7622, 5
      %v7741 = vrot.slane %v7740, 4
      %v7742 = vrot.slane %v7200, 5
      %v7743 = vsel %vm1651, %v7741, %v7742
      %v7744 = vrot.slane %v7742, 4
      %v7745 = vrot.slane %v7222, 5
      %v7746 = vsel %vm1651, %v7744, %v7745
      %v7747 = vrot.slane %v7623, 5
      %v7748 = vrot.slane %v7747, 4
      %v7749 = vrot.slane %v7202, 5
      %v7750 = vsel %vm1651, %v7748, %v7749
      %v7751 = vrot.slane %v7749, 4
      %v7752 = vrot.slane %v7223, 5
      %v7753 = vsel %vm1651, %v7751, %v7752
      %v7754 = vrot.slane %v7624, 5
      %v7755 = vrot.slane %v7754, 4
      %v7756 = vrot.slane %v7204, 5
      %v7757 = vsel %vm1651, %v7755, %v7756
      %v7758 = vrot.slane %v7756, 4
      %v7759 = vrot.slane %v7224, 5
      %v7760 = vsel %vm1651, %v7758, %v7759
      %v7761 = vrot.slane %v7625, 5
      %v7762 = vrot.slane %v7761, 4
      %v7763 = vrot.slane %v7206, 5
      %v7764 = vsel %vm1651, %v7762, %v7763
      %v7765 = vrot.slane %v7763, 4
      %v7766 = vrot.slane %v7225, 5
      %v7767 = vsel %vm1651, %v7765, %v7766
      %v7768 = vrot.slane %v7626, 5
      %v7769 = vrot.slane %v7768, 4
      %v7770 = vrot.slane %v7208, 5
      %v7771 = vsel %vm1651, %v7769, %v7770
      %v7772 = vrot.slane %v7770, 4
      %v7773 = vrot.slane %v7226, 5
      %v7774 = vsel %vm1651, %v7772, %v7773
      %v7775 = vrot.slane %v7627, 5
      %v7776 = vrot.slane %v7775, 4
      %v7777 = vrot.slane %v7210, 5
      %v7778 = vsel %vm1651, %v7776, %v7777
      %v7779 = vrot.slane %v7777, 4
      %v7780 = vrot.slane %v7227, 5
      %v7781 = vsel %vm1651, %v7779, %v7780
      %v7782 = vrot.slane %v7628, 5
      %v7783 = vrot.slane %v7782, 4
      %v7784 = vrot.slane %v7212, 5
      %v7785 = vsel %vm1651, %v7783, %v7784
      %v7786 = vrot.slane %v7784, 4
      %v7787 = vrot.slane %v7228, 5
      %v7788 = vsel %vm1651, %v7786, %v7787
      %v7805 = vunpack.c.l.b16 %v7181
      %v7806 = vunpack.c.l.b16 %v7182
      %v7807 = vunpack.c.l.b16 %v7183
      %v7808 = vunpack.c.l.b16 %v7184
      %v7809 = vunpack.c.l.b16 %v7185
      %v7810 = vunpack.c.l.b16 %v7186
      %v7811 = vunpack.c.l.b16 %v7187
      %v7812 = vunpack.c.l.b16 %v7188
      %v7813 = vunpack.c.l.b16 %v7189
      %v7814 = vunpack.c.l.b16 %v7190
      %v7815 = vunpack.c.l.b16 %v7191
      %v7816 = vunpack.c.l.b16 %v7192
      %v7817 = vunpack.c.l.b16 %v7193
      %v7818 = vunpack.c.l.b16 %v7194
      %v7819 = vunpack.c.l.b16 %v7195
      %v7820 = vunpack.c.l.b16 %v7196
      %v7821 = vunpack.c.l.b16 %v7197
      %v7822 = vunpack.c.l.b16 %v7198
      %v7823 = vunpack.c.l.b16 %v7199
      %v7824 = vunpack.c.l.b16 %v7200
      %v7825 = vunpack.c.l.b16 %v7201
      %v7826 = vunpack.c.l.b16 %v7202
      %v7827 = vunpack.c.l.b16 %v7203
      %v7828 = vunpack.c.l.b16 %v7204
      %v7829 = vunpack.c.l.b16 %v7205
      %v7830 = vunpack.c.l.b16 %v7206
      %v7831 = vunpack.c.l.b16 %v7207
      %v7832 = vunpack.c.l.b16 %v7208
      %v7833 = vunpack.c.l.b16 %v7209
      %v7834 = vunpack.c.l.b16 %v7210
      %v7835 = vunpack.c.l.b16 %v7211
      %v7836 = vunpack.c.l.b16 %v7212
      %v7837 = vpack.c.b16 %v7806, %v7805
      %v7838 = vpack.c.b16 %v7808, %v7807
      %v7839 = vpack.c.b16 %v7810, %v7809
      %v7840 = vpack.c.b16 %v7812, %v7811
      %v7841 = vpack.c.b16 %v7814, %v7813
      %v7842 = vpack.c.b16 %v7816, %v7815
      %v7843 = vpack.c.b16 %v7818, %v7817
      %v7844 = vpack.c.b16 %v7820, %v7819
      %v7845 = vpack.c.b16 %v7822, %v7821
      %v7846 = vpack.c.b16 %v7824, %v7823
      %v7847 = vpack.c.b16 %v7826, %v7825
      %v7848 = vpack.c.b16 %v7828, %v7827
      %v7849 = vpack.c.b16 %v7830, %v7829
      %v7850 = vpack.c.b16 %v7832, %v7831
      %v7851 = vpack.c.b16 %v7834, %v7833
      %v7852 = vpack.c.b16 %v7836, %v7835
      %v7853 = vunpack.c.l.b16 %v7242
      %v7854 = vunpack.c.l.b16 %v7252
      %v7855 = vunpack.c.l.b16 %v7266
      %v7856 = vunpack.c.l.b16 %v7276
      %v7857 = vunpack.c.l.b16 %v7290
      %v7858 = vunpack.c.l.b16 %v7300
      %v7859 = vunpack.c.l.b16 %v7314
      %v7860 = vunpack.c.l.b16 %v7324
      %v7861 = vunpack.c.l.b16 %v7338
      %v7862 = vunpack.c.l.b16 %v7348
      %v7863 = vunpack.c.l.b16 %v7362
      %v7864 = vunpack.c.l.b16 %v7372
      %v7865 = vunpack.c.l.b16 %v7386
      %v7866 = vunpack.c.l.b16 %v7396
      %v7867 = vunpack.c.l.b16 %v7410
      %v7868 = vunpack.c.l.b16 %v7420
      %v7869 = vunpack.c.l.b16 %v7434
      %v7870 = vunpack.c.l.b16 %v7444
      %v7871 = vunpack.c.l.b16 %v7458
      %v7872 = vunpack.c.l.b16 %v7468
      %v7873 = vunpack.c.l.b16 %v7482
      %v7874 = vunpack.c.l.b16 %v7492
      %v7875 = vunpack.c.l.b16 %v7506
      %v7876 = vunpack.c.l.b16 %v7516
      %v7877 = vunpack.c.l.b16 %v7530
      %v7878 = vunpack.c.l.b16 %v7540
      %v7879 = vunpack.c.l.b16 %v7554
      %v7880 = vunpack.c.l.b16 %v7564
      %v7881 = vunpack.c.l.b16 %v7578
      %v7882 = vunpack.c.l.b16 %v7588
      %v7883 = vunpack.c.l.b16 %v7602
      %v7884 = vunpack.c.l.b16 %v7612
      %v7885 = vpack.c.b16 %v7854, %v7853
      %v7886 = vpack.c.b16 %v7856, %v7855
      %v7887 = vpack.c.b16 %v7858, %v7857
      %v7888 = vpack.c.b16 %v7860, %v7859
      %v7889 = vpack.c.b16 %v7862, %v7861
      %v7890 = vpack.c.b16 %v7864, %v7863
      %v7891 = vpack.c.b16 %v7866, %v7865
      %v7892 = vpack.c.b16 %v7868, %v7867
      %v7893 = vpack.c.b16 %v7870, %v7869
      %v7894 = vpack.c.b16 %v7872, %v7871
      %v7895 = vpack.c.b16 %v7874, %v7873
      %v7896 = vpack.c.b16 %v7876, %v7875
      %v7897 = vpack.c.b16 %v7878, %v7877
      %v7898 = vpack.c.b16 %v7880, %v7879
      %v7899 = vpack.c.b16 %v7882, %v7881
      %v7900 = vpack.c.b16 %v7884, %v7883
      %7901 = vrot.lane.b32.xlu0 %v7885, 8
      %v7902 = vpop.permute.xlu0 %7901
      %7903 = vrot.lane.b32.xlu0 %v7886, 8
      %v7904 = vpop.permute.xlu0 %7903
      %7905 = vrot.lane.b32.xlu0 %v7887, 8
      %v7906 = vpop.permute.xlu0 %7905
      %7907 = vrot.lane.b32.xlu0 %v7888, 8
      %v7908 = vpop.permute.xlu0 %7907
      %7909 = vrot.lane.b32.xlu0 %v7889, 8
      %v7910 = vpop.permute.xlu0 %7909
      %7911 = vrot.lane.b32.xlu0 %v7890, 8
      %v7912 = vpop.permute.xlu0 %7911
      %7913 = vrot.lane.b32.xlu0 %v7891, 8
      %v7914 = vpop.permute.xlu0 %7913
      %7915 = vrot.lane.b32.xlu0 %v7892, 8
      %v7916 = vpop.permute.xlu0 %7915
      %7917 = vrot.lane.b32.xlu0 %v7893, 8
      %v7918 = vpop.permute.xlu0 %7917
      %7919 = vrot.lane.b32.xlu0 %v7894, 8
      %v7920 = vpop.permute.xlu0 %7919
      %7921 = vrot.lane.b32.xlu0 %v7895, 8
      %v7922 = vpop.permute.xlu0 %7921
      %7923 = vrot.lane.b32.xlu0 %v7896, 8
      %v7924 = vpop.permute.xlu0 %7923
      %7925 = vrot.lane.b32.xlu0 %v7897, 8
      %v7926 = vpop.permute.xlu0 %7925
      %7927 = vrot.lane.b32.xlu0 %v7898, 8
      %v7928 = vpop.permute.xlu0 %7927
      %7929 = vrot.lane.b32.xlu0 %v7899, 8
      %v7930 = vpop.permute.xlu0 %7929
      %7931 = vrot.lane.b32.xlu0 %v7900, 8
      %v7932 = vpop.permute.xlu0 %7931
      %v7933 = vunpack.c.l.b16 %v7680
      %v7934 = vunpack.c.l.b16 %v7683
      %v7935 = vunpack.c.l.b16 %v7687
      %v7936 = vunpack.c.l.b16 %v7690
      %v7937 = vunpack.c.l.b16 %v7694
      %v7938 = vunpack.c.l.b16 %v7697
      %v7939 = vunpack.c.l.b16 %v7701
      %v7940 = vunpack.c.l.b16 %v7704
      %v7941 = vunpack.c.l.b16 %v7708
      %v7942 = vunpack.c.l.b16 %v7711
      %v7943 = vunpack.c.l.b16 %v7715
      %v7944 = vunpack.c.l.b16 %v7718
      %v7945 = vunpack.c.l.b16 %v7722
      %v7946 = vunpack.c.l.b16 %v7725
      %v7947 = vunpack.c.l.b16 %v7729
      %v7948 = vunpack.c.l.b16 %v7732
      %v7949 = vunpack.c.l.b16 %v7736
      %v7950 = vunpack.c.l.b16 %v7739
      %v7951 = vunpack.c.l.b16 %v7743
      %v7952 = vunpack.c.l.b16 %v7746
      %v7953 = vunpack.c.l.b16 %v7750
      %v7954 = vunpack.c.l.b16 %v7753
      %v7955 = vunpack.c.l.b16 %v7757
      %v7956 = vunpack.c.l.b16 %v7760
      %v7957 = vunpack.c.l.b16 %v7764
      %v7958 = vunpack.c.l.b16 %v7767
      %v7959 = vunpack.c.l.b16 %v7771
      %v7960 = vunpack.c.l.b16 %v7774
      %v7961 = vunpack.c.l.b16 %v7778
      %v7962 = vunpack.c.l.b16 %v7781
      %v7963 = vunpack.c.l.b16 %v7785
      %v7964 = vunpack.c.l.b16 %v7788
      %v7965 = vpack.c.b16 %v7934, %v7933
      %v7966 = vpack.c.b16 %v7936, %v7935
      %v7967 = vpack.c.b16 %v7938, %v7937
      %v7968 = vpack.c.b16 %v7940, %v7939
      %v7969 = vpack.c.b16 %v7942, %v7941
      %v7970 = vpack.c.b16 %v7944, %v7943
      %v7971 = vpack.c.b16 %v7946, %v7945
      %v7972 = vpack.c.b16 %v7948, %v7947
      %v7973 = vpack.c.b16 %v7950, %v7949
      %v7974 = vpack.c.b16 %v7952, %v7951
      %v7975 = vpack.c.b16 %v7954, %v7953
      %v7976 = vpack.c.b16 %v7956, %v7955
      %v7977 = vpack.c.b16 %v7958, %v7957
      %v7978 = vpack.c.b16 %v7960, %v7959
      %v7979 = vpack.c.b16 %v7962, %v7961
      %v7980 = vpack.c.b16 %v7964, %v7963
      %7981 = vrot.lane.b32.xlu0 %v7965, 16
      %v7982 = vpop.permute.xlu0 %7981
      %7983 = vrot.lane.b32.xlu0 %v7966, 16
      %v7984 = vpop.permute.xlu0 %7983
      %7985 = vrot.lane.b32.xlu0 %v7967, 16
      %v7986 = vpop.permute.xlu0 %7985
      %7987 = vrot.lane.b32.xlu0 %v7968, 16
      %v7988 = vpop.permute.xlu0 %7987
      %7989 = vrot.lane.b32.xlu0 %v7969, 16
      %v7990 = vpop.permute.xlu0 %7989
      %7991 = vrot.lane.b32.xlu0 %v7970, 16
      %v7992 = vpop.permute.xlu0 %7991
      %7993 = vrot.lane.b32.xlu0 %v7971, 16
      %v7994 = vpop.permute.xlu0 %7993
      %7995 = vrot.lane.b32.xlu0 %v7972, 16
      %v7996 = vpop.permute.xlu0 %7995
      %7997 = vrot.lane.b32.xlu0 %v7973, 16
      %v7998 = vpop.permute.xlu0 %7997
      %7999 = vrot.lane.b32.xlu0 %v7974, 16
      %v8000 = vpop.permute.xlu0 %7999
      %8001 = vrot.lane.b32.xlu0 %v7975, 16
      %v8002 = vpop.permute.xlu0 %8001
      %8003 = vrot.lane.b32.xlu0 %v7976, 16
      %v8004 = vpop.permute.xlu0 %8003
      %8005 = vrot.lane.b32.xlu0 %v7977, 16
      %v8006 = vpop.permute.xlu0 %8005
      %8007 = vrot.lane.b32.xlu0 %v7978, 16
      %v8008 = vpop.permute.xlu0 %8007
      %8009 = vrot.lane.b32.xlu0 %v7979, 16
      %v8010 = vpop.permute.xlu0 %8009
      %8011 = vrot.lane.b32.xlu0 %v7980, 16
      %v8012 = vpop.permute.xlu0 %8011
      %v8015 = vsel %vm1988, %v7837, %v7902
      %v8018 = vsel %vm1988, %v7838, %v7904
      %v8021 = vsel %vm1988, %v7839, %v7906
      %v8024 = vsel %vm1988, %v7840, %v7908
      %v8027 = vsel %vm1988, %v7841, %v7910
      %v8030 = vsel %vm1988, %v7842, %v7912
      %v8033 = vsel %vm1988, %v7843, %v7914
      %v8036 = vsel %vm1988, %v7844, %v7916
      %v8039 = vsel %vm1988, %v7845, %v7918
      %v8042 = vsel %vm1988, %v7846, %v7920
      %v8045 = vsel %vm1988, %v7847, %v7922
      %v8048 = vsel %vm1988, %v7848, %v7924
      %v8051 = vsel %vm1988, %v7849, %v7926
      %v8054 = vsel %vm1988, %v7850, %v7928
      %v8057 = vsel %vm1988, %v7851, %v7930
      %v8060 = vsel %vm1988, %v7852, %v7932
      %v8062 = vsel %vm2037, %v8015, %v7982
      %v8064 = vsel %vm2037, %v8018, %v7984
      %v8066 = vsel %vm2037, %v8021, %v7986
      %v8068 = vsel %vm2037, %v8024, %v7988
      %v8070 = vsel %vm2037, %v8027, %v7990
      %v8072 = vsel %vm2037, %v8030, %v7992
      %v8074 = vsel %vm2037, %v8033, %v7994
      %v8076 = vsel %vm2037, %v8036, %v7996
      %v8078 = vsel %vm2037, %v8039, %v7998
      %v8080 = vsel %vm2037, %v8042, %v8000
      %v8082 = vsel %vm2037, %v8045, %v8002
      %v8084 = vsel %vm2037, %v8048, %v8004
      %v8086 = vsel %vm2037, %v8051, %v8006
      %v8088 = vsel %vm2037, %v8054, %v8008
      %v8090 = vsel %vm2037, %v8057, %v8010
      %v8092 = vsel %vm2037, %v8060, %v8012
      %v8093 = vld [vmem:[%s3 + $0x18] sm:$0xf]
      %v8094 = vld [vmem:[%s3 + $0x1c] sm:$0xf]
      %v8095 = vld [vmem:[%s3 + $0x20] sm:$0xf]
      %v8099 = vunpack.c.l.b16 %v8093
      %v8100 = vunpack.c.l.b16 %v8094
      %v8101 = vunpack.c.l.b16 %v8095
      %v8102 = vpack.c.b16 %v8100, %v8099
      %v8103 = vpack.c.b16 %v8101, %v8101
      %v8105 = vsel %vm2997, %v8062, 0
      %v8107 = vsel %vm2997, %v8064, 0
      %v8109 = vsel %vm2997, %v8066, 0
      %v8111 = vsel %vm2997, %v8068, 0
      %v8113 = vsel %vm2997, %v8070, 0
      %v8115 = vsel %vm2997, %v8072, 0
      %v8117 = vsel %vm2997, %v8074, 0
      %v8119 = vsel %vm2997, %v8076, 0
      %v8121 = vsel %vm2997, %v8078, 0
      %v8123 = vsel %vm2997, %v8080, 0
      %v8125 = vsel %vm2997, %v8082, 0
      %v8127 = vsel %vm2997, %v8084, 0
      %v8129 = vsel %vm2997, %v8086, 0
      %v8131 = vsel %vm2997, %v8088, 0
      %v8133 = vsel %vm2997, %v8090, 0
      %v8135 = vsel %vm2997, %v8092, 0
      %v8138 = vsel %vm3030, %v8103, 0
      %8140 = vmatpush.bf16.msra.mxu0 0
      %8141 = vmatpush.bf16.msra.mxu0 0
      %8142 = vmatpush.bf16.msra.mxu0 0
      %8143 = vmatpush.bf16.msra.mxu0 0
      %8144 = vmatpush.bf16.msra.mxu0 0
      %8145 = vmatpush.bf16.msra.mxu0 0
      %8146 = vmatpush.bf16.msra.mxu0 %v8138
      %8147 = vmatpush.bf16.msra.mxu0 %v8102
      %8148 = vmatmul.bf16.gmra.mxu0 %v8105
      %v8149 = vpop.f32.mrf.mxu0
      %v8150 = vadd.f32 0.0, %v8149
      %v8151 = vpop.f32.mrf.mxu0
      %v8152 = vadd.f32 0.0, %v8151
      %8153 = vmatmul.bf16.gmra.mxu0 %v8107
      %v8154 = vpop.f32.mrf.mxu0
      %v8155 = vadd.f32 0.0, %v8154
      %v8156 = vpop.f32.mrf.mxu0
      %v8157 = vadd.f32 0.0, %v8156
      %8158 = vmatmul.bf16.gmra.mxu0 %v8109
      %v8159 = vpop.f32.mrf.mxu0
      %v8160 = vadd.f32 0.0, %v8159
      %v8161 = vpop.f32.mrf.mxu0
      %v8162 = vadd.f32 0.0, %v8161
      %8163 = vmatmul.bf16.gmra.mxu0 %v8111
      %v8164 = vpop.f32.mrf.mxu0
      %v8165 = vadd.f32 0.0, %v8164
      %v8166 = vpop.f32.mrf.mxu0
      %v8167 = vadd.f32 0.0, %v8166
      %8168 = vmatmul.bf16.gmra.mxu0 %v8113
      %v8169 = vpop.f32.mrf.mxu0
      %v8170 = vadd.f32 0.0, %v8169
      %v8171 = vpop.f32.mrf.mxu0
      %v8172 = vadd.f32 0.0, %v8171
      %8173 = vmatmul.bf16.gmra.mxu0 %v8115
      %v8174 = vpop.f32.mrf.mxu0
      %v8175 = vadd.f32 0.0, %v8174
      %v8176 = vpop.f32.mrf.mxu0
      %v8177 = vadd.f32 0.0, %v8176
      %8178 = vmatmul.bf16.gmra.mxu0 %v8117
      %v8179 = vpop.f32.mrf.mxu0
      %v8180 = vadd.f32 0.0, %v8179
      %v8181 = vpop.f32.mrf.mxu0
      %v8182 = vadd.f32 0.0, %v8181
      %8183 = vmatmul.bf16.gmra.mxu0 %v8119
      %v8184 = vpop.f32.mrf.mxu0
      %v8185 = vadd.f32 0.0, %v8184
      %v8186 = vpop.f32.mrf.mxu0
      %v8187 = vadd.f32 0.0, %v8186
      %8188 = vmatmul.bf16.gmra.mxu0 %v8121
      %v8189 = vpop.f32.mrf.mxu0
      %v8190 = vadd.f32 0.0, %v8189
      %v8191 = vpop.f32.mrf.mxu0
      %v8192 = vadd.f32 0.0, %v8191
      %8193 = vmatmul.bf16.gmra.mxu0 %v8123
      %v8194 = vpop.f32.mrf.mxu0
      %v8195 = vadd.f32 0.0, %v8194
      %v8196 = vpop.f32.mrf.mxu0
      %v8197 = vadd.f32 0.0, %v8196
      %8198 = vmatmul.bf16.gmra.mxu0 %v8125
      %v8199 = vpop.f32.mrf.mxu0
      %v8200 = vadd.f32 0.0, %v8199
      %v8201 = vpop.f32.mrf.mxu0
      %v8202 = vadd.f32 0.0, %v8201
      %8203 = vmatmul.bf16.gmra.mxu0 %v8127
      %v8204 = vpop.f32.mrf.mxu0
      %v8205 = vadd.f32 0.0, %v8204
      %v8206 = vpop.f32.mrf.mxu0
      %v8207 = vadd.f32 0.0, %v8206
      %8208 = vmatmul.bf16.gmra.mxu0 %v8129
      %v8209 = vpop.f32.mrf.mxu0
      %v8210 = vadd.f32 0.0, %v8209
      %v8211 = vpop.f32.mrf.mxu0
      %v8212 = vadd.f32 0.0, %v8211
      %8213 = vmatmul.bf16.gmra.mxu0 %v8131
      %v8214 = vpop.f32.mrf.mxu0
      %v8215 = vadd.f32 0.0, %v8214
      %v8216 = vpop.f32.mrf.mxu0
      %v8217 = vadd.f32 0.0, %v8216
      %8218 = vmatmul.bf16.gmra.mxu0 %v8133
      %v8219 = vpop.f32.mrf.mxu0
      %v8220 = vadd.f32 0.0, %v8219
      %v8221 = vpop.f32.mrf.mxu0
      %v8222 = vadd.f32 0.0, %v8221
      %8223 = vmatmul.bf16.gmra.mxu0 %v8135
      %v8224 = vpop.f32.mrf.mxu0
      %v8225 = vadd.f32 0.0, %v8224
      %v8226 = vpop.f32.mrf.mxu0
      %v8227 = vadd.f32 0.0, %v8226
      %8228 = vdwg.mxu0
      %v8229 = vadd.f32 %v7101, %v8150
      %v8230 = vadd.f32 %v7103, %v8152
      %v8231 = vadd.f32 %v7106, %v8155
      %v8232 = vadd.f32 %v7108, %v8157
      %v8233 = vadd.f32 %v7111, %v8160
      %v8234 = vadd.f32 %v7113, %v8162
      %v8235 = vadd.f32 %v7116, %v8165
      %v8236 = vadd.f32 %v7118, %v8167
      %v8237 = vadd.f32 %v7121, %v8170
      %v8238 = vadd.f32 %v7123, %v8172
      %v8239 = vadd.f32 %v7126, %v8175
      %v8240 = vadd.f32 %v7128, %v8177
      %v8241 = vadd.f32 %v7131, %v8180
      %v8242 = vadd.f32 %v7133, %v8182
      %v8243 = vadd.f32 %v7136, %v8185
      %v8244 = vadd.f32 %v7138, %v8187
      %v8245 = vadd.f32 %v7141, %v8190
      %v8246 = vadd.f32 %v7143, %v8192
      %v8247 = vadd.f32 %v7146, %v8195
      %v8248 = vadd.f32 %v7148, %v8197
      %v8249 = vadd.f32 %v7151, %v8200
      %v8250 = vadd.f32 %v7153, %v8202
      %v8251 = vadd.f32 %v7156, %v8205
      %v8252 = vadd.f32 %v7158, %v8207
      %v8253 = vadd.f32 %v7161, %v8210
      %v8254 = vadd.f32 %v7163, %v8212
      %v8255 = vadd.f32 %v7166, %v8215
      %v8256 = vadd.f32 %v7168, %v8217
      %v8257 = vadd.f32 %v7171, %v8220
      %v8258 = vadd.f32 %v7173, %v8222
      %v8259 = vadd.f32 %v7176, %v8225
      %v8260 = vadd.f32 %v7178, %v8227
      %v8261 = vsel %vm1988, %v8229, 0.0
      %v8262 = vsel %vm1988, %v8230, 0.0
      %v8263 = vadd.f32 %v8261, %v8262
      %v8264 = vsel %vm1988, %v8231, 0.0
      %v8265 = vadd.f32 %v8263, %v8264
      %v8266 = vsel %vm1988, %v8232, 0.0
      %v8267 = vadd.f32 %v8265, %v8266
      %v8268 = vsel %vm1988, %v8233, 0.0
      %v8269 = vadd.f32 %v8267, %v8268
      %v8270 = vsel %vm1988, %v8234, 0.0
      %v8271 = vadd.f32 %v8269, %v8270
      %v8272 = vsel %vm1988, %v8235, 0.0
      %v8273 = vadd.f32 %v8271, %v8272
      %v8274 = vsel %vm1988, %v8236, 0.0
      %v8275 = vadd.f32 %v8273, %v8274
      %v8276 = vsel %vm1988, %v8237, 0.0
      %v8277 = vadd.f32 %v8275, %v8276
      %v8278 = vsel %vm1988, %v8238, 0.0
      %v8279 = vadd.f32 %v8277, %v8278
      %v8280 = vsel %vm1988, %v8239, 0.0
      %v8281 = vadd.f32 %v8279, %v8280
      %v8282 = vsel %vm1988, %v8240, 0.0
      %v8283 = vadd.f32 %v8281, %v8282
      %v8284 = vsel %vm1988, %v8241, 0.0
      %v8285 = vadd.f32 %v8283, %v8284
      %v8286 = vsel %vm1988, %v8242, 0.0
      %v8287 = vadd.f32 %v8285, %v8286
      %v8288 = vsel %vm1988, %v8243, 0.0
      %v8289 = vadd.f32 %v8287, %v8288
      %v8290 = vsel %vm1988, %v8244, 0.0
      %v8291 = vadd.f32 %v8289, %v8290
      %v8292 = vsel %vm1988, %v8245, 0.0
      %v8293 = vadd.f32 %v8291, %v8292
      %v8294 = vsel %vm1988, %v8246, 0.0
      %v8295 = vadd.f32 %v8293, %v8294
      %v8296 = vsel %vm1988, %v8247, 0.0
      %v8297 = vadd.f32 %v8295, %v8296
      %v8298 = vsel %vm1988, %v8248, 0.0
      %v8299 = vadd.f32 %v8297, %v8298
      %v8300 = vsel %vm1988, %v8249, 0.0
      %v8301 = vadd.f32 %v8299, %v8300
      %v8302 = vsel %vm1988, %v8250, 0.0
      %v8303 = vadd.f32 %v8301, %v8302
      %v8304 = vsel %vm1988, %v8251, 0.0
      %v8305 = vadd.f32 %v8303, %v8304
      %v8306 = vsel %vm1988, %v8252, 0.0
      %v8307 = vadd.f32 %v8305, %v8306
      %v8308 = vsel %vm1988, %v8253, 0.0
      %v8309 = vadd.f32 %v8307, %v8308
      %v8310 = vsel %vm1988, %v8254, 0.0
      %v8311 = vadd.f32 %v8309, %v8310
      %v8312 = vsel %vm1988, %v8255, 0.0
      %v8313 = vadd.f32 %v8311, %v8312
      %v8314 = vsel %vm1988, %v8256, 0.0
      %v8315 = vadd.f32 %v8313, %v8314
      %v8316 = vsel %vm1988, %v8257, 0.0
      %v8317 = vadd.f32 %v8315, %v8316
      %v8318 = vsel %vm1988, %v8258, 0.0
      %v8319 = vadd.f32 %v8317, %v8318
      %v8320 = vsel %vm1988, %v8259, 0.0
      %v8321 = vadd.f32 %v8319, %v8320
      %v8322 = vsel %vm1988, %v8260, 0.0
      %v8323 = vadd.f32 %v8321, %v8322
      %v8324 = vrot.slane %v8323, 4
      %v8325 = vadd.f32 %v8323, %v8324
      %v8326 = vrot.slane %v8325, 2
      %v8327 = vadd.f32 %v8325, %v8326
      %v8328 = vrot.slane %v8327, 1
      %v8329 = vadd.f32 %v8327, %v8328
      %v8330 = vmul.f32 %v8229, %v8229
      %v8331 = vmul.f32 %v8230, %v8230
      %v8332 = vmul.f32 %v8231, %v8231
      %v8333 = vmul.f32 %v8232, %v8232
      %v8334 = vmul.f32 %v8233, %v8233
      %v8335 = vmul.f32 %v8234, %v8234
      %v8336 = vmul.f32 %v8235, %v8235
      %v8337 = vmul.f32 %v8236, %v8236
      %v8338 = vmul.f32 %v8237, %v8237
      %v8339 = vmul.f32 %v8238, %v8238
      %v8340 = vmul.f32 %v8239, %v8239
      %v8341 = vmul.f32 %v8240, %v8240
      %v8342 = vmul.f32 %v8241, %v8241
      %v8343 = vmul.f32 %v8242, %v8242
      %v8344 = vmul.f32 %v8243, %v8243
      %v8345 = vmul.f32 %v8244, %v8244
      %v8346 = vmul.f32 %v8245, %v8245
      %v8347 = vmul.f32 %v8246, %v8246
      %v8348 = vmul.f32 %v8247, %v8247
      %v8349 = vmul.f32 %v8248, %v8248
      %v8350 = vmul.f32 %v8249, %v8249
      %v8351 = vmul.f32 %v8250, %v8250
      %v8352 = vmul.f32 %v8251, %v8251
      %v8353 = vmul.f32 %v8252, %v8252
      %v8354 = vmul.f32 %v8253, %v8253
      %v8355 = vmul.f32 %v8254, %v8254
      %v8356 = vmul.f32 %v8255, %v8255
      %v8357 = vmul.f32 %v8256, %v8256
      %v8358 = vmul.f32 %v8257, %v8257
      %v8359 = vmul.f32 %v8258, %v8258
      %v8360 = vmul.f32 %v8259, %v8259
      %v8361 = vmul.f32 %v8260, %v8260
      %v8362 = vsel %vm1988, %v8330, 0.0
      %v8363 = vsel %vm1988, %v8331, 0.0
      %v8364 = vadd.f32 %v8362, %v8363
      %v8365 = vsel %vm1988, %v8332, 0.0
      %v8366 = vadd.f32 %v8364, %v8365
      %v8367 = vsel %vm1988, %v8333, 0.0
      %v8368 = vadd.f32 %v8366, %v8367
      %v8369 = vsel %vm1988, %v8334, 0.0
      %v8370 = vadd.f32 %v8368, %v8369
      %v8371 = vsel %vm1988, %v8335, 0.0
      %v8372 = vadd.f32 %v8370, %v8371
      %v8373 = vsel %vm1988, %v8336, 0.0
      %v8374 = vadd.f32 %v8372, %v8373
      %v8375 = vsel %vm1988, %v8337, 0.0
      %v8376 = vadd.f32 %v8374, %v8375
      %v8377 = vsel %vm1988, %v8338, 0.0
      %v8378 = vadd.f32 %v8376, %v8377
      %v8379 = vsel %vm1988, %v8339, 0.0
      %v8380 = vadd.f32 %v8378, %v8379
      %v8381 = vsel %vm1988, %v8340, 0.0
      %v8382 = vadd.f32 %v8380, %v8381
      %v8383 = vsel %vm1988, %v8341, 0.0
      %v8384 = vadd.f32 %v8382, %v8383
      %v8385 = vsel %vm1988, %v8342, 0.0
      %v8386 = vadd.f32 %v8384, %v8385
      %v8387 = vsel %vm1988, %v8343, 0.0
      %v8388 = vadd.f32 %v8386, %v8387
      %v8389 = vsel %vm1988, %v8344, 0.0
      %v8390 = vadd.f32 %v8388, %v8389
      %v8391 = vsel %vm1988, %v8345, 0.0
      %v8392 = vadd.f32 %v8390, %v8391
      %v8393 = vsel %vm1988, %v8346, 0.0
      %v8394 = vadd.f32 %v8392, %v8393
      %v8395 = vsel %vm1988, %v8347, 0.0
      %v8396 = vadd.f32 %v8394, %v8395
      %v8397 = vsel %vm1988, %v8348, 0.0
      %v8398 = vadd.f32 %v8396, %v8397
      %v8399 = vsel %vm1988, %v8349, 0.0
      %v8400 = vadd.f32 %v8398, %v8399
      %v8401 = vsel %vm1988, %v8350, 0.0
      %v8402 = vadd.f32 %v8400, %v8401
      %v8403 = vsel %vm1988, %v8351, 0.0
      %v8404 = vadd.f32 %v8402, %v8403
      %v8405 = vsel %vm1988, %v8352, 0.0
      %v8406 = vadd.f32 %v8404, %v8405
      %v8407 = vsel %vm1988, %v8353, 0.0
      %v8408 = vadd.f32 %v8406, %v8407
      %v8409 = vsel %vm1988, %v8354, 0.0
      %v8410 = vadd.f32 %v8408, %v8409
      %v8411 = vsel %vm1988, %v8355, 0.0
      %v8412 = vadd.f32 %v8410, %v8411
      %v8413 = vsel %vm1988, %v8356, 0.0
      %v8414 = vadd.f32 %v8412, %v8413
      %v8415 = vsel %vm1988, %v8357, 0.0
      %v8416 = vadd.f32 %v8414, %v8415
      %v8417 = vsel %vm1988, %v8358, 0.0
      %v8418 = vadd.f32 %v8416, %v8417
      %v8419 = vsel %vm1988, %v8359, 0.0
      %v8420 = vadd.f32 %v8418, %v8419
      %v8421 = vsel %vm1988, %v8360, 0.0
      %v8422 = vadd.f32 %v8420, %v8421
      %v8423 = vsel %vm1988, %v8361, 0.0
      %v8424 = vadd.f32 %v8422, %v8423
      %v8425 = vrot.slane %v8424, 4
      %v8426 = vadd.f32 %v8424, %v8425
      %v8427 = vrot.slane %v8426, 2
      %v8428 = vadd.f32 %v8426, %v8427
      %v8429 = vrot.slane %v8428, 1
      %v8430 = vadd.f32 %v8428, %v8429
      %v8431 = vmul.f32 %v8329, 0.00390625
      %v8432 = vmul.f32 %v8430, 0.00390625
      %v8433 = vmul.f32 %v8431, %v8431
      %v8434 = vsub.f32 %v8432, %v8433
      %v8435 = vmax.f32 %v8434, 0.0
      %v8436 = vsub.f32 %v8229, %v8431
      %v8437 = vsub.f32 %v8230, %v8431
      %v8438 = vsub.f32 %v8231, %v8431
      %v8439 = vsub.f32 %v8232, %v8431
      %v8440 = vsub.f32 %v8233, %v8431
      %v8441 = vsub.f32 %v8234, %v8431
      %v8442 = vsub.f32 %v8235, %v8431
      %v8443 = vsub.f32 %v8236, %v8431
      %v8444 = vsub.f32 %v8237, %v8431
      %v8445 = vsub.f32 %v8238, %v8431
      %v8446 = vsub.f32 %v8239, %v8431
      %v8447 = vsub.f32 %v8240, %v8431
      %v8448 = vsub.f32 %v8241, %v8431
      %v8449 = vsub.f32 %v8242, %v8431
      %v8450 = vsub.f32 %v8243, %v8431
      %v8451 = vsub.f32 %v8244, %v8431
      %v8452 = vsub.f32 %v8245, %v8431
      %v8453 = vsub.f32 %v8246, %v8431
      %v8454 = vsub.f32 %v8247, %v8431
      %v8455 = vsub.f32 %v8248, %v8431
      %v8456 = vsub.f32 %v8249, %v8431
      %v8457 = vsub.f32 %v8250, %v8431
      %v8458 = vsub.f32 %v8251, %v8431
      %v8459 = vsub.f32 %v8252, %v8431
      %v8460 = vsub.f32 %v8253, %v8431
      %v8461 = vsub.f32 %v8254, %v8431
      %v8462 = vsub.f32 %v8255, %v8431
      %v8463 = vsub.f32 %v8256, %v8431
      %v8464 = vsub.f32 %v8257, %v8431
      %v8465 = vsub.f32 %v8258, %v8431
      %v8466 = vsub.f32 %v8259, %v8431
      %v8467 = vsub.f32 %v8260, %v8431
      %v8468 = vadd.f32 %v8435, 1e-05
      %v8469 = vrsqrt.pop %v8468
      %v8470 = vmul.f32 %v8469, %v8468
      %v8471 = vmul.f32 %v8470, %v8469
      %v8472 = vmul.f32 0.5, %v8471
      %v8473 = vsub.f32 1.5, %v8472
      %v8474 = vmul.f32 %v8469, %v8473
      %vm8475 = vweird.f32 %v8468
      %vm8476 = vweird.f32 %v8469
      %vm8477 = vmor %vm8475, %vm8476
      %v8478 = vsel %vm8477, %v8469, %v8474
      %v8479 = vmul.f32 %v8436, %v8478
      %v8480 = vmul.f32 %v8437, %v8478
      %v8481 = vmul.f32 %v8438, %v8478
      %v8482 = vmul.f32 %v8439, %v8478
      %v8483 = vmul.f32 %v8440, %v8478
      %v8484 = vmul.f32 %v8441, %v8478
      %v8485 = vmul.f32 %v8442, %v8478
      %v8486 = vmul.f32 %v8443, %v8478
      %v8487 = vmul.f32 %v8444, %v8478
      %v8488 = vmul.f32 %v8445, %v8478
      %v8489 = vmul.f32 %v8446, %v8478
      %v8490 = vmul.f32 %v8447, %v8478
      %v8491 = vmul.f32 %v8448, %v8478
      %v8492 = vmul.f32 %v8449, %v8478
      %v8493 = vmul.f32 %v8450, %v8478
      %v8494 = vmul.f32 %v8451, %v8478
      %v8495 = vmul.f32 %v8452, %v8478
      %v8496 = vmul.f32 %v8453, %v8478
      %v8497 = vmul.f32 %v8454, %v8478
      %v8498 = vmul.f32 %v8455, %v8478
      %v8499 = vmul.f32 %v8456, %v8478
      %v8500 = vmul.f32 %v8457, %v8478
      %v8501 = vmul.f32 %v8458, %v8478
      %v8502 = vmul.f32 %v8459, %v8478
      %v8503 = vmul.f32 %v8460, %v8478
      %v8504 = vmul.f32 %v8461, %v8478
      %v8505 = vmul.f32 %v8462, %v8478
      %v8506 = vmul.f32 %v8463, %v8478
      %v8507 = vmul.f32 %v8464, %v8478
      %v8508 = vmul.f32 %v8465, %v8478
      %v8509 = vmul.f32 %v8466, %v8478
      %v8510 = vmul.f32 %v8467, %v8478
      %v8511 = vmax.f32 %v8479, 0.0
      %v8512 = vmax.f32 %v8480, 0.0
      %v8513 = vmax.f32 %v8481, 0.0
      %v8514 = vmax.f32 %v8482, 0.0
      %v8515 = vmax.f32 %v8483, 0.0
      %v8516 = vmax.f32 %v8484, 0.0
      %v8517 = vmax.f32 %v8485, 0.0
      %v8518 = vmax.f32 %v8486, 0.0
      %v8519 = vmax.f32 %v8487, 0.0
      %v8520 = vmax.f32 %v8488, 0.0
      %v8521 = vmax.f32 %v8489, 0.0
      %v8522 = vmax.f32 %v8490, 0.0
      %v8523 = vmax.f32 %v8491, 0.0
      %v8524 = vmax.f32 %v8492, 0.0
      %v8525 = vmax.f32 %v8493, 0.0
      %v8526 = vmax.f32 %v8494, 0.0
      %v8527 = vmax.f32 %v8495, 0.0
      %v8528 = vmax.f32 %v8496, 0.0
      %v8529 = vmax.f32 %v8497, 0.0
      %v8530 = vmax.f32 %v8498, 0.0
      %v8531 = vmax.f32 %v8499, 0.0
      %v8532 = vmax.f32 %v8500, 0.0
      %v8533 = vmax.f32 %v8501, 0.0
      %v8534 = vmax.f32 %v8502, 0.0
      %v8535 = vmax.f32 %v8503, 0.0
      %v8536 = vmax.f32 %v8504, 0.0
      %v8537 = vmax.f32 %v8505, 0.0
      %v8538 = vmax.f32 %v8506, 0.0
      %v8539 = vmax.f32 %v8507, 0.0
      %v8540 = vmax.f32 %v8508, 0.0
      %v8541 = vmax.f32 %v8509, 0.0
      %v8542 = vmax.f32 %v8510, 0.0
      %8543 = vst.msk [vmem:[%s217] sm:$0xff] %vm1988, %v8511
      %8544 = vst.msk [vmem:[%s217 + $0x8] sm:$0xff] %vm1988, %v8512
      %8545 = vst.msk [vmem:[%s217 + $0x10] sm:$0xff] %vm1988, %v8513
      %8546 = vst.msk [vmem:[%s217 + $0x18] sm:$0xff] %vm1988, %v8514
      %8547 = vst.msk [vmem:[%s217 + $0x20] sm:$0xff] %vm1988, %v8515
      %8548 = vst.msk [vmem:[%s217 + $0x28] sm:$0xff] %vm1988, %v8516
      %8549 = vst.msk [vmem:[%s217 + $0x30] sm:$0xff] %vm1988, %v8517
      %8550 = vst.msk [vmem:[%s217 + $0x38] sm:$0xff] %vm1988, %v8518
      %8551 = vst.msk [vmem:[%s217 + $0x40] sm:$0xff] %vm1988, %v8519
      %8552 = vst.msk [vmem:[%s217 + $0x48] sm:$0xff] %vm1988, %v8520
      %8553 = vst.msk [vmem:[%s217 + $0x50] sm:$0xff] %vm1988, %v8521
      %8554 = vst.msk [vmem:[%s217 + $0x58] sm:$0xff] %vm1988, %v8522
      %8555 = vst.msk [vmem:[%s217 + $0x60] sm:$0xff] %vm1988, %v8523
      %8556 = vst.msk [vmem:[%s217 + $0x68] sm:$0xff] %vm1988, %v8524
      %8557 = vst.msk [vmem:[%s217 + $0x70] sm:$0xff] %vm1988, %v8525
      %8558 = vst.msk [vmem:[%s217 + $0x78] sm:$0xff] %vm1988, %v8526
      %8559 = vst.msk [vmem:[%s217 + $0x80] sm:$0xff] %vm1988, %v8527
      %8560 = vst.msk [vmem:[%s217 + $0x88] sm:$0xff] %vm1988, %v8528
      %8561 = vst.msk [vmem:[%s217 + $0x90] sm:$0xff] %vm1988, %v8529
      %8562 = vst.msk [vmem:[%s217 + $0x98] sm:$0xff] %vm1988, %v8530
      %8563 = vst.msk [vmem:[%s217 + $0xa0] sm:$0xff] %vm1988, %v8531
      %8564 = vst.msk [vmem:[%s217 + $0xa8] sm:$0xff] %vm1988, %v8532
      %8565 = vst.msk [vmem:[%s217 + $0xb0] sm:$0xff] %vm1988, %v8533
      %8566 = vst.msk [vmem:[%s217 + $0xb8] sm:$0xff] %vm1988, %v8534
      %8567 = vst.msk [vmem:[%s217 + $0xc0] sm:$0xff] %vm1988, %v8535
      %8568 = vst.msk [vmem:[%s217 + $0xc8] sm:$0xff] %vm1988, %v8536
      %8569 = vst.msk [vmem:[%s217 + $0xd0] sm:$0xff] %vm1988, %v8537
      %8570 = vst.msk [vmem:[%s217 + $0xd8] sm:$0xff] %vm1988, %v8538
      %8571 = vst.msk [vmem:[%s217 + $0xe0] sm:$0xff] %vm1988, %v8539
      %8572 = vst.msk [vmem:[%s217 + $0xe8] sm:$0xff] %vm1988, %v8540
      %8573 = vst.msk [vmem:[%s217 + $0xf0] sm:$0xff] %vm1988, %v8541
      %8574 = vst.msk [vmem:[%s217 + $0xf8] sm:$0xff] %vm1988, %v8542
      %p8575 = scmp.lt.s32.totalorder %s15, 1
      %s8576 = scalar_select %p8575, %s15, 1
      %s8577 = smul.addr %s8576, 32
      %s8578 = smul.addr %s8577, 8
      %s8579 = scalar_lea.vmem %s4, %s8578
      // Predicated region
      $region37: #{concat_forward.1} parent=35 // pred_check
        %p8580 = pneg %p127
      $region38: #{concat_forward.1} parent=35 // pred_check_branch
        %8582 = sbr.rel (%p8580) target = $region40
      $region39: #{concat_forward.1} parent=35 // pred_region
        _
      $region40: #{concat_forward.1} parent=35 // pred_fallthru
        _
    $region36: #{concat_forward.1} parent=5 // pred_fallthru
      _
    %p8583 = scmp.le.s32.totalorder 2, %s10
    // Predicated region
    $region41: #{concat_forward.1} parent=5 // pred_check
      %p8584 = pneg %p8583
    $region42: #{concat_forward.1} parent=5 // pred_check_branch
      %8586 = sbr.rel (%p8584) target = $region44
    $region43: #{concat_forward.1} parent=5 // pred_region
      %s8587 = ssub.s32 %s10, 2
      // Predicated region
      $region45: #{concat_forward.1} parent=43 // pred_check
        %p8588 = pneg %p133
      $region46: #{concat_forward.1} parent=43 // pred_check_branch
        %8590 = sbr.rel (%p8588) target = $region48
      $region47: #{concat_forward.1} parent=43 // pred_region
        %p8591 = scmp.lt.s32.totalorder %s16, 1
        %s8592 = scalar_select %p8591, %s16, 1
        %s8593 = smul.addr %s8592, 32
        %s8594 = smul.addr %s8593, 8
        %s8595 = scalar_lea.vmem %s4, %s8594
      $region48: #{concat_forward.1} parent=43 // pred_fallthru
        _
    $region44: #{concat_forward.1} parent=5 // pred_fallthru
      _
  $region6: #{concat_forward.1} parent=0 // loop_footer
    %s14 = sadd.s32 1, %s10
  $region7: #{concat_forward.1} parent=0 // loop_footer_branch
    %9 = sbr.rel target = $region3
  $region8: #{concat_forward.1} parent=0 // loop_exit
    _

</llo_original>
